<compile_context>
chip_gen: v7x
topology: tpu7x:2x2x1
jax: 0.10.0
libtpu: 0.0.40
codegen_flags: <defaults>
</compile_context>

<pallas_src>
import functools

import jax
import jax.numpy as jnp
from jax.experimental import pallas as pl
from jax.experimental.pallas import tpu as pltpu


def _round_up(x, m):
    return (x + m - 1) // m * m


@functools.lru_cache(maxsize=None)
def _vmem_budget():
    """(vmem_limit_bytes, per-call tile budget) from the local TPU generation.

    128 MiB parts (v5e/v6e) get ~100 MiB so the big-K 8*ngf layers keep 512-1024-row
    M tiles without K-tiling; 64 MiB parts (v7x) get 40 MiB and rely on the K-tiled path."""
    try:
        cap = int(pltpu.get_tpu_info().vmem_capacity_bytes)
    except Exception:
        cap = 64 * 1024 * 1024
    limit = max(32 * 1024 * 1024, min(cap - 24 * 1024 * 1024, 100 * 1024 * 1024))
    return limit, int(limit * 0.75)


def _choose_tiles(M, K, N, budget):
    """Pick (tm, tk, Kpad) for the GEMM pipeline.  N is already 128-padded.

    Pass-1 VMEM accounting (pass 2 only needs 8*tm*N bytes of bf16 in+out, which is
    always <= pass 1's tm*(4*tk + 8*N), so pass 1 governs the budget):
        weight  (tk, N)  bf16 double-buffered : 4*tk*N
        patches (tm, tk) bf16 double-buffered : 4*tm*tk
        y       (tm, N)  bf16 double-buffered : 4*tm*N
        acc     (tm, N)  f32  scratch         : 4*tm*N
        stats   2 x (8,N) f32 double-buffered : 128*N
    """
    if 4 * K * N + 128 * N <= budget // 2:
        tk, Kpad = K, K                             # whole reduction axis in one block
    else:
        # K-tile the reduction (innermost 'arbitrary' grid axis) so the weight tile fits
        # v7x's smaller VMEM; give the weight roughly a third of the budget.
        tk = ((budget // 3) // (4 * N)) // 128 * 128
        tk = max(128, min(tk, _round_up(K, 128)))
        Kpad = _round_up(K, tk)
    rows = (budget - 4 * tk * N - 128 * N) // (4 * tk + 8 * N)
    if rows >= 256:
        tm = min(rows // 256 * 256, 1024)           # 256-aligned: full MXU rows (v6e/v7x)
    elif rows >= 128:
        tm = 128
    else:
        tm = max(16, rows // 16 * 16)               # 16 = bf16 sublane-pack minimum
    # Rebalance so tiles evenly cover M (no oversized tail padding), keep 16-aligned.
    n_m = -(-M // tm)
    tm = max(16, _round_up(-(-M // n_m), 16))
    return tm, tk, Kpad


# ----------------------------------------------------------------------------
# Pallas kernels
# ----------------------------------------------------------------------------
def _gemm_stats_kernel(x_ref, w_ref, y_ref, s_ref, ss_ref, acc_ref, *, act, n_k):
    """One (tm, tk) x (tk, Npad) MXU step of the K-tiled conv GEMM.

    The pre-activation of the PyTorch block that precedes this conv is fused here on the
    bf16 patch tile (never a separate HBM pass; it can't live in the producer's BN pass
    because the raw BN outputs are returned features / skip inputs).  f32 accumulation
    lives in VMEM scratch across the innermost K axis; the last K step stores bf16 and
    emits per-channel sum / sum-of-squares for one-pass train-mode BatchNorm stats."""
    k = pl.program_id(2)

    @pl.when(k == 0)
    def _():
        acc_ref[...] = jnp.zeros_like(acc_ref)

    x = x_ref[0]
    if act == "leaky":
        x = jnp.where(x > 0, x, 0.2 * x)
    elif act == "relu":
        x = jnp.maximum(x, 0.0)
    acc_ref[...] += jnp.dot(x, w_ref[...], preferred_element_type=jnp.float32)

    @pl.when(k == n_k - 1)
    def _():
        y = acc_ref[...]
        y_ref[0] = y.astype(y_ref.dtype)
        s = jnp.sum(y, axis=0, keepdims=True)
        ss = jnp.sum(y * y, axis=0, keepdims=True)
        # Replicate the stats row to a full 8-sublane block for an aligned, unmasked store.
        s_ref[0] = jnp.broadcast_to(s, s_ref.shape[1:])
        ss_ref[0] = jnp.broadcast_to(ss, ss_ref.shape[1:])


def _scale_shift_kernel(y_ref, a_ref, b_ref, o_ref):
    """BatchNorm apply pass: bf16 in, f32 FMA, bf16 out, lane-dense (tm, Npad) tiles."""
    a = a_ref[0][:1]     # (1, N): the 8 replicated rows are identical
    b = b_ref[0][:1]
    o_ref[0] = (y_ref[0].astype(jnp.float32) * a + b).astype(o_ref.dtype)


# ----------------------------------------------------------------------------
# Fused conv-as-GEMM pipeline (+ optional train-mode BatchNorm2d)
# ----------------------------------------------------------------------------
def _fused_conv_gemm(patches, w_mat, gamma=None, beta=None, *, act=None,
                     phase_groups=1, eps=1e-5, budget_override=None):
    """patches: (S, M, K); w_mat: (K, Ncols). Returns ((S, Mpad, Npad) bf16, Npad).

    Padded rows/lanes are exactly zero, so callers may consume the padded tensor directly
    and unpad lazily (inside the next layer's patch-formation fusion or once at the end).
    If gamma/beta are given, applies PyTorch train-mode BatchNorm2d per branch s: channel
    statistics pooled over all M rows and `phase_groups` column groups (sub-pixel ConvT
    phases), biased variance, eps=1e-5.  `act` is the pre-activation of this conv's block."""
    S, M, K = patches.shape
    Ncols = w_mat.shape[1]
    Npad = _round_up(max(Ncols, 128), 128)          # lane-dense output -> unmasked vst
    limit, budget = _vmem_budget()
    if budget_override is not None:
        budget = budget_override
    tm, tk, Kpad = _choose_tiles(M, K, Npad, budget)
    n_k = Kpad // tk
    Mpad = _round_up(M, tm)
    n_m = Mpad // tm

    p = patches.astype(jnp.bfloat16)
    if Mpad != M or Kpad != K:
        p = jnp.pad(p, ((0, 0), (0, Mpad - M), (0, Kpad - K)))
    w = w_mat.astype(jnp.bfloat16)
    if Kpad != K or Npad != Ncols:
        w = jnp.pad(w, ((0, Kpad - K), (0, Npad - Ncols)))

    cparams3 = pltpu.CompilerParams(
        dimension_semantics=("parallel", "parallel", "arbitrary"),
        vmem_limit_bytes=limit)
    cparams2 = pltpu.CompilerParams(
        dimension_semantics=("parallel", "parallel"),
        vmem_limit_bytes=limit)

    kernel = functools.partial(_gemm_stats_kernel, act=act, n_k=n_k)
    y, sums, sumsq = pl.pallas_call(
        kernel,
        grid=(S, n_m, n_k),
        in_specs=[
            pl.BlockSpec((1, tm, tk), lambda s, i, k: (s, i, k)),
            pl.BlockSpec((tk, Npad), lambda s, i, k: (k, 0)),
        ],
        out_specs=[
            pl.BlockSpec((1, tm, Npad), lambda s, i, k: (s, i, 0)),
            pl.BlockSpec((1, 8, Npad), lambda s, i, k: (s, i, 0)),
            pl.BlockSpec((1, 8, Npad), lambda s, i, k: (s, i, 0)),
        ],
        out_shape=[
            jax.ShapeDtypeStruct((S, Mpad, Npad), jnp.bfloat16),
            jax.ShapeDtypeStruct((S, n_m * 8, Npad), jnp.float32),
            jax.ShapeDtypeStruct((S, n_m * 8, Npad), jnp.float32),
        ],
        scratch_shapes=[pltpu.VMEM((tm, Npad), jnp.float32)],
        compiler_params=cparams3,
    )(p, w)

    if gamma is None:
        return y, Npad

    # ---- finish the two-phase BatchNorm: reduce per-tile stats, fold into scale/shift ----
    cout = Ncols // phase_groups
    count = float(M * phase_groups)                 # zero-padded rows contribute 0 to sums
    tile_s = sums.reshape(S, n_m, 8, Npad)[:, :, 0, :Ncols]
    tile_ss = sumsq.reshape(S, n_m, 8, Npad)[:, :, 0, :Ncols]
    s_c = tile_s.sum(axis=1).reshape(S, phase_groups, cout).sum(axis=1)
    ss_c = tile_ss.sum(axis=1).reshape(S, phase_groups, cout).sum(axis=1)
    mean = s_c / count
    var = jnp.maximum(ss_c / count - mean * mean, 0.0)    # one-pass biased var, f32, clamped
    scale_c = gamma[None, :] * jax.lax.rsqrt(var + eps)   # (S, cout)
    shift_c = beta[None, :] - mean * scale_c
    scale = jnp.pad(jnp.tile(scale_c, (1, phase_groups)), ((0, 0), (0, Npad - Ncols)))
    shift = jnp.pad(jnp.tile(shift_c, (1, phase_groups)), ((0, 0), (0, Npad - Ncols)))
    scale8 = jnp.broadcast_to(scale[:, None, :], (S, 8, Npad)).astype(jnp.float32)
    shift8 = jnp.broadcast_to(shift[:, None, :], (S, 8, Npad)).astype(jnp.float32)

    out = pl.pallas_call(
        _scale_shift_kernel,
        grid=(S, n_m),
        in_specs=[
            pl.BlockSpec((1, tm, Npad), lambda s, i: (s, i, 0)),
            pl.BlockSpec((1, 8, Npad), lambda s, i: (s, 0, 0)),
            pl.BlockSpec((1, 8, Npad), lambda s, i: (s, 0, 0)),
        ],
        out_specs=pl.BlockSpec((1, tm, Npad), lambda s, i: (s, i, 0)),
        out_shape=jax.ShapeDtypeStruct((S, Mpad, Npad), jnp.bfloat16),
        input_output_aliases={0: 0},                # reuse pass-1's y buffer in place
        compiler_params=cparams2,
    )(y, scale8, shift8)
    return out, Npad


# ----------------------------------------------------------------------------
# Plain-JAX glue: im2col (fuses the lazy channel/row unpad of the producer), conv wrappers
# ----------------------------------------------------------------------------
def _im2col(x_nhwc, k, s, p):
    # TODO(synk): replace with in-kernel patch formation (manual DMA over NHWC rows) to
    # remove the k*k/s*s HBM inflation of the patch tensor entirely.
    B, H, W, C = x_nhwc.shape
    xp = jnp.pad(x_nhwc, ((0, 0), (p, p), (p, p), (0, 0)))
    Ho = (H + 2 * p - k) // s + 1
    Wo = (W + 2 * p - k) // s + 1
    cols = []
    for di in range(k):
        for dj in range(k):
            cols.append(xp[:, di: di + (Ho - 1) * s + 1: s,
                           dj: dj + (Wo - 1) * s + 1: s, :])
    patches = jnp.stack(cols, axis=3)                    # (B, Ho, Wo, k*k, C)
    return patches.reshape(B * Ho * Wo, k * k * C), (Ho, Wo)


def conv4x4_s2(x, w_oihw, gamma=None, beta=None, act=None):
    """Conv2d(cin->cout, k=4, s=2, p=1, bias=False) on a (possibly channel-padded) input
    x: (S, B, H, W, Cp) with Cp >= cin (extra channels are zero and are sliced off inside
    the patch-formation fusion).  Optional fused pre-activation and train-mode BN.
    Returns ((S, B, Ho, Wo, Npad) bf16 padded activation, cout)."""
    S, B, H, W, Cp = x.shape
    cout, cin = w_oihw.shape[0], w_oihw.shape[1]
    assert Cp >= cin
    xs = x[..., :cin] if Cp != cin else x            # fuses into the im2col producer fusion
    patches, (Ho, Wo) = _im2col(xs.reshape(S * B, H, W, cin).astype(jnp.bfloat16), 4, 2, 1)
    patches = patches.reshape(S, B * Ho * Wo, 16 * cin)
    w_mat = jnp.transpose(w_oihw, (2, 3, 1, 0)).reshape(16 * cin, cout)   # (kh,kw,Cin,Cout)
    out, Npad = _fused_conv_gemm(patches, w_mat, gamma, beta, act=act)
    M = B * Ho * Wo
    if out.shape[1] != M:
        out = out[:, :M]                             # only tiny deep layers pad M rows
    return out.reshape(S, B, Ho, Wo, Npad), cout


def _convT_phase_weights(wt_iokk):
    """ConvTranspose2d(4,2,1) weight (Cin,Cout,4,4) -> equivalent 3x3 stride-1 weight
    (9*Cin, 4*Cout) emitting all 4 sub-pixel phases; columns ordered (phase_y, phase_x, Cout).

    out[2i+a, 2j+b] uses taps:  a=0 -> (row i-1, ky=3), (row i, ky=1)
                                a=1 -> (row i,   ky=2), (row i+1, ky=0)   (same for columns)."""
    cin, cout = wt_iokk.shape[0], wt_iokk.shape[1]
    taps = {0: ((0, 3), (1, 1)), 1: ((1, 2), (2, 0))}    # phase -> ((3x3 window idx, tap), ...)
    w9 = jnp.zeros((3, 3, cin, 2, 2, cout), wt_iokk.dtype)
    for a in (0, 1):
        for b in (0, 1):
            for r, ky in taps[a]:
                for c, kx in taps[b]:
                    w9 = w9.at[r, c, :, a, b, :].set(wt_iokk[:, :, ky, kx])
    return w9.reshape(9 * cin, 4 * cout)


def convT4x4_s2(x, wt_iokk, gamma=None, beta=None, act=None):
    """ConvTranspose2d(cin, cout, k=4, s=2, p=1, bias=False) via sub-pixel decomposition:
    one 3x3 stride-1 GEMM produces all 4 output phases (N = 4*cout lanes), avoiding the
    75%-zero dilated-input GEMM.  Optional fused ReLU pre-activation and train-mode BN."""
    S, B, H, W, Cp = x.shape
    cin, cout = wt_iokk.shape[0], wt_iokk.shape[1]
    assert Cp >= cin
    xs = x[..., :cin] if Cp != cin else x
    patches, _ = _im2col(xs.reshape(S * B, H, W, cin).astype(jnp.bfloat16), 3, 1, 1)
    patches = patches.reshape(S, B * H * W, 9 * cin)
    w_mat = _convT_phase_weights(wt_iokk)
    out, Npad = _fused_conv_gemm(patches, w_mat, gamma, beta, phase_groups=4, act=act)
    M = B * H * W
    if out.shape[1] != M:
        out = out[:, :M]
    if Npad != 4 * cout:
        out = out[..., :4 * cout]
    out = out.reshape(S, B, H, W, 2, 2, cout)
    # TODO(synk): fold this sub-pixel interleave into the next consumer's patch formation.
    out = out.transpose(0, 1, 2, 4, 3, 5, 6).reshape(S, B, 2 * H, 2 * W, cout)
    return out, cout


# ----------------------------------------------------------------------------
# Parameter construction (deterministic; BatchNorm -> all conv bias=False)
# ----------------------------------------------------------------------------
def _conv_w(key, cout, cin, k=4):
    return 0.02 * jax.random.normal(key, (cout, cin, k, k), jnp.float32)


def _convT_w(key, cin, cout, k=4):
    return 0.02 * jax.random.normal(key, (cin, cout, k, k), jnp.float32)


def _bn(key, c):
    k1, k2 = jax.random.split(key)
    return (1.0 + 0.1 * jax.random.normal(k1, (c,), jnp.float32),
            0.1 * jax.random.normal(k2, (c,), jnp.float32))


def init_params(key, input_nc, num_downs, ngf):
    keys = iter(jax.random.split(key, 64))
    p = {}
    p["outer_w"] = _conv_w(next(keys), ngf, input_nc)
    p["d2_w"] = _conv_w(next(keys), 2 * ngf, ngf)
    p["d2_g"], p["d2_b"] = _bn(next(keys), 2 * ngf)
    p["d4_w"] = _conv_w(next(keys), 4 * ngf, 2 * ngf)
    p["d4_g"], p["d4_b"] = _bn(next(keys), 4 * ngf)
    p["d8_w"] = _conv_w(next(keys), 8 * ngf, 4 * ngf)
    p["d8_g"], p["d8_b"] = _bn(next(keys), 8 * ngf)
    # innermost UNet block: down=[Leaky, Conv(8ngf->8ngf)]  up=[ReLU, ConvT(8ngf->8ngf), BN]
    inner = {"down_w": _conv_w(next(keys), 8 * ngf, 8 * ngf),
             "up_w": _convT_w(next(keys), 8 * ngf, 8 * ngf)}
    inner["up_g"], inner["up_b"] = _bn(next(keys), 8 * ngf)
    p["inner"] = inner
    # middle UNet blocks (num_downs - 5): down=[Leaky, Conv(8ngf->8ngf), BN]
    #                                     up  =[ReLU, ConvT(16ngf->8ngf), BN]
    mids = []
    for _ in range(num_downs - 5):
        m = {"down_w": _conv_w(next(keys), 8 * ngf, 8 * ngf),
             "up_w": _convT_w(next(keys), 16 * ngf, 8 * ngf)}
        m["down_g"], m["down_b"] = _bn(next(keys), 8 * ngf)
        m["up_g"], m["up_b"] = _bn(next(keys), 8 * ngf)
        mids.append(m)
    p["mids"] = mids
    return p


# ----------------------------------------------------------------------------
# UNet skip blocks + MixNetEncode forward
# ----------------------------------------------------------------------------
def unet_innermost(x, xc, p):
    d, dc = conv4x4_s2(x, p["down_w"], act="leaky")                          # Conv(Leaky(x)), no BN
    u, uc = convT4x4_s2(d, p["up_w"], p["up_g"], p["up_b"], act="relu")      # BN(ConvT(ReLU(d)))
    skip = jnp.concatenate([x[..., :xc].astype(u.dtype), u], axis=-1)        # 16*ngf channels
    return skip, xc + uc


def unet_middle(x, xc, p, sub_fn):
    d, dc = conv4x4_s2(x, p["down_w"], p["down_g"], p["down_b"], act="leaky")
    s, sc = sub_fn(d, dc)
    u, uc = convT4x4_s2(s, p["up_w"], p["up_g"], p["up_b"], act="relu")
    skip = jnp.concatenate([x[..., :xc].astype(u.dtype), u], axis=-1)
    return skip, xc + uc


def build_inner_blocks(params):
    fn = lambda t, c: unet_innermost(t, c, params["inner"])
    for m in params["mids"]:
        prev = fn
        fn = (lambda t, c, m=m, prev=prev: unet_middle(t, c, m, prev))
    return fn


def mixnet_encode(params, x, y, ngf):
    inner_fn = build_inner_blocks(params)
    # Stack x and y on a leading "branch" axis: one Pallas launch per layer for both
    # branches, while BN stats stay per-branch (per-s) so the train-mode semantics match
    # running the PyTorch encoder on x and y separately.  Intermediates stay bf16 and
    # channel-padded between layers; returned features are unpadded / cast once at the end.
    inp = jnp.stack([x, y], axis=0)                                          # (2, B, H, W, C)
    f1, c1 = conv4x4_s2(inp, params["outer_w"])                                          # outerencoder
    f2, c2 = conv4x4_s2(f1, params["d2_w"], params["d2_g"], params["d2_b"], act="leaky")
    f4, c4 = conv4x4_s2(f2, params["d4_w"], params["d4_g"], params["d4_b"], act="leaky")
    f8, c8 = conv4x4_s2(f4, params["d8_w"], params["d8_g"], params["d8_b"], act="leaky")
    dec, _ = inner_fn(f8, c8)
    dec8 = dec[..., c8: c8 + 8 * ngf]               # drop the identity half of the skip concat

    def fin(t, c):
        return t[..., :c].astype(jnp.float32)

    return {
        "x_ngf": fin(f1[0], c1), "x_2ngf": fin(f2[0], c2),
        "x_4ngf": fin(f4[0], c4), "x_8ngf": fin(f8[0], c8),
        "x_dec8ngf": dec8[0].astype(jnp.float32),
        "y_ngf": fin(f1[1], c1), "y_2ngf": fin(f2[1], c2),
        "y_4ngf": fin(f4[1], c4), "y_8ngf": fin(f8[1], c8),
        "y_dec8ngf": dec8[1].astype(jnp.float32),
    }


# ----------------------------------------------------------------------------
def _bn_gemm_ref(x, w, gamma, beta, act, eps=1e-5):
    """Pure-JAX f32 reference of one fused pre-act -> GEMM -> train-mode-BN layer."""
    if act == "leaky":
        x = jnp.where(x > 0, x, 0.2 * x)
    elif act == "relu":
        x = jnp.maximum(x, 0.0)
    y = jnp.einsum("smk,kn->smn", x, w)
    mean = y.mean(axis=1, keepdims=True)
    var = ((y - mean) ** 2).mean(axis=1, keepdims=True)
    return (y - mean) * jax.lax.rsqrt(var + eps) * gamma + beta


if __name__ == "__main__":
    # Small, module-consistent config: num_downs=5 (no middle blocks), ngf=8,
    # input_nc=3, batch=2, 32x32 spatial (NHWC).
    INPUT_NC, NUM_DOWNS, NGF = 3, 5, 8
    key = jax.random.PRNGKey(0)
    kp, kx, ky = jax.random.split(key, 3)

    params = init_params(kp, INPUT_NC, NUM_DOWNS, NGF)
    x = jax.random.normal(kx, (2, 32, 32, INPUT_NC), jnp.float32)
    y = jax.random.normal(ky, (2, 32, 32, INPUT_NC), jnp.float32)

    encode = jax.jit(mixnet_encode, static_argnums=(3,))
    feats = encode(params, x, y, NGF)
    jax.block_until_ready(feats)

    expected = {
        "x_ngf": (2, 16, 16, NGF), "x_2ngf": (2, 8, 8, 2 * NGF),
        "x_4ngf": (2, 4, 4, 4 * NGF), "x_8ngf": (2, 2, 2, 8 * NGF),
        "x_dec8ngf": (2, 2, 2, 8 * NGF),
    }
    for k_, shp in expected.items():
        assert feats[k_].shape == shp, (k_, feats[k_].shape, shp)
        assert feats["y" + k_[1:]].shape == shp

    # --- self-check: force the K-tiled accumulator path (n_k > 1, n_m > 1), which the tiny
    #     demo layers don't exercise, and compare against a pure-JAX f32 reference. ---
    tkeys = jax.random.split(jax.random.PRNGKey(1), 4)
    S_, M_, K_, N_ = 2, 256, 512, 256
    tp = jax.random.normal(tkeys[0], (S_, M_, K_), jnp.float32)
    tw = 0.05 * jax.random.normal(tkeys[1], (K_, N_), jnp.float32)
    tg = 1.0 + 0.1 * jax.random.normal(tkeys[2], (N_,), jnp.float32)
    tb = 0.1 * jax.random.normal(tkeys[3], (N_,), jnp.float32)
    got, _ = _fused_conv_gemm(tp, tw, tg, tb, act="leaky",
                              budget_override=900_000)        # -> tm=128, tk=256, n_k=2
    ref = _bn_gemm_ref(tp, tw, tg, tb, act="leaky")
    err = float(jnp.max(jnp.abs(got[:, :M_, :N_].astype(jnp.float32) - ref)))
    assert err < 0.25, f"K-tiled GEMM+BN mismatch: max abs err {err}"

    print("KERNEL_OK")
</pallas_src>

<mosaic_0001>
module attributes {stable_mosaic.version = 11 : i64} {
  func.func @_gemm_stats_kernel(%arg0: i32, %arg1: i32, %arg2: i32, %arg3: memref<1x512x48xbf16, #tpu.memory_space<vmem>>, %arg4: memref<48x128xbf16, #tpu.memory_space<vmem>>, %arg5: memref<1x512x128xbf16, #tpu.memory_space<vmem>>, %arg6: memref<1x8x128xf32, #tpu.memory_space<vmem>>, %arg7: memref<1x8x128xf32, #tpu.memory_space<vmem>>, %arg8: memref<512x128xf32, #tpu.memory_space<vmem>>) attributes {dimension_semantics = [#tpu.dimension_semantics<parallel>, #tpu.dimension_semantics<parallel>, #tpu.dimension_semantics<arbitrary>], iteration_bounds = array<i64: 2, 1, 1>, scalar_prefetch = 0 : i64, scratch_operands = 1 : i64, tpu.core_type = #tpu.core_type<tc>, window_params = [{transform_indices = @transform_0, window_bounds = array<i64: 1, 512, 48>}, {transform_indices = @transform_1, window_bounds = array<i64: 48, 128>}, {transform_indices = @transform_2, window_bounds = array<i64: 1, 512, 128>}, {transform_indices = @transform_3, window_bounds = array<i64: 1, 8, 128>}, {transform_indices = @transform_4, window_bounds = array<i64: 1, 8, 128>}]} {
    %c0_i32 = arith.constant 0 : i32
    %0 = arith.cmpi eq, %arg2, %c0_i32 : i32
    %1 = arith.extui %0 : i1 to i32
    %c0_i32_0 = arith.constant 0 : i32
    %2 = arith.cmpi ne, %1, %c0_i32_0 : i32
    scf.if %2 {
      %cst_11 = arith.constant 0.000000e+00 : f32
      %13 = vector.broadcast %cst_11 : f32 to vector<512x128xf32>
      %c0_12 = arith.constant 0 : index
      %c0_13 = arith.constant 0 : index
      %14 = vector.load %arg8[%c0_12, %c0_13] : memref<512x128xf32, #tpu.memory_space<vmem>>, vector<512x128xf32>
      tpu.vector_store %arg8[%c0_12, %c0_13], %13 {strides = array<i32>} : memref<512x128xf32, #tpu.memory_space<vmem>>, vector<512x128xf32>,
    } else {
    }
    %c0 = arith.constant 0 : index
    %c0_1 = arith.constant 0 : index
    %c0_2 = arith.constant 0 : index
    %3 = vector.load %arg3[%c0, %c0_1, %c0_2] : memref<1x512x48xbf16, #tpu.memory_space<vmem>>, vector<1x512x48xbf16>
    %4 = vector.shape_cast %3 : vector<1x512x48xbf16> to vector<512x48xbf16>
    %c0_3 = arith.constant 0 : index
    %c0_4 = arith.constant 0 : index
    %5 = vector.load %arg8[%c0_3, %c0_4] : memref<512x128xf32, #tpu.memory_space<vmem>>, vector<512x128xf32>
    %c0_5 = arith.constant 0 : index
    %c0_6 = arith.constant 0 : index
    %6 = vector.load %arg4[%c0_5, %c0_6] : memref<48x128xbf16, #tpu.memory_space<vmem>>, vector<48x128xbf16>
    %cst = arith.constant dense<0.000000e+00> : vector<512x128xf32>
    %7 = tpu.matmul %4, %6, %cst {dimension_numbers = #tpu.dot_dimension_numbers<[1], [0], [0], [1], [0, 0, 1, 1], [], []>} : vector<512x48xbf16>, vector<48x128xbf16>, vector<512x128xf32> -> vector<512x128xf32>
    %8 = arith.addf %5, %7 : vector<512x128xf32>
    %c0_7 = arith.constant 0 : index
    %c0_8 = arith.constant 0 : index
    %9 = vector.load %arg8[%c0_7, %c0_8] : memref<512x128xf32, #tpu.memory_space<vmem>>, vector<512x128xf32>
    tpu.vector_store %arg8[%c0_7, %c0_8], %8 {strides = array<i32>} : memref<512x128xf32, #tpu.memory_space<vmem>>, vector<512x128xf32>,
    %c0_i32_9 = arith.constant 0 : i32
    %10 = arith.cmpi eq, %arg2, %c0_i32_9 : i32
    %11 = arith.extui %10 : i1 to i32
    %c0_i32_10 = arith.constant 0 : i32
    %12 = arith.cmpi ne, %11, %c0_i32_10 : i32
    scf.if %12 {
      %c0_11 = arith.constant 0 : index
      %c0_12 = arith.constant 0 : index
      %13 = vector.load %arg8[%c0_11, %c0_12] : memref<512x128xf32, #tpu.memory_space<vmem>>, vector<512x128xf32>
      %14 = arith.truncf %13 : vector<512x128xf32> to vector<512x128xbf16>
      %c0_13 = arith.constant 0 : index
      %c0_14 = arith.constant 0 : index
      %c0_15 = arith.constant 0 : index
      %15 = vector.load %arg5[%c0_13, %c0_14, %c0_15] : memref<1x512x128xbf16, #tpu.memory_space<vmem>>, vector<1x512x128xbf16>
      %16 = vector.shape_cast %15 : vector<1x512x128xbf16> to vector<512x128xbf16>
      %17 = vector.shape_cast %14 : vector<512x128xbf16> to vector<1x512x128xbf16>
      tpu.vector_store %arg5[%c0_13, %c0_14, %c0_15], %17 {strides = array<i32>} : memref<1x512x128xbf16, #tpu.memory_space<vmem>>, vector<1x512x128xbf16>,
      %cst_16 = arith.constant dense<0.000000e+00> : vector<128xf32>
      %18 = vector.multi_reduction <add>, %13, %cst_16 [0] : vector<512x128xf32> to vector<128xf32>
      %19 = vector.shape_cast %18 : vector<128xf32> to vector<1x128xf32>
      %20 = arith.mulf %13, %13 : vector<512x128xf32>
      %cst_17 = arith.constant dense<0.000000e+00> : vector<128xf32>
      %21 = vector.multi_reduction <add>, %20, %cst_17 [0] : vector<512x128xf32> to vector<128xf32>
      %22 = vector.shape_cast %21 : vector<128xf32> to vector<1x128xf32>
      %23 = vector.shape_cast %19 : vector<1x128xf32> to vector<1x128xf32>
      %24 = vector.broadcast %23 : vector<1x128xf32> to vector<8x128xf32>
      %c0_18 = arith.constant 0 : index
      %c0_19 = arith.constant 0 : index
      %c0_20 = arith.constant 0 : index
      %25 = vector.load %arg6[%c0_18, %c0_19, %c0_20] : memref<1x8x128xf32, #tpu.memory_space<vmem>>, vector<1x8x128xf32>
      %26 = vector.shape_cast %25 : vector<1x8x128xf32> to vector<8x128xf32>
      %27 = vector.shape_cast %24 : vector<8x128xf32> to vector<1x8x128xf32>
      tpu.vector_store %arg6[%c0_18, %c0_19, %c0_20], %27 {strides = array<i32>} : memref<1x8x128xf32, #tpu.memory_space<vmem>>, vector<1x8x128xf32>,
      %28 = vector.shape_cast %22 : vector<1x128xf32> to vector<1x128xf32>
      %29 = vector.broadcast %28 : vector<1x128xf32> to vector<8x128xf32>
      %c0_21 = arith.constant 0 : index
      %c0_22 = arith.constant 0 : index
      %c0_23 = arith.constant 0 : index
      %30 = vector.load %arg7[%c0_21, %c0_22, %c0_23] : memref<1x8x128xf32, #tpu.memory_space<vmem>>, vector<1x8x128xf32>
      %31 = vector.shape_cast %30 : vector<1x8x128xf32> to vector<8x128xf32>
      %32 = vector.shape_cast %29 : vector<8x128xf32> to vector<1x8x128xf32>
      tpu.vector_store %arg7[%c0_21, %c0_22, %c0_23], %32 {strides = array<i32>} : memref<1x8x128xf32, #tpu.memory_space<vmem>>, vector<1x8x128xf32>,
    } else {
    }
    return
  }
  func.func @transform_0(%arg0: i32, %arg1: i32, %arg2: i32) -> (i32, i32, i32) {
    %c0_i32 = arith.constant 0 : i32
    return %arg0, %arg1, %arg2 : i32, i32, i32
  }
  func.func @transform_1(%arg0: i32, %arg1: i32, %arg2: i32) -> (i32, i32) {
    %c0_i32 = arith.constant 0 : i32
    %c0_i32_0 = arith.constant 0 : i32
    return %arg2, %c0_i32 : i32, i32
  }
  func.func @transform_2(%arg0: i32, %arg1: i32, %arg2: i32) -> (i32, i32, i32) {
    %c0_i32 = arith.constant 0 : i32
    %c0_i32_0 = arith.constant 0 : i32
    return %arg0, %arg1, %c0_i32 : i32, i32, i32
  }
  func.func @transform_3(%arg0: i32, %arg1: i32, %arg2: i32) -> (i32, i32, i32) {
    %c0_i32 = arith.constant 0 : i32
    %c0_i32_0 = arith.constant 0 : i32
    return %arg0, %arg1, %c0_i32 : i32, i32, i32
  }
  func.func @transform_4(%arg0: i32, %arg1: i32, %arg2: i32) -> (i32, i32, i32) {
    %c0_i32 = arith.constant 0 : i32
    %c0_i32_0 = arith.constant 0 : i32
    return %arg0, %arg1, %c0_i32 : i32, i32, i32
  }
}

module attributes {stable_mosaic.version = 11 : i64} {
  func.func @_gemm_stats_kernel(%arg0: i32, %arg1: i32, %arg2: i32, %arg3: memref<1x128x128xbf16, #tpu.memory_space<vmem>>, %arg4: memref<128x128xbf16, #tpu.memory_space<vmem>>, %arg5: memref<1x128x128xbf16, #tpu.memory_space<vmem>>, %arg6: memref<1x8x128xf32, #tpu.memory_space<vmem>>, %arg7: memref<1x8x128xf32, #tpu.memory_space<vmem>>, %arg8: memref<128x128xf32, #tpu.memory_space<vmem>>) attributes {dimension_semantics = [#tpu.dimension_semantics<parallel>, #tpu.dimension_semantics<parallel>, #tpu.dimension_semantics<arbitrary>], iteration_bounds = array<i64: 2, 1, 1>, scalar_prefetch = 0 : i64, scratch_operands = 1 : i64, tpu.core_type = #tpu.core_type<tc>, window_params = [{transform_indices = @transform_0, window_bounds = array<i64: 1, 128, 128>}, {transform_indices = @transform_1, window_bounds = array<i64: 128, 128>}, {transform_indices = @transform_2, window_bounds = array<i64: 1, 128, 128>}, {transform_indices = @transform_3, window_bounds = array<i64: 1, 8, 128>}, {transform_indices = @transform_4, window_bounds = array<i64: 1, 8, 128>}]} {
    %c0_i32 = arith.constant 0 : i32
    %0 = arith.cmpi eq, %arg2, %c0_i32 : i32
    %1 = arith.extui %0 : i1 to i32
    %c0_i32_0 = arith.constant 0 : i32
    %2 = arith.cmpi ne, %1, %c0_i32_0 : i32
    scf.if %2 {
      %cst_13 = arith.constant 0.000000e+00 : f32
      %18 = vector.broadcast %cst_13 : f32 to vector<128x128xf32>
      %c0_14 = arith.constant 0 : index
      %c0_15 = arith.constant 0 : index
      %19 = vector.load %arg8[%c0_14, %c0_15] : memref<128x128xf32, #tpu.memory_space<vmem>>, vector<128x128xf32>
      tpu.vector_store %arg8[%c0_14, %c0_15], %18 {strides = array<i32>} : memref<128x128xf32, #tpu.memory_space<vmem>>, vector<128x128xf32>,
    } else {
    }
    %c0 = arith.constant 0 : index
    %c0_1 = arith.constant 0 : index
    %c0_2 = arith.constant 0 : index
    %3 = vector.load %arg3[%c0, %c0_1, %c0_2] : memref<1x128x128xbf16, #tpu.memory_space<vmem>>, vector<1x128x128xbf16>
    %4 = vector.shape_cast %3 : vector<1x128x128xbf16> to vector<128x128xbf16>
    %cst = arith.constant 0.000000e+00 : bf16
    %5 = vector.broadcast %cst : bf16 to vector<128x128xbf16>
    %6 = arith.cmpf ogt, %4, %5 : vector<128x128xbf16>
    %cst_3 = arith.constant 2.001950e-01 : bf16
    %7 = vector.broadcast %cst_3 : bf16 to vector<128x128xbf16>
    %8 = arith.mulf %7, %4 : vector<128x128xbf16>
    %9 = arith.select %6, %4, %8 : vector<128x128xi1>, vector<128x128xbf16>
    %c0_4 = arith.constant 0 : index
    %c0_5 = arith.constant 0 : index
    %10 = vector.load %arg8[%c0_4, %c0_5] : memref<128x128xf32, #tpu.memory_space<vmem>>, vector<128x128xf32>
    %c0_6 = arith.constant 0 : index
    %c0_7 = arith.constant 0 : index
    %11 = vector.load %arg4[%c0_6, %c0_7] : memref<128x128xbf16, #tpu.memory_space<vmem>>, vector<128x128xbf16>
    %cst_8 = arith.constant dense<0.000000e+00> : vector<128x128xf32>
    %12 = tpu.matmul %9, %11, %cst_8 {dimension_numbers = #tpu.dot_dimension_numbers<[1], [0], [0], [1], [0, 0, 1, 1], [], []>} : vector<128x128xbf16>, vector<128x128xbf16>, vector<128x128xf32> -> vector<128x128xf32>
    %13 = arith.addf %10, %12 : vector<128x128xf32>
    %c0_9 = arith.constant 0 : index
    %c0_10 = arith.constant 0 : index
    %14 = vector.load %arg8[%c0_9, %c0_10] : memref<128x128xf32, #tpu.memory_space<vmem>>, vector<128x128xf32>
    tpu.vector_store %arg8[%c0_9, %c0_10], %13 {strides = array<i32>} : memref<128x128xf32, #tpu.memory_space<vmem>>, vector<128x128xf32>,
    %c0_i32_11 = arith.constant 0 : i32
    %15 = arith.cmpi eq, %arg2, %c0_i32_11 : i32
    %16 = arith.extui %15 : i1 to i32
    %c0_i32_12 = arith.constant 0 : i32
    %17 = arith.cmpi ne, %16, %c0_i32_12 : i32
    scf.if %17 {
      %c0_13 = arith.constant 0 : index
      %c0_14 = arith.constant 0 : index
      %18 = vector.load %arg8[%c0_13, %c0_14] : memref<128x128xf32, #tpu.memory_space<vmem>>, vector<128x128xf32>
      %19 = arith.truncf %18 : vector<128x128xf32> to vector<128x128xbf16>
      %c0_15 = arith.constant 0 : index
      %c0_16 = arith.constant 0 : index
      %c0_17 = arith.constant 0 : index
      %20 = vector.load %arg5[%c0_15, %c0_16, %c0_17] : memref<1x128x128xbf16, #tpu.memory_space<vmem>>, vector<1x128x128xbf16>
      %21 = vector.shape_cast %20 : vector<1x128x128xbf16> to vector<128x128xbf16>
      %22 = vector.shape_cast %19 : vector<128x128xbf16> to vector<1x128x128xbf16>
      tpu.vector_store %arg5[%c0_15, %c0_16, %c0_17], %22 {strides = array<i32>} : memref<1x128x128xbf16, #tpu.memory_space<vmem>>, vector<1x128x128xbf16>,
      %cst_18 = arith.constant dense<0.000000e+00> : vector<128xf32>
      %23 = vector.multi_reduction <add>, %18, %cst_18 [0] : vector<128x128xf32> to vector<128xf32>
      %24 = vector.shape_cast %23 : vector<128xf32> to vector<1x128xf32>
      %25 = arith.mulf %18, %18 : vector<128x128xf32>
      %cst_19 = arith.constant dense<0.000000e+00> : vector<128xf32>
      %26 = vector.multi_reduction <add>, %25, %cst_19 [0] : vector<128x128xf32> to vector<128xf32>
      %27 = vector.shape_cast %26 : vector<128xf32> to vector<1x128xf32>
      %28 = vector.shape_cast %24 : vector<1x128xf32> to vector<1x128xf32>
      %29 = vector.broadcast %28 : vector<1x128xf32> to vector<8x128xf32>
      %c0_20 = arith.constant 0 : index
      %c0_21 = arith.constant 0 : index
      %c0_22 = arith.constant 0 : index
      %30 = vector.load %arg6[%c0_20, %c0_21, %c0_22] : memref<1x8x128xf32, #tpu.memory_space<vmem>>, vector<1x8x128xf32>
      %31 = vector.shape_cast %30 : vector<1x8x128xf32> to vector<8x128xf32>
      %32 = vector.shape_cast %29 : vector<8x128xf32> to vector<1x8x128xf32>
      tpu.vector_store %arg6[%c0_20, %c0_21, %c0_22], %32 {strides = array<i32>} : memref<1x8x128xf32, #tpu.memory_space<vmem>>, vector<1x8x128xf32>,
      %33 = vector.shape_cast %27 : vector<1x128xf32> to vector<1x128xf32>
      %34 = vector.broadcast %33 : vector<1x128xf32> to vector<8x128xf32>
      %c0_23 = arith.constant 0 : index
      %c0_24 = arith.constant 0 : index
      %c0_25 = arith.constant 0 : index
      %35 = vector.load %arg7[%c0_23, %c0_24, %c0_25] : memref<1x8x128xf32, #tpu.memory_space<vmem>>, vector<1x8x128xf32>
      %36 = vector.shape_cast %35 : vector<1x8x128xf32> to vector<8x128xf32>
      %37 = vector.shape_cast %34 : vector<8x128xf32> to vector<1x8x128xf32>
      tpu.vector_store %arg7[%c0_23, %c0_24, %c0_25], %37 {strides = array<i32>} : memref<1x8x128xf32, #tpu.memory_space<vmem>>, vector<1x8x128xf32>,
    } else {
    }
    return
  }
  func.func @transform_0(%arg0: i32, %arg1: i32, %arg2: i32) -> (i32, i32, i32) {
    %c0_i32 = arith.constant 0 : i32
    return %arg0, %arg1, %arg2 : i32, i32, i32
  }
  func.func @transform_1(%arg0: i32, %arg1: i32, %arg2: i32) -> (i32, i32) {
    %c0_i32 = arith.constant 0 : i32
    %c0_i32_0 = arith.constant 0 : i32
    return %arg2, %c0_i32 : i32, i32
  }
  func.func @transform_2(%arg0: i32, %arg1: i32, %arg2: i32) -> (i32, i32, i32) {
    %c0_i32 = arith.constant 0 : i32
    %c0_i32_0 = arith.constant 0 : i32
    return %arg0, %arg1, %c0_i32 : i32, i32, i32
  }
  func.func @transform_3(%arg0: i32, %arg1: i32, %arg2: i32) -> (i32, i32, i32) {
    %c0_i32 = arith.constant 0 : i32
    %c0_i32_0 = arith.constant 0 : i32
    return %arg0, %arg1, %c0_i32 : i32, i32, i32
  }
  func.func @transform_4(%arg0: i32, %arg1: i32, %arg2: i32) -> (i32, i32, i32) {
    %c0_i32 = arith.constant 0 : i32
    %c0_i32_0 = arith.constant 0 : i32
    return %arg0, %arg1, %c0_i32 : i32, i32, i32
  }
}

module attributes {stable_mosaic.version = 11 : i64} {
  func.func @_scale_shift_kernel(%arg0: i32, %arg1: i32, %arg2: memref<1x128x128xbf16, #tpu.memory_space<vmem>>, %arg3: memref<1x8x128xf32, #tpu.memory_space<vmem>>, %arg4: memref<1x8x128xf32, #tpu.memory_space<vmem>>, %arg5: memref<1x128x128xbf16, #tpu.memory_space<vmem>>) attributes {dimension_semantics = [#tpu.dimension_semantics<parallel>, #tpu.dimension_semantics<parallel>], iteration_bounds = array<i64: 2, 1>, scalar_prefetch = 0 : i64, scratch_operands = 0 : i64, tpu.core_type = #tpu.core_type<tc>, window_params = [{transform_indices = @transform_0, window_bounds = array<i64: 1, 128, 128>}, {transform_indices = @transform_1, window_bounds = array<i64: 1, 8, 128>}, {transform_indices = @transform_2, window_bounds = array<i64: 1, 8, 128>}, {transform_indices = @transform_3, window_bounds = array<i64: 1, 128, 128>}]} {
    %c0 = arith.constant 0 : index
    %c0_0 = arith.constant 0 : index
    %c0_1 = arith.constant 0 : index
    %0 = vector.load %arg3[%c0, %c0_0, %c0_1] : memref<1x8x128xf32, #tpu.memory_space<vmem>>, vector<1x8x128xf32>
    %1 = vector.shape_cast %0 : vector<1x8x128xf32> to vector<8x128xf32>
    %2 = vector.extract_strided_slice %1 {offsets = [0, 0], sizes = [1, 128], strides = [1, 1]} : vector<8x128xf32> to vector<1x128xf32>
    %c0_2 = arith.constant 0 : index
    %c0_3 = arith.constant 0 : index
    %c0_4 = arith.constant 0 : index
    %3 = vector.load %arg4[%c0_2, %c0_3, %c0_4] : memref<1x8x128xf32, #tpu.memory_space<vmem>>, vector<1x8x128xf32>
    %4 = vector.shape_cast %3 : vector<1x8x128xf32> to vector<8x128xf32>
    %5 = vector.extract_strided_slice %4 {offsets = [0, 0], sizes = [1, 128], strides = [1, 1]} : vector<8x128xf32> to vector<1x128xf32>
    %c0_5 = arith.constant 0 : index
    %c0_6 = arith.constant 0 : index
    %c0_7 = arith.constant 0 : index
    %6 = vector.load %arg2[%c0_5, %c0_6, %c0_7] : memref<1x128x128xbf16, #tpu.memory_space<vmem>>, vector<1x128x128xbf16>
    %7 = vector.shape_cast %6 : vector<1x128x128xbf16> to vector<128x128xbf16>
    %8 = arith.extf %7 : vector<128x128xbf16> to vector<128x128xf32>
    %9 = vector.broadcast %2 : vector<1x128xf32> to vector<128x128xf32>
    %10 = arith.mulf %8, %9 : vector<128x128xf32>
    %11 = vector.broadcast %5 : vector<1x128xf32> to vector<128x128xf32>
    %12 = arith.addf %10, %11 : vector<128x128xf32>
    %13 = arith.truncf %12 : vector<128x128xf32> to vector<128x128xbf16>
    %c0_8 = arith.constant 0 : index
    %c0_9 = arith.constant 0 : index
    %c0_10 = arith.constant 0 : index
    %14 = vector.load %arg5[%c0_8, %c0_9, %c0_10] : memref<1x128x128xbf16, #tpu.memory_space<vmem>>, vector<1x128x128xbf16>
    %15 = vector.shape_cast %14 : vector<1x128x128xbf16> to vector<128x128xbf16>
    %16 = vector.shape_cast %13 : vector<128x128xbf16> to vector<1x128x128xbf16>
    tpu.vector_store %arg5[%c0_8, %c0_9, %c0_10], %16 {strides = array<i32>} : memref<1x128x128xbf16, #tpu.memory_space<vmem>>, vector<1x128x128xbf16>,
    return
  }
  func.func @transform_0(%arg0: i32, %arg1: i32) -> (i32, i32, i32) {
    %c0_i32 = arith.constant 0 : i32
    %c0_i32_0 = arith.constant 0 : i32
    return %arg0, %arg1, %c0_i32 : i32, i32, i32
  }
  func.func @transform_1(%arg0: i32, %arg1: i32) -> (i32, i32, i32) {
    %c0_i32 = arith.constant 0 : i32
    %c0_i32_0 = arith.constant 0 : i32
    %c0_i32_1 = arith.constant 0 : i32
    return %arg0, %c0_i32, %c0_i32_0 : i32, i32, i32
  }
  func.func @transform_2(%arg0: i32, %arg1: i32) -> (i32, i32, i32) {
    %c0_i32 = arith.constant 0 : i32
    %c0_i32_0 = arith.constant 0 : i32
    %c0_i32_1 = arith.constant 0 : i32
    return %arg0, %c0_i32, %c0_i32_0 : i32, i32, i32
  }
  func.func @transform_3(%arg0: i32, %arg1: i32) -> (i32, i32, i32) {
    %c0_i32 = arith.constant 0 : i32
    %c0_i32_0 = arith.constant 0 : i32
    return %arg0, %arg1, %c0_i32 : i32, i32, i32
  }
}

module attributes {stable_mosaic.version = 11 : i64} {
  func.func @_gemm_stats_kernel(%arg0: i32, %arg1: i32, %arg2: i32, %arg3: memref<1x32x256xbf16, #tpu.memory_space<vmem>>, %arg4: memref<256x128xbf16, #tpu.memory_space<vmem>>, %arg5: memref<1x32x128xbf16, #tpu.memory_space<vmem>>, %arg6: memref<1x8x128xf32, #tpu.memory_space<vmem>>, %arg7: memref<1x8x128xf32, #tpu.memory_space<vmem>>, %arg8: memref<32x128xf32, #tpu.memory_space<vmem>>) attributes {dimension_semantics = [#tpu.dimension_semantics<parallel>, #tpu.dimension_semantics<parallel>, #tpu.dimension_semantics<arbitrary>], iteration_bounds = array<i64: 2, 1, 1>, scalar_prefetch = 0 : i64, scratch_operands = 1 : i64, tpu.core_type = #tpu.core_type<tc>, window_params = [{transform_indices = @transform_0, window_bounds = array<i64: 1, 32, 256>}, {transform_indices = @transform_1, window_bounds = array<i64: 256, 128>}, {transform_indices = @transform_2, window_bounds = array<i64: 1, 32, 128>}, {transform_indices = @transform_3, window_bounds = array<i64: 1, 8, 128>}, {transform_indices = @transform_4, window_bounds = array<i64: 1, 8, 128>}]} {
    %c0_i32 = arith.constant 0 : i32
    %0 = arith.cmpi eq, %arg2, %c0_i32 : i32
    %1 = arith.extui %0 : i1 to i32
    %c0_i32_0 = arith.constant 0 : i32
    %2 = arith.cmpi ne, %1, %c0_i32_0 : i32
    scf.if %2 {
      %cst_13 = arith.constant 0.000000e+00 : f32
      %18 = vector.broadcast %cst_13 : f32 to vector<32x128xf32>
      %c0_14 = arith.constant 0 : index
      %c0_15 = arith.constant 0 : index
      %19 = vector.load %arg8[%c0_14, %c0_15] : memref<32x128xf32, #tpu.memory_space<vmem>>, vector<32x128xf32>
      tpu.vector_store %arg8[%c0_14, %c0_15], %18 {strides = array<i32>} : memref<32x128xf32, #tpu.memory_space<vmem>>, vector<32x128xf32>,
    } else {
    }
    %c0 = arith.constant 0 : index
    %c0_1 = arith.constant 0 : index
    %c0_2 = arith.constant 0 : index
    %3 = vector.load %arg3[%c0, %c0_1, %c0_2] : memref<1x32x256xbf16, #tpu.memory_space<vmem>>, vector<1x32x256xbf16>
    %4 = vector.shape_cast %3 : vector<1x32x256xbf16> to vector<32x256xbf16>
    %cst = arith.constant 0.000000e+00 : bf16
    %5 = vector.broadcast %cst : bf16 to vector<32x256xbf16>
    %6 = arith.cmpf ogt, %4, %5 : vector<32x256xbf16>
    %cst_3 = arith.constant 2.001950e-01 : bf16
    %7 = vector.broadcast %cst_3 : bf16 to vector<32x256xbf16>
    %8 = arith.mulf %7, %4 : vector<32x256xbf16>
    %9 = arith.select %6, %4, %8 : vector<32x256xi1>, vector<32x256xbf16>
    %c0_4 = arith.constant 0 : index
    %c0_5 = arith.constant 0 : index
    %10 = vector.load %arg8[%c0_4, %c0_5] : memref<32x128xf32, #tpu.memory_space<vmem>>, vector<32x128xf32>
    %c0_6 = arith.constant 0 : index
    %c0_7 = arith.constant 0 : index
    %11 = vector.load %arg4[%c0_6, %c0_7] : memref<256x128xbf16, #tpu.memory_space<vmem>>, vector<256x128xbf16>
    %cst_8 = arith.constant dense<0.000000e+00> : vector<32x128xf32>
    %12 = tpu.matmul %9, %11, %cst_8 {dimension_numbers = #tpu.dot_dimension_numbers<[1], [0], [0], [1], [0, 0, 1, 1], [], []>} : vector<32x256xbf16>, vector<256x128xbf16>, vector<32x128xf32> -> vector<32x128xf32>
    %13 = arith.addf %10, %12 : vector<32x128xf32>
    %c0_9 = arith.constant 0 : index
    %c0_10 = arith.constant 0 : index
    %14 = vector.load %arg8[%c0_9, %c0_10] : memref<32x128xf32, #tpu.memory_space<vmem>>, vector<32x128xf32>
    tpu.vector_store %arg8[%c0_9, %c0_10], %13 {strides = array<i32>} : memref<32x128xf32, #tpu.memory_space<vmem>>, vector<32x128xf32>,
    %c0_i32_11 = arith.constant 0 : i32
    %15 = arith.cmpi eq, %arg2, %c0_i32_11 : i32
    %16 = arith.extui %15 : i1 to i32
    %c0_i32_12 = arith.constant 0 : i32
    %17 = arith.cmpi ne, %16, %c0_i32_12 : i32
    scf.if %17 {
      %c0_13 = arith.constant 0 : index
      %c0_14 = arith.constant 0 : index
      %18 = vector.load %arg8[%c0_13, %c0_14] : memref<32x128xf32, #tpu.memory_space<vmem>>, vector<32x128xf32>
      %19 = arith.truncf %18 : vector<32x128xf32> to vector<32x128xbf16>
      %c0_15 = arith.constant 0 : index
      %c0_16 = arith.constant 0 : index
      %c0_17 = arith.constant 0 : index
      %20 = vector.load %arg5[%c0_15, %c0_16, %c0_17] : memref<1x32x128xbf16, #tpu.memory_space<vmem>>, vector<1x32x128xbf16>
      %21 = vector.shape_cast %20 : vector<1x32x128xbf16> to vector<32x128xbf16>
      %22 = vector.shape_cast %19 : vector<32x128xbf16> to vector<1x32x128xbf16>
      tpu.vector_store %arg5[%c0_15, %c0_16, %c0_17], %22 {strides = array<i32>} : memref<1x32x128xbf16, #tpu.memory_space<vmem>>, vector<1x32x128xbf16>,
      %cst_18 = arith.constant dense<0.000000e+00> : vector<128xf32>
      %23 = vector.multi_reduction <add>, %18, %cst_18 [0] : vector<32x128xf32> to vector<128xf32>
      %24 = vector.shape_cast %23 : vector<128xf32> to vector<1x128xf32>
      %25 = arith.mulf %18, %18 : vector<32x128xf32>
      %cst_19 = arith.constant dense<0.000000e+00> : vector<128xf32>
      %26 = vector.multi_reduction <add>, %25, %cst_19 [0] : vector<32x128xf32> to vector<128xf32>
      %27 = vector.shape_cast %26 : vector<128xf32> to vector<1x128xf32>
      %28 = vector.shape_cast %24 : vector<1x128xf32> to vector<1x128xf32>
      %29 = vector.broadcast %28 : vector<1x128xf32> to vector<8x128xf32>
      %c0_20 = arith.constant 0 : index
      %c0_21 = arith.constant 0 : index
      %c0_22 = arith.constant 0 : index
      %30 = vector.load %arg6[%c0_20, %c0_21, %c0_22] : memref<1x8x128xf32, #tpu.memory_space<vmem>>, vector<1x8x128xf32>
      %31 = vector.shape_cast %30 : vector<1x8x128xf32> to vector<8x128xf32>
      %32 = vector.shape_cast %29 : vector<8x128xf32> to vector<1x8x128xf32>
      tpu.vector_store %arg6[%c0_20, %c0_21, %c0_22], %32 {strides = array<i32>} : memref<1x8x128xf32, #tpu.memory_space<vmem>>, vector<1x8x128xf32>,
      %33 = vector.shape_cast %27 : vector<1x128xf32> to vector<1x128xf32>
      %34 = vector.broadcast %33 : vector<1x128xf32> to vector<8x128xf32>
      %c0_23 = arith.constant 0 : index
      %c0_24 = arith.constant 0 : index
      %c0_25 = arith.constant 0 : index
      %35 = vector.load %arg7[%c0_23, %c0_24, %c0_25] : memref<1x8x128xf32, #tpu.memory_space<vmem>>, vector<1x8x128xf32>
      %36 = vector.shape_cast %35 : vector<1x8x128xf32> to vector<8x128xf32>
      %37 = vector.shape_cast %34 : vector<8x128xf32> to vector<1x8x128xf32>
      tpu.vector_store %arg7[%c0_23, %c0_24, %c0_25], %37 {strides = array<i32>} : memref<1x8x128xf32, #tpu.memory_space<vmem>>, vector<1x8x128xf32>,
    } else {
    }
    return
  }
  func.func @transform_0(%arg0: i32, %arg1: i32, %arg2: i32) -> (i32, i32, i32) {
    %c0_i32 = arith.constant 0 : i32
    return %arg0, %arg1, %arg2 : i32, i32, i32
  }
  func.func @transform_1(%arg0: i32, %arg1: i32, %arg2: i32) -> (i32, i32) {
    %c0_i32 = arith.constant 0 : i32
    %c0_i32_0 = arith.constant 0 : i32
    return %arg2, %c0_i32 : i32, i32
  }
  func.func @transform_2(%arg0: i32, %arg1: i32, %arg2: i32) -> (i32, i32, i32) {
    %c0_i32 = arith.constant 0 : i32
    %c0_i32_0 = arith.constant 0 : i32
    return %arg0, %arg1, %c0_i32 : i32, i32, i32
  }
  func.func @transform_3(%arg0: i32, %arg1: i32, %arg2: i32) -> (i32, i32, i32) {
    %c0_i32 = arith.constant 0 : i32
    %c0_i32_0 = arith.constant 0 : i32
    return %arg0, %arg1, %c0_i32 : i32, i32, i32
  }
  func.func @transform_4(%arg0: i32, %arg1: i32, %arg2: i32) -> (i32, i32, i32) {
    %c0_i32 = arith.constant 0 : i32
    %c0_i32_0 = arith.constant 0 : i32
    return %arg0, %arg1, %c0_i32 : i32, i32, i32
  }
}

module attributes {stable_mosaic.version = 11 : i64} {
  func.func @_scale_shift_kernel(%arg0: i32, %arg1: i32, %arg2: memref<1x32x128xbf16, #tpu.memory_space<vmem>>, %arg3: memref<1x8x128xf32, #tpu.memory_space<vmem>>, %arg4: memref<1x8x128xf32, #tpu.memory_space<vmem>>, %arg5: memref<1x32x128xbf16, #tpu.memory_space<vmem>>) attributes {dimension_semantics = [#tpu.dimension_semantics<parallel>, #tpu.dimension_semantics<parallel>], iteration_bounds = array<i64: 2, 1>, scalar_prefetch = 0 : i64, scratch_operands = 0 : i64, tpu.core_type = #tpu.core_type<tc>, window_params = [{transform_indices = @transform_0, window_bounds = array<i64: 1, 32, 128>}, {transform_indices = @transform_1, window_bounds = array<i64: 1, 8, 128>}, {transform_indices = @transform_2, window_bounds = array<i64: 1, 8, 128>}, {transform_indices = @transform_3, window_bounds = array<i64: 1, 32, 128>}]} {
    %c0 = arith.constant 0 : index
    %c0_0 = arith.constant 0 : index
    %c0_1 = arith.constant 0 : index
    %0 = vector.load %arg3[%c0, %c0_0, %c0_1] : memref<1x8x128xf32, #tpu.memory_space<vmem>>, vector<1x8x128xf32>
    %1 = vector.shape_cast %0 : vector<1x8x128xf32> to vector<8x128xf32>
    %2 = vector.extract_strided_slice %1 {offsets = [0, 0], sizes = [1, 128], strides = [1, 1]} : vector<8x128xf32> to vector<1x128xf32>
    %c0_2 = arith.constant 0 : index
    %c0_3 = arith.constant 0 : index
    %c0_4 = arith.constant 0 : index
    %3 = vector.load %arg4[%c0_2, %c0_3, %c0_4] : memref<1x8x128xf32, #tpu.memory_space<vmem>>, vector<1x8x128xf32>
    %4 = vector.shape_cast %3 : vector<1x8x128xf32> to vector<8x128xf32>
    %5 = vector.extract_strided_slice %4 {offsets = [0, 0], sizes = [1, 128], strides = [1, 1]} : vector<8x128xf32> to vector<1x128xf32>
    %c0_5 = arith.constant 0 : index
    %c0_6 = arith.constant 0 : index
    %c0_7 = arith.constant 0 : index
    %6 = vector.load %arg2[%c0_5, %c0_6, %c0_7] : memref<1x32x128xbf16, #tpu.memory_space<vmem>>, vector<1x32x128xbf16>
    %7 = vector.shape_cast %6 : vector<1x32x128xbf16> to vector<32x128xbf16>
    %8 = arith.extf %7 : vector<32x128xbf16> to vector<32x128xf32>
    %9 = vector.broadcast %2 : vector<1x128xf32> to vector<32x128xf32>
    %10 = arith.mulf %8, %9 : vector<32x128xf32>
    %11 = vector.broadcast %5 : vector<1x128xf32> to vector<32x128xf32>
    %12 = arith.addf %10, %11 : vector<32x128xf32>
    %13 = arith.truncf %12 : vector<32x128xf32> to vector<32x128xbf16>
    %c0_8 = arith.constant 0 : index
    %c0_9 = arith.constant 0 : index
    %c0_10 = arith.constant 0 : index
    %14 = vector.load %arg5[%c0_8, %c0_9, %c0_10] : memref<1x32x128xbf16, #tpu.memory_space<vmem>>, vector<1x32x128xbf16>
    %15 = vector.shape_cast %14 : vector<1x32x128xbf16> to vector<32x128xbf16>
    %16 = vector.shape_cast %13 : vector<32x128xbf16> to vector<1x32x128xbf16>
    tpu.vector_store %arg5[%c0_8, %c0_9, %c0_10], %16 {strides = array<i32>} : memref<1x32x128xbf16, #tpu.memory_space<vmem>>, vector<1x32x128xbf16>,
    return
  }
  func.func @transform_0(%arg0: i32, %arg1: i32) -> (i32, i32, i32) {
    %c0_i32 = arith.constant 0 : i32
    %c0_i32_0 = arith.constant 0 : i32
    return %arg0, %arg1, %c0_i32 : i32, i32, i32
  }
  func.func @transform_1(%arg0: i32, %arg1: i32) -> (i32, i32, i32) {
    %c0_i32 = arith.constant 0 : i32
    %c0_i32_0 = arith.constant 0 : i32
    %c0_i32_1 = arith.constant 0 : i32
    return %arg0, %c0_i32, %c0_i32_0 : i32, i32, i32
  }
  func.func @transform_2(%arg0: i32, %arg1: i32) -> (i32, i32, i32) {
    %c0_i32 = arith.constant 0 : i32
    %c0_i32_0 = arith.constant 0 : i32
    %c0_i32_1 = arith.constant 0 : i32
    return %arg0, %c0_i32, %c0_i32_0 : i32, i32, i32
  }
  func.func @transform_3(%arg0: i32, %arg1: i32) -> (i32, i32, i32) {
    %c0_i32 = arith.constant 0 : i32
    %c0_i32_0 = arith.constant 0 : i32
    return %arg0, %arg1, %c0_i32 : i32, i32, i32
  }
}

module attributes {stable_mosaic.version = 11 : i64} {
  func.func @_gemm_stats_kernel(%arg0: i32, %arg1: i32, %arg2: i32, %arg3: memref<1x16x512xbf16, #tpu.memory_space<vmem>>, %arg4: memref<512x128xbf16, #tpu.memory_space<vmem>>, %arg5: memref<1x16x128xbf16, #tpu.memory_space<vmem>>, %arg6: memref<1x8x128xf32, #tpu.memory_space<vmem>>, %arg7: memref<1x8x128xf32, #tpu.memory_space<vmem>>, %arg8: memref<16x128xf32, #tpu.memory_space<vmem>>) attributes {dimension_semantics = [#tpu.dimension_semantics<parallel>, #tpu.dimension_semantics<parallel>, #tpu.dimension_semantics<arbitrary>], iteration_bounds = array<i64: 2, 1, 1>, scalar_prefetch = 0 : i64, scratch_operands = 1 : i64, tpu.core_type = #tpu.core_type<tc>, window_params = [{transform_indices = @transform_0, window_bounds = array<i64: 1, 16, 512>}, {transform_indices = @transform_1, window_bounds = array<i64: 512, 128>}, {transform_indices = @transform_2, window_bounds = array<i64: 1, 16, 128>}, {transform_indices = @transform_3, window_bounds = array<i64: 1, 8, 128>}, {transform_indices = @transform_4, window_bounds = array<i64: 1, 8, 128>}]} {
    %c0_i32 = arith.constant 0 : i32
    %0 = arith.cmpi eq, %arg2, %c0_i32 : i32
    %1 = arith.extui %0 : i1 to i32
    %c0_i32_0 = arith.constant 0 : i32
    %2 = arith.cmpi ne, %1, %c0_i32_0 : i32
    scf.if %2 {
      %cst_13 = arith.constant 0.000000e+00 : f32
      %18 = vector.broadcast %cst_13 : f32 to vector<16x128xf32>
      %c0_14 = arith.constant 0 : index
      %c0_15 = arith.constant 0 : index
      %19 = vector.load %arg8[%c0_14, %c0_15] : memref<16x128xf32, #tpu.memory_space<vmem>>, vector<16x128xf32>
      tpu.vector_store %arg8[%c0_14, %c0_15], %18 {strides = array<i32>} : memref<16x128xf32, #tpu.memory_space<vmem>>, vector<16x128xf32>,
    } else {
    }
    %c0 = arith.constant 0 : index
    %c0_1 = arith.constant 0 : index
    %c0_2 = arith.constant 0 : index
    %3 = vector.load %arg3[%c0, %c0_1, %c0_2] : memref<1x16x512xbf16, #tpu.memory_space<vmem>>, vector<1x16x512xbf16>
    %4 = vector.shape_cast %3 : vector<1x16x512xbf16> to vector<16x512xbf16>
    %cst = arith.constant 0.000000e+00 : bf16
    %5 = vector.broadcast %cst : bf16 to vector<16x512xbf16>
    %6 = arith.cmpf ogt, %4, %5 : vector<16x512xbf16>
    %cst_3 = arith.constant 2.001950e-01 : bf16
    %7 = vector.broadcast %cst_3 : bf16 to vector<16x512xbf16>
    %8 = arith.mulf %7, %4 : vector<16x512xbf16>
    %9 = arith.select %6, %4, %8 : vector<16x512xi1>, vector<16x512xbf16>
    %c0_4 = arith.constant 0 : index
    %c0_5 = arith.constant 0 : index
    %10 = vector.load %arg8[%c0_4, %c0_5] : memref<16x128xf32, #tpu.memory_space<vmem>>, vector<16x128xf32>
    %c0_6 = arith.constant 0 : index
    %c0_7 = arith.constant 0 : index
    %11 = vector.load %arg4[%c0_6, %c0_7] : memref<512x128xbf16, #tpu.memory_space<vmem>>, vector<512x128xbf16>
    %cst_8 = arith.constant dense<0.000000e+00> : vector<16x128xf32>
    %12 = tpu.matmul %9, %11, %cst_8 {dimension_numbers = #tpu.dot_dimension_numbers<[1], [0], [0], [1], [0, 0, 1, 1], [], []>} : vector<16x512xbf16>, vector<512x128xbf16>, vector<16x128xf32> -> vector<16x128xf32>
    %13 = arith.addf %10, %12 : vector<16x128xf32>
    %c0_9 = arith.constant 0 : index
    %c0_10 = arith.constant 0 : index
    %14 = vector.load %arg8[%c0_9, %c0_10] : memref<16x128xf32, #tpu.memory_space<vmem>>, vector<16x128xf32>
    tpu.vector_store %arg8[%c0_9, %c0_10], %13 {strides = array<i32>} : memref<16x128xf32, #tpu.memory_space<vmem>>, vector<16x128xf32>,
    %c0_i32_11 = arith.constant 0 : i32
    %15 = arith.cmpi eq, %arg2, %c0_i32_11 : i32
    %16 = arith.extui %15 : i1 to i32
    %c0_i32_12 = arith.constant 0 : i32
    %17 = arith.cmpi ne, %16, %c0_i32_12 : i32
    scf.if %17 {
      %c0_13 = arith.constant 0 : index
      %c0_14 = arith.constant 0 : index
      %18 = vector.load %arg8[%c0_13, %c0_14] : memref<16x128xf32, #tpu.memory_space<vmem>>, vector<16x128xf32>
      %19 = arith.truncf %18 : vector<16x128xf32> to vector<16x128xbf16>
      %c0_15 = arith.constant 0 : index
      %c0_16 = arith.constant 0 : index
      %c0_17 = arith.constant 0 : index
      %20 = vector.load %arg5[%c0_15, %c0_16, %c0_17] : memref<1x16x128xbf16, #tpu.memory_space<vmem>>, vector<1x16x128xbf16>
      %21 = vector.shape_cast %20 : vector<1x16x128xbf16> to vector<16x128xbf16>
      %22 = vector.shape_cast %19 : vector<16x128xbf16> to vector<1x16x128xbf16>
      tpu.vector_store %arg5[%c0_15, %c0_16, %c0_17], %22 {strides = array<i32>} : memref<1x16x128xbf16, #tpu.memory_space<vmem>>, vector<1x16x128xbf16>,
      %cst_18 = arith.constant dense<0.000000e+00> : vector<128xf32>
      %23 = vector.multi_reduction <add>, %18, %cst_18 [0] : vector<16x128xf32> to vector<128xf32>
      %24 = vector.shape_cast %23 : vector<128xf32> to vector<1x128xf32>
      %25 = arith.mulf %18, %18 : vector<16x128xf32>
      %cst_19 = arith.constant dense<0.000000e+00> : vector<128xf32>
      %26 = vector.multi_reduction <add>, %25, %cst_19 [0] : vector<16x128xf32> to vector<128xf32>
      %27 = vector.shape_cast %26 : vector<128xf32> to vector<1x128xf32>
      %28 = vector.shape_cast %24 : vector<1x128xf32> to vector<1x128xf32>
      %29 = vector.broadcast %28 : vector<1x128xf32> to vector<8x128xf32>
      %c0_20 = arith.constant 0 : index
      %c0_21 = arith.constant 0 : index
      %c0_22 = arith.constant 0 : index
      %30 = vector.load %arg6[%c0_20, %c0_21, %c0_22] : memref<1x8x128xf32, #tpu.memory_space<vmem>>, vector<1x8x128xf32>
      %31 = vector.shape_cast %30 : vector<1x8x128xf32> to vector<8x128xf32>
      %32 = vector.shape_cast %29 : vector<8x128xf32> to vector<1x8x128xf32>
      tpu.vector_store %arg6[%c0_20, %c0_21, %c0_22], %32 {strides = array<i32>} : memref<1x8x128xf32, #tpu.memory_space<vmem>>, vector<1x8x128xf32>,
      %33 = vector.shape_cast %27 : vector<1x128xf32> to vector<1x128xf32>
      %34 = vector.broadcast %33 : vector<1x128xf32> to vector<8x128xf32>
      %c0_23 = arith.constant 0 : index
      %c0_24 = arith.constant 0 : index
      %c0_25 = arith.constant 0 : index
      %35 = vector.load %arg7[%c0_23, %c0_24, %c0_25] : memref<1x8x128xf32, #tpu.memory_space<vmem>>, vector<1x8x128xf32>
      %36 = vector.shape_cast %35 : vector<1x8x128xf32> to vector<8x128xf32>
      %37 = vector.shape_cast %34 : vector<8x128xf32> to vector<1x8x128xf32>
      tpu.vector_store %arg7[%c0_23, %c0_24, %c0_25], %37 {strides = array<i32>} : memref<1x8x128xf32, #tpu.memory_space<vmem>>, vector<1x8x128xf32>,
    } else {
    }
    return
  }
  func.func @transform_0(%arg0: i32, %arg1: i32, %arg2: i32) -> (i32, i32, i32) {
    %c0_i32 = arith.constant 0 : i32
    return %arg0, %arg1, %arg2 : i32, i32, i32
  }
  func.func @transform_1(%arg0: i32, %arg1: i32, %arg2: i32) -> (i32, i32) {
    %c0_i32 = arith.constant 0 : i32
    %c0_i32_0 = arith.constant 0 : i32
    return %arg2, %c0_i32 : i32, i32
  }
  func.func @transform_2(%arg0: i32, %arg1: i32, %arg2: i32) -> (i32, i32, i32) {
    %c0_i32 = arith.constant 0 : i32
    %c0_i32_0 = arith.constant 0 : i32
    return %arg0, %arg1, %c0_i32 : i32, i32, i32
  }
  func.func @transform_3(%arg0: i32, %arg1: i32, %arg2: i32) -> (i32, i32, i32) {
    %c0_i32 = arith.constant 0 : i32
    %c0_i32_0 = arith.constant 0 : i32
    return %arg0, %arg1, %c0_i32 : i32, i32, i32
  }
  func.func @transform_4(%arg0: i32, %arg1: i32, %arg2: i32) -> (i32, i32, i32) {
    %c0_i32 = arith.constant 0 : i32
    %c0_i32_0 = arith.constant 0 : i32
    return %arg0, %arg1, %c0_i32 : i32, i32, i32
  }
}

module attributes {stable_mosaic.version = 11 : i64} {
  func.func @_scale_shift_kernel(%arg0: i32, %arg1: i32, %arg2: memref<1x16x128xbf16, #tpu.memory_space<vmem>>, %arg3: memref<1x8x128xf32, #tpu.memory_space<vmem>>, %arg4: memref<1x8x128xf32, #tpu.memory_space<vmem>>, %arg5: memref<1x16x128xbf16, #tpu.memory_space<vmem>>) attributes {dimension_semantics = [#tpu.dimension_semantics<parallel>, #tpu.dimension_semantics<parallel>], iteration_bounds = array<i64: 2, 1>, scalar_prefetch = 0 : i64, scratch_operands = 0 : i64, tpu.core_type = #tpu.core_type<tc>, window_params = [{transform_indices = @transform_0, window_bounds = array<i64: 1, 16, 128>}, {transform_indices = @transform_1, window_bounds = array<i64: 1, 8, 128>}, {transform_indices = @transform_2, window_bounds = array<i64: 1, 8, 128>}, {transform_indices = @transform_3, window_bounds = array<i64: 1, 16, 128>}]} {
    %c0 = arith.constant 0 : index
    %c0_0 = arith.constant 0 : index
    %c0_1 = arith.constant 0 : index
    %0 = vector.load %arg3[%c0, %c0_0, %c0_1] : memref<1x8x128xf32, #tpu.memory_space<vmem>>, vector<1x8x128xf32>
    %1 = vector.shape_cast %0 : vector<1x8x128xf32> to vector<8x128xf32>
    %2 = vector.extract_strided_slice %1 {offsets = [0, 0], sizes = [1, 128], strides = [1, 1]} : vector<8x128xf32> to vector<1x128xf32>
    %c0_2 = arith.constant 0 : index
    %c0_3 = arith.constant 0 : index
    %c0_4 = arith.constant 0 : index
    %3 = vector.load %arg4[%c0_2, %c0_3, %c0_4] : memref<1x8x128xf32, #tpu.memory_space<vmem>>, vector<1x8x128xf32>
    %4 = vector.shape_cast %3 : vector<1x8x128xf32> to vector<8x128xf32>
    %5 = vector.extract_strided_slice %4 {offsets = [0, 0], sizes = [1, 128], strides = [1, 1]} : vector<8x128xf32> to vector<1x128xf32>
    %c0_5 = arith.constant 0 : index
    %c0_6 = arith.constant 0 : index
    %c0_7 = arith.constant 0 : index
    %6 = vector.load %arg2[%c0_5, %c0_6, %c0_7] : memref<1x16x128xbf16, #tpu.memory_space<vmem>>, vector<1x16x128xbf16>
    %7 = vector.shape_cast %6 : vector<1x16x128xbf16> to vector<16x128xbf16>
    %8 = arith.extf %7 : vector<16x128xbf16> to vector<16x128xf32>
    %9 = vector.broadcast %2 : vector<1x128xf32> to vector<16x128xf32>
    %10 = arith.mulf %8, %9 : vector<16x128xf32>
    %11 = vector.broadcast %5 : vector<1x128xf32> to vector<16x128xf32>
    %12 = arith.addf %10, %11 : vector<16x128xf32>
    %13 = arith.truncf %12 : vector<16x128xf32> to vector<16x128xbf16>
    %c0_8 = arith.constant 0 : index
    %c0_9 = arith.constant 0 : index
    %c0_10 = arith.constant 0 : index
    %14 = vector.load %arg5[%c0_8, %c0_9, %c0_10] : memref<1x16x128xbf16, #tpu.memory_space<vmem>>, vector<1x16x128xbf16>
    %15 = vector.shape_cast %14 : vector<1x16x128xbf16> to vector<16x128xbf16>
    %16 = vector.shape_cast %13 : vector<16x128xbf16> to vector<1x16x128xbf16>
    tpu.vector_store %arg5[%c0_8, %c0_9, %c0_10], %16 {strides = array<i32>} : memref<1x16x128xbf16, #tpu.memory_space<vmem>>, vector<1x16x128xbf16>,
    return
  }
  func.func @transform_0(%arg0: i32, %arg1: i32) -> (i32, i32, i32) {
    %c0_i32 = arith.constant 0 : i32
    %c0_i32_0 = arith.constant 0 : i32
    return %arg0, %arg1, %c0_i32 : i32, i32, i32
  }
  func.func @transform_1(%arg0: i32, %arg1: i32) -> (i32, i32, i32) {
    %c0_i32 = arith.constant 0 : i32
    %c0_i32_0 = arith.constant 0 : i32
    %c0_i32_1 = arith.constant 0 : i32
    return %arg0, %c0_i32, %c0_i32_0 : i32, i32, i32
  }
  func.func @transform_2(%arg0: i32, %arg1: i32) -> (i32, i32, i32) {
    %c0_i32 = arith.constant 0 : i32
    %c0_i32_0 = arith.constant 0 : i32
    %c0_i32_1 = arith.constant 0 : i32
    return %arg0, %c0_i32, %c0_i32_0 : i32, i32, i32
  }
  func.func @transform_3(%arg0: i32, %arg1: i32) -> (i32, i32, i32) {
    %c0_i32 = arith.constant 0 : i32
    %c0_i32_0 = arith.constant 0 : i32
    return %arg0, %arg1, %c0_i32 : i32, i32, i32
  }
}

module attributes {stable_mosaic.version = 11 : i64} {
  func.func @_gemm_stats_kernel(%arg0: i32, %arg1: i32, %arg2: i32, %arg3: memref<1x16x1024xbf16, #tpu.memory_space<vmem>>, %arg4: memref<1024x128xbf16, #tpu.memory_space<vmem>>, %arg5: memref<1x16x128xbf16, #tpu.memory_space<vmem>>, %arg6: memref<1x8x128xf32, #tpu.memory_space<vmem>>, %arg7: memref<1x8x128xf32, #tpu.memory_space<vmem>>, %arg8: memref<16x128xf32, #tpu.memory_space<vmem>>) attributes {dimension_semantics = [#tpu.dimension_semantics<parallel>, #tpu.dimension_semantics<parallel>, #tpu.dimension_semantics<arbitrary>], iteration_bounds = array<i64: 2, 1, 1>, scalar_prefetch = 0 : i64, scratch_operands = 1 : i64, tpu.core_type = #tpu.core_type<tc>, window_params = [{transform_indices = @transform_0, window_bounds = array<i64: 1, 16, 1024>}, {transform_indices = @transform_1, window_bounds = array<i64: 1024, 128>}, {transform_indices = @transform_2, window_bounds = array<i64: 1, 16, 128>}, {transform_indices = @transform_3, window_bounds = array<i64: 1, 8, 128>}, {transform_indices = @transform_4, window_bounds = array<i64: 1, 8, 128>}]} {
    %c0_i32 = arith.constant 0 : i32
    %0 = arith.cmpi eq, %arg2, %c0_i32 : i32
    %1 = arith.extui %0 : i1 to i32
    %c0_i32_0 = arith.constant 0 : i32
    %2 = arith.cmpi ne, %1, %c0_i32_0 : i32
    scf.if %2 {
      %cst_13 = arith.constant 0.000000e+00 : f32
      %18 = vector.broadcast %cst_13 : f32 to vector<16x128xf32>
      %c0_14 = arith.constant 0 : index
      %c0_15 = arith.constant 0 : index
      %19 = vector.load %arg8[%c0_14, %c0_15] : memref<16x128xf32, #tpu.memory_space<vmem>>, vector<16x128xf32>
      tpu.vector_store %arg8[%c0_14, %c0_15], %18 {strides = array<i32>} : memref<16x128xf32, #tpu.memory_space<vmem>>, vector<16x128xf32>,
    } else {
    }
    %c0 = arith.constant 0 : index
    %c0_1 = arith.constant 0 : index
    %c0_2 = arith.constant 0 : index
    %3 = vector.load %arg3[%c0, %c0_1, %c0_2] : memref<1x16x1024xbf16, #tpu.memory_space<vmem>>, vector<1x16x1024xbf16>
    %4 = vector.shape_cast %3 : vector<1x16x1024xbf16> to vector<16x1024xbf16>
    %cst = arith.constant 0.000000e+00 : bf16
    %5 = vector.broadcast %cst : bf16 to vector<16x1024xbf16>
    %6 = arith.cmpf ogt, %4, %5 : vector<16x1024xbf16>
    %cst_3 = arith.constant 2.001950e-01 : bf16
    %7 = vector.broadcast %cst_3 : bf16 to vector<16x1024xbf16>
    %8 = arith.mulf %7, %4 : vector<16x1024xbf16>
    %9 = arith.select %6, %4, %8 : vector<16x1024xi1>, vector<16x1024xbf16>
    %c0_4 = arith.constant 0 : index
    %c0_5 = arith.constant 0 : index
    %10 = vector.load %arg8[%c0_4, %c0_5] : memref<16x128xf32, #tpu.memory_space<vmem>>, vector<16x128xf32>
    %c0_6 = arith.constant 0 : index
    %c0_7 = arith.constant 0 : index
    %11 = vector.load %arg4[%c0_6, %c0_7] : memref<1024x128xbf16, #tpu.memory_space<vmem>>, vector<1024x128xbf16>
    %cst_8 = arith.constant dense<0.000000e+00> : vector<16x128xf32>
    %12 = tpu.matmul %9, %11, %cst_8 {dimension_numbers = #tpu.dot_dimension_numbers<[1], [0], [0], [1], [0, 0, 1, 1], [], []>} : vector<16x1024xbf16>, vector<1024x128xbf16>, vector<16x128xf32> -> vector<16x128xf32>
    %13 = arith.addf %10, %12 : vector<16x128xf32>
    %c0_9 = arith.constant 0 : index
    %c0_10 = arith.constant 0 : index
    %14 = vector.load %arg8[%c0_9, %c0_10] : memref<16x128xf32, #tpu.memory_space<vmem>>, vector<16x128xf32>
    tpu.vector_store %arg8[%c0_9, %c0_10], %13 {strides = array<i32>} : memref<16x128xf32, #tpu.memory_space<vmem>>, vector<16x128xf32>,
    %c0_i32_11 = arith.constant 0 : i32
    %15 = arith.cmpi eq, %arg2, %c0_i32_11 : i32
    %16 = arith.extui %15 : i1 to i32
    %c0_i32_12 = arith.constant 0 : i32
    %17 = arith.cmpi ne, %16, %c0_i32_12 : i32
    scf.if %17 {
      %c0_13 = arith.constant 0 : index
      %c0_14 = arith.constant 0 : index
      %18 = vector.load %arg8[%c0_13, %c0_14] : memref<16x128xf32, #tpu.memory_space<vmem>>, vector<16x128xf32>
      %19 = arith.truncf %18 : vector<16x128xf32> to vector<16x128xbf16>
      %c0_15 = arith.constant 0 : index
      %c0_16 = arith.constant 0 : index
      %c0_17 = arith.constant 0 : index
      %20 = vector.load %arg5[%c0_15, %c0_16, %c0_17] : memref<1x16x128xbf16, #tpu.memory_space<vmem>>, vector<1x16x128xbf16>
      %21 = vector.shape_cast %20 : vector<1x16x128xbf16> to vector<16x128xbf16>
      %22 = vector.shape_cast %19 : vector<16x128xbf16> to vector<1x16x128xbf16>
      tpu.vector_store %arg5[%c0_15, %c0_16, %c0_17], %22 {strides = array<i32>} : memref<1x16x128xbf16, #tpu.memory_space<vmem>>, vector<1x16x128xbf16>,
      %cst_18 = arith.constant dense<0.000000e+00> : vector<128xf32>
      %23 = vector.multi_reduction <add>, %18, %cst_18 [0] : vector<16x128xf32> to vector<128xf32>
      %24 = vector.shape_cast %23 : vector<128xf32> to vector<1x128xf32>
      %25 = arith.mulf %18, %18 : vector<16x128xf32>
      %cst_19 = arith.constant dense<0.000000e+00> : vector<128xf32>
      %26 = vector.multi_reduction <add>, %25, %cst_19 [0] : vector<16x128xf32> to vector<128xf32>
      %27 = vector.shape_cast %26 : vector<128xf32> to vector<1x128xf32>
      %28 = vector.shape_cast %24 : vector<1x128xf32> to vector<1x128xf32>
      %29 = vector.broadcast %28 : vector<1x128xf32> to vector<8x128xf32>
      %c0_20 = arith.constant 0 : index
      %c0_21 = arith.constant 0 : index
      %c0_22 = arith.constant 0 : index
      %30 = vector.load %arg6[%c0_20, %c0_21, %c0_22] : memref<1x8x128xf32, #tpu.memory_space<vmem>>, vector<1x8x128xf32>
      %31 = vector.shape_cast %30 : vector<1x8x128xf32> to vector<8x128xf32>
      %32 = vector.shape_cast %29 : vector<8x128xf32> to vector<1x8x128xf32>
      tpu.vector_store %arg6[%c0_20, %c0_21, %c0_22], %32 {strides = array<i32>} : memref<1x8x128xf32, #tpu.memory_space<vmem>>, vector<1x8x128xf32>,
      %33 = vector.shape_cast %27 : vector<1x128xf32> to vector<1x128xf32>
      %34 = vector.broadcast %33 : vector<1x128xf32> to vector<8x128xf32>
      %c0_23 = arith.constant 0 : index
      %c0_24 = arith.constant 0 : index
      %c0_25 = arith.constant 0 : index
      %35 = vector.load %arg7[%c0_23, %c0_24, %c0_25] : memref<1x8x128xf32, #tpu.memory_space<vmem>>, vector<1x8x128xf32>
      %36 = vector.shape_cast %35 : vector<1x8x128xf32> to vector<8x128xf32>
      %37 = vector.shape_cast %34 : vector<8x128xf32> to vector<1x8x128xf32>
      tpu.vector_store %arg7[%c0_23, %c0_24, %c0_25], %37 {strides = array<i32>} : memref<1x8x128xf32, #tpu.memory_space<vmem>>, vector<1x8x128xf32>,
    } else {
    }
    return
  }
  func.func @transform_0(%arg0: i32, %arg1: i32, %arg2: i32) -> (i32, i32, i32) {
    %c0_i32 = arith.constant 0 : i32
    return %arg0, %arg1, %arg2 : i32, i32, i32
  }
  func.func @transform_1(%arg0: i32, %arg1: i32, %arg2: i32) -> (i32, i32) {
    %c0_i32 = arith.constant 0 : i32
    %c0_i32_0 = arith.constant 0 : i32
    return %arg2, %c0_i32 : i32, i32
  }
  func.func @transform_2(%arg0: i32, %arg1: i32, %arg2: i32) -> (i32, i32, i32) {
    %c0_i32 = arith.constant 0 : i32
    %c0_i32_0 = arith.constant 0 : i32
    return %arg0, %arg1, %c0_i32 : i32, i32, i32
  }
  func.func @transform_3(%arg0: i32, %arg1: i32, %arg2: i32) -> (i32, i32, i32) {
    %c0_i32 = arith.constant 0 : i32
    %c0_i32_0 = arith.constant 0 : i32
    return %arg0, %arg1, %c0_i32 : i32, i32, i32
  }
  func.func @transform_4(%arg0: i32, %arg1: i32, %arg2: i32) -> (i32, i32, i32) {
    %c0_i32 = arith.constant 0 : i32
    %c0_i32_0 = arith.constant 0 : i32
    return %arg0, %arg1, %c0_i32 : i32, i32, i32
  }
}

module attributes {stable_mosaic.version = 11 : i64} {
  func.func @_gemm_stats_kernel(%arg0: i32, %arg1: i32, %arg2: i32, %arg3: memref<1x16x576xbf16, #tpu.memory_space<vmem>>, %arg4: memref<576x256xbf16, #tpu.memory_space<vmem>>, %arg5: memref<1x16x256xbf16, #tpu.memory_space<vmem>>, %arg6: memref<1x8x256xf32, #tpu.memory_space<vmem>>, %arg7: memref<1x8x256xf32, #tpu.memory_space<vmem>>, %arg8: memref<16x256xf32, #tpu.memory_space<vmem>>) attributes {dimension_semantics = [#tpu.dimension_semantics<parallel>, #tpu.dimension_semantics<parallel>, #tpu.dimension_semantics<arbitrary>], iteration_bounds = array<i64: 2, 1, 1>, scalar_prefetch = 0 : i64, scratch_operands = 1 : i64, tpu.core_type = #tpu.core_type<tc>, window_params = [{transform_indices = @transform_0, window_bounds = array<i64: 1, 16, 576>}, {transform_indices = @transform_1, window_bounds = array<i64: 576, 256>}, {transform_indices = @transform_2, window_bounds = array<i64: 1, 16, 256>}, {transform_indices = @transform_3, window_bounds = array<i64: 1, 8, 256>}, {transform_indices = @transform_4, window_bounds = array<i64: 1, 8, 256>}]} {
    %c0_i32 = arith.constant 0 : i32
    %0 = arith.cmpi eq, %arg2, %c0_i32 : i32
    %1 = arith.extui %0 : i1 to i32
    %c0_i32_0 = arith.constant 0 : i32
    %2 = arith.cmpi ne, %1, %c0_i32_0 : i32
    scf.if %2 {
      %cst_12 = arith.constant 0.000000e+00 : f32
      %15 = vector.broadcast %cst_12 : f32 to vector<16x256xf32>
      %c0_13 = arith.constant 0 : index
      %c0_14 = arith.constant 0 : index
      %16 = vector.load %arg8[%c0_13, %c0_14] : memref<16x256xf32, #tpu.memory_space<vmem>>, vector<16x256xf32>
      tpu.vector_store %arg8[%c0_13, %c0_14], %15 {strides = array<i32>} : memref<16x256xf32, #tpu.memory_space<vmem>>, vector<16x256xf32>,
    } else {
    }
    %c0 = arith.constant 0 : index
    %c0_1 = arith.constant 0 : index
    %c0_2 = arith.constant 0 : index
    %3 = vector.load %arg3[%c0, %c0_1, %c0_2] : memref<1x16x576xbf16, #tpu.memory_space<vmem>>, vector<1x16x576xbf16>
    %4 = vector.shape_cast %3 : vector<1x16x576xbf16> to vector<16x576xbf16>
    %cst = arith.constant 0.000000e+00 : bf16
    %5 = vector.broadcast %cst : bf16 to vector<16x576xbf16>
    %6 = arith.maximumf %4, %5 : vector<16x576xbf16>
    %c0_3 = arith.constant 0 : index
    %c0_4 = arith.constant 0 : index
    %7 = vector.load %arg8[%c0_3, %c0_4] : memref<16x256xf32, #tpu.memory_space<vmem>>, vector<16x256xf32>
    %c0_5 = arith.constant 0 : index
    %c0_6 = arith.constant 0 : index
    %8 = vector.load %arg4[%c0_5, %c0_6] : memref<576x256xbf16, #tpu.memory_space<vmem>>, vector<576x256xbf16>
    %cst_7 = arith.constant dense<0.000000e+00> : vector<16x256xf32>
    %9 = tpu.matmul %6, %8, %cst_7 {dimension_numbers = #tpu.dot_dimension_numbers<[1], [0], [0], [1], [0, 0, 1, 1], [], []>} : vector<16x576xbf16>, vector<576x256xbf16>, vector<16x256xf32> -> vector<16x256xf32>
    %10 = arith.addf %7, %9 : vector<16x256xf32>
    %c0_8 = arith.constant 0 : index
    %c0_9 = arith.constant 0 : index
    %11 = vector.load %arg8[%c0_8, %c0_9] : memref<16x256xf32, #tpu.memory_space<vmem>>, vector<16x256xf32>
    tpu.vector_store %arg8[%c0_8, %c0_9], %10 {strides = array<i32>} : memref<16x256xf32, #tpu.memory_space<vmem>>, vector<16x256xf32>,
    %c0_i32_10 = arith.constant 0 : i32
    %12 = arith.cmpi eq, %arg2, %c0_i32_10 : i32
    %13 = arith.extui %12 : i1 to i32
    %c0_i32_11 = arith.constant 0 : i32
    %14 = arith.cmpi ne, %13, %c0_i32_11 : i32
    scf.if %14 {
      %c0_12 = arith.constant 0 : index
      %c0_13 = arith.constant 0 : index
      %15 = vector.load %arg8[%c0_12, %c0_13] : memref<16x256xf32, #tpu.memory_space<vmem>>, vector<16x256xf32>
      %16 = arith.truncf %15 : vector<16x256xf32> to vector<16x256xbf16>
      %c0_14 = arith.constant 0 : index
      %c0_15 = arith.constant 0 : index
      %c0_16 = arith.constant 0 : index
      %17 = vector.load %arg5[%c0_14, %c0_15, %c0_16] : memref<1x16x256xbf16, #tpu.memory_space<vmem>>, vector<1x16x256xbf16>
      %18 = vector.shape_cast %17 : vector<1x16x256xbf16> to vector<16x256xbf16>
      %19 = vector.shape_cast %16 : vector<16x256xbf16> to vector<1x16x256xbf16>
      tpu.vector_store %arg5[%c0_14, %c0_15, %c0_16], %19 {strides = array<i32>} : memref<1x16x256xbf16, #tpu.memory_space<vmem>>, vector<1x16x256xbf16>,
      %cst_17 = arith.constant dense<0.000000e+00> : vector<256xf32>
      %20 = vector.multi_reduction <add>, %15, %cst_17 [0] : vector<16x256xf32> to vector<256xf32>
      %21 = vector.shape_cast %20 : vector<256xf32> to vector<1x256xf32>
      %22 = arith.mulf %15, %15 : vector<16x256xf32>
      %cst_18 = arith.constant dense<0.000000e+00> : vector<256xf32>
      %23 = vector.multi_reduction <add>, %22, %cst_18 [0] : vector<16x256xf32> to vector<256xf32>
      %24 = vector.shape_cast %23 : vector<256xf32> to vector<1x256xf32>
      %25 = vector.shape_cast %21 : vector<1x256xf32> to vector<1x256xf32>
      %26 = vector.broadcast %25 : vector<1x256xf32> to vector<8x256xf32>
      %c0_19 = arith.constant 0 : index
      %c0_20 = arith.constant 0 : index
      %c0_21 = arith.constant 0 : index
      %27 = vector.load %arg6[%c0_19, %c0_20, %c0_21] : memref<1x8x256xf32, #tpu.memory_space<vmem>>, vector<1x8x256xf32>
      %28 = vector.shape_cast %27 : vector<1x8x256xf32> to vector<8x256xf32>
      %29 = vector.shape_cast %26 : vector<8x256xf32> to vector<1x8x256xf32>
      tpu.vector_store %arg6[%c0_19, %c0_20, %c0_21], %29 {strides = array<i32>} : memref<1x8x256xf32, #tpu.memory_space<vmem>>, vector<1x8x256xf32>,
      %30 = vector.shape_cast %24 : vector<1x256xf32> to vector<1x256xf32>
      %31 = vector.broadcast %30 : vector<1x256xf32> to vector<8x256xf32>
      %c0_22 = arith.constant 0 : index
      %c0_23 = arith.constant 0 : index
      %c0_24 = arith.constant 0 : index
      %32 = vector.load %arg7[%c0_22, %c0_23, %c0_24] : memref<1x8x256xf32, #tpu.memory_space<vmem>>, vector<1x8x256xf32>
      %33 = vector.shape_cast %32 : vector<1x8x256xf32> to vector<8x256xf32>
      %34 = vector.shape_cast %31 : vector<8x256xf32> to vector<1x8x256xf32>
      tpu.vector_store %arg7[%c0_22, %c0_23, %c0_24], %34 {strides = array<i32>} : memref<1x8x256xf32, #tpu.memory_space<vmem>>, vector<1x8x256xf32>,
    } else {
    }
    return
  }
  func.func @transform_0(%arg0: i32, %arg1: i32, %arg2: i32) -> (i32, i32, i32) {
    %c0_i32 = arith.constant 0 : i32
    return %arg0, %arg1, %arg2 : i32, i32, i32
  }
  func.func @transform_1(%arg0: i32, %arg1: i32, %arg2: i32) -> (i32, i32) {
    %c0_i32 = arith.constant 0 : i32
    %c0_i32_0 = arith.constant 0 : i32
    return %arg2, %c0_i32 : i32, i32
  }
  func.func @transform_2(%arg0: i32, %arg1: i32, %arg2: i32) -> (i32, i32, i32) {
    %c0_i32 = arith.constant 0 : i32
    %c0_i32_0 = arith.constant 0 : i32
    return %arg0, %arg1, %c0_i32 : i32, i32, i32
  }
  func.func @transform_3(%arg0: i32, %arg1: i32, %arg2: i32) -> (i32, i32, i32) {
    %c0_i32 = arith.constant 0 : i32
    %c0_i32_0 = arith.constant 0 : i32
    return %arg0, %arg1, %c0_i32 : i32, i32, i32
  }
  func.func @transform_4(%arg0: i32, %arg1: i32, %arg2: i32) -> (i32, i32, i32) {
    %c0_i32 = arith.constant 0 : i32
    %c0_i32_0 = arith.constant 0 : i32
    return %arg0, %arg1, %c0_i32 : i32, i32, i32
  }
}

module attributes {stable_mosaic.version = 11 : i64} {
  func.func @_scale_shift_kernel(%arg0: i32, %arg1: i32, %arg2: memref<1x16x256xbf16, #tpu.memory_space<vmem>>, %arg3: memref<1x8x256xf32, #tpu.memory_space<vmem>>, %arg4: memref<1x8x256xf32, #tpu.memory_space<vmem>>, %arg5: memref<1x16x256xbf16, #tpu.memory_space<vmem>>) attributes {dimension_semantics = [#tpu.dimension_semantics<parallel>, #tpu.dimension_semantics<parallel>], iteration_bounds = array<i64: 2, 1>, scalar_prefetch = 0 : i64, scratch_operands = 0 : i64, tpu.core_type = #tpu.core_type<tc>, window_params = [{transform_indices = @transform_0, window_bounds = array<i64: 1, 16, 256>}, {transform_indices = @transform_1, window_bounds = array<i64: 1, 8, 256>}, {transform_indices = @transform_2, window_bounds = array<i64: 1, 8, 256>}, {transform_indices = @transform_3, window_bounds = array<i64: 1, 16, 256>}]} {
    %c0 = arith.constant 0 : index
    %c0_0 = arith.constant 0 : index
    %c0_1 = arith.constant 0 : index
    %0 = vector.load %arg3[%c0, %c0_0, %c0_1] : memref<1x8x256xf32, #tpu.memory_space<vmem>>, vector<1x8x256xf32>
    %1 = vector.shape_cast %0 : vector<1x8x256xf32> to vector<8x256xf32>
    %2 = vector.extract_strided_slice %1 {offsets = [0, 0], sizes = [1, 256], strides = [1, 1]} : vector<8x256xf32> to vector<1x256xf32>
    %c0_2 = arith.constant 0 : index
    %c0_3 = arith.constant 0 : index
    %c0_4 = arith.constant 0 : index
    %3 = vector.load %arg4[%c0_2, %c0_3, %c0_4] : memref<1x8x256xf32, #tpu.memory_space<vmem>>, vector<1x8x256xf32>
    %4 = vector.shape_cast %3 : vector<1x8x256xf32> to vector<8x256xf32>
    %5 = vector.extract_strided_slice %4 {offsets = [0, 0], sizes = [1, 256], strides = [1, 1]} : vector<8x256xf32> to vector<1x256xf32>
    %c0_5 = arith.constant 0 : index
    %c0_6 = arith.constant 0 : index
    %c0_7 = arith.constant 0 : index
    %6 = vector.load %arg2[%c0_5, %c0_6, %c0_7] : memref<1x16x256xbf16, #tpu.memory_space<vmem>>, vector<1x16x256xbf16>
    %7 = vector.shape_cast %6 : vector<1x16x256xbf16> to vector<16x256xbf16>
    %8 = arith.extf %7 : vector<16x256xbf16> to vector<16x256xf32>
    %9 = vector.broadcast %2 : vector<1x256xf32> to vector<16x256xf32>
    %10 = arith.mulf %8, %9 : vector<16x256xf32>
    %11 = vector.broadcast %5 : vector<1x256xf32> to vector<16x256xf32>
    %12 = arith.addf %10, %11 : vector<16x256xf32>
    %13 = arith.truncf %12 : vector<16x256xf32> to vector<16x256xbf16>
    %c0_8 = arith.constant 0 : index
    %c0_9 = arith.constant 0 : index
    %c0_10 = arith.constant 0 : index
    %14 = vector.load %arg5[%c0_8, %c0_9, %c0_10] : memref<1x16x256xbf16, #tpu.memory_space<vmem>>, vector<1x16x256xbf16>
    %15 = vector.shape_cast %14 : vector<1x16x256xbf16> to vector<16x256xbf16>
    %16 = vector.shape_cast %13 : vector<16x256xbf16> to vector<1x16x256xbf16>
    tpu.vector_store %arg5[%c0_8, %c0_9, %c0_10], %16 {strides = array<i32>} : memref<1x16x256xbf16, #tpu.memory_space<vmem>>, vector<1x16x256xbf16>,
    return
  }
  func.func @transform_0(%arg0: i32, %arg1: i32) -> (i32, i32, i32) {
    %c0_i32 = arith.constant 0 : i32
    %c0_i32_0 = arith.constant 0 : i32
    return %arg0, %arg1, %c0_i32 : i32, i32, i32
  }
  func.func @transform_1(%arg0: i32, %arg1: i32) -> (i32, i32, i32) {
    %c0_i32 = arith.constant 0 : i32
    %c0_i32_0 = arith.constant 0 : i32
    %c0_i32_1 = arith.constant 0 : i32
    return %arg0, %c0_i32, %c0_i32_0 : i32, i32, i32
  }
  func.func @transform_2(%arg0: i32, %arg1: i32) -> (i32, i32, i32) {
    %c0_i32 = arith.constant 0 : i32
    %c0_i32_0 = arith.constant 0 : i32
    %c0_i32_1 = arith.constant 0 : i32
    return %arg0, %c0_i32, %c0_i32_0 : i32, i32, i32
  }
  func.func @transform_3(%arg0: i32, %arg1: i32) -> (i32, i32, i32) {
    %c0_i32 = arith.constant 0 : i32
    %c0_i32_0 = arith.constant 0 : i32
    return %arg0, %arg1, %c0_i32 : i32, i32, i32
  }
}

</mosaic_0001>

<llo_original>
// kernel: mixnet_encode.10
$region0: #{mixnet_encode.10}
  #allocation0 [shape = 'u32[]', space=smem, size = 0x4, offset = 0x4, fixed_abs, tag = 'smem constant byte address 0x4 - core index']
  #allocation1 [shape = 'u32[144,128]{1,0:T(1,128)}', space=vmem, size = 0x12000, scoped, tag = 'internal scratch']
  #allocation2 [shape = 'f32[512,128]{1,0:T(8,128)}', space=vmem, size = 0x40000, scoped, tag = 'scratch operand']
  %s0 = inlined_call_operand.vmem [shape: bf16[2,512,48], index: 0, kind: input, shape index: {}]
  %s1 = inlined_call_operand.vmem [shape: bf16[48,128], index: 1, kind: input, shape index: {}]
  %s2 = inlined_call_operand.vmem [shape: bf16[2,512,128], index: 2, kind: output, shape index: {0}]
  %s3 = inlined_call_operand.hbm [shape: f32[2,8,128], index: 3, kind: output, shape index: {1}]
  %s4 = inlined_call_operand.hbm [shape: f32[2,8,128], index: 4, kind: output, shape index: {2}]
  %5 = xla_tuple %s2, %s3, %s4
  %s6 = sld [smem:[#allocation0]]
  $region65: #{mixnet_encode.10} parent=0
    _
  %s8 = ssub.s32 1, %s6
  %s9 = scalar_select 0, %s8, %s6
  $region1: #{mixnet_encode.10} parent=0
    #allocation3 [shape = 'u8[8192]{0}', space=vmem, size = 0x2000, scoped, tag = 'output window, operand 1']
    #allocation4 [shape = 's32[2]{0}', space=sflag, size = 0x8, scoped, tag = 'scoped memory for mixnet_encode.10']
    #allocation5 [shape = 'u8[8192]{0}', space=vmem, size = 0x2000, scoped, tag = 'output window, operand 2']
    #allocation6 [shape = 's32[2]{0}', space=sflag, size = 0x8, scoped, tag = 'scoped memory for mixnet_encode.10']
    %10 = vsyncpa [#allocation4], 0
    %s11 = scalar_lea.sflag [#allocation4], 1
    %12 = vsyncpa %s11, 0
    %13 = vsyncpa [#allocation6], 0
    %s14 = scalar_lea.sflag [#allocation6], 1
    %15 = vsyncpa %s14, 0
    loop: start=0, step=1, limit=4
    $region2: #{mixnet_encode.10} parent=1 // loop_pre_header
      _
    $region3: #{mixnet_encode.10} parent=1 // loop_header
      %s17 = sphi 0, %s21
      %p18 = scmp.ge.s32.totalorder %s17, 4
      %s24 = sphi 0, %s43
      %s25 = sphi 0, %s39
      %s26 = sphi 0, %s35
      %s27 = sphi 0, %s24
      %s28 = sphi 0, %s25
      %s29 = sphi 0, %s26
      %s30 = sphi 0, %s27
      %s31 = sphi 0, %s28
      %s32 = sphi 0, %s29
      %s50 = sphi 0, %s52
      %s53 = sphi 0, %s50
      %s54 = sphi 0, %s53
      %s70 = sphi 0, %s54
      %s76 = sphi 0, %s78
      %s79 = sphi 0, %s76
      %s80 = sphi 0, %s79
      %s96 = sphi 0, %s80
      %s104 = sphi 0, %s106
      %s107 = sphi 0, %s104
      %s108 = sphi 0, %s107
      %s124 = sphi 0, %s108
      %s132 = sphi 0, %s134
      %s135 = sphi 0, %s132
      %s136 = sphi 0, %s135
      %s152 = sphi 0, %s136
      %s160 = sphi 0, %s162
      %s163 = sphi 0, %s160
      %s164 = sphi 0, %s163
      %s180 = sphi 0, %s164
    $region4: #{mixnet_encode.10} parent=1 // loop_header_branch
      %20 = sbr.rel (%p18) target = $region8
    $region5: #{mixnet_encode.10} parent=1 // loop_body
      %s22 = ssub.s32 %s17, 1
      %s23 = ssub.s32 %s17, 2
      %s33 = sadd.s32 1, %s26
      %p34 = scmp.ge.s32.totalorder %s33, 1
      %s35 = scalar_select %p34, 0, %s33
      %s36 = sadd.s32 1, %s25
      %s37 = scalar_select %p34, %s36, %s25
      %p38 = scmp.ge.s32.totalorder %s37, 1
      %s39 = scalar_select %p38, 0, %s37
      %s40 = sadd.s32 1, %s24
      %s41 = scalar_select %p38, %s40, %s24
      %p42 = scmp.ge.s32.totalorder %s41, 2
      %s43 = scalar_select %p42, 0, %s41
      %s44 = ssub.s32 %s24, %s43
      %s45 = ssub.s32 %s25, %s39
      %s46 = sor.u32 %s44, %s45
      %s47 = ssub.s32 %s26, %s35
      %s48 = sor.u32 %s46, %s47
      %p49 = scmp.eq.s32.totalorder %s48, 0
      %s51 = sadd.s32 %s50, 1
      %s52 = scalar_select %p49, %s50, %s51
      %p55 = pneg %p49
      %p56 = scmp.eq.s32.totalorder %s17, 1
      %p57 = por %p55, %p56
      %p58 = scmp.ne.s32.totalorder %s50, %s53
      %p59 = scmp.eq.s32.totalorder %s17, 0
      %p60 = por %p58, %p59
      %p61 = scmp.ne.s32.totalorder %s50, %s53
      %p62 = scmp.eq.s32.totalorder %s22, 1
      %p63 = por %p61, %p62
      %p64 = scmp.ne.s32.totalorder %s53, %s54
      %p65 = scmp.eq.s32.totalorder %s22, 0
      %p66 = por %p64, %p65
      %p67 = scmp.ne.s32.totalorder %s53, %s54
      %p68 = scmp.eq.s32.totalorder %s23, 1
      %p69 = por %p67, %p68
      %p71 = scmp.ne.s32.totalorder %s54, %s70
      %p72 = scmp.eq.s32.totalorder %s23, 0
      %p73 = por %p71, %p72
      %s74 = ssub.s32 %s26, %s35
      %p75 = scmp.eq.s32.totalorder %s74, 0
      %s77 = sadd.s32 %s76, 1
      %s78 = scalar_select %p75, %s76, %s77
      %p81 = pneg %p75
      %p82 = scmp.eq.s32.totalorder %s17, 1
      %p83 = por %p81, %p82
      %p84 = scmp.ne.s32.totalorder %s76, %s79
      %p85 = scmp.eq.s32.totalorder %s17, 0
      %p86 = por %p84, %p85
      %p87 = scmp.ne.s32.totalorder %s76, %s79
      %p88 = scmp.eq.s32.totalorder %s22, 1
      %p89 = por %p87, %p88
      %p90 = scmp.ne.s32.totalorder %s79, %s80
      %p91 = scmp.eq.s32.totalorder %s22, 0
      %p92 = por %p90, %p91
      %p93 = scmp.ne.s32.totalorder %s79, %s80
      %p94 = scmp.eq.s32.totalorder %s23, 1
      %p95 = por %p93, %p94
      %p97 = scmp.ne.s32.totalorder %s80, %s96
      %p98 = scmp.eq.s32.totalorder %s23, 0
      %p99 = por %p97, %p98
      %s100 = ssub.s32 %s24, %s43
      %s101 = ssub.s32 %s25, %s39
      %s102 = sor.u32 %s100, %s101
      %p103 = scmp.eq.s32.totalorder %s102, 0
      %s105 = sadd.s32 %s104, 1
      %s106 = scalar_select %p103, %s104, %s105
      %p109 = pneg %p103
      %p110 = scmp.eq.s32.totalorder %s17, 1
      %p111 = por %p109, %p110
      %p112 = scmp.ne.s32.totalorder %s104, %s107
      %p113 = scmp.eq.s32.totalorder %s17, 0
      %p114 = por %p112, %p113
      %p115 = scmp.ne.s32.totalorder %s104, %s107
      %p116 = scmp.eq.s32.totalorder %s22, 1
      %p117 = por %p115, %p116
      %p118 = scmp.ne.s32.totalorder %s107, %s108
      %p119 = scmp.eq.s32.totalorder %s22, 0
      %p120 = por %p118, %p119
      %p121 = scmp.ne.s32.totalorder %s107, %s108
      %p122 = scmp.eq.s32.totalorder %s23, 1
      %p123 = por %p121, %p122
      %p125 = scmp.ne.s32.totalorder %s108, %s124
      %p126 = scmp.eq.s32.totalorder %s23, 0
      %p127 = por %p125, %p126
      %s128 = ssub.s32 %s24, %s43
      %s129 = ssub.s32 %s25, %s39
      %s130 = sor.u32 %s128, %s129
      %p131 = scmp.eq.s32.totalorder %s130, 0
      %s133 = sadd.s32 %s132, 1
      %s134 = scalar_select %p131, %s132, %s133
      %p137 = pneg %p131
      %p138 = scmp.eq.s32.totalorder %s17, 1
      %p139 = por %p137, %p138
      %p140 = scmp.ne.s32.totalorder %s132, %s135
      %p141 = scmp.eq.s32.totalorder %s17, 0
      %p142 = por %p140, %p141
      %p143 = scmp.ne.s32.totalorder %s132, %s135
      %p144 = scmp.eq.s32.totalorder %s22, 1
      %p145 = por %p143, %p144
      %p146 = scmp.ne.s32.totalorder %s135, %s136
      %p147 = scmp.eq.s32.totalorder %s22, 0
      %p148 = por %p146, %p147
      %p149 = scmp.ne.s32.totalorder %s135, %s136
      %p150 = scmp.eq.s32.totalorder %s23, 1
      %p151 = por %p149, %p150
      %p153 = scmp.ne.s32.totalorder %s136, %s152
      %p154 = scmp.eq.s32.totalorder %s23, 0
      %p155 = por %p153, %p154
      %s156 = ssub.s32 %s24, %s43
      %s157 = ssub.s32 %s25, %s39
      %s158 = sor.u32 %s156, %s157
      %p159 = scmp.eq.s32.totalorder %s158, 0
      %s161 = sadd.s32 %s160, 1
      %s162 = scalar_select %p159, %s160, %s161
      %p165 = pneg %p159
      %p166 = scmp.eq.s32.totalorder %s17, 1
      %p167 = por %p165, %p166
      %p168 = scmp.ne.s32.totalorder %s160, %s163
      %p169 = scmp.eq.s32.totalorder %s17, 0
      %p170 = por %p168, %p169
      %p171 = scmp.ne.s32.totalorder %s160, %s163
      %p172 = scmp.eq.s32.totalorder %s22, 1
      %p173 = por %p171, %p172
      %p174 = scmp.ne.s32.totalorder %s163, %s164
      %p175 = scmp.eq.s32.totalorder %s22, 0
      %p176 = por %p174, %p175
      %p177 = scmp.ne.s32.totalorder %s163, %s164
      %p178 = scmp.eq.s32.totalorder %s23, 1
      %p179 = por %p177, %p178
      %p181 = scmp.ne.s32.totalorder %s164, %s180
      %p182 = scmp.eq.s32.totalorder %s23, 0
      %p183 = por %p181, %p182
      %p184 = scmp.le.s32.totalorder 1, %s17
      %p185 = scmp.lt.s32.totalorder %s17, 3
      %p186 = pnand %p184, %p185
      %p187 = pneg %p186
      // Predicated region
      $region9: #{mixnet_encode.10} parent=5 // pred_check
        _
      $region10: #{mixnet_encode.10} parent=5 // pred_check_branch
        %189 = sbr.rel (%p186) target = $region12
      $region11: #{mixnet_encode.10} parent=5 // pred_region
        %s190 = ssub.s32 %s17, 1
        // Predicated region
        $region13: #{mixnet_encode.10} parent=11 // pred_check
          %p191 = pneg %p92
        $region14: #{mixnet_encode.10} parent=11 // pred_check_branch
          %193 = sbr.rel (%p191) target = $region16
        $region15: #{mixnet_encode.10} parent=11 // pred_region
          %s194 = smul.u32 6, %s29
          %p195 = scmp.lt.s32.totalorder %s194, 5
          %s196 = scalar_select %p195, %s194, 5
          %s197 = smul.addr %s196, 4
          %s198 = scalar_lea.vmem %s1, %s197
          %s199 = smul.u32 6, %s29
        $region16: #{mixnet_encode.10} parent=11 // pred_fallthru
          _
      $region12: #{mixnet_encode.10} parent=5 // pred_fallthru
        _
      %p200 = scmp.lt.s32.totalorder %s17, 2
      // Predicated region
      $region17: #{mixnet_encode.10} parent=5 // pred_check
        %p201 = pneg %p200
      $region18: #{mixnet_encode.10} parent=5 // pred_check_branch
        %203 = sbr.rel (%p201) target = $region20
      $region19: #{mixnet_encode.10} parent=5 // pred_region
        // Predicated region
        $region21: #{mixnet_encode.10} parent=19 // pred_check
          %p204 = pneg %p60
        $region22: #{mixnet_encode.10} parent=19 // pred_check_branch
          %206 = sbr.rel (%p204) target = $region24
        $region23: #{mixnet_encode.10} parent=19 // pred_region
          %s207 = smul.u32 64, %s25
          %p208 = scmp.lt.s32.totalorder %s24, 1
          %s209 = scalar_select %p208, %s24, 1
          %p210 = scmp.lt.s32.totalorder %s207, 63
          %s211 = scalar_select %p210, %s207, 63
          %p212 = scmp.lt.s32.totalorder %s26, 0
          %s213 = scalar_select %p212, %s26, 0
          %s214 = sadd.s32 %s213, %s211
          %s215 = smul.addr %s209, 64
          %s216 = sadd.s32 %s214, %s215
          %s217 = smul.addr %s216, 4
          %s218 = scalar_lea.vmem %s0, %s217
          %s219 = smul.u32 64, %s25
        $region24: #{mixnet_encode.10} parent=19 // pred_fallthru
          _
      $region20: #{mixnet_encode.10} parent=5 // pred_fallthru
        _
      %p220 = scmp.le.s32.totalorder 1, %s17
      %p221 = scmp.lt.s32.totalorder %s17, 3
      %p222 = pnand %p220, %p221
      %p223 = pneg %p222
      // Predicated region
      $region25: #{mixnet_encode.10} parent=5 // pred_check
        _
      $region26: #{mixnet_encode.10} parent=5 // pred_check_branch
        %225 = sbr.rel (%p222) target = $region28
      $region27: #{mixnet_encode.10} parent=5 // pred_region
        %s226 = ssub.s32 %s17, 1
        %s227 = smul.u32 64, %s28
        %p228 = scmp.lt.s32.totalorder %s27, 1
        %s229 = scalar_select %p228, %s27, 1
        %p230 = scmp.lt.s32.totalorder %s227, 63
        %s231 = scalar_select %p230, %s227, 63
        %p232 = scmp.lt.s32.totalorder %s29, 0
        %s233 = scalar_select %p232, %s29, 0
        %s234 = sadd.s32 %s233, %s231
        %s235 = smul.addr %s229, 64
        %s236 = sadd.s32 %s234, %s235
        %s237 = smul.addr %s236, 4
        %s238 = scalar_lea.vmem %s0, %s237
        %p239 = pneg %p66
        %p240 = pneg %p63
        %s241 = smul.u32 6, %s29
        %p242 = scmp.lt.s32.totalorder %s241, 5
        %s243 = scalar_select %p242, %s241, 5
        %s244 = smul.addr %s243, 4
        %s245 = scalar_lea.vmem %s1, %s244
        %p246 = pneg %p92
        %p247 = pneg %p89
        %p248 = pneg %p120
        %p249 = pneg %p117
        %s250 = smul.u32 64, %s28
        %p251 = scmp.lt.s32.totalorder %s27, 1
        %s252 = scalar_select %p251, %s27, 1
        %p253 = scmp.lt.s32.totalorder %s250, 63
        %s254 = scalar_select %p253, %s250, 63
        %s255 = smul.addr %s252, 64
        %s256 = sadd.s32 %s254, %s255
        %s257 = smul.addr %s256, 4
        %s258 = scalar_lea.vmem %s2, %s257
        %p259 = pneg %p148
        %p260 = pneg %p145
        %s261 = sand.u32 %s135, 1
        %s262 = scalar_lea.sflag [#allocation4], %s261
        %s263 = sand.u32 %s135, 1
        %s264 = smul.addr %s263, 8
        %s265 = scalar_lea.vmem [#allocation3], %s264
        %p266 = pneg %p176
        %p267 = pneg %p173
        %s268 = sand.u32 %s163, 1
        %s269 = scalar_lea.sflag [#allocation6], %s268
        %s270 = sand.u32 %s163, 1
        %s271 = smul.addr %s270, 8
        %s272 = scalar_lea.vmem [#allocation5], %s271
        %s273 = smul.u32 64, %s28
        %p274 = scmp.lt.s32.totalorder %s27, 1
        %s275 = scalar_select %p274, %s27, 1
        %p276 = scmp.lt.s32.totalorder %s273, 63
        %s277 = scalar_select %p276, %s273, 63
        %p278 = scmp.lt.s32.totalorder %s29, 0
        %s279 = scalar_select %p278, %s29, 0
        %s280 = sadd.s32 %s279, %s277
        %s281 = smul.addr %s275, 64
        %s282 = sadd.s32 %s280, %s281
        %s283 = smul.addr %s282, 4
        %s284 = scalar_lea.vmem %s0, %s283
        %s285 = smul.u32 64, %s28
        %s286 = smul.u32 6, %s29
        %p287 = scmp.lt.s32.totalorder %s286, 5
        %s288 = scalar_select %p287, %s286, 5
        %s289 = smul.addr %s288, 4
        %s290 = scalar_lea.vmem %s1, %s289
        %s291 = smul.u32 6, %s29
        %s292 = smul.u32 64, %s28
        %p293 = scmp.lt.s32.totalorder %s27, 1
        %s294 = scalar_select %p293, %s27, 1
        %p295 = scmp.lt.s32.totalorder %s292, 63
        %s296 = scalar_select %p295, %s292, 63
        %s297 = smul.addr %s294, 64
        %s298 = sadd.s32 %s296, %s297
        %s299 = smul.addr %s298, 4
        %s300 = scalar_lea.vmem %s2, %s299
        %s301 = smul.u32 64, %s28
        %p303 = scmp.eq.s32.totalorder %s29, 0
        // Predicated region
        $region29: #{mixnet_encode.10} parent=27 // pred_check
          %p304 = pneg %p303
        $region30: #{mixnet_encode.10} parent=27 // pred_check_branch
          %306 = sbr.rel (%p304) target = $region32
        $region31: #{mixnet_encode.10} parent=27 // pred_region
          %307 = vst [vmem:[#allocation2] sm:$0xff] 0.0
          %308 = vst [vmem:[#allocation2 + $0x8] sm:$0xff] 0.0
          %309 = vst [vmem:[#allocation2 + $0x10] sm:$0xff] 0.0
          %310 = vst [vmem:[#allocation2 + $0x18] sm:$0xff] 0.0
          %311 = vst [vmem:[#allocation2 + $0x20] sm:$0xff] 0.0
          %312 = vst [vmem:[#allocation2 + $0x28] sm:$0xff] 0.0
          %313 = vst [vmem:[#allocation2 + $0x30] sm:$0xff] 0.0
          %314 = vst [vmem:[#allocation2 + $0x38] sm:$0xff] 0.0
          %315 = vst [vmem:[#allocation2 + $0x40] sm:$0xff] 0.0
          %316 = vst [vmem:[#allocation2 + $0x48] sm:$0xff] 0.0
          %317 = vst [vmem:[#allocation2 + $0x50] sm:$0xff] 0.0
          %318 = vst [vmem:[#allocation2 + $0x58] sm:$0xff] 0.0
          %319 = vst [vmem:[#allocation2 + $0x60] sm:$0xff] 0.0
          %320 = vst [vmem:[#allocation2 + $0x68] sm:$0xff] 0.0
          %321 = vst [vmem:[#allocation2 + $0x70] sm:$0xff] 0.0
          %322 = vst [vmem:[#allocation2 + $0x78] sm:$0xff] 0.0
          %323 = vst [vmem:[#allocation2 + $0x80] sm:$0xff] 0.0
          %324 = vst [vmem:[#allocation2 + $0x88] sm:$0xff] 0.0
          %325 = vst [vmem:[#allocation2 + $0x90] sm:$0xff] 0.0
          %326 = vst [vmem:[#allocation2 + $0x98] sm:$0xff] 0.0
          %327 = vst [vmem:[#allocation2 + $0xa0] sm:$0xff] 0.0
          %328 = vst [vmem:[#allocation2 + $0xa8] sm:$0xff] 0.0
          %329 = vst [vmem:[#allocation2 + $0xb0] sm:$0xff] 0.0
          %330 = vst [vmem:[#allocation2 + $0xb8] sm:$0xff] 0.0
          %331 = vst [vmem:[#allocation2 + $0xc0] sm:$0xff] 0.0
          %332 = vst [vmem:[#allocation2 + $0xc8] sm:$0xff] 0.0
          %333 = vst [vmem:[#allocation2 + $0xd0] sm:$0xff] 0.0
          %334 = vst [vmem:[#allocation2 + $0xd8] sm:$0xff] 0.0
          %335 = vst [vmem:[#allocation2 + $0xe0] sm:$0xff] 0.0
          %336 = vst [vmem:[#allocation2 + $0xe8] sm:$0xff] 0.0
          %337 = vst [vmem:[#allocation2 + $0xf0] sm:$0xff] 0.0
          %338 = vst [vmem:[#allocation2 + $0xf8] sm:$0xff] 0.0
          %339 = vst [vmem:[#allocation2 + $0x100] sm:$0xff] 0.0
          %340 = vst [vmem:[#allocation2 + $0x108] sm:$0xff] 0.0
          %341 = vst [vmem:[#allocation2 + $0x110] sm:$0xff] 0.0
          %342 = vst [vmem:[#allocation2 + $0x118] sm:$0xff] 0.0
          %343 = vst [vmem:[#allocation2 + $0x120] sm:$0xff] 0.0
          %344 = vst [vmem:[#allocation2 + $0x128] sm:$0xff] 0.0
          %345 = vst [vmem:[#allocation2 + $0x130] sm:$0xff] 0.0
          %346 = vst [vmem:[#allocation2 + $0x138] sm:$0xff] 0.0
          %347 = vst [vmem:[#allocation2 + $0x140] sm:$0xff] 0.0
          %348 = vst [vmem:[#allocation2 + $0x148] sm:$0xff] 0.0
          %349 = vst [vmem:[#allocation2 + $0x150] sm:$0xff] 0.0
          %350 = vst [vmem:[#allocation2 + $0x158] sm:$0xff] 0.0
          %351 = vst [vmem:[#allocation2 + $0x160] sm:$0xff] 0.0
          %352 = vst [vmem:[#allocation2 + $0x168] sm:$0xff] 0.0
          %353 = vst [vmem:[#allocation2 + $0x170] sm:$0xff] 0.0
          %354 = vst [vmem:[#allocation2 + $0x178] sm:$0xff] 0.0
          %355 = vst [vmem:[#allocation2 + $0x180] sm:$0xff] 0.0
          %356 = vst [vmem:[#allocation2 + $0x188] sm:$0xff] 0.0
          %357 = vst [vmem:[#allocation2 + $0x190] sm:$0xff] 0.0
          %358 = vst [vmem:[#allocation2 + $0x198] sm:$0xff] 0.0
          %359 = vst [vmem:[#allocation2 + $0x1a0] sm:$0xff] 0.0
          %360 = vst [vmem:[#allocation2 + $0x1a8] sm:$0xff] 0.0
          %361 = vst [vmem:[#allocation2 + $0x1b0] sm:$0xff] 0.0
          %362 = vst [vmem:[#allocation2 + $0x1b8] sm:$0xff] 0.0
          %363 = vst [vmem:[#allocation2 + $0x1c0] sm:$0xff] 0.0
          %364 = vst [vmem:[#allocation2 + $0x1c8] sm:$0xff] 0.0
          %365 = vst [vmem:[#allocation2 + $0x1d0] sm:$0xff] 0.0
          %366 = vst [vmem:[#allocation2 + $0x1d8] sm:$0xff] 0.0
          %367 = vst [vmem:[#allocation2 + $0x1e0] sm:$0xff] 0.0
          %368 = vst [vmem:[#allocation2 + $0x1e8] sm:$0xff] 0.0
          %369 = vst [vmem:[#allocation2 + $0x1f0] sm:$0xff] 0.0
          %370 = vst [vmem:[#allocation2 + $0x1f8] sm:$0xff] 0.0
        $region32: #{mixnet_encode.10} parent=27 // pred_fallthru
          _
        %v371 = vld [vmem:[%s284] sm:$0xf]
        %v372 = vld [vmem:[%s284 + $0x4] sm:$0xf]
        %v373 = vld [vmem:[%s284 + $0x8] sm:$0xf]
        %v374 = vld [vmem:[%s284 + $0xc] sm:$0xf]
        %v375 = vld [vmem:[%s284 + $0x10] sm:$0xf]
        %v376 = vld [vmem:[%s284 + $0x14] sm:$0xf]
        %v377 = vld [vmem:[%s284 + $0x18] sm:$0xf]
        %v378 = vld [vmem:[%s284 + $0x1c] sm:$0xf]
        %v379 = vld [vmem:[%s284 + $0x20] sm:$0xf]
        %v380 = vld [vmem:[%s284 + $0x24] sm:$0xf]
        %v381 = vld [vmem:[%s284 + $0x28] sm:$0xf]
        %v382 = vld [vmem:[%s284 + $0x2c] sm:$0xf]
        %v383 = vld [vmem:[%s284 + $0x30] sm:$0xf]
        %v384 = vld [vmem:[%s284 + $0x34] sm:$0xf]
        %v385 = vld [vmem:[%s284 + $0x38] sm:$0xf]
        %v386 = vld [vmem:[%s284 + $0x3c] sm:$0xf]
        %v387 = vld [vmem:[%s284 + $0x40] sm:$0xf]
        %v388 = vld [vmem:[%s284 + $0x44] sm:$0xf]
        %v389 = vld [vmem:[%s284 + $0x48] sm:$0xf]
        %v390 = vld [vmem:[%s284 + $0x4c] sm:$0xf]
        %v391 = vld [vmem:[%s284 + $0x50] sm:$0xf]
        %v392 = vld [vmem:[%s284 + $0x54] sm:$0xf]
        %v393 = vld [vmem:[%s284 + $0x58] sm:$0xf]
        %v394 = vld [vmem:[%s284 + $0x5c] sm:$0xf]
        %v395 = vld [vmem:[%s284 + $0x60] sm:$0xf]
        %v396 = vld [vmem:[%s284 + $0x64] sm:$0xf]
        %v397 = vld [vmem:[%s284 + $0x68] sm:$0xf]
        %v398 = vld [vmem:[%s284 + $0x6c] sm:$0xf]
        %v399 = vld [vmem:[%s284 + $0x70] sm:$0xf]
        %v400 = vld [vmem:[%s284 + $0x74] sm:$0xf]
        %v401 = vld [vmem:[%s284 + $0x78] sm:$0xf]
        %v402 = vld [vmem:[%s284 + $0x7c] sm:$0xf]
        %v403 = vld [vmem:[%s284 + $0x80] sm:$0xf]
        %v404 = vld [vmem:[%s284 + $0x84] sm:$0xf]
        %v405 = vld [vmem:[%s284 + $0x88] sm:$0xf]
        %v406 = vld [vmem:[%s284 + $0x8c] sm:$0xf]
        %v407 = vld [vmem:[%s284 + $0x90] sm:$0xf]
        %v408 = vld [vmem:[%s284 + $0x94] sm:$0xf]
        %v409 = vld [vmem:[%s284 + $0x98] sm:$0xf]
        %v410 = vld [vmem:[%s284 + $0x9c] sm:$0xf]
        %v411 = vld [vmem:[%s284 + $0xa0] sm:$0xf]
        %v412 = vld [vmem:[%s284 + $0xa4] sm:$0xf]
        %v413 = vld [vmem:[%s284 + $0xa8] sm:$0xf]
        %v414 = vld [vmem:[%s284 + $0xac] sm:$0xf]
        %v415 = vld [vmem:[%s284 + $0xb0] sm:$0xf]
        %v416 = vld [vmem:[%s284 + $0xb4] sm:$0xf]
        %v417 = vld [vmem:[%s284 + $0xb8] sm:$0xf]
        %v418 = vld [vmem:[%s284 + $0xbc] sm:$0xf]
        %v419 = vld [vmem:[%s284 + $0xc0] sm:$0xf]
        %v420 = vld [vmem:[%s284 + $0xc4] sm:$0xf]
        %v421 = vld [vmem:[%s284 + $0xc8] sm:$0xf]
        %v422 = vld [vmem:[%s284 + $0xcc] sm:$0xf]
        %v423 = vld [vmem:[%s284 + $0xd0] sm:$0xf]
        %v424 = vld [vmem:[%s284 + $0xd4] sm:$0xf]
        %v425 = vld [vmem:[%s284 + $0xd8] sm:$0xf]
        %v426 = vld [vmem:[%s284 + $0xdc] sm:$0xf]
        %v427 = vld [vmem:[%s284 + $0xe0] sm:$0xf]
        %v428 = vld [vmem:[%s284 + $0xe4] sm:$0xf]
        %v429 = vld [vmem:[%s284 + $0xe8] sm:$0xf]
        %v430 = vld [vmem:[%s284 + $0xec] sm:$0xf]
        %v431 = vld [vmem:[%s284 + $0xf0] sm:$0xf]
        %v432 = vld [vmem:[%s284 + $0xf4] sm:$0xf]
        %v433 = vld [vmem:[%s284 + $0xf8] sm:$0xf]
        %v434 = vld [vmem:[%s284 + $0xfc] sm:$0xf]
        %v435 = vld [vmem:[#allocation2] sm:$0xff]
        %v436 = vld [vmem:[#allocation2 + $0x8] sm:$0xff]
        %v437 = vld [vmem:[#allocation2 + $0x10] sm:$0xff]
        %v438 = vld [vmem:[#allocation2 + $0x18] sm:$0xff]
        %v439 = vld [vmem:[#allocation2 + $0x20] sm:$0xff]
        %v440 = vld [vmem:[#allocation2 + $0x28] sm:$0xff]
        %v441 = vld [vmem:[#allocation2 + $0x30] sm:$0xff]
        %v442 = vld [vmem:[#allocation2 + $0x38] sm:$0xff]
        %v443 = vld [vmem:[#allocation2 + $0x40] sm:$0xff]
        %v444 = vld [vmem:[#allocation2 + $0x48] sm:$0xff]
        %v445 = vld [vmem:[#allocation2 + $0x50] sm:$0xff]
        %v446 = vld [vmem:[#allocation2 + $0x58] sm:$0xff]
        %v447 = vld [vmem:[#allocation2 + $0x60] sm:$0xff]
        %v448 = vld [vmem:[#allocation2 + $0x68] sm:$0xff]
        %v449 = vld [vmem:[#allocation2 + $0x70] sm:$0xff]
        %v450 = vld [vmem:[#allocation2 + $0x78] sm:$0xff]
        %v451 = vld [vmem:[#allocation2 + $0x80] sm:$0xff]
        %v452 = vld [vmem:[#allocation2 + $0x88] sm:$0xff]
        %v453 = vld [vmem:[#allocation2 + $0x90] sm:$0xff]
        %v454 = vld [vmem:[#allocation2 + $0x98] sm:$0xff]
        %v455 = vld [vmem:[#allocation2 + $0xa0] sm:$0xff]
        %v456 = vld [vmem:[#allocation2 + $0xa8] sm:$0xff]
        %v457 = vld [vmem:[#allocation2 + $0xb0] sm:$0xff]
        %v458 = vld [vmem:[#allocation2 + $0xb8] sm:$0xff]
        %v459 = vld [vmem:[#allocation2 + $0xc0] sm:$0xff]
        %v460 = vld [vmem:[#allocation2 + $0xc8] sm:$0xff]
        %v461 = vld [vmem:[#allocation2 + $0xd0] sm:$0xff]
        %v462 = vld [vmem:[#allocation2 + $0xd8] sm:$0xff]
        %v463 = vld [vmem:[#allocation2 + $0xe0] sm:$0xff]
        %v464 = vld [vmem:[#allocation2 + $0xe8] sm:$0xff]
        %v465 = vld [vmem:[#allocation2 + $0xf0] sm:$0xff]
        %v466 = vld [vmem:[#allocation2 + $0xf8] sm:$0xff]
        %v467 = vld [vmem:[#allocation2 + $0x100] sm:$0xff]
        %v468 = vld [vmem:[#allocation2 + $0x108] sm:$0xff]
        %v469 = vld [vmem:[#allocation2 + $0x110] sm:$0xff]
        %v470 = vld [vmem:[#allocation2 + $0x118] sm:$0xff]
        %v471 = vld [vmem:[#allocation2 + $0x120] sm:$0xff]
        %v472 = vld [vmem:[#allocation2 + $0x128] sm:$0xff]
        %v473 = vld [vmem:[#allocation2 + $0x130] sm:$0xff]
        %v474 = vld [vmem:[#allocation2 + $0x138] sm:$0xff]
        %v475 = vld [vmem:[#allocation2 + $0x140] sm:$0xff]
        %v476 = vld [vmem:[#allocation2 + $0x148] sm:$0xff]
        %v477 = vld [vmem:[#allocation2 + $0x150] sm:$0xff]
        %v478 = vld [vmem:[#allocation2 + $0x158] sm:$0xff]
        %v479 = vld [vmem:[#allocation2 + $0x160] sm:$0xff]
        %v480 = vld [vmem:[#allocation2 + $0x168] sm:$0xff]
        %v481 = vld [vmem:[#allocation2 + $0x170] sm:$0xff]
        %v482 = vld [vmem:[#allocation2 + $0x178] sm:$0xff]
        %v483 = vld [vmem:[#allocation2 + $0x180] sm:$0xff]
        %v484 = vld [vmem:[#allocation2 + $0x188] sm:$0xff]
        %v485 = vld [vmem:[#allocation2 + $0x190] sm:$0xff]
        %v486 = vld [vmem:[#allocation2 + $0x198] sm:$0xff]
        %v487 = vld [vmem:[#allocation2 + $0x1a0] sm:$0xff]
        %v488 = vld [vmem:[#allocation2 + $0x1a8] sm:$0xff]
        %v489 = vld [vmem:[#allocation2 + $0x1b0] sm:$0xff]
        %v490 = vld [vmem:[#allocation2 + $0x1b8] sm:$0xff]
        %v491 = vld [vmem:[#allocation2 + $0x1c0] sm:$0xff]
        %v492 = vld [vmem:[#allocation2 + $0x1c8] sm:$0xff]
        %v493 = vld [vmem:[#allocation2 + $0x1d0] sm:$0xff]
        %v494 = vld [vmem:[#allocation2 + $0x1d8] sm:$0xff]
        %v495 = vld [vmem:[#allocation2 + $0x1e0] sm:$0xff]
        %v496 = vld [vmem:[#allocation2 + $0x1e8] sm:$0xff]
        %v497 = vld [vmem:[#allocation2 + $0x1f0] sm:$0xff]
        %v498 = vld [vmem:[#allocation2 + $0x1f8] sm:$0xff]
        %v499 = vld [vmem:[%s290] sm:$0xf]
        %v500 = vld [vmem:[%s290 + $0x4] sm:$0xf]
        %v501 = vld [vmem:[%s290 + $0x8] sm:$0xf]
        %v502 = vld [vmem:[%s290 + $0xc] sm:$0xf]
        %v503 = vld [vmem:[%s290 + $0x10] sm:$0xf]
        %v504 = vld [vmem:[%s290 + $0x14] sm:$0xf]
        %v569 = vunpack.c.l.b16 %v371
        %v570 = vunpack.c.l.b16 %v372
        %v571 = vunpack.c.l.b16 %v373
        %v572 = vunpack.c.l.b16 %v374
        %v573 = vunpack.c.l.b16 %v375
        %v574 = vunpack.c.l.b16 %v376
        %v575 = vunpack.c.l.b16 %v377
        %v576 = vunpack.c.l.b16 %v378
        %v577 = vunpack.c.l.b16 %v379
        %v578 = vunpack.c.l.b16 %v380
        %v579 = vunpack.c.l.b16 %v381
        %v580 = vunpack.c.l.b16 %v382
        %v581 = vunpack.c.l.b16 %v383
        %v582 = vunpack.c.l.b16 %v384
        %v583 = vunpack.c.l.b16 %v385
        %v584 = vunpack.c.l.b16 %v386
        %v585 = vunpack.c.l.b16 %v387
        %v586 = vunpack.c.l.b16 %v388
        %v587 = vunpack.c.l.b16 %v389
        %v588 = vunpack.c.l.b16 %v390
        %v589 = vunpack.c.l.b16 %v391
        %v590 = vunpack.c.l.b16 %v392
        %v591 = vunpack.c.l.b16 %v393
        %v592 = vunpack.c.l.b16 %v394
        %v593 = vunpack.c.l.b16 %v395
        %v594 = vunpack.c.l.b16 %v396
        %v595 = vunpack.c.l.b16 %v397
        %v596 = vunpack.c.l.b16 %v398
        %v597 = vunpack.c.l.b16 %v399
        %v598 = vunpack.c.l.b16 %v400
        %v599 = vunpack.c.l.b16 %v401
        %v600 = vunpack.c.l.b16 %v402
        %v601 = vunpack.c.l.b16 %v403
        %v602 = vunpack.c.l.b16 %v404
        %v603 = vunpack.c.l.b16 %v405
        %v604 = vunpack.c.l.b16 %v406
        %v605 = vunpack.c.l.b16 %v407
        %v606 = vunpack.c.l.b16 %v408
        %v607 = vunpack.c.l.b16 %v409
        %v608 = vunpack.c.l.b16 %v410
        %v609 = vunpack.c.l.b16 %v411
        %v610 = vunpack.c.l.b16 %v412
        %v611 = vunpack.c.l.b16 %v413
        %v612 = vunpack.c.l.b16 %v414
        %v613 = vunpack.c.l.b16 %v415
        %v614 = vunpack.c.l.b16 %v416
        %v615 = vunpack.c.l.b16 %v417
        %v616 = vunpack.c.l.b16 %v418
        %v617 = vunpack.c.l.b16 %v419
        %v618 = vunpack.c.l.b16 %v420
        %v619 = vunpack.c.l.b16 %v421
        %v620 = vunpack.c.l.b16 %v422
        %v621 = vunpack.c.l.b16 %v423
        %v622 = vunpack.c.l.b16 %v424
        %v623 = vunpack.c.l.b16 %v425
        %v624 = vunpack.c.l.b16 %v426
        %v625 = vunpack.c.l.b16 %v427
        %v626 = vunpack.c.l.b16 %v428
        %v627 = vunpack.c.l.b16 %v429
        %v628 = vunpack.c.l.b16 %v430
        %v629 = vunpack.c.l.b16 %v431
        %v630 = vunpack.c.l.b16 %v432
        %v631 = vunpack.c.l.b16 %v433
        %v632 = vunpack.c.l.b16 %v434
        %v633 = vpack.c.b16 %v570, %v569
        %v634 = vpack.c.b16 %v572, %v571
        %v635 = vpack.c.b16 %v574, %v573
        %v636 = vpack.c.b16 %v576, %v575
        %v637 = vpack.c.b16 %v578, %v577
        %v638 = vpack.c.b16 %v580, %v579
        %v639 = vpack.c.b16 %v582, %v581
        %v640 = vpack.c.b16 %v584, %v583
        %v641 = vpack.c.b16 %v586, %v585
        %v642 = vpack.c.b16 %v588, %v587
        %v643 = vpack.c.b16 %v590, %v589
        %v644 = vpack.c.b16 %v592, %v591
        %v645 = vpack.c.b16 %v594, %v593
        %v646 = vpack.c.b16 %v596, %v595
        %v647 = vpack.c.b16 %v598, %v597
        %v648 = vpack.c.b16 %v600, %v599
        %v649 = vpack.c.b16 %v602, %v601
        %v650 = vpack.c.b16 %v604, %v603
        %v651 = vpack.c.b16 %v606, %v605
        %v652 = vpack.c.b16 %v608, %v607
        %v653 = vpack.c.b16 %v610, %v609
        %v654 = vpack.c.b16 %v612, %v611
        %v655 = vpack.c.b16 %v614, %v613
        %v656 = vpack.c.b16 %v616, %v615
        %v657 = vpack.c.b16 %v618, %v617
        %v658 = vpack.c.b16 %v620, %v619
        %v659 = vpack.c.b16 %v622, %v621
        %v660 = vpack.c.b16 %v624, %v623
        %v661 = vpack.c.b16 %v626, %v625
        %v662 = vpack.c.b16 %v628, %v627
        %v663 = vpack.c.b16 %v630, %v629
        %v664 = vpack.c.b16 %v632, %v631
        %v671 = vunpack.c.l.b16 %v499
        %v672 = vunpack.c.l.b16 %v500
        %v673 = vunpack.c.l.b16 %v501
        %v674 = vunpack.c.l.b16 %v502
        %v675 = vunpack.c.l.b16 %v503
        %v676 = vunpack.c.l.b16 %v504
        %v677 = vpack.c.b16 %v672, %v671
        %v678 = vpack.c.b16 %v674, %v673
        %v679 = vpack.c.b16 %v676, %v675
        %vm683 = vcmask 392192
        %v685 = vsel %vm683, %v633, 0
        %v688 = vsel %vm683, %v634, 0
        %v691 = vsel %vm683, %v635, 0
        %v694 = vsel %vm683, %v636, 0
        %v697 = vsel %vm683, %v637, 0
        %v700 = vsel %vm683, %v638, 0
        %v703 = vsel %vm683, %v639, 0
        %v706 = vsel %vm683, %v640, 0
        %v709 = vsel %vm683, %v641, 0
        %v712 = vsel %vm683, %v642, 0
        %v715 = vsel %vm683, %v643, 0
        %v718 = vsel %vm683, %v644, 0
        %v721 = vsel %vm683, %v645, 0
        %v724 = vsel %vm683, %v646, 0
        %v727 = vsel %vm683, %v647, 0
        %v730 = vsel %vm683, %v648, 0
        %v733 = vsel %vm683, %v649, 0
        %v736 = vsel %vm683, %v650, 0
        %v739 = vsel %vm683, %v651, 0
        %v742 = vsel %vm683, %v652, 0
        %v745 = vsel %vm683, %v653, 0
        %v748 = vsel %vm683, %v654, 0
        %v751 = vsel %vm683, %v655, 0
        %v754 = vsel %vm683, %v656, 0
        %v757 = vsel %vm683, %v657, 0
        %v760 = vsel %vm683, %v658, 0
        %v763 = vsel %vm683, %v659, 0
        %v766 = vsel %vm683, %v660, 0
        %v769 = vsel %vm683, %v661, 0
        %v772 = vsel %vm683, %v662, 0
        %v775 = vsel %vm683, %v663, 0
        %v778 = vsel %vm683, %v664, 0
        %780 = vmatprep.subr.bf16.mxu0 0
        %781 = vmatpush1.bf16.msra.mxu0 %v677
        %782 = vmatprep.subr.bf16.mxu0 0
        %783 = vmatpush1.bf16.msra.mxu0 %v678
        %784 = vmatprep.subr.bf16.mxu0 0
        %785 = vmatpush1.bf16.msra.mxu0 %v679
        %786 = vmatprep.subr.bf16.mxu0 0
        %787 = vmatpush1.bf16.msra.mxu0 0
        %788 = vmatprep.subr.bf16.mxu0 0
        %789 = vmatpush1.bf16.msra.mxu0 0
        %790 = vmatprep.subr.bf16.mxu0 0
        %791 = vmatpush1.bf16.msra.mxu0 0
        %792 = vmatprep.subr.bf16.mxu0 0
        %793 = vmatpush1.bf16.msra.mxu0 0
        %794 = vmatprep.subr.bf16.mxu0 0
        %795 = vmatpush1.bf16.msra.mxu0 0
        %796 = vmatprep.subr.bf16.mxu0 0
        %797 = vmatpush1.bf16.msra.mxu0 0
        %798 = vmatprep.subr.bf16.mxu0 0
        %799 = vmatpush1.bf16.msra.mxu0 0
        %800 = vmatprep.subr.bf16.mxu0 0
        %801 = vmatpush1.bf16.msra.mxu0 0
        %802 = vmatprep.subr.bf16.mxu0 0
        %803 = vmatpush1.bf16.msra.mxu0 0
        %804 = vmatprep.subr.bf16.mxu0 0
        %805 = vmatpush1.bf16.msra.mxu0 0
        %806 = vmatprep.subr.bf16.mxu0 0
        %807 = vmatpush1.bf16.msra.mxu0 0
        %808 = vmatprep.subr.bf16.mxu0 0
        %809 = vmatpush1.bf16.msra.mxu0 0
        %810 = vmatprep.subr.bf16.mxu0 0
        %811 = vmatpush1.bf16.msra.mxu0 0
        %812 = vmatprep.mubr.bf16.mxu0 0
        %813 = vmatmul.mubr.bf16.gmra.mrb[0].mxu0 %v685
        %v814 = vpop.f32.mrb[0].mxu0
        %v815 = vadd.f32 0.0, %v814
        %v816 = vpop.f32.mrb[0].mxu0
        %v817 = vpop.f32.mrb[0].mxu0
        %v818 = vadd.f32 0.0, %v817
        %v819 = vpop.f32.mrb[0].mxu0
        %820 = vmatprep.mubr.bf16.mxu0 0
        %821 = vmatmul.mubr.bf16.gmra.mrb[0].mxu0 %v688
        %v822 = vpop.f32.mrb[0].mxu0
        %v823 = vadd.f32 0.0, %v822
        %v824 = vpop.f32.mrb[0].mxu0
        %v825 = vpop.f32.mrb[0].mxu0
        %v826 = vadd.f32 0.0, %v825
        %v827 = vpop.f32.mrb[0].mxu0
        %828 = vmatprep.mubr.bf16.mxu0 0
        %829 = vmatmul.mubr.bf16.gmra.mrb[0].mxu0 %v691
        %v830 = vpop.f32.mrb[0].mxu0
        %v831 = vadd.f32 0.0, %v830
        %v832 = vpop.f32.mrb[0].mxu0
        %v833 = vpop.f32.mrb[0].mxu0
        %v834 = vadd.f32 0.0, %v833
        %v835 = vpop.f32.mrb[0].mxu0
        %836 = vmatprep.mubr.bf16.mxu0 0
        %837 = vmatmul.mubr.bf16.gmra.mrb[0].mxu0 %v694
        %v838 = vpop.f32.mrb[0].mxu0
        %v839 = vadd.f32 0.0, %v838
        %v840 = vpop.f32.mrb[0].mxu0
        %v841 = vpop.f32.mrb[0].mxu0
        %v842 = vadd.f32 0.0, %v841
        %v843 = vpop.f32.mrb[0].mxu0
        %844 = vmatprep.mubr.bf16.mxu0 0
        %845 = vmatmul.mubr.bf16.gmra.mrb[0].mxu0 %v697
        %v846 = vpop.f32.mrb[0].mxu0
        %v847 = vadd.f32 0.0, %v846
        %v848 = vpop.f32.mrb[0].mxu0
        %v849 = vpop.f32.mrb[0].mxu0
        %v850 = vadd.f32 0.0, %v849
        %v851 = vpop.f32.mrb[0].mxu0
        %852 = vmatprep.mubr.bf16.mxu0 0
        %853 = vmatmul.mubr.bf16.gmra.mrb[0].mxu0 %v700
        %v854 = vpop.f32.mrb[0].mxu0
        %v855 = vadd.f32 0.0, %v854
        %v856 = vpop.f32.mrb[0].mxu0
        %v857 = vpop.f32.mrb[0].mxu0
        %v858 = vadd.f32 0.0, %v857
        %v859 = vpop.f32.mrb[0].mxu0
        %860 = vmatprep.mubr.bf16.mxu0 0
        %861 = vmatmul.mubr.bf16.gmra.mrb[0].mxu0 %v703
        %v862 = vpop.f32.mrb[0].mxu0
        %v863 = vadd.f32 0.0, %v862
        %v864 = vpop.f32.mrb[0].mxu0
        %v865 = vpop.f32.mrb[0].mxu0
        %v866 = vadd.f32 0.0, %v865
        %v867 = vpop.f32.mrb[0].mxu0
        %868 = vmatprep.mubr.bf16.mxu0 0
        %869 = vmatmul.mubr.bf16.gmra.mrb[0].mxu0 %v706
        %v870 = vpop.f32.mrb[0].mxu0
        %v871 = vadd.f32 0.0, %v870
        %v872 = vpop.f32.mrb[0].mxu0
        %v873 = vpop.f32.mrb[0].mxu0
        %v874 = vadd.f32 0.0, %v873
        %v875 = vpop.f32.mrb[0].mxu0
        %876 = vmatprep.mubr.bf16.mxu0 0
        %877 = vmatmul.mubr.bf16.gmra.mrb[0].mxu0 %v709
        %v878 = vpop.f32.mrb[0].mxu0
        %v879 = vadd.f32 0.0, %v878
        %v880 = vpop.f32.mrb[0].mxu0
        %v881 = vpop.f32.mrb[0].mxu0
        %v882 = vadd.f32 0.0, %v881
        %v883 = vpop.f32.mrb[0].mxu0
        %884 = vmatprep.mubr.bf16.mxu0 0
        %885 = vmatmul.mubr.bf16.gmra.mrb[0].mxu0 %v712
        %v886 = vpop.f32.mrb[0].mxu0
        %v887 = vadd.f32 0.0, %v886
        %v888 = vpop.f32.mrb[0].mxu0
        %v889 = vpop.f32.mrb[0].mxu0
        %v890 = vadd.f32 0.0, %v889
        %v891 = vpop.f32.mrb[0].mxu0
        %892 = vmatprep.mubr.bf16.mxu0 0
        %893 = vmatmul.mubr.bf16.gmra.mrb[0].mxu0 %v715
        %v894 = vpop.f32.mrb[0].mxu0
        %v895 = vadd.f32 0.0, %v894
        %v896 = vpop.f32.mrb[0].mxu0
        %v897 = vpop.f32.mrb[0].mxu0
        %v898 = vadd.f32 0.0, %v897
        %v899 = vpop.f32.mrb[0].mxu0
        %900 = vmatprep.mubr.bf16.mxu0 0
        %901 = vmatmul.mubr.bf16.gmra.mrb[0].mxu0 %v718
        %v902 = vpop.f32.mrb[0].mxu0
        %v903 = vadd.f32 0.0, %v902
        %v904 = vpop.f32.mrb[0].mxu0
        %v905 = vpop.f32.mrb[0].mxu0
        %v906 = vadd.f32 0.0, %v905
        %v907 = vpop.f32.mrb[0].mxu0
        %908 = vmatprep.mubr.bf16.mxu0 0
        %909 = vmatmul.mubr.bf16.gmra.mrb[0].mxu0 %v721
        %v910 = vpop.f32.mrb[0].mxu0
        %v911 = vadd.f32 0.0, %v910
        %v912 = vpop.f32.mrb[0].mxu0
        %v913 = vpop.f32.mrb[0].mxu0
        %v914 = vadd.f32 0.0, %v913
        %v915 = vpop.f32.mrb[0].mxu0
        %916 = vmatprep.mubr.bf16.mxu0 0
        %917 = vmatmul.mubr.bf16.gmra.mrb[0].mxu0 %v724
        %v918 = vpop.f32.mrb[0].mxu0
        %v919 = vadd.f32 0.0, %v918
        %v920 = vpop.f32.mrb[0].mxu0
        %v921 = vpop.f32.mrb[0].mxu0
        %v922 = vadd.f32 0.0, %v921
        %v923 = vpop.f32.mrb[0].mxu0
        %924 = vmatprep.mubr.bf16.mxu0 0
        %925 = vmatmul.mubr.bf16.gmra.mrb[0].mxu0 %v727
        %v926 = vpop.f32.mrb[0].mxu0
        %v927 = vadd.f32 0.0, %v926
        %v928 = vpop.f32.mrb[0].mxu0
        %v929 = vpop.f32.mrb[0].mxu0
        %v930 = vadd.f32 0.0, %v929
        %v931 = vpop.f32.mrb[0].mxu0
        %932 = vmatprep.mubr.bf16.mxu0 0
        %933 = vmatmul.mubr.bf16.gmra.mrb[0].mxu0 %v730
        %v934 = vpop.f32.mrb[0].mxu0
        %v935 = vadd.f32 0.0, %v934
        %v936 = vpop.f32.mrb[0].mxu0
        %v937 = vpop.f32.mrb[0].mxu0
        %v938 = vadd.f32 0.0, %v937
        %v939 = vpop.f32.mrb[0].mxu0
        %940 = vmatprep.mubr.bf16.mxu0 0
        %941 = vmatmul.mubr.bf16.gmra.mrb[0].mxu0 %v733
        %v942 = vpop.f32.mrb[0].mxu0
        %v943 = vadd.f32 0.0, %v942
        %v944 = vpop.f32.mrb[0].mxu0
        %v945 = vpop.f32.mrb[0].mxu0
        %v946 = vadd.f32 0.0, %v945
        %v947 = vpop.f32.mrb[0].mxu0
        %948 = vmatprep.mubr.bf16.mxu0 0
        %949 = vmatmul.mubr.bf16.gmra.mrb[0].mxu0 %v736
        %v950 = vpop.f32.mrb[0].mxu0
        %v951 = vadd.f32 0.0, %v950
        %v952 = vpop.f32.mrb[0].mxu0
        %v953 = vpop.f32.mrb[0].mxu0
        %v954 = vadd.f32 0.0, %v953
        %v955 = vpop.f32.mrb[0].mxu0
        %956 = vmatprep.mubr.bf16.mxu0 0
        %957 = vmatmul.mubr.bf16.gmra.mrb[0].mxu0 %v739
        %v958 = vpop.f32.mrb[0].mxu0
        %v959 = vadd.f32 0.0, %v958
        %v960 = vpop.f32.mrb[0].mxu0
        %v961 = vpop.f32.mrb[0].mxu0
        %v962 = vadd.f32 0.0, %v961
        %v963 = vpop.f32.mrb[0].mxu0
        %964 = vmatprep.mubr.bf16.mxu0 0
        %965 = vmatmul.mubr.bf16.gmra.mrb[0].mxu0 %v742
        %v966 = vpop.f32.mrb[0].mxu0
        %v967 = vadd.f32 0.0, %v966
        %v968 = vpop.f32.mrb[0].mxu0
        %v969 = vpop.f32.mrb[0].mxu0
        %v970 = vadd.f32 0.0, %v969
        %v971 = vpop.f32.mrb[0].mxu0
        %972 = vmatprep.mubr.bf16.mxu0 0
        %973 = vmatmul.mubr.bf16.gmra.mrb[0].mxu0 %v745
        %v974 = vpop.f32.mrb[0].mxu0
        %v975 = vadd.f32 0.0, %v974
        %v976 = vpop.f32.mrb[0].mxu0
        %v977 = vpop.f32.mrb[0].mxu0
        %v978 = vadd.f32 0.0, %v977
        %v979 = vpop.f32.mrb[0].mxu0
        %980 = vmatprep.mubr.bf16.mxu0 0
        %981 = vmatmul.mubr.bf16.gmra.mrb[0].mxu0 %v748
        %v982 = vpop.f32.mrb[0].mxu0
        %v983 = vadd.f32 0.0, %v982
        %v984 = vpop.f32.mrb[0].mxu0
        %v985 = vpop.f32.mrb[0].mxu0
        %v986 = vadd.f32 0.0, %v985
        %v987 = vpop.f32.mrb[0].mxu0
        %988 = vmatprep.mubr.bf16.mxu0 0
        %989 = vmatmul.mubr.bf16.gmra.mrb[0].mxu0 %v751
        %v990 = vpop.f32.mrb[0].mxu0
        %v991 = vadd.f32 0.0, %v990
        %v992 = vpop.f32.mrb[0].mxu0
        %v993 = vpop.f32.mrb[0].mxu0
        %v994 = vadd.f32 0.0, %v993
        %v995 = vpop.f32.mrb[0].mxu0
        %996 = vmatprep.mubr.bf16.mxu0 0
        %997 = vmatmul.mubr.bf16.gmra.mrb[0].mxu0 %v754
        %v998 = vpop.f32.mrb[0].mxu0
        %v999 = vadd.f32 0.0, %v998
        %v1000 = vpop.f32.mrb[0].mxu0
        %v1001 = vpop.f32.mrb[0].mxu0
        %v1002 = vadd.f32 0.0, %v1001
        %v1003 = vpop.f32.mrb[0].mxu0
        %1004 = vmatprep.mubr.bf16.mxu0 0
        %1005 = vmatmul.mubr.bf16.gmra.mrb[0].mxu0 %v757
        %v1006 = vpop.f32.mrb[0].mxu0
        %v1007 = vadd.f32 0.0, %v1006
        %v1008 = vpop.f32.mrb[0].mxu0
        %v1009 = vpop.f32.mrb[0].mxu0
        %v1010 = vadd.f32 0.0, %v1009
        %v1011 = vpop.f32.mrb[0].mxu0
        %1012 = vmatprep.mubr.bf16.mxu0 0
        %1013 = vmatmul.mubr.bf16.gmra.mrb[0].mxu0 %v760
        %v1014 = vpop.f32.mrb[0].mxu0
        %v1015 = vadd.f32 0.0, %v1014
        %v1016 = vpop.f32.mrb[0].mxu0
        %v1017 = vpop.f32.mrb[0].mxu0
        %v1018 = vadd.f32 0.0, %v1017
        %v1019 = vpop.f32.mrb[0].mxu0
        %1020 = vmatprep.mubr.bf16.mxu0 0
        %1021 = vmatmul.mubr.bf16.gmra.mrb[0].mxu0 %v763
        %v1022 = vpop.f32.mrb[0].mxu0
        %v1023 = vadd.f32 0.0, %v1022
        %v1024 = vpop.f32.mrb[0].mxu0
        %v1025 = vpop.f32.mrb[0].mxu0
        %v1026 = vadd.f32 0.0, %v1025
        %v1027 = vpop.f32.mrb[0].mxu0
        %1028 = vmatprep.mubr.bf16.mxu0 0
        %1029 = vmatmul.mubr.bf16.gmra.mrb[0].mxu0 %v766
        %v1030 = vpop.f32.mrb[0].mxu0
        %v1031 = vadd.f32 0.0, %v1030
        %v1032 = vpop.f32.mrb[0].mxu0
        %v1033 = vpop.f32.mrb[0].mxu0
        %v1034 = vadd.f32 0.0, %v1033
        %v1035 = vpop.f32.mrb[0].mxu0
        %1036 = vmatprep.mubr.bf16.mxu0 0
        %1037 = vmatmul.mubr.bf16.gmra.mrb[0].mxu0 %v769
        %v1038 = vpop.f32.mrb[0].mxu0
        %v1039 = vadd.f32 0.0, %v1038
        %v1040 = vpop.f32.mrb[0].mxu0
        %v1041 = vpop.f32.mrb[0].mxu0
        %v1042 = vadd.f32 0.0, %v1041
        %v1043 = vpop.f32.mrb[0].mxu0
        %1044 = vmatprep.mubr.bf16.mxu0 0
        %1045 = vmatmul.mubr.bf16.gmra.mrb[0].mxu0 %v772
        %v1046 = vpop.f32.mrb[0].mxu0
        %v1047 = vadd.f32 0.0, %v1046
        %v1048 = vpop.f32.mrb[0].mxu0
        %v1049 = vpop.f32.mrb[0].mxu0
        %v1050 = vadd.f32 0.0, %v1049
        %v1051 = vpop.f32.mrb[0].mxu0
        %1052 = vmatprep.mubr.bf16.mxu0 0
        %1053 = vmatmul.mubr.bf16.gmra.mrb[0].mxu0 %v775
        %v1054 = vpop.f32.mrb[0].mxu0
        %v1055 = vadd.f32 0.0, %v1054
        %v1056 = vpop.f32.mrb[0].mxu0
        %v1057 = vpop.f32.mrb[0].mxu0
        %v1058 = vadd.f32 0.0, %v1057
        %v1059 = vpop.f32.mrb[0].mxu0
        %1060 = vmatprep.mubr.bf16.mxu0 0
        %1061 = vmatmul.mubr.bf16.gmra.mrb[0].mxu0 %v778
        %v1062 = vpop.f32.mrb[0].mxu0
        %v1063 = vadd.f32 0.0, %v1062
        %v1064 = vpop.f32.mrb[0].mxu0
        %v1065 = vpop.f32.mrb[0].mxu0
        %v1066 = vadd.f32 0.0, %v1065
        %v1067 = vpop.f32.mrb[0].mxu0
        %1068 = vdwg.mxu0
        %v1069 = vadd.f32 %v435, %v815
        %v1070 = vadd.f32 %v436, %v818
        %v1071 = vadd.f32 %v437, %v823
        %v1072 = vadd.f32 %v438, %v826
        %v1073 = vadd.f32 %v439, %v831
        %v1074 = vadd.f32 %v440, %v834
        %v1075 = vadd.f32 %v441, %v839
        %v1076 = vadd.f32 %v442, %v842
        %v1077 = vadd.f32 %v443, %v847
        %v1078 = vadd.f32 %v444, %v850
        %v1079 = vadd.f32 %v445, %v855
        %v1080 = vadd.f32 %v446, %v858
        %v1081 = vadd.f32 %v447, %v863
        %v1082 = vadd.f32 %v448, %v866
        %v1083 = vadd.f32 %v449, %v871
        %v1084 = vadd.f32 %v450, %v874
        %v1085 = vadd.f32 %v451, %v879
        %v1086 = vadd.f32 %v452, %v882
        %v1087 = vadd.f32 %v453, %v887
        %v1088 = vadd.f32 %v454, %v890
        %v1089 = vadd.f32 %v455, %v895
        %v1090 = vadd.f32 %v456, %v898
        %v1091 = vadd.f32 %v457, %v903
        %v1092 = vadd.f32 %v458, %v906
        %v1093 = vadd.f32 %v459, %v911
        %v1094 = vadd.f32 %v460, %v914
        %v1095 = vadd.f32 %v461, %v919
        %v1096 = vadd.f32 %v462, %v922
        %v1097 = vadd.f32 %v463, %v927
        %v1098 = vadd.f32 %v464, %v930
        %v1099 = vadd.f32 %v465, %v935
        %v1100 = vadd.f32 %v466, %v938
        %v1101 = vadd.f32 %v467, %v943
        %v1102 = vadd.f32 %v468, %v946
        %v1103 = vadd.f32 %v469, %v951
        %v1104 = vadd.f32 %v470, %v954
        %v1105 = vadd.f32 %v471, %v959
        %v1106 = vadd.f32 %v472, %v962
        %v1107 = vadd.f32 %v473, %v967
        %v1108 = vadd.f32 %v474, %v970
        %v1109 = vadd.f32 %v475, %v975
        %v1110 = vadd.f32 %v476, %v978
        %v1111 = vadd.f32 %v477, %v983
        %v1112 = vadd.f32 %v478, %v986
        %v1113 = vadd.f32 %v479, %v991
        %v1114 = vadd.f32 %v480, %v994
        %v1115 = vadd.f32 %v481, %v999
        %v1116 = vadd.f32 %v482, %v1002
        %v1117 = vadd.f32 %v483, %v1007
        %v1118 = vadd.f32 %v484, %v1010
        %v1119 = vadd.f32 %v485, %v1015
        %v1120 = vadd.f32 %v486, %v1018
        %v1121 = vadd.f32 %v487, %v1023
        %v1122 = vadd.f32 %v488, %v1026
        %v1123 = vadd.f32 %v489, %v1031
        %v1124 = vadd.f32 %v490, %v1034
        %v1125 = vadd.f32 %v491, %v1039
        %v1126 = vadd.f32 %v492, %v1042
        %v1127 = vadd.f32 %v493, %v1047
        %v1128 = vadd.f32 %v494, %v1050
        %v1129 = vadd.f32 %v495, %v1055
        %v1130 = vadd.f32 %v496, %v1058
        %v1131 = vadd.f32 %v497, %v1063
        %v1132 = vadd.f32 %v498, %v1066
        %1133 = vst [vmem:[#allocation2] sm:$0xff] %v1069
        %1134 = vst [vmem:[#allocation2 + $0x8] sm:$0xff] %v1070
        %1135 = vst [vmem:[#allocation2 + $0x10] sm:$0xff] %v1071
        %1136 = vst [vmem:[#allocation2 + $0x18] sm:$0xff] %v1072
        %1137 = vst [vmem:[#allocation2 + $0x20] sm:$0xff] %v1073
        %1138 = vst [vmem:[#allocation2 + $0x28] sm:$0xff] %v1074
        %1139 = vst [vmem:[#allocation2 + $0x30] sm:$0xff] %v1075
        %1140 = vst [vmem:[#allocation2 + $0x38] sm:$0xff] %v1076
        %1141 = vst [vmem:[#allocation2 + $0x40] sm:$0xff] %v1077
        %1142 = vst [vmem:[#allocation2 + $0x48] sm:$0xff] %v1078
        %1143 = vst [vmem:[#allocation2 + $0x50] sm:$0xff] %v1079
        %1144 = vst [vmem:[#allocation2 + $0x58] sm:$0xff] %v1080
        %1145 = vst [vmem:[#allocation2 + $0x60] sm:$0xff] %v1081
        %1146 = vst [vmem:[#allocation2 + $0x68] sm:$0xff] %v1082
        %1147 = vst [vmem:[#allocation2 + $0x70] sm:$0xff] %v1083
        %1148 = vst [vmem:[#allocation2 + $0x78] sm:$0xff] %v1084
        %1149 = vst [vmem:[#allocation2 + $0x80] sm:$0xff] %v1085
        %1150 = vst [vmem:[#allocation2 + $0x88] sm:$0xff] %v1086
        %1151 = vst [vmem:[#allocation2 + $0x90] sm:$0xff] %v1087
        %1152 = vst [vmem:[#allocation2 + $0x98] sm:$0xff] %v1088
        %1153 = vst [vmem:[#allocation2 + $0xa0] sm:$0xff] %v1089
        %1154 = vst [vmem:[#allocation2 + $0xa8] sm:$0xff] %v1090
        %1155 = vst [vmem:[#allocation2 + $0xb0] sm:$0xff] %v1091
        %1156 = vst [vmem:[#allocation2 + $0xb8] sm:$0xff] %v1092
        %1157 = vst [vmem:[#allocation2 + $0xc0] sm:$0xff] %v1093
        %1158 = vst [vmem:[#allocation2 + $0xc8] sm:$0xff] %v1094
        %1159 = vst [vmem:[#allocation2 + $0xd0] sm:$0xff] %v1095
        %1160 = vst [vmem:[#allocation2 + $0xd8] sm:$0xff] %v1096
        %1161 = vst [vmem:[#allocation2 + $0xe0] sm:$0xff] %v1097
        %1162 = vst [vmem:[#allocation2 + $0xe8] sm:$0xff] %v1098
        %1163 = vst [vmem:[#allocation2 + $0xf0] sm:$0xff] %v1099
        %1164 = vst [vmem:[#allocation2 + $0xf8] sm:$0xff] %v1100
        %1165 = vst [vmem:[#allocation2 + $0x100] sm:$0xff] %v1101
        %1166 = vst [vmem:[#allocation2 + $0x108] sm:$0xff] %v1102
        %1167 = vst [vmem:[#allocation2 + $0x110] sm:$0xff] %v1103
        %1168 = vst [vmem:[#allocation2 + $0x118] sm:$0xff] %v1104
        %1169 = vst [vmem:[#allocation2 + $0x120] sm:$0xff] %v1105
        %1170 = vst [vmem:[#allocation2 + $0x128] sm:$0xff] %v1106
        %1171 = vst [vmem:[#allocation2 + $0x130] sm:$0xff] %v1107
        %1172 = vst [vmem:[#allocation2 + $0x138] sm:$0xff] %v1108
        %1173 = vst [vmem:[#allocation2 + $0x140] sm:$0xff] %v1109
        %1174 = vst [vmem:[#allocation2 + $0x148] sm:$0xff] %v1110
        %1175 = vst [vmem:[#allocation2 + $0x150] sm:$0xff] %v1111
        %1176 = vst [vmem:[#allocation2 + $0x158] sm:$0xff] %v1112
        %1177 = vst [vmem:[#allocation2 + $0x160] sm:$0xff] %v1113
        %1178 = vst [vmem:[#allocation2 + $0x168] sm:$0xff] %v1114
        %1179 = vst [vmem:[#allocation2 + $0x170] sm:$0xff] %v1115
        %1180 = vst [vmem:[#allocation2 + $0x178] sm:$0xff] %v1116
        %1181 = vst [vmem:[#allocation2 + $0x180] sm:$0xff] %v1117
        %1182 = vst [vmem:[#allocation2 + $0x188] sm:$0xff] %v1118
        %1183 = vst [vmem:[#allocation2 + $0x190] sm:$0xff] %v1119
        %1184 = vst [vmem:[#allocation2 + $0x198] sm:$0xff] %v1120
        %1185 = vst [vmem:[#allocation2 + $0x1a0] sm:$0xff] %v1121
        %1186 = vst [vmem:[#allocation2 + $0x1a8] sm:$0xff] %v1122
        %1187 = vst [vmem:[#allocation2 + $0x1b0] sm:$0xff] %v1123
        %1188 = vst [vmem:[#allocation2 + $0x1b8] sm:$0xff] %v1124
        %1189 = vst [vmem:[#allocation2 + $0x1c0] sm:$0xff] %v1125
        %1190 = vst [vmem:[#allocation2 + $0x1c8] sm:$0xff] %v1126
        %1191 = vst [vmem:[#allocation2 + $0x1d0] sm:$0xff] %v1127
        %1192 = vst [vmem:[#allocation2 + $0x1d8] sm:$0xff] %v1128
        %1193 = vst [vmem:[#allocation2 + $0x1e0] sm:$0xff] %v1129
        %1194 = vst [vmem:[#allocation2 + $0x1e8] sm:$0xff] %v1130
        %1195 = vst [vmem:[#allocation2 + $0x1f0] sm:$0xff] %v1131
        %1196 = vst [vmem:[#allocation2 + $0x1f8] sm:$0xff] %v1132
        // Predicated region
        $region33: #{mixnet_encode.10} parent=27 // pred_check
          %p1197 = pneg %p303
        $region34: #{mixnet_encode.10} parent=27 // pred_check_branch
          %1199 = sbr.rel (%p1197) target = $region36
        $region35: #{mixnet_encode.10} parent=27 // pred_region
          %v1200 = vld [vmem:[#allocation2] sm:$0xff]
          %v1201 = vld [vmem:[#allocation2 + $0x8] sm:$0xff]
          %v1202 = vld [vmem:[#allocation2 + $0x10] sm:$0xff]
          %v1203 = vld [vmem:[#allocation2 + $0x18] sm:$0xff]
          %v1204 = vld [vmem:[#allocation2 + $0x20] sm:$0xff]
          %v1205 = vld [vmem:[#allocation2 + $0x28] sm:$0xff]
          %v1206 = vld [vmem:[#allocation2 + $0x30] sm:$0xff]
          %v1207 = vld [vmem:[#allocation2 + $0x38] sm:$0xff]
          %v1208 = vld [vmem:[#allocation2 + $0x40] sm:$0xff]
          %v1209 = vld [vmem:[#allocation2 + $0x48] sm:$0xff]
          %v1210 = vld [vmem:[#allocation2 + $0x50] sm:$0xff]
          %v1211 = vld [vmem:[#allocation2 + $0x58] sm:$0xff]
          %v1212 = vld [vmem:[#allocation2 + $0x60] sm:$0xff]
          %v1213 = vld [vmem:[#allocation2 + $0x68] sm:$0xff]
          %v1214 = vld [vmem:[#allocation2 + $0x70] sm:$0xff]
          %v1215 = vld [vmem:[#allocation2 + $0x78] sm:$0xff]
          %v1216 = vld [vmem:[#allocation2 + $0x80] sm:$0xff]
          %v1217 = vld [vmem:[#allocation2 + $0x88] sm:$0xff]
          %v1218 = vld [vmem:[#allocation2 + $0x90] sm:$0xff]
          %v1219 = vld [vmem:[#allocation2 + $0x98] sm:$0xff]
          %v1220 = vld [vmem:[#allocation2 + $0xa0] sm:$0xff]
          %v1221 = vld [vmem:[#allocation2 + $0xa8] sm:$0xff]
          %v1222 = vld [vmem:[#allocation2 + $0xb0] sm:$0xff]
          %v1223 = vld [vmem:[#allocation2 + $0xb8] sm:$0xff]
          %v1224 = vld [vmem:[#allocation2 + $0xc0] sm:$0xff]
          %v1225 = vld [vmem:[#allocation2 + $0xc8] sm:$0xff]
          %v1226 = vld [vmem:[#allocation2 + $0xd0] sm:$0xff]
          %v1227 = vld [vmem:[#allocation2 + $0xd8] sm:$0xff]
          %v1228 = vld [vmem:[#allocation2 + $0xe0] sm:$0xff]
          %v1229 = vld [vmem:[#allocation2 + $0xe8] sm:$0xff]
          %v1230 = vld [vmem:[#allocation2 + $0xf0] sm:$0xff]
          %v1231 = vld [vmem:[#allocation2 + $0xf8] sm:$0xff]
          %v1232 = vld [vmem:[#allocation2 + $0x100] sm:$0xff]
          %v1233 = vld [vmem:[#allocation2 + $0x108] sm:$0xff]
          %v1234 = vld [vmem:[#allocation2 + $0x110] sm:$0xff]
          %v1235 = vld [vmem:[#allocation2 + $0x118] sm:$0xff]
          %v1236 = vld [vmem:[#allocation2 + $0x120] sm:$0xff]
          %v1237 = vld [vmem:[#allocation2 + $0x128] sm:$0xff]
          %v1238 = vld [vmem:[#allocation2 + $0x130] sm:$0xff]
          %v1239 = vld [vmem:[#allocation2 + $0x138] sm:$0xff]
          %v1240 = vld [vmem:[#allocation2 + $0x140] sm:$0xff]
          %v1241 = vld [vmem:[#allocation2 + $0x148] sm:$0xff]
          %v1242 = vld [vmem:[#allocation2 + $0x150] sm:$0xff]
          %v1243 = vld [vmem:[#allocation2 + $0x158] sm:$0xff]
          %v1244 = vld [vmem:[#allocation2 + $0x160] sm:$0xff]
          %v1245 = vld [vmem:[#allocation2 + $0x168] sm:$0xff]
          %v1246 = vld [vmem:[#allocation2 + $0x170] sm:$0xff]
          %v1247 = vld [vmem:[#allocation2 + $0x178] sm:$0xff]
          %v1248 = vld [vmem:[#allocation2 + $0x180] sm:$0xff]
          %v1249 = vld [vmem:[#allocation2 + $0x188] sm:$0xff]
          %v1250 = vld [vmem:[#allocation2 + $0x190] sm:$0xff]
          %v1251 = vld [vmem:[#allocation2 + $0x198] sm:$0xff]
          %v1252 = vld [vmem:[#allocation2 + $0x1a0] sm:$0xff]
          %v1253 = vld [vmem:[#allocation2 + $0x1a8] sm:$0xff]
          %v1254 = vld [vmem:[#allocation2 + $0x1b0] sm:$0xff]
          %v1255 = vld [vmem:[#allocation2 + $0x1b8] sm:$0xff]
          %v1256 = vld [vmem:[#allocation2 + $0x1c0] sm:$0xff]
          %v1257 = vld [vmem:[#allocation2 + $0x1c8] sm:$0xff]
          %v1258 = vld [vmem:[#allocation2 + $0x1d0] sm:$0xff]
          %v1259 = vld [vmem:[#allocation2 + $0x1d8] sm:$0xff]
          %v1260 = vld [vmem:[#allocation2 + $0x1e0] sm:$0xff]
          %v1261 = vld [vmem:[#allocation2 + $0x1e8] sm:$0xff]
          %v1262 = vld [vmem:[#allocation2 + $0x1f0] sm:$0xff]
          %v1263 = vld [vmem:[#allocation2 + $0x1f8] sm:$0xff]
          %v1264 = vpack.c.bf16 %v1201, %v1200
          %v1265 = vpack.c.bf16 %v1203, %v1202
          %v1266 = vpack.c.bf16 %v1205, %v1204
          %v1267 = vpack.c.bf16 %v1207, %v1206
          %v1268 = vpack.c.bf16 %v1209, %v1208
          %v1269 = vpack.c.bf16 %v1211, %v1210
          %v1270 = vpack.c.bf16 %v1213, %v1212
          %v1271 = vpack.c.bf16 %v1215, %v1214
          %v1272 = vpack.c.bf16 %v1217, %v1216
          %v1273 = vpack.c.bf16 %v1219, %v1218
          %v1274 = vpack.c.bf16 %v1221, %v1220
          %v1275 = vpack.c.bf16 %v1223, %v1222
          %v1276 = vpack.c.bf16 %v1225, %v1224
          %v1277 = vpack.c.bf16 %v1227, %v1226
          %v1278 = vpack.c.bf16 %v1229, %v1228
          %v1279 = vpack.c.bf16 %v1231, %v1230
          %v1280 = vpack.c.bf16 %v1233, %v1232
          %v1281 = vpack.c.bf16 %v1235, %v1234
          %v1282 = vpack.c.bf16 %v1237, %v1236
          %v1283 = vpack.c.bf16 %v1239, %v1238
          %v1284 = vpack.c.bf16 %v1241, %v1240
          %v1285 = vpack.c.bf16 %v1243, %v1242
          %v1286 = vpack.c.bf16 %v1245, %v1244
          %v1287 = vpack.c.bf16 %v1247, %v1246
          %v1288 = vpack.c.bf16 %v1249, %v1248
          %v1289 = vpack.c.bf16 %v1251, %v1250
          %v1290 = vpack.c.bf16 %v1253, %v1252
          %v1291 = vpack.c.bf16 %v1255, %v1254
          %v1292 = vpack.c.bf16 %v1257, %v1256
          %v1293 = vpack.c.bf16 %v1259, %v1258
          %v1294 = vpack.c.bf16 %v1261, %v1260
          %v1295 = vpack.c.bf16 %v1263, %v1262
          %v1328 = vunpack.c.l.b16 %v1264
          %v1329 = vunpack.c.h.b16 %v1264
          %v1330 = vunpack.c.l.b16 %v1265
          %v1331 = vunpack.c.h.b16 %v1265
          %v1332 = vunpack.c.l.b16 %v1266
          %v1333 = vunpack.c.h.b16 %v1266
          %v1334 = vunpack.c.l.b16 %v1267
          %v1335 = vunpack.c.h.b16 %v1267
          %v1336 = vunpack.c.l.b16 %v1268
          %v1337 = vunpack.c.h.b16 %v1268
          %v1338 = vunpack.c.l.b16 %v1269
          %v1339 = vunpack.c.h.b16 %v1269
          %v1340 = vunpack.c.l.b16 %v1270
          %v1341 = vunpack.c.h.b16 %v1270
          %v1342 = vunpack.c.l.b16 %v1271
          %v1343 = vunpack.c.h.b16 %v1271
          %v1344 = vunpack.c.l.b16 %v1272
          %v1345 = vunpack.c.h.b16 %v1272
          %v1346 = vunpack.c.l.b16 %v1273
          %v1347 = vunpack.c.h.b16 %v1273
          %v1348 = vunpack.c.l.b16 %v1274
          %v1349 = vunpack.c.h.b16 %v1274
          %v1350 = vunpack.c.l.b16 %v1275
          %v1351 = vunpack.c.h.b16 %v1275
          %v1352 = vunpack.c.l.b16 %v1276
          %v1353 = vunpack.c.h.b16 %v1276
          %v1354 = vunpack.c.l.b16 %v1277
          %v1355 = vunpack.c.h.b16 %v1277
          %v1356 = vunpack.c.l.b16 %v1278
          %v1357 = vunpack.c.h.b16 %v1278
          %v1358 = vunpack.c.l.b16 %v1279
          %v1359 = vunpack.c.h.b16 %v1279
          %v1360 = vunpack.c.l.b16 %v1280
          %v1361 = vunpack.c.h.b16 %v1280
          %v1362 = vunpack.c.l.b16 %v1281
          %v1363 = vunpack.c.h.b16 %v1281
          %v1364 = vunpack.c.l.b16 %v1282
          %v1365 = vunpack.c.h.b16 %v1282
          %v1366 = vunpack.c.l.b16 %v1283
          %v1367 = vunpack.c.h.b16 %v1283
          %v1368 = vunpack.c.l.b16 %v1284
          %v1369 = vunpack.c.h.b16 %v1284
          %v1370 = vunpack.c.l.b16 %v1285
          %v1371 = vunpack.c.h.b16 %v1285
          %v1372 = vunpack.c.l.b16 %v1286
          %v1373 = vunpack.c.h.b16 %v1286
          %v1374 = vunpack.c.l.b16 %v1287
          %v1375 = vunpack.c.h.b16 %v1287
          %v1376 = vunpack.c.l.b16 %v1288
          %v1377 = vunpack.c.h.b16 %v1288
          %v1378 = vunpack.c.l.b16 %v1289
          %v1379 = vunpack.c.h.b16 %v1289
          %v1380 = vunpack.c.l.b16 %v1290
          %v1381 = vunpack.c.h.b16 %v1290
          %v1382 = vunpack.c.l.b16 %v1291
          %v1383 = vunpack.c.h.b16 %v1291
          %v1384 = vunpack.c.l.b16 %v1292
          %v1385 = vunpack.c.h.b16 %v1292
          %v1386 = vunpack.c.l.b16 %v1293
          %v1387 = vunpack.c.h.b16 %v1293
          %v1388 = vunpack.c.l.b16 %v1294
          %v1389 = vunpack.c.h.b16 %v1294
          %v1390 = vunpack.c.l.b16 %v1295
          %v1391 = vunpack.c.h.b16 %v1295
          %v1392 = vpack.c.b16 %v1328, %v1328
          %v1393 = vpack.c.b16 %v1329, %v1329
          %v1394 = vpack.c.b16 %v1330, %v1330
          %v1395 = vpack.c.b16 %v1331, %v1331
          %v1396 = vpack.c.b16 %v1332, %v1332
          %v1397 = vpack.c.b16 %v1333, %v1333
          %v1398 = vpack.c.b16 %v1334, %v1334
          %v1399 = vpack.c.b16 %v1335, %v1335
          %v1400 = vpack.c.b16 %v1336, %v1336
          %v1401 = vpack.c.b16 %v1337, %v1337
          %v1402 = vpack.c.b16 %v1338, %v1338
          %v1403 = vpack.c.b16 %v1339, %v1339
          %v1404 = vpack.c.b16 %v1340, %v1340
          %v1405 = vpack.c.b16 %v1341, %v1341
          %v1406 = vpack.c.b16 %v1342, %v1342
          %v1407 = vpack.c.b16 %v1343, %v1343
          %v1408 = vpack.c.b16 %v1344, %v1344
          %v1409 = vpack.c.b16 %v1345, %v1345
          %v1410 = vpack.c.b16 %v1346, %v1346
          %v1411 = vpack.c.b16 %v1347, %v1347
          %v1412 = vpack.c.b16 %v1348, %v1348
          %v1413 = vpack.c.b16 %v1349, %v1349
          %v1414 = vpack.c.b16 %v1350, %v1350
          %v1415 = vpack.c.b16 %v1351, %v1351
          %v1416 = vpack.c.b16 %v1352, %v1352
          %v1417 = vpack.c.b16 %v1353, %v1353
          %v1418 = vpack.c.b16 %v1354, %v1354
          %v1419 = vpack.c.b16 %v1355, %v1355
          %v1420 = vpack.c.b16 %v1356, %v1356
          %v1421 = vpack.c.b16 %v1357, %v1357
          %v1422 = vpack.c.b16 %v1358, %v1358
          %v1423 = vpack.c.b16 %v1359, %v1359
          %v1424 = vpack.c.b16 %v1360, %v1360
          %v1425 = vpack.c.b16 %v1361, %v1361
          %v1426 = vpack.c.b16 %v1362, %v1362
          %v1427 = vpack.c.b16 %v1363, %v1363
          %v1428 = vpack.c.b16 %v1364, %v1364
          %v1429 = vpack.c.b16 %v1365, %v1365
          %v1430 = vpack.c.b16 %v1366, %v1366
          %v1431 = vpack.c.b16 %v1367, %v1367
          %v1432 = vpack.c.b16 %v1368, %v1368
          %v1433 = vpack.c.b16 %v1369, %v1369
          %v1434 = vpack.c.b16 %v1370, %v1370
          %v1435 = vpack.c.b16 %v1371, %v1371
          %v1436 = vpack.c.b16 %v1372, %v1372
          %v1437 = vpack.c.b16 %v1373, %v1373
          %v1438 = vpack.c.b16 %v1374, %v1374
          %v1439 = vpack.c.b16 %v1375, %v1375
          %v1440 = vpack.c.b16 %v1376, %v1376
          %v1441 = vpack.c.b16 %v1377, %v1377
          %v1442 = vpack.c.b16 %v1378, %v1378
          %v1443 = vpack.c.b16 %v1379, %v1379
          %v1444 = vpack.c.b16 %v1380, %v1380
          %v1445 = vpack.c.b16 %v1381, %v1381
          %v1446 = vpack.c.b16 %v1382, %v1382
          %v1447 = vpack.c.b16 %v1383, %v1383
          %v1448 = vpack.c.b16 %v1384, %v1384
          %v1449 = vpack.c.b16 %v1385, %v1385
          %v1450 = vpack.c.b16 %v1386, %v1386
          %v1451 = vpack.c.b16 %v1387, %v1387
          %v1452 = vpack.c.b16 %v1388, %v1388
          %v1453 = vpack.c.b16 %v1389, %v1389
          %v1454 = vpack.c.b16 %v1390, %v1390
          %v1455 = vpack.c.b16 %v1391, %v1391
          %1520 = vst [vmem:[%s300] sm:$0xf] %v1392
          %1521 = vst [vmem:[%s300 + $0x4] sm:$0xf] %v1393
          %1522 = vst [vmem:[%s300 + $0x8] sm:$0xf] %v1394
          %1523 = vst [vmem:[%s300 + $0xc] sm:$0xf] %v1395
          %1524 = vst [vmem:[%s300 + $0x10] sm:$0xf] %v1396
          %1525 = vst [vmem:[%s300 + $0x14] sm:$0xf] %v1397
          %1526 = vst [vmem:[%s300 + $0x18] sm:$0xf] %v1398
          %1527 = vst [vmem:[%s300 + $0x1c] sm:$0xf] %v1399
          %1528 = vst [vmem:[%s300 + $0x20] sm:$0xf] %v1400
          %1529 = vst [vmem:[%s300 + $0x24] sm:$0xf] %v1401
          %1530 = vst [vmem:[%s300 + $0x28] sm:$0xf] %v1402
          %1531 = vst [vmem:[%s300 + $0x2c] sm:$0xf] %v1403
          %1532 = vst [vmem:[%s300 + $0x30] sm:$0xf] %v1404
          %1533 = vst [vmem:[%s300 + $0x34] sm:$0xf] %v1405
          %1534 = vst [vmem:[%s300 + $0x38] sm:$0xf] %v1406
          %1535 = vst [vmem:[%s300 + $0x3c] sm:$0xf] %v1407
          %1536 = vst [vmem:[%s300 + $0x40] sm:$0xf] %v1408
          %1537 = vst [vmem:[%s300 + $0x44] sm:$0xf] %v1409
          %1538 = vst [vmem:[%s300 + $0x48] sm:$0xf] %v1410
          %1539 = vst [vmem:[%s300 + $0x4c] sm:$0xf] %v1411
          %1540 = vst [vmem:[%s300 + $0x50] sm:$0xf] %v1412
          %1541 = vst [vmem:[%s300 + $0x54] sm:$0xf] %v1413
          %1542 = vst [vmem:[%s300 + $0x58] sm:$0xf] %v1414
          %1543 = vst [vmem:[%s300 + $0x5c] sm:$0xf] %v1415
          %1544 = vst [vmem:[%s300 + $0x60] sm:$0xf] %v1416
          %1545 = vst [vmem:[%s300 + $0x64] sm:$0xf] %v1417
          %1546 = vst [vmem:[%s300 + $0x68] sm:$0xf] %v1418
          %1547 = vst [vmem:[%s300 + $0x6c] sm:$0xf] %v1419
          %1548 = vst [vmem:[%s300 + $0x70] sm:$0xf] %v1420
          %1549 = vst [vmem:[%s300 + $0x74] sm:$0xf] %v1421
          %1550 = vst [vmem:[%s300 + $0x78] sm:$0xf] %v1422
          %1551 = vst [vmem:[%s300 + $0x7c] sm:$0xf] %v1423
          %1552 = vst [vmem:[%s300 + $0x80] sm:$0xf] %v1424
          %1553 = vst [vmem:[%s300 + $0x84] sm:$0xf] %v1425
          %1554 = vst [vmem:[%s300 + $0x88] sm:$0xf] %v1426
          %1555 = vst [vmem:[%s300 + $0x8c] sm:$0xf] %v1427
          %1556 = vst [vmem:[%s300 + $0x90] sm:$0xf] %v1428
          %1557 = vst [vmem:[%s300 + $0x94] sm:$0xf] %v1429
          %1558 = vst [vmem:[%s300 + $0x98] sm:$0xf] %v1430
          %1559 = vst [vmem:[%s300 + $0x9c] sm:$0xf] %v1431
          %1560 = vst [vmem:[%s300 + $0xa0] sm:$0xf] %v1432
          %1561 = vst [vmem:[%s300 + $0xa4] sm:$0xf] %v1433
          %1562 = vst [vmem:[%s300 + $0xa8] sm:$0xf] %v1434
          %1563 = vst [vmem:[%s300 + $0xac] sm:$0xf] %v1435
          %1564 = vst [vmem:[%s300 + $0xb0] sm:$0xf] %v1436
          %1565 = vst [vmem:[%s300 + $0xb4] sm:$0xf] %v1437
          %1566 = vst [vmem:[%s300 + $0xb8] sm:$0xf] %v1438
          %1567 = vst [vmem:[%s300 + $0xbc] sm:$0xf] %v1439
          %1568 = vst [vmem:[%s300 + $0xc0] sm:$0xf] %v1440
          %1569 = vst [vmem:[%s300 + $0xc4] sm:$0xf] %v1441
          %1570 = vst [vmem:[%s300 + $0xc8] sm:$0xf] %v1442
          %1571 = vst [vmem:[%s300 + $0xcc] sm:$0xf] %v1443
          %1572 = vst [vmem:[%s300 + $0xd0] sm:$0xf] %v1444
          %1573 = vst [vmem:[%s300 + $0xd4] sm:$0xf] %v1445
          %1574 = vst [vmem:[%s300 + $0xd8] sm:$0xf] %v1446
          %1575 = vst [vmem:[%s300 + $0xdc] sm:$0xf] %v1447
          %1576 = vst [vmem:[%s300 + $0xe0] sm:$0xf] %v1448
          %1577 = vst [vmem:[%s300 + $0xe4] sm:$0xf] %v1449
          %1578 = vst [vmem:[%s300 + $0xe8] sm:$0xf] %v1450
          %1579 = vst [vmem:[%s300 + $0xec] sm:$0xf] %v1451
          %1580 = vst [vmem:[%s300 + $0xf0] sm:$0xf] %v1452
          %1581 = vst [vmem:[%s300 + $0xf4] sm:$0xf] %v1453
          %1582 = vst [vmem:[%s300 + $0xf8] sm:$0xf] %v1454
          %1583 = vst [vmem:[%s300 + $0xfc] sm:$0xf] %v1455
          %v1584 = vadd.f32 %v1200, %v1201
          %v1585 = vadd.f32 %v1584, %v1202
          %v1586 = vadd.f32 %v1585, %v1203
          %v1587 = vadd.f32 %v1586, %v1204
          %v1588 = vadd.f32 %v1587, %v1205
          %v1589 = vadd.f32 %v1588, %v1206
          %v1590 = vadd.f32 %v1589, %v1207
          %v1591 = vadd.f32 %v1590, %v1208
          %v1592 = vadd.f32 %v1591, %v1209
          %v1593 = vadd.f32 %v1592, %v1210
          %v1594 = vadd.f32 %v1593, %v1211
          %v1595 = vadd.f32 %v1594, %v1212
          %v1596 = vadd.f32 %v1595, %v1213
          %v1597 = vadd.f32 %v1596, %v1214
          %v1598 = vadd.f32 %v1597, %v1215
          %v1599 = vadd.f32 %v1598, %v1216
          %v1600 = vadd.f32 %v1599, %v1217
          %v1601 = vadd.f32 %v1600, %v1218
          %v1602 = vadd.f32 %v1601, %v1219
          %v1603 = vadd.f32 %v1602, %v1220
          %v1604 = vadd.f32 %v1603, %v1221
          %v1605 = vadd.f32 %v1604, %v1222
          %v1606 = vadd.f32 %v1605, %v1223
          %v1607 = vadd.f32 %v1606, %v1224
          %v1608 = vadd.f32 %v1607, %v1225
          %v1609 = vadd.f32 %v1608, %v1226
          %v1610 = vadd.f32 %v1609, %v1227
          %v1611 = vadd.f32 %v1610, %v1228
          %v1612 = vadd.f32 %v1611, %v1229
          %v1613 = vadd.f32 %v1612, %v1230
          %v1614 = vadd.f32 %v1613, %v1231
          %v1615 = vadd.f32 %v1614, %v1232
          %v1616 = vadd.f32 %v1615, %v1233
          %v1617 = vadd.f32 %v1616, %v1234
          %v1618 = vadd.f32 %v1617, %v1235
          %v1619 = vadd.f32 %v1618, %v1236
          %v1620 = vadd.f32 %v1619, %v1237
          %v1621 = vadd.f32 %v1620, %v1238
          %v1622 = vadd.f32 %v1621, %v1239
          %v1623 = vadd.f32 %v1622, %v1240
          %v1624 = vadd.f32 %v1623, %v1241
          %v1625 = vadd.f32 %v1624, %v1242
          %v1626 = vadd.f32 %v1625, %v1243
          %v1627 = vadd.f32 %v1626, %v1244
          %v1628 = vadd.f32 %v1627, %v1245
          %v1629 = vadd.f32 %v1628, %v1246
          %v1630 = vadd.f32 %v1629, %v1247
          %v1631 = vadd.f32 %v1630, %v1248
          %v1632 = vadd.f32 %v1631, %v1249
          %v1633 = vadd.f32 %v1632, %v1250
          %v1634 = vadd.f32 %v1633, %v1251
          %v1635 = vadd.f32 %v1634, %v1252
          %v1636 = vadd.f32 %v1635, %v1253
          %v1637 = vadd.f32 %v1636, %v1254
          %v1638 = vadd.f32 %v1637, %v1255
          %v1639 = vadd.f32 %v1638, %v1256
          %v1640 = vadd.f32 %v1639, %v1257
          %v1641 = vadd.f32 %v1640, %v1258
          %v1642 = vadd.f32 %v1641, %v1259
          %v1643 = vadd.f32 %v1642, %v1260
          %v1644 = vadd.f32 %v1643, %v1261
          %v1645 = vadd.f32 %v1644, %v1262
          %v1646 = vadd.f32 %v1645, %v1263
          %v1647 = vrot.slane %v1646, 4
          %v1648 = vadd.f32 %v1646, %v1647
          %v1649 = vrot.slane %v1648, 2
          %v1650 = vadd.f32 %v1648, %v1649
          %v1651 = vrot.slane %v1650, 1
          %v1652 = vadd.f32 %v1650, %v1651
          %v1653 = vmul.f32 %v1200, %v1200
          %v1654 = vmul.f32 %v1201, %v1201
          %v1655 = vmul.f32 %v1202, %v1202
          %v1656 = vmul.f32 %v1203, %v1203
          %v1657 = vmul.f32 %v1204, %v1204
          %v1658 = vmul.f32 %v1205, %v1205
          %v1659 = vmul.f32 %v1206, %v1206
          %v1660 = vmul.f32 %v1207, %v1207
          %v1661 = vmul.f32 %v1208, %v1208
          %v1662 = vmul.f32 %v1209, %v1209
          %v1663 = vmul.f32 %v1210, %v1210
          %v1664 = vmul.f32 %v1211, %v1211
          %v1665 = vmul.f32 %v1212, %v1212
          %v1666 = vmul.f32 %v1213, %v1213
          %v1667 = vmul.f32 %v1214, %v1214
          %v1668 = vmul.f32 %v1215, %v1215
          %v1669 = vmul.f32 %v1216, %v1216
          %v1670 = vmul.f32 %v1217, %v1217
          %v1671 = vmul.f32 %v1218, %v1218
          %v1672 = vmul.f32 %v1219, %v1219
          %v1673 = vmul.f32 %v1220, %v1220
          %v1674 = vmul.f32 %v1221, %v1221
          %v1675 = vmul.f32 %v1222, %v1222
          %v1676 = vmul.f32 %v1223, %v1223
          %v1677 = vmul.f32 %v1224, %v1224
          %v1678 = vmul.f32 %v1225, %v1225
          %v1679 = vmul.f32 %v1226, %v1226
          %v1680 = vmul.f32 %v1227, %v1227
          %v1681 = vmul.f32 %v1228, %v1228
          %v1682 = vmul.f32 %v1229, %v1229
          %v1683 = vmul.f32 %v1230, %v1230
          %v1684 = vmul.f32 %v1231, %v1231
          %v1685 = vmul.f32 %v1232, %v1232
          %v1686 = vmul.f32 %v1233, %v1233
          %v1687 = vmul.f32 %v1234, %v1234
          %v1688 = vmul.f32 %v1235, %v1235
          %v1689 = vmul.f32 %v1236, %v1236
          %v1690 = vmul.f32 %v1237, %v1237
          %v1691 = vmul.f32 %v1238, %v1238
          %v1692 = vmul.f32 %v1239, %v1239
          %v1693 = vmul.f32 %v1240, %v1240
          %v1694 = vmul.f32 %v1241, %v1241
          %v1695 = vmul.f32 %v1242, %v1242
          %v1696 = vmul.f32 %v1243, %v1243
          %v1697 = vmul.f32 %v1244, %v1244
          %v1698 = vmul.f32 %v1245, %v1245
          %v1699 = vmul.f32 %v1246, %v1246
          %v1700 = vmul.f32 %v1247, %v1247
          %v1701 = vmul.f32 %v1248, %v1248
          %v1702 = vmul.f32 %v1249, %v1249
          %v1703 = vmul.f32 %v1250, %v1250
          %v1704 = vmul.f32 %v1251, %v1251
          %v1705 = vmul.f32 %v1252, %v1252
          %v1706 = vmul.f32 %v1253, %v1253
          %v1707 = vmul.f32 %v1254, %v1254
          %v1708 = vmul.f32 %v1255, %v1255
          %v1709 = vmul.f32 %v1256, %v1256
          %v1710 = vmul.f32 %v1257, %v1257
          %v1711 = vmul.f32 %v1258, %v1258
          %v1712 = vmul.f32 %v1259, %v1259
          %v1713 = vmul.f32 %v1260, %v1260
          %v1714 = vmul.f32 %v1261, %v1261
          %v1715 = vmul.f32 %v1262, %v1262
          %v1716 = vmul.f32 %v1263, %v1263
          %v1717 = vadd.f32 %v1653, %v1654
          %v1718 = vadd.f32 %v1717, %v1655
          %v1719 = vadd.f32 %v1718, %v1656
          %v1720 = vadd.f32 %v1719, %v1657
          %v1721 = vadd.f32 %v1720, %v1658
          %v1722 = vadd.f32 %v1721, %v1659
          %v1723 = vadd.f32 %v1722, %v1660
          %v1724 = vadd.f32 %v1723, %v1661
          %v1725 = vadd.f32 %v1724, %v1662
          %v1726 = vadd.f32 %v1725, %v1663
          %v1727 = vadd.f32 %v1726, %v1664
          %v1728 = vadd.f32 %v1727, %v1665
          %v1729 = vadd.f32 %v1728, %v1666
          %v1730 = vadd.f32 %v1729, %v1667
          %v1731 = vadd.f32 %v1730, %v1668
          %v1732 = vadd.f32 %v1731, %v1669
          %v1733 = vadd.f32 %v1732, %v1670
          %v1734 = vadd.f32 %v1733, %v1671
          %v1735 = vadd.f32 %v1734, %v1672
          %v1736 = vadd.f32 %v1735, %v1673
          %v1737 = vadd.f32 %v1736, %v1674
          %v1738 = vadd.f32 %v1737, %v1675
          %v1739 = vadd.f32 %v1738, %v1676
          %v1740 = vadd.f32 %v1739, %v1677
          %v1741 = vadd.f32 %v1740, %v1678
          %v1742 = vadd.f32 %v1741, %v1679
          %v1743 = vadd.f32 %v1742, %v1680
          %v1744 = vadd.f32 %v1743, %v1681
          %v1745 = vadd.f32 %v1744, %v1682
          %v1746 = vadd.f32 %v1745, %v1683
          %v1747 = vadd.f32 %v1746, %v1684
          %v1748 = vadd.f32 %v1747, %v1685
          %v1749 = vadd.f32 %v1748, %v1686
          %v1750 = vadd.f32 %v1749, %v1687
          %v1751 = vadd.f32 %v1750, %v1688
          %v1752 = vadd.f32 %v1751, %v1689
          %v1753 = vadd.f32 %v1752, %v1690
          %v1754 = vadd.f32 %v1753, %v1691
          %v1755 = vadd.f32 %v1754, %v1692
          %v1756 = vadd.f32 %v1755, %v1693
          %v1757 = vadd.f32 %v1756, %v1694
          %v1758 = vadd.f32 %v1757, %v1695
          %v1759 = vadd.f32 %v1758, %v1696
          %v1760 = vadd.f32 %v1759, %v1697
          %v1761 = vadd.f32 %v1760, %v1698
          %v1762 = vadd.f32 %v1761, %v1699
          %v1763 = vadd.f32 %v1762, %v1700
          %v1764 = vadd.f32 %v1763, %v1701
          %v1765 = vadd.f32 %v1764, %v1702
          %v1766 = vadd.f32 %v1765, %v1703
          %v1767 = vadd.f32 %v1766, %v1704
          %v1768 = vadd.f32 %v1767, %v1705
          %v1769 = vadd.f32 %v1768, %v1706
          %v1770 = vadd.f32 %v1769, %v1707
          %v1771 = vadd.f32 %v1770, %v1708
          %v1772 = vadd.f32 %v1771, %v1709
          %v1773 = vadd.f32 %v1772, %v1710
          %v1774 = vadd.f32 %v1773, %v1711
          %v1775 = vadd.f32 %v1774, %v1712
          %v1776 = vadd.f32 %v1775, %v1713
          %v1777 = vadd.f32 %v1776, %v1714
          %v1778 = vadd.f32 %v1777, %v1715
          %v1779 = vadd.f32 %v1778, %v1716
          %v1780 = vrot.slane %v1779, 4
          %v1781 = vadd.f32 %v1779, %v1780
          %v1782 = vrot.slane %v1781, 2
          %v1783 = vadd.f32 %v1781, %v1782
          %v1784 = vrot.slane %v1783, 1
          %v1785 = vadd.f32 %v1783, %v1784
          %1786 = vst [vmem:[%s265] sm:$0xff] %v1652
          %1787 = vst [vmem:[%s272] sm:$0xff] %v1785
        $region36: #{mixnet_encode.10} parent=27 // pred_fallthru
          _
        %s1788 = smul.u32 64, %s28
        %p1789 = scmp.lt.s32.totalorder %s27, 1
        %s1790 = scalar_select %p1789, %s27, 1
        %p1791 = scmp.lt.s32.totalorder %s1788, 63
        %s1792 = scalar_select %p1791, %s1788, 63
        %s1793 = smul.addr %s1790, 64
        %s1794 = sadd.s32 %s1792, %s1793
        %s1795 = smul.addr %s1794, 4
        %s1796 = scalar_lea.vmem %s2, %s1795
        %s1797 = sand.u32 %s135, 1
        %s1798 = scalar_lea.sflag [#allocation4], %s1797
        %s1799 = sand.u32 %s135, 1
        %s1800 = smul.addr %s1799, 8
        %s1801 = scalar_lea.vmem [#allocation3], %s1800
        %s1802 = sand.u32 %s163, 1
        %s1803 = scalar_lea.sflag [#allocation6], %s1802
        %s1804 = sand.u32 %s163, 1
        %s1805 = smul.addr %s1804, 8
        %s1806 = scalar_lea.vmem [#allocation5], %s1805
        // Predicated region
        $region37: #{mixnet_encode.10} parent=27 // pred_check
          %p1807 = pneg %p117
        $region38: #{mixnet_encode.10} parent=27 // pred_check_branch
          %1809 = sbr.rel (%p1807) target = $region40
        $region39: #{mixnet_encode.10} parent=27 // pred_region
          %s1810 = smul.u32 64, %s28
        $region40: #{mixnet_encode.10} parent=27 // pred_fallthru
          _
        // Predicated region
        $region41: #{mixnet_encode.10} parent=27 // pred_check
          %p1811 = pneg %p145
        $region42: #{mixnet_encode.10} parent=27 // pred_check_branch
          %1813 = sbr.rel (%p1811) target = $region44
        $region43: #{mixnet_encode.10} parent=27 // pred_region
          %s1815 = ssub.s32 128, 128
          %1816 = vsyncadd %s1798, %s1815
          %s1817 = sadd.s32 %s28, %s27
          %s1818 = smul.addr %s1817, 128
          %s1819 = scalar_lea.hbm %s3, %s1818
          %s1821 = sshll.u32 %s1801, 4
          %s1822 = int_to_ptr.vmem [resolvable:$true] %s1821
          %1824 = dma.vmem_to_hbm [thread:$0]  %s1822, 128, %s1819, %s1798
        $region44: #{mixnet_encode.10} parent=27 // pred_fallthru
          _
        // Predicated region
        $region45: #{mixnet_encode.10} parent=27 // pred_check
          %p1825 = pneg %p173
        $region46: #{mixnet_encode.10} parent=27 // pred_check_branch
          %1827 = sbr.rel (%p1825) target = $region48
        $region47: #{mixnet_encode.10} parent=27 // pred_region
          %s1829 = ssub.s32 128, 128
          %1830 = vsyncadd %s1803, %s1829
          %s1831 = sadd.s32 %s28, %s27
          %s1832 = smul.addr %s1831, 128
          %s1833 = scalar_lea.hbm %s4, %s1832
          %s1835 = sshll.u32 %s1806, 4
          %s1836 = int_to_ptr.vmem [resolvable:$true] %s1835
          %1838 = dma.vmem_to_hbm [thread:$0]  %s1836, 128, %s1833, %s1803
        $region48: #{mixnet_encode.10} parent=27 // pred_fallthru
          _
      $region28: #{mixnet_encode.10} parent=5 // pred_fallthru
        _
      %p1839 = scmp.le.s32.totalorder 2, %s17
      // Predicated region
      $region49: #{mixnet_encode.10} parent=5 // pred_check
        %p1840 = pneg %p1839
      $region50: #{mixnet_encode.10} parent=5 // pred_check_branch
        %1842 = sbr.rel (%p1840) target = $region52
      $region51: #{mixnet_encode.10} parent=5 // pred_region
        %s1843 = ssub.s32 %s17, 2
        // Predicated region
        $region53: #{mixnet_encode.10} parent=51 // pred_check
          %p1844 = pneg %p123
        $region54: #{mixnet_encode.10} parent=51 // pred_check_branch
          %1846 = sbr.rel (%p1844) target = $region56
        $region55: #{mixnet_encode.10} parent=51 // pred_region
          %s1847 = smul.u32 64, %s31
          %p1848 = scmp.lt.s32.totalorder %s30, 1
          %s1849 = scalar_select %p1848, %s30, 1
          %p1850 = scmp.lt.s32.totalorder %s1847, 63
          %s1851 = scalar_select %p1850, %s1847, 63
          %s1852 = smul.addr %s1849, 64
          %s1853 = sadd.s32 %s1851, %s1852
          %s1854 = smul.addr %s1853, 4
          %s1855 = scalar_lea.vmem %s2, %s1854
        $region56: #{mixnet_encode.10} parent=51 // pred_fallthru
          _
        // Predicated region
        $region57: #{mixnet_encode.10} parent=51 // pred_check
          %p1856 = pneg %p151
        $region58: #{mixnet_encode.10} parent=51 // pred_check_branch
          %1858 = sbr.rel (%p1856) target = $region60
        $region59: #{mixnet_encode.10} parent=51 // pred_region
          %s1859 = sand.u32 %s136, 1
          %s1860 = scalar_lea.sflag [#allocation4], %s1859
          %s1861 = sand.u32 %s136, 1
          %s1862 = smul.addr %s1861, 8
          %s1863 = scalar_lea.vmem [#allocation3], %s1862
          %1864 = dma.done %s1860, 128
        $region60: #{mixnet_encode.10} parent=51 // pred_fallthru
          _
        // Predicated region
        $region61: #{mixnet_encode.10} parent=51 // pred_check
          %p1865 = pneg %p179
        $region62: #{mixnet_encode.10} parent=51 // pred_check_branch
          %1867 = sbr.rel (%p1865) target = $region64
        $region63: #{mixnet_encode.10} parent=51 // pred_region
          %s1868 = sand.u32 %s164, 1
          %s1869 = scalar_lea.sflag [#allocation6], %s1868
          %s1870 = sand.u32 %s164, 1
          %s1871 = smul.addr %s1870, 8
          %s1872 = scalar_lea.vmem [#allocation5], %s1871
          %1873 = dma.done %s1869, 128
        $region64: #{mixnet_encode.10} parent=51 // pred_fallthru
          _
      $region52: #{mixnet_encode.10} parent=5 // pred_fallthru
        _
    $region6: #{mixnet_encode.10} parent=1 // loop_footer
      %s21 = sadd.s32 1, %s17
    $region7: #{mixnet_encode.10} parent=1 // loop_footer_branch
      %16 = sbr.rel target = $region3
    $region8: #{mixnet_encode.10} parent=1 // loop_exit
      _
    %1874 = vsyncpa [#allocation4], 1
    %s1875 = scalar_lea.sflag [#allocation4], 1
    %1876 = vsyncpa %s1875, 1
    %1877 = vsyncpa [#allocation6], 1
    %s1878 = scalar_lea.sflag [#allocation6], 1
    %1879 = vsyncpa %s1878, 1

// kernel: mixnet_encode.11
$region0: #{mixnet_encode.11}
  #allocation0 [shape = 'u32[]', space=smem, size = 0x4, offset = 0x4, fixed_abs, tag = 'smem constant byte address 0x4 - core index']
  #allocation1 [shape = 'u32[144,128]{1,0:T(1,128)}', space=vmem, size = 0x12000, scoped, tag = 'internal scratch']
  #allocation2 [shape = 'f32[128,128]{1,0:T(8,128)}', space=vmem, size = 0x10000, scoped, tag = 'scratch operand']
  %s0 = inlined_call_operand.vmem [shape: bf16[2,128,128], index: 0, kind: input, shape index: {}]
  %s1 = inlined_call_operand.vmem [shape: bf16[128,128], index: 1, kind: input, shape index: {}]
  %s2 = inlined_call_operand.vmem [shape: bf16[2,128,128], index: 2, kind: output, shape index: {0}]
  %s3 = inlined_call_operand.vmem [shape: f32[2,8,128], index: 3, kind: output, shape index: {1}]
  %s4 = inlined_call_operand.vmem [shape: f32[2,8,128], index: 4, kind: output, shape index: {2}]
  %5 = xla_tuple %s2, %s3, %s4
  %s6 = sld [smem:[#allocation0]]
  $region65: #{mixnet_encode.11} parent=0
    _
  %s8 = ssub.s32 1, %s6
  %s9 = scalar_select 0, %s8, %s6
  loop: start=0, step=1, limit=4
  $region2: #{mixnet_encode.11} parent=0 // loop_pre_header
    _
  $region3: #{mixnet_encode.11} parent=0 // loop_header
    %s11 = sphi 0, %s15
    %p12 = scmp.ge.s32.totalorder %s11, 4
    %s18 = sphi 0, %s37
    %s19 = sphi 0, %s33
    %s20 = sphi 0, %s29
    %s21 = sphi 0, %s18
    %s22 = sphi 0, %s19
    %s23 = sphi 0, %s20
    %s24 = sphi 0, %s21
    %s25 = sphi 0, %s22
    %s26 = sphi 0, %s23
    %s44 = sphi 0, %s46
    %s47 = sphi 0, %s44
    %s48 = sphi 0, %s47
    %s64 = sphi 0, %s48
    %s70 = sphi 0, %s72
    %s73 = sphi 0, %s70
    %s74 = sphi 0, %s73
    %s90 = sphi 0, %s74
    %s98 = sphi 0, %s100
    %s101 = sphi 0, %s98
    %s102 = sphi 0, %s101
    %s118 = sphi 0, %s102
    %s126 = sphi 0, %s128
    %s129 = sphi 0, %s126
    %s130 = sphi 0, %s129
    %s146 = sphi 0, %s130
    %s154 = sphi 0, %s156
    %s157 = sphi 0, %s154
    %s158 = sphi 0, %s157
    %s174 = sphi 0, %s158
  $region4: #{mixnet_encode.11} parent=0 // loop_header_branch
    %14 = sbr.rel (%p12) target = $region8
  $region5: #{mixnet_encode.11} parent=0 // loop_body
    %s16 = ssub.s32 %s11, 1
    %s17 = ssub.s32 %s11, 2
    %s27 = sadd.s32 1, %s20
    %p28 = scmp.ge.s32.totalorder %s27, 1
    %s29 = scalar_select %p28, 0, %s27
    %s30 = sadd.s32 1, %s19
    %s31 = scalar_select %p28, %s30, %s19
    %p32 = scmp.ge.s32.totalorder %s31, 1
    %s33 = scalar_select %p32, 0, %s31
    %s34 = sadd.s32 1, %s18
    %s35 = scalar_select %p32, %s34, %s18
    %p36 = scmp.ge.s32.totalorder %s35, 2
    %s37 = scalar_select %p36, 0, %s35
    %s38 = ssub.s32 %s18, %s37
    %s39 = ssub.s32 %s19, %s33
    %s40 = sor.u32 %s38, %s39
    %s41 = ssub.s32 %s20, %s29
    %s42 = sor.u32 %s40, %s41
    %p43 = scmp.eq.s32.totalorder %s42, 0
    %s45 = sadd.s32 %s44, 1
    %s46 = scalar_select %p43, %s44, %s45
    %p49 = pneg %p43
    %p50 = scmp.eq.s32.totalorder %s11, 1
    %p51 = por %p49, %p50
    %p52 = scmp.ne.s32.totalorder %s44, %s47
    %p53 = scmp.eq.s32.totalorder %s11, 0
    %p54 = por %p52, %p53
    %p55 = scmp.ne.s32.totalorder %s44, %s47
    %p56 = scmp.eq.s32.totalorder %s16, 1
    %p57 = por %p55, %p56
    %p58 = scmp.ne.s32.totalorder %s47, %s48
    %p59 = scmp.eq.s32.totalorder %s16, 0
    %p60 = por %p58, %p59
    %p61 = scmp.ne.s32.totalorder %s47, %s48
    %p62 = scmp.eq.s32.totalorder %s17, 1
    %p63 = por %p61, %p62
    %p65 = scmp.ne.s32.totalorder %s48, %s64
    %p66 = scmp.eq.s32.totalorder %s17, 0
    %p67 = por %p65, %p66
    %s68 = ssub.s32 %s20, %s29
    %p69 = scmp.eq.s32.totalorder %s68, 0
    %s71 = sadd.s32 %s70, 1
    %s72 = scalar_select %p69, %s70, %s71
    %p75 = pneg %p69
    %p76 = scmp.eq.s32.totalorder %s11, 1
    %p77 = por %p75, %p76
    %p78 = scmp.ne.s32.totalorder %s70, %s73
    %p79 = scmp.eq.s32.totalorder %s11, 0
    %p80 = por %p78, %p79
    %p81 = scmp.ne.s32.totalorder %s70, %s73
    %p82 = scmp.eq.s32.totalorder %s16, 1
    %p83 = por %p81, %p82
    %p84 = scmp.ne.s32.totalorder %s73, %s74
    %p85 = scmp.eq.s32.totalorder %s16, 0
    %p86 = por %p84, %p85
    %p87 = scmp.ne.s32.totalorder %s73, %s74
    %p88 = scmp.eq.s32.totalorder %s17, 1
    %p89 = por %p87, %p88
    %p91 = scmp.ne.s32.totalorder %s74, %s90
    %p92 = scmp.eq.s32.totalorder %s17, 0
    %p93 = por %p91, %p92
    %s94 = ssub.s32 %s18, %s37
    %s95 = ssub.s32 %s19, %s33
    %s96 = sor.u32 %s94, %s95
    %p97 = scmp.eq.s32.totalorder %s96, 0
    %s99 = sadd.s32 %s98, 1
    %s100 = scalar_select %p97, %s98, %s99
    %p103 = pneg %p97
    %p104 = scmp.eq.s32.totalorder %s11, 1
    %p105 = por %p103, %p104
    %p106 = scmp.ne.s32.totalorder %s98, %s101
    %p107 = scmp.eq.s32.totalorder %s11, 0
    %p108 = por %p106, %p107
    %p109 = scmp.ne.s32.totalorder %s98, %s101
    %p110 = scmp.eq.s32.totalorder %s16, 1
    %p111 = por %p109, %p110
    %p112 = scmp.ne.s32.totalorder %s101, %s102
    %p113 = scmp.eq.s32.totalorder %s16, 0
    %p114 = por %p112, %p113
    %p115 = scmp.ne.s32.totalorder %s101, %s102
    %p116 = scmp.eq.s32.totalorder %s17, 1
    %p117 = por %p115, %p116
    %p119 = scmp.ne.s32.totalorder %s102, %s118
    %p120 = scmp.eq.s32.totalorder %s17, 0
    %p121 = por %p119, %p120
    %s122 = ssub.s32 %s18, %s37
    %s123 = ssub.s32 %s19, %s33
    %s124 = sor.u32 %s122, %s123
    %p125 = scmp.eq.s32.totalorder %s124, 0
    %s127 = sadd.s32 %s126, 1
    %s128 = scalar_select %p125, %s126, %s127
    %p131 = pneg %p125
    %p132 = scmp.eq.s32.totalorder %s11, 1
    %p133 = por %p131, %p132
    %p134 = scmp.ne.s32.totalorder %s126, %s129
    %p135 = scmp.eq.s32.totalorder %s11, 0
    %p136 = por %p134, %p135
    %p137 = scmp.ne.s32.totalorder %s126, %s129
    %p138 = scmp.eq.s32.totalorder %s16, 1
    %p139 = por %p137, %p138
    %p140 = scmp.ne.s32.totalorder %s129, %s130
    %p141 = scmp.eq.s32.totalorder %s16, 0
    %p142 = por %p140, %p141
    %p143 = scmp.ne.s32.totalorder %s129, %s130
    %p144 = scmp.eq.s32.totalorder %s17, 1
    %p145 = por %p143, %p144
    %p147 = scmp.ne.s32.totalorder %s130, %s146
    %p148 = scmp.eq.s32.totalorder %s17, 0
    %p149 = por %p147, %p148
    %s150 = ssub.s32 %s18, %s37
    %s151 = ssub.s32 %s19, %s33
    %s152 = sor.u32 %s150, %s151
    %p153 = scmp.eq.s32.totalorder %s152, 0
    %s155 = sadd.s32 %s154, 1
    %s156 = scalar_select %p153, %s154, %s155
    %p159 = pneg %p153
    %p160 = scmp.eq.s32.totalorder %s11, 1
    %p161 = por %p159, %p160
    %p162 = scmp.ne.s32.totalorder %s154, %s157
    %p163 = scmp.eq.s32.totalorder %s11, 0
    %p164 = por %p162, %p163
    %p165 = scmp.ne.s32.totalorder %s154, %s157
    %p166 = scmp.eq.s32.totalorder %s16, 1
    %p167 = por %p165, %p166
    %p168 = scmp.ne.s32.totalorder %s157, %s158
    %p169 = scmp.eq.s32.totalorder %s16, 0
    %p170 = por %p168, %p169
    %p171 = scmp.ne.s32.totalorder %s157, %s158
    %p172 = scmp.eq.s32.totalorder %s17, 1
    %p173 = por %p171, %p172
    %p175 = scmp.ne.s32.totalorder %s158, %s174
    %p176 = scmp.eq.s32.totalorder %s17, 0
    %p177 = por %p175, %p176
    %p178 = scmp.le.s32.totalorder 1, %s11
    %p179 = scmp.lt.s32.totalorder %s11, 3
    %p180 = pnand %p178, %p179
    %p181 = pneg %p180
    // Predicated region
    $region9: #{mixnet_encode.11} parent=5 // pred_check
      _
    $region10: #{mixnet_encode.11} parent=5 // pred_check_branch
      %183 = sbr.rel (%p180) target = $region12
    $region11: #{mixnet_encode.11} parent=5 // pred_region
      %s184 = ssub.s32 %s11, 1
      // Predicated region
      $region13: #{mixnet_encode.11} parent=11 // pred_check
        %p185 = pneg %p86
      $region14: #{mixnet_encode.11} parent=11 // pred_check_branch
        %187 = sbr.rel (%p185) target = $region16
      $region15: #{mixnet_encode.11} parent=11 // pred_region
        %s188 = smul.u32 16, %s23
        %p189 = scmp.lt.s32.totalorder %s188, 15
        %s190 = scalar_select %p189, %s188, 15
        %s191 = smul.addr %s190, 4
        %s192 = scalar_lea.vmem %s1, %s191
        %s193 = smul.u32 16, %s23
      $region16: #{mixnet_encode.11} parent=11 // pred_fallthru
        _
    $region12: #{mixnet_encode.11} parent=5 // pred_fallthru
      _
    %p194 = scmp.lt.s32.totalorder %s11, 2
    // Predicated region
    $region17: #{mixnet_encode.11} parent=5 // pred_check
      %p195 = pneg %p194
    $region18: #{mixnet_encode.11} parent=5 // pred_check_branch
      %197 = sbr.rel (%p195) target = $region20
    $region19: #{mixnet_encode.11} parent=5 // pred_region
      // Predicated region
      $region21: #{mixnet_encode.11} parent=19 // pred_check
        %p198 = pneg %p54
      $region22: #{mixnet_encode.11} parent=19 // pred_check_branch
        %200 = sbr.rel (%p198) target = $region24
      $region23: #{mixnet_encode.11} parent=19 // pred_region
        %s201 = smul.u32 16, %s19
        %p202 = scmp.lt.s32.totalorder %s18, 1
        %s203 = scalar_select %p202, %s18, 1
        %p204 = scmp.lt.s32.totalorder %s201, 15
        %s205 = scalar_select %p204, %s201, 15
        %p206 = scmp.lt.s32.totalorder %s20, 0
        %s207 = scalar_select %p206, %s20, 0
        %s208 = sadd.s32 %s207, %s205
        %s209 = smul.addr %s203, 16
        %s210 = sadd.s32 %s208, %s209
        %s211 = smul.addr %s210, 4
        %s212 = scalar_lea.vmem %s0, %s211
        %s213 = smul.u32 16, %s19
      $region24: #{mixnet_encode.11} parent=19 // pred_fallthru
        _
    $region20: #{mixnet_encode.11} parent=5 // pred_fallthru
      _
    %p214 = scmp.le.s32.totalorder 1, %s11
    %p215 = scmp.lt.s32.totalorder %s11, 3
    %p216 = pnand %p214, %p215
    %p217 = pneg %p216
    // Predicated region
    $region25: #{mixnet_encode.11} parent=5 // pred_check
      _
    $region26: #{mixnet_encode.11} parent=5 // pred_check_branch
      %219 = sbr.rel (%p216) target = $region28
    $region27: #{mixnet_encode.11} parent=5 // pred_region
      %s220 = ssub.s32 %s11, 1
      %s221 = smul.u32 16, %s22
      %p222 = scmp.lt.s32.totalorder %s21, 1
      %s223 = scalar_select %p222, %s21, 1
      %p224 = scmp.lt.s32.totalorder %s221, 15
      %s225 = scalar_select %p224, %s221, 15
      %p226 = scmp.lt.s32.totalorder %s23, 0
      %s227 = scalar_select %p226, %s23, 0
      %s228 = sadd.s32 %s227, %s225
      %s229 = smul.addr %s223, 16
      %s230 = sadd.s32 %s228, %s229
      %s231 = smul.addr %s230, 4
      %s232 = scalar_lea.vmem %s0, %s231
      %p233 = pneg %p60
      %p234 = pneg %p57
      %s235 = smul.u32 16, %s23
      %p236 = scmp.lt.s32.totalorder %s235, 15
      %s237 = scalar_select %p236, %s235, 15
      %s238 = smul.addr %s237, 4
      %s239 = scalar_lea.vmem %s1, %s238
      %p240 = pneg %p86
      %p241 = pneg %p83
      %p242 = pneg %p114
      %p243 = pneg %p111
      %s244 = smul.u32 16, %s22
      %p245 = scmp.lt.s32.totalorder %s21, 1
      %s246 = scalar_select %p245, %s21, 1
      %p247 = scmp.lt.s32.totalorder %s244, 15
      %s248 = scalar_select %p247, %s244, 15
      %s249 = smul.addr %s246, 16
      %s250 = sadd.s32 %s248, %s249
      %s251 = smul.addr %s250, 4
      %s252 = scalar_lea.vmem %s2, %s251
      %p253 = pneg %p142
      %p254 = pneg %p139
      %p255 = scmp.lt.s32.totalorder %s21, 1
      %s256 = scalar_select %p255, %s21, 1
      %p257 = scmp.lt.s32.totalorder %s22, 0
      %s258 = scalar_select %p257, %s22, 0
      %s259 = sadd.s32 %s258, %s256
      %s260 = smul.addr %s259, 8
      %s261 = scalar_lea.vmem %s3, %s260
      %p262 = pneg %p170
      %p263 = pneg %p167
      %p264 = scmp.lt.s32.totalorder %s21, 1
      %s265 = scalar_select %p264, %s21, 1
      %p266 = scmp.lt.s32.totalorder %s22, 0
      %s267 = scalar_select %p266, %s22, 0
      %s268 = sadd.s32 %s267, %s265
      %s269 = smul.addr %s268, 8
      %s270 = scalar_lea.vmem %s4, %s269
      %s271 = smul.u32 16, %s22
      %p272 = scmp.lt.s32.totalorder %s21, 1
      %s273 = scalar_select %p272, %s21, 1
      %p274 = scmp.lt.s32.totalorder %s271, 15
      %s275 = scalar_select %p274, %s271, 15
      %p276 = scmp.lt.s32.totalorder %s23, 0
      %s277 = scalar_select %p276, %s23, 0
      %s278 = sadd.s32 %s277, %s275
      %s279 = smul.addr %s273, 16
      %s280 = sadd.s32 %s278, %s279
      %s281 = smul.addr %s280, 4
      %s282 = scalar_lea.vmem %s0, %s281
      %s283 = smul.u32 16, %s22
      %s284 = smul.u32 16, %s23
      %p285 = scmp.lt.s32.totalorder %s284, 15
      %s286 = scalar_select %p285, %s284, 15
      %s287 = smul.addr %s286, 4
      %s288 = scalar_lea.vmem %s1, %s287
      %s289 = smul.u32 16, %s23
      %s290 = smul.u32 16, %s22
      %p291 = scmp.lt.s32.totalorder %s21, 1
      %s292 = scalar_select %p291, %s21, 1
      %p293 = scmp.lt.s32.totalorder %s290, 15
      %s294 = scalar_select %p293, %s290, 15
      %s295 = smul.addr %s292, 16
      %s296 = sadd.s32 %s294, %s295
      %s297 = smul.addr %s296, 4
      %s298 = scalar_lea.vmem %s2, %s297
      %s299 = smul.u32 16, %s22
      %p300 = scmp.lt.s32.totalorder %s21, 1
      %s301 = scalar_select %p300, %s21, 1
      %p302 = scmp.lt.s32.totalorder %s22, 0
      %s303 = scalar_select %p302, %s22, 0
      %s304 = sadd.s32 %s303, %s301
      %s305 = smul.addr %s304, 8
      %s306 = scalar_lea.vmem %s3, %s305
      %p307 = scmp.lt.s32.totalorder %s21, 1
      %s308 = scalar_select %p307, %s21, 1
      %p309 = scmp.lt.s32.totalorder %s22, 0
      %s310 = scalar_select %p309, %s22, 0
      %s311 = sadd.s32 %s310, %s308
      %s312 = smul.addr %s311, 8
      %s313 = scalar_lea.vmem %s4, %s312
      %p316 = scmp.eq.s32.totalorder %s23, 0
      // Predicated region
      $region29: #{mixnet_encode.11} parent=27 // pred_check
        %p317 = pneg %p316
      $region30: #{mixnet_encode.11} parent=27 // pred_check_branch
        %319 = sbr.rel (%p317) target = $region32
      $region31: #{mixnet_encode.11} parent=27 // pred_region
        %320 = vst [vmem:[#allocation2] sm:$0xff] 0.0
        %321 = vst [vmem:[#allocation2 + $0x8] sm:$0xff] 0.0
        %322 = vst [vmem:[#allocation2 + $0x10] sm:$0xff] 0.0
        %323 = vst [vmem:[#allocation2 + $0x18] sm:$0xff] 0.0
        %324 = vst [vmem:[#allocation2 + $0x20] sm:$0xff] 0.0
        %325 = vst [vmem:[#allocation2 + $0x28] sm:$0xff] 0.0
        %326 = vst [vmem:[#allocation2 + $0x30] sm:$0xff] 0.0
        %327 = vst [vmem:[#allocation2 + $0x38] sm:$0xff] 0.0
        %328 = vst [vmem:[#allocation2 + $0x40] sm:$0xff] 0.0
        %329 = vst [vmem:[#allocation2 + $0x48] sm:$0xff] 0.0
        %330 = vst [vmem:[#allocation2 + $0x50] sm:$0xff] 0.0
        %331 = vst [vmem:[#allocation2 + $0x58] sm:$0xff] 0.0
        %332 = vst [vmem:[#allocation2 + $0x60] sm:$0xff] 0.0
        %333 = vst [vmem:[#allocation2 + $0x68] sm:$0xff] 0.0
        %334 = vst [vmem:[#allocation2 + $0x70] sm:$0xff] 0.0
        %335 = vst [vmem:[#allocation2 + $0x78] sm:$0xff] 0.0
      $region32: #{mixnet_encode.11} parent=27 // pred_fallthru
        _
      %v336 = vld [vmem:[%s282] sm:$0xf]
      %v337 = vld [vmem:[%s282 + $0x4] sm:$0xf]
      %v338 = vld [vmem:[%s282 + $0x8] sm:$0xf]
      %v339 = vld [vmem:[%s282 + $0xc] sm:$0xf]
      %v340 = vld [vmem:[%s282 + $0x10] sm:$0xf]
      %v341 = vld [vmem:[%s282 + $0x14] sm:$0xf]
      %v342 = vld [vmem:[%s282 + $0x18] sm:$0xf]
      %v343 = vld [vmem:[%s282 + $0x1c] sm:$0xf]
      %v344 = vld [vmem:[%s282 + $0x20] sm:$0xf]
      %v345 = vld [vmem:[%s282 + $0x24] sm:$0xf]
      %v346 = vld [vmem:[%s282 + $0x28] sm:$0xf]
      %v347 = vld [vmem:[%s282 + $0x2c] sm:$0xf]
      %v348 = vld [vmem:[%s282 + $0x30] sm:$0xf]
      %v349 = vld [vmem:[%s282 + $0x34] sm:$0xf]
      %v350 = vld [vmem:[%s282 + $0x38] sm:$0xf]
      %v351 = vld [vmem:[%s282 + $0x3c] sm:$0xf]
      %vm352 = vcmp.gt.bf16.partialorder %v336, 0
      %vm353 = vcmp.gt.bf16.partialorder %v337, 0
      %vm354 = vcmp.gt.bf16.partialorder %v338, 0
      %vm355 = vcmp.gt.bf16.partialorder %v339, 0
      %vm356 = vcmp.gt.bf16.partialorder %v340, 0
      %vm357 = vcmp.gt.bf16.partialorder %v341, 0
      %vm358 = vcmp.gt.bf16.partialorder %v342, 0
      %vm359 = vcmp.gt.bf16.partialorder %v343, 0
      %vm360 = vcmp.gt.bf16.partialorder %v344, 0
      %vm361 = vcmp.gt.bf16.partialorder %v345, 0
      %vm362 = vcmp.gt.bf16.partialorder %v346, 0
      %vm363 = vcmp.gt.bf16.partialorder %v347, 0
      %vm364 = vcmp.gt.bf16.partialorder %v348, 0
      %vm365 = vcmp.gt.bf16.partialorder %v349, 0
      %vm366 = vcmp.gt.bf16.partialorder %v350, 0
      %vm367 = vcmp.gt.bf16.partialorder %v351, 0
      %v368 = vmul.bf16 %v336, 1045249613
      %v369 = vmul.bf16 %v337, 1045249613
      %v370 = vmul.bf16 %v338, 1045249613
      %v371 = vmul.bf16 %v339, 1045249613
      %v372 = vmul.bf16 %v340, 1045249613
      %v373 = vmul.bf16 %v341, 1045249613
      %v374 = vmul.bf16 %v342, 1045249613
      %v375 = vmul.bf16 %v343, 1045249613
      %v376 = vmul.bf16 %v344, 1045249613
      %v377 = vmul.bf16 %v345, 1045249613
      %v378 = vmul.bf16 %v346, 1045249613
      %v379 = vmul.bf16 %v347, 1045249613
      %v380 = vmul.bf16 %v348, 1045249613
      %v381 = vmul.bf16 %v349, 1045249613
      %v382 = vmul.bf16 %v350, 1045249613
      %v383 = vmul.bf16 %v351, 1045249613
      %v384 = vsel %vm352, %v336, %v368
      %v385 = vsel %vm353, %v337, %v369
      %v386 = vsel %vm354, %v338, %v370
      %v387 = vsel %vm355, %v339, %v371
      %v388 = vsel %vm356, %v340, %v372
      %v389 = vsel %vm357, %v341, %v373
      %v390 = vsel %vm358, %v342, %v374
      %v391 = vsel %vm359, %v343, %v375
      %v392 = vsel %vm360, %v344, %v376
      %v393 = vsel %vm361, %v345, %v377
      %v394 = vsel %vm362, %v346, %v378
      %v395 = vsel %vm363, %v347, %v379
      %v396 = vsel %vm364, %v348, %v380
      %v397 = vsel %vm365, %v349, %v381
      %v398 = vsel %vm366, %v350, %v382
      %v399 = vsel %vm367, %v351, %v383
      %v400 = vld [vmem:[#allocation2] sm:$0xff]
      %v401 = vld [vmem:[#allocation2 + $0x8] sm:$0xff]
      %v402 = vld [vmem:[#allocation2 + $0x10] sm:$0xff]
      %v403 = vld [vmem:[#allocation2 + $0x18] sm:$0xff]
      %v404 = vld [vmem:[#allocation2 + $0x20] sm:$0xff]
      %v405 = vld [vmem:[#allocation2 + $0x28] sm:$0xff]
      %v406 = vld [vmem:[#allocation2 + $0x30] sm:$0xff]
      %v407 = vld [vmem:[#allocation2 + $0x38] sm:$0xff]
      %v408 = vld [vmem:[#allocation2 + $0x40] sm:$0xff]
      %v409 = vld [vmem:[#allocation2 + $0x48] sm:$0xff]
      %v410 = vld [vmem:[#allocation2 + $0x50] sm:$0xff]
      %v411 = vld [vmem:[#allocation2 + $0x58] sm:$0xff]
      %v412 = vld [vmem:[#allocation2 + $0x60] sm:$0xff]
      %v413 = vld [vmem:[#allocation2 + $0x68] sm:$0xff]
      %v414 = vld [vmem:[#allocation2 + $0x70] sm:$0xff]
      %v415 = vld [vmem:[#allocation2 + $0x78] sm:$0xff]
      %v416 = vld [vmem:[%s288] sm:$0xf]
      %v417 = vld [vmem:[%s288 + $0x4] sm:$0xf]
      %v418 = vld [vmem:[%s288 + $0x8] sm:$0xf]
      %v419 = vld [vmem:[%s288 + $0xc] sm:$0xf]
      %v420 = vld [vmem:[%s288 + $0x10] sm:$0xf]
      %v421 = vld [vmem:[%s288 + $0x14] sm:$0xf]
      %v422 = vld [vmem:[%s288 + $0x18] sm:$0xf]
      %v423 = vld [vmem:[%s288 + $0x1c] sm:$0xf]
      %v424 = vld [vmem:[%s288 + $0x20] sm:$0xf]
      %v425 = vld [vmem:[%s288 + $0x24] sm:$0xf]
      %v426 = vld [vmem:[%s288 + $0x28] sm:$0xf]
      %v427 = vld [vmem:[%s288 + $0x2c] sm:$0xf]
      %v428 = vld [vmem:[%s288 + $0x30] sm:$0xf]
      %v429 = vld [vmem:[%s288 + $0x34] sm:$0xf]
      %v430 = vld [vmem:[%s288 + $0x38] sm:$0xf]
      %v431 = vld [vmem:[%s288 + $0x3c] sm:$0xf]
      %v448 = vunpack.c.l.b16 %v384
      %v449 = vunpack.c.l.b16 %v385
      %v450 = vunpack.c.l.b16 %v386
      %v451 = vunpack.c.l.b16 %v387
      %v452 = vunpack.c.l.b16 %v388
      %v453 = vunpack.c.l.b16 %v389
      %v454 = vunpack.c.l.b16 %v390
      %v455 = vunpack.c.l.b16 %v391
      %v456 = vunpack.c.l.b16 %v392
      %v457 = vunpack.c.l.b16 %v393
      %v458 = vunpack.c.l.b16 %v394
      %v459 = vunpack.c.l.b16 %v395
      %v460 = vunpack.c.l.b16 %v396
      %v461 = vunpack.c.l.b16 %v397
      %v462 = vunpack.c.l.b16 %v398
      %v463 = vunpack.c.l.b16 %v399
      %v464 = vpack.c.b16 %v449, %v448
      %v465 = vpack.c.b16 %v451, %v450
      %v466 = vpack.c.b16 %v453, %v452
      %v467 = vpack.c.b16 %v455, %v454
      %v468 = vpack.c.b16 %v457, %v456
      %v469 = vpack.c.b16 %v459, %v458
      %v470 = vpack.c.b16 %v461, %v460
      %v471 = vpack.c.b16 %v463, %v462
      %v496 = vunpack.c.l.b16 %v416
      %v497 = vunpack.c.l.b16 %v417
      %v498 = vunpack.c.l.b16 %v418
      %v499 = vunpack.c.l.b16 %v419
      %v500 = vunpack.c.l.b16 %v420
      %v501 = vunpack.c.l.b16 %v421
      %v502 = vunpack.c.l.b16 %v422
      %v503 = vunpack.c.l.b16 %v423
      %v504 = vunpack.c.l.b16 %v424
      %v505 = vunpack.c.l.b16 %v425
      %v506 = vunpack.c.l.b16 %v426
      %v507 = vunpack.c.l.b16 %v427
      %v508 = vunpack.c.l.b16 %v428
      %v509 = vunpack.c.l.b16 %v429
      %v510 = vunpack.c.l.b16 %v430
      %v511 = vunpack.c.l.b16 %v431
      %v512 = vpack.c.b16 %v497, %v496
      %v513 = vpack.c.b16 %v499, %v498
      %v514 = vpack.c.b16 %v501, %v500
      %v515 = vpack.c.b16 %v503, %v502
      %v516 = vpack.c.b16 %v505, %v504
      %v517 = vpack.c.b16 %v507, %v506
      %v518 = vpack.c.b16 %v509, %v508
      %v519 = vpack.c.b16 %v511, %v510
      %528 = vmatprep.subr.bf16.mxu0 0
      %529 = vmatpush1.bf16.msra.mxu0 %v512
      %530 = vmatprep.subr.bf16.mxu0 0
      %531 = vmatpush1.bf16.msra.mxu0 %v513
      %532 = vmatprep.subr.bf16.mxu0 0
      %533 = vmatpush1.bf16.msra.mxu0 %v514
      %534 = vmatprep.subr.bf16.mxu0 0
      %535 = vmatpush1.bf16.msra.mxu0 %v515
      %536 = vmatprep.subr.bf16.mxu0 0
      %537 = vmatpush1.bf16.msra.mxu0 %v516
      %538 = vmatprep.subr.bf16.mxu0 0
      %539 = vmatpush1.bf16.msra.mxu0 %v517
      %540 = vmatprep.subr.bf16.mxu0 0
      %541 = vmatpush1.bf16.msra.mxu0 %v518
      %542 = vmatprep.subr.bf16.mxu0 0
      %543 = vmatpush1.bf16.msra.mxu0 %v519
      %544 = vmatprep.subr.bf16.mxu0 0
      %545 = vmatpush1.bf16.msra.mxu0 0
      %546 = vmatprep.subr.bf16.mxu0 0
      %547 = vmatpush1.bf16.msra.mxu0 0
      %548 = vmatprep.subr.bf16.mxu0 0
      %549 = vmatpush1.bf16.msra.mxu0 0
      %550 = vmatprep.subr.bf16.mxu0 0
      %551 = vmatpush1.bf16.msra.mxu0 0
      %552 = vmatprep.subr.bf16.mxu0 0
      %553 = vmatpush1.bf16.msra.mxu0 0
      %554 = vmatprep.subr.bf16.mxu0 0
      %555 = vmatpush1.bf16.msra.mxu0 0
      %556 = vmatprep.subr.bf16.mxu0 0
      %557 = vmatpush1.bf16.msra.mxu0 0
      %558 = vmatprep.subr.bf16.mxu0 0
      %559 = vmatpush1.bf16.msra.mxu0 0
      %560 = vmatprep.mubr.bf16.mxu0 0
      %561 = vmatmul.mubr.bf16.gmra.mrb[0].mxu0 %v464
      %v562 = vpop.f32.mrb[0].mxu0
      %v563 = vadd.f32 0.0, %v562
      %v564 = vpop.f32.mrb[0].mxu0
      %v565 = vpop.f32.mrb[0].mxu0
      %v566 = vadd.f32 0.0, %v565
      %v567 = vpop.f32.mrb[0].mxu0
      %568 = vmatprep.mubr.bf16.mxu0 0
      %569 = vmatmul.mubr.bf16.gmra.mrb[0].mxu0 %v465
      %v570 = vpop.f32.mrb[0].mxu0
      %v571 = vadd.f32 0.0, %v570
      %v572 = vpop.f32.mrb[0].mxu0
      %v573 = vpop.f32.mrb[0].mxu0
      %v574 = vadd.f32 0.0, %v573
      %v575 = vpop.f32.mrb[0].mxu0
      %576 = vmatprep.mubr.bf16.mxu0 0
      %577 = vmatmul.mubr.bf16.gmra.mrb[0].mxu0 %v466
      %v578 = vpop.f32.mrb[0].mxu0
      %v579 = vadd.f32 0.0, %v578
      %v580 = vpop.f32.mrb[0].mxu0
      %v581 = vpop.f32.mrb[0].mxu0
      %v582 = vadd.f32 0.0, %v581
      %v583 = vpop.f32.mrb[0].mxu0
      %584 = vmatprep.mubr.bf16.mxu0 0
      %585 = vmatmul.mubr.bf16.gmra.mrb[0].mxu0 %v467
      %v586 = vpop.f32.mrb[0].mxu0
      %v587 = vadd.f32 0.0, %v586
      %v588 = vpop.f32.mrb[0].mxu0
      %v589 = vpop.f32.mrb[0].mxu0
      %v590 = vadd.f32 0.0, %v589
      %v591 = vpop.f32.mrb[0].mxu0
      %592 = vmatprep.mubr.bf16.mxu0 0
      %593 = vmatmul.mubr.bf16.gmra.mrb[0].mxu0 %v468
      %v594 = vpop.f32.mrb[0].mxu0
      %v595 = vadd.f32 0.0, %v594
      %v596 = vpop.f32.mrb[0].mxu0
      %v597 = vpop.f32.mrb[0].mxu0
      %v598 = vadd.f32 0.0, %v597
      %v599 = vpop.f32.mrb[0].mxu0
      %600 = vmatprep.mubr.bf16.mxu0 0
      %601 = vmatmul.mubr.bf16.gmra.mrb[0].mxu0 %v469
      %v602 = vpop.f32.mrb[0].mxu0
      %v603 = vadd.f32 0.0, %v602
      %v604 = vpop.f32.mrb[0].mxu0
      %v605 = vpop.f32.mrb[0].mxu0
      %v606 = vadd.f32 0.0, %v605
      %v607 = vpop.f32.mrb[0].mxu0
      %608 = vmatprep.mubr.bf16.mxu0 0
      %609 = vmatmul.mubr.bf16.gmra.mrb[0].mxu0 %v470
      %v610 = vpop.f32.mrb[0].mxu0
      %v611 = vadd.f32 0.0, %v610
      %v612 = vpop.f32.mrb[0].mxu0
      %v613 = vpop.f32.mrb[0].mxu0
      %v614 = vadd.f32 0.0, %v613
      %v615 = vpop.f32.mrb[0].mxu0
      %616 = vmatprep.mubr.bf16.mxu0 0
      %617 = vmatmul.mubr.bf16.gmra.mrb[0].mxu0 %v471
      %v618 = vpop.f32.mrb[0].mxu0
      %v619 = vadd.f32 0.0, %v618
      %v620 = vpop.f32.mrb[0].mxu0
      %v621 = vpop.f32.mrb[0].mxu0
      %v622 = vadd.f32 0.0, %v621
      %v623 = vpop.f32.mrb[0].mxu0
      %624 = vdwg.mxu0
      %v625 = vadd.f32 %v400, %v563
      %v626 = vadd.f32 %v401, %v566
      %v627 = vadd.f32 %v402, %v571
      %v628 = vadd.f32 %v403, %v574
      %v629 = vadd.f32 %v404, %v579
      %v630 = vadd.f32 %v405, %v582
      %v631 = vadd.f32 %v406, %v587
      %v632 = vadd.f32 %v407, %v590
      %v633 = vadd.f32 %v408, %v595
      %v634 = vadd.f32 %v409, %v598
      %v635 = vadd.f32 %v410, %v603
      %v636 = vadd.f32 %v411, %v606
      %v637 = vadd.f32 %v412, %v611
      %v638 = vadd.f32 %v413, %v614
      %v639 = vadd.f32 %v414, %v619
      %v640 = vadd.f32 %v415, %v622
      %641 = vst [vmem:[#allocation2] sm:$0xff] %v625
      %642 = vst [vmem:[#allocation2 + $0x8] sm:$0xff] %v626
      %643 = vst [vmem:[#allocation2 + $0x10] sm:$0xff] %v627
      %644 = vst [vmem:[#allocation2 + $0x18] sm:$0xff] %v628
      %645 = vst [vmem:[#allocation2 + $0x20] sm:$0xff] %v629
      %646 = vst [vmem:[#allocation2 + $0x28] sm:$0xff] %v630
      %647 = vst [vmem:[#allocation2 + $0x30] sm:$0xff] %v631
      %648 = vst [vmem:[#allocation2 + $0x38] sm:$0xff] %v632
      %649 = vst [vmem:[#allocation2 + $0x40] sm:$0xff] %v633
      %650 = vst [vmem:[#allocation2 + $0x48] sm:$0xff] %v634
      %651 = vst [vmem:[#allocation2 + $0x50] sm:$0xff] %v635
      %652 = vst [vmem:[#allocation2 + $0x58] sm:$0xff] %v636
      %653 = vst [vmem:[#allocation2 + $0x60] sm:$0xff] %v637
      %654 = vst [vmem:[#allocation2 + $0x68] sm:$0xff] %v638
      %655 = vst [vmem:[#allocation2 + $0x70] sm:$0xff] %v639
      %656 = vst [vmem:[#allocation2 + $0x78] sm:$0xff] %v640
      // Predicated region
      $region33: #{mixnet_encode.11} parent=27 // pred_check
        %p657 = pneg %p316
      $region34: #{mixnet_encode.11} parent=27 // pred_check_branch
        %659 = sbr.rel (%p657) target = $region36
      $region35: #{mixnet_encode.11} parent=27 // pred_region
        %v660 = vld [vmem:[#allocation2] sm:$0xff]
        %v661 = vld [vmem:[#allocation2 + $0x8] sm:$0xff]
        %v662 = vld [vmem:[#allocation2 + $0x10] sm:$0xff]
        %v663 = vld [vmem:[#allocation2 + $0x18] sm:$0xff]
        %v664 = vld [vmem:[#allocation2 + $0x20] sm:$0xff]
        %v665 = vld [vmem:[#allocation2 + $0x28] sm:$0xff]
        %v666 = vld [vmem:[#allocation2 + $0x30] sm:$0xff]
        %v667 = vld [vmem:[#allocation2 + $0x38] sm:$0xff]
        %v668 = vld [vmem:[#allocation2 + $0x40] sm:$0xff]
        %v669 = vld [vmem:[#allocation2 + $0x48] sm:$0xff]
        %v670 = vld [vmem:[#allocation2 + $0x50] sm:$0xff]
        %v671 = vld [vmem:[#allocation2 + $0x58] sm:$0xff]
        %v672 = vld [vmem:[#allocation2 + $0x60] sm:$0xff]
        %v673 = vld [vmem:[#allocation2 + $0x68] sm:$0xff]
        %v674 = vld [vmem:[#allocation2 + $0x70] sm:$0xff]
        %v675 = vld [vmem:[#allocation2 + $0x78] sm:$0xff]
        %v676 = vpack.c.bf16 %v661, %v660
        %v677 = vpack.c.bf16 %v663, %v662
        %v678 = vpack.c.bf16 %v665, %v664
        %v679 = vpack.c.bf16 %v667, %v666
        %v680 = vpack.c.bf16 %v669, %v668
        %v681 = vpack.c.bf16 %v671, %v670
        %v682 = vpack.c.bf16 %v673, %v672
        %v683 = vpack.c.bf16 %v675, %v674
        %v692 = vunpack.c.l.b16 %v676
        %v693 = vunpack.c.h.b16 %v676
        %v694 = vunpack.c.l.b16 %v677
        %v695 = vunpack.c.h.b16 %v677
        %v696 = vunpack.c.l.b16 %v678
        %v697 = vunpack.c.h.b16 %v678
        %v698 = vunpack.c.l.b16 %v679
        %v699 = vunpack.c.h.b16 %v679
        %v700 = vunpack.c.l.b16 %v680
        %v701 = vunpack.c.h.b16 %v680
        %v702 = vunpack.c.l.b16 %v681
        %v703 = vunpack.c.h.b16 %v681
        %v704 = vunpack.c.l.b16 %v682
        %v705 = vunpack.c.h.b16 %v682
        %v706 = vunpack.c.l.b16 %v683
        %v707 = vunpack.c.h.b16 %v683
        %v708 = vpack.c.b16 %v692, %v692
        %v709 = vpack.c.b16 %v693, %v693
        %v710 = vpack.c.b16 %v694, %v694
        %v711 = vpack.c.b16 %v695, %v695
        %v712 = vpack.c.b16 %v696, %v696
        %v713 = vpack.c.b16 %v697, %v697
        %v714 = vpack.c.b16 %v698, %v698
        %v715 = vpack.c.b16 %v699, %v699
        %v716 = vpack.c.b16 %v700, %v700
        %v717 = vpack.c.b16 %v701, %v701
        %v718 = vpack.c.b16 %v702, %v702
        %v719 = vpack.c.b16 %v703, %v703
        %v720 = vpack.c.b16 %v704, %v704
        %v721 = vpack.c.b16 %v705, %v705
        %v722 = vpack.c.b16 %v706, %v706
        %v723 = vpack.c.b16 %v707, %v707
        %740 = vst [vmem:[%s298] sm:$0xf] %v708
        %741 = vst [vmem:[%s298 + $0x4] sm:$0xf] %v709
        %742 = vst [vmem:[%s298 + $0x8] sm:$0xf] %v710
        %743 = vst [vmem:[%s298 + $0xc] sm:$0xf] %v711
        %744 = vst [vmem:[%s298 + $0x10] sm:$0xf] %v712
        %745 = vst [vmem:[%s298 + $0x14] sm:$0xf] %v713
        %746 = vst [vmem:[%s298 + $0x18] sm:$0xf] %v714
        %747 = vst [vmem:[%s298 + $0x1c] sm:$0xf] %v715
        %748 = vst [vmem:[%s298 + $0x20] sm:$0xf] %v716
        %749 = vst [vmem:[%s298 + $0x24] sm:$0xf] %v717
        %750 = vst [vmem:[%s298 + $0x28] sm:$0xf] %v718
        %751 = vst [vmem:[%s298 + $0x2c] sm:$0xf] %v719
        %752 = vst [vmem:[%s298 + $0x30] sm:$0xf] %v720
        %753 = vst [vmem:[%s298 + $0x34] sm:$0xf] %v721
        %754 = vst [vmem:[%s298 + $0x38] sm:$0xf] %v722
        %755 = vst [vmem:[%s298 + $0x3c] sm:$0xf] %v723
        %v756 = vadd.f32 %v660, %v661
        %v757 = vadd.f32 %v756, %v662
        %v758 = vadd.f32 %v757, %v663
        %v759 = vadd.f32 %v758, %v664
        %v760 = vadd.f32 %v759, %v665
        %v761 = vadd.f32 %v760, %v666
        %v762 = vadd.f32 %v761, %v667
        %v763 = vadd.f32 %v762, %v668
        %v764 = vadd.f32 %v763, %v669
        %v765 = vadd.f32 %v764, %v670
        %v766 = vadd.f32 %v765, %v671
        %v767 = vadd.f32 %v766, %v672
        %v768 = vadd.f32 %v767, %v673
        %v769 = vadd.f32 %v768, %v674
        %v770 = vadd.f32 %v769, %v675
        %v771 = vrot.slane %v770, 4
        %v772 = vadd.f32 %v770, %v771
        %v773 = vrot.slane %v772, 2
        %v774 = vadd.f32 %v772, %v773
        %v775 = vrot.slane %v774, 1
        %v776 = vadd.f32 %v774, %v775
        %v777 = vmul.f32 %v660, %v660
        %v778 = vmul.f32 %v661, %v661
        %v779 = vmul.f32 %v662, %v662
        %v780 = vmul.f32 %v663, %v663
        %v781 = vmul.f32 %v664, %v664
        %v782 = vmul.f32 %v665, %v665
        %v783 = vmul.f32 %v666, %v666
        %v784 = vmul.f32 %v667, %v667
        %v785 = vmul.f32 %v668, %v668
        %v786 = vmul.f32 %v669, %v669
        %v787 = vmul.f32 %v670, %v670
        %v788 = vmul.f32 %v671, %v671
        %v789 = vmul.f32 %v672, %v672
        %v790 = vmul.f32 %v673, %v673
        %v791 = vmul.f32 %v674, %v674
        %v792 = vmul.f32 %v675, %v675
        %v793 = vadd.f32 %v777, %v778
        %v794 = vadd.f32 %v793, %v779
        %v795 = vadd.f32 %v794, %v780
        %v796 = vadd.f32 %v795, %v781
        %v797 = vadd.f32 %v796, %v782
        %v798 = vadd.f32 %v797, %v783
        %v799 = vadd.f32 %v798, %v784
        %v800 = vadd.f32 %v799, %v785
        %v801 = vadd.f32 %v800, %v786
        %v802 = vadd.f32 %v801, %v787
        %v803 = vadd.f32 %v802, %v788
        %v804 = vadd.f32 %v803, %v789
        %v805 = vadd.f32 %v804, %v790
        %v806 = vadd.f32 %v805, %v791
        %v807 = vadd.f32 %v806, %v792
        %v808 = vrot.slane %v807, 4
        %v809 = vadd.f32 %v807, %v808
        %v810 = vrot.slane %v809, 2
        %v811 = vadd.f32 %v809, %v810
        %v812 = vrot.slane %v811, 1
        %v813 = vadd.f32 %v811, %v812
        %814 = vst [vmem:[%s306] sm:$0xff] %v776
        %815 = vst [vmem:[%s313] sm:$0xff] %v813
      $region36: #{mixnet_encode.11} parent=27 // pred_fallthru
        _
      %s816 = smul.u32 16, %s22
      %p817 = scmp.lt.s32.totalorder %s21, 1
      %s818 = scalar_select %p817, %s21, 1
      %p819 = scmp.lt.s32.totalorder %s816, 15
      %s820 = scalar_select %p819, %s816, 15
      %s821 = smul.addr %s818, 16
      %s822 = sadd.s32 %s820, %s821
      %s823 = smul.addr %s822, 4
      %s824 = scalar_lea.vmem %s2, %s823
      %p825 = scmp.lt.s32.totalorder %s21, 1
      %s826 = scalar_select %p825, %s21, 1
      %p827 = scmp.lt.s32.totalorder %s22, 0
      %s828 = scalar_select %p827, %s22, 0
      %s829 = sadd.s32 %s828, %s826
      %s830 = smul.addr %s829, 8
      %s831 = scalar_lea.vmem %s3, %s830
      %p832 = scmp.lt.s32.totalorder %s21, 1
      %s833 = scalar_select %p832, %s21, 1
      %p834 = scmp.lt.s32.totalorder %s22, 0
      %s835 = scalar_select %p834, %s22, 0
      %s836 = sadd.s32 %s835, %s833
      %s837 = smul.addr %s836, 8
      %s838 = scalar_lea.vmem %s4, %s837
      // Predicated region
      $region37: #{mixnet_encode.11} parent=27 // pred_check
        %p839 = pneg %p111
      $region38: #{mixnet_encode.11} parent=27 // pred_check_branch
        %841 = sbr.rel (%p839) target = $region40
      $region39: #{mixnet_encode.11} parent=27 // pred_region
        %s842 = smul.u32 16, %s22
      $region40: #{mixnet_encode.11} parent=27 // pred_fallthru
        _
      // Predicated region
      $region41: #{mixnet_encode.11} parent=27 // pred_check
        %p843 = pneg %p139
      $region42: #{mixnet_encode.11} parent=27 // pred_check_branch
        %845 = sbr.rel (%p843) target = $region44
      $region43: #{mixnet_encode.11} parent=27 // pred_region
        _
      $region44: #{mixnet_encode.11} parent=27 // pred_fallthru
        _
      // Predicated region
      $region45: #{mixnet_encode.11} parent=27 // pred_check
        %p846 = pneg %p167
      $region46: #{mixnet_encode.11} parent=27 // pred_check_branch
        %848 = sbr.rel (%p846) target = $region48
      $region47: #{mixnet_encode.11} parent=27 // pred_region
        _
      $region48: #{mixnet_encode.11} parent=27 // pred_fallthru
        _
    $region28: #{mixnet_encode.11} parent=5 // pred_fallthru
      _
    %p849 = scmp.le.s32.totalorder 2, %s11
    // Predicated region
    $region49: #{mixnet_encode.11} parent=5 // pred_check
      %p850 = pneg %p849
    $region50: #{mixnet_encode.11} parent=5 // pred_check_branch
      %852 = sbr.rel (%p850) target = $region52
    $region51: #{mixnet_encode.11} parent=5 // pred_region
      %s853 = ssub.s32 %s11, 2
      // Predicated region
      $region53: #{mixnet_encode.11} parent=51 // pred_check
        %p854 = pneg %p117
      $region54: #{mixnet_encode.11} parent=51 // pred_check_branch
        %856 = sbr.rel (%p854) target = $region56
      $region55: #{mixnet_encode.11} parent=51 // pred_region
        %s857 = smul.u32 16, %s25
        %p858 = scmp.lt.s32.totalorder %s24, 1
        %s859 = scalar_select %p858, %s24, 1
        %p860 = scmp.lt.s32.totalorder %s857, 15
        %s861 = scalar_select %p860, %s857, 15
        %s862 = smul.addr %s859, 16
        %s863 = sadd.s32 %s861, %s862
        %s864 = smul.addr %s863, 4
        %s865 = scalar_lea.vmem %s2, %s864
      $region56: #{mixnet_encode.11} parent=51 // pred_fallthru
        _
      // Predicated region
      $region57: #{mixnet_encode.11} parent=51 // pred_check
        %p866 = pneg %p145
      $region58: #{mixnet_encode.11} parent=51 // pred_check_branch
        %868 = sbr.rel (%p866) target = $region60
      $region59: #{mixnet_encode.11} parent=51 // pred_region
        %p869 = scmp.lt.s32.totalorder %s24, 1
        %s870 = scalar_select %p869, %s24, 1
        %p871 = scmp.lt.s32.totalorder %s25, 0
        %s872 = scalar_select %p871, %s25, 0
        %s873 = sadd.s32 %s872, %s870
        %s874 = smul.addr %s873, 8
        %s875 = scalar_lea.vmem %s3, %s874
      $region60: #{mixnet_encode.11} parent=51 // pred_fallthru
        _
      // Predicated region
      $region61: #{mixnet_encode.11} parent=51 // pred_check
        %p876 = pneg %p173
      $region62: #{mixnet_encode.11} parent=51 // pred_check_branch
        %878 = sbr.rel (%p876) target = $region64
      $region63: #{mixnet_encode.11} parent=51 // pred_region
        %p879 = scmp.lt.s32.totalorder %s24, 1
        %s880 = scalar_select %p879, %s24, 1
        %p881 = scmp.lt.s32.totalorder %s25, 0
        %s882 = scalar_select %p881, %s25, 0
        %s883 = sadd.s32 %s882, %s880
        %s884 = smul.addr %s883, 8
        %s885 = scalar_lea.vmem %s4, %s884
      $region64: #{mixnet_encode.11} parent=51 // pred_fallthru
        _
    $region52: #{mixnet_encode.11} parent=5 // pred_fallthru
      _
  $region6: #{mixnet_encode.11} parent=0 // loop_footer
    %s15 = sadd.s32 1, %s11
  $region7: #{mixnet_encode.11} parent=0 // loop_footer_branch
    %10 = sbr.rel target = $region3
  $region8: #{mixnet_encode.11} parent=0 // loop_exit
    _

// kernel: mixnet_encode.12
$region0: #{mixnet_encode.12}
  #allocation0 [shape = 'u32[]', space=smem, size = 0x4, offset = 0x4, fixed_abs, tag = 'smem constant byte address 0x4 - core index']
  #allocation1 [shape = 'u32[144,128]{1,0:T(1,128)}', space=vmem, size = 0x12000, scoped, tag = 'internal scratch']
  %s0 = inlined_call_operand.vmem [shape: bf16[2,128,128], index: 0, kind: input, shape index: {}, may-alias: {0,3}]
  %s1 = inlined_call_operand.vmem [shape: f32[2,8,128], index: 1, kind: input, shape index: {}]
  %s2 = inlined_call_operand.vmem [shape: f32[2,8,128], index: 2, kind: input, shape index: {}]
  %s3 = inlined_call_operand.vmem [shape: bf16[2,128,128], index: 3, kind: output, shape index: {}, may-alias: {0,3}]
  %s4 = sld [smem:[#allocation0]]
  $region45: #{mixnet_encode.12} parent=0
    _
  %s6 = ssub.s32 1, %s4
  %s7 = scalar_select 0, %s6, %s4
  loop: start=0, step=1, limit=4
  $region2: #{mixnet_encode.12} parent=0 // loop_pre_header
    _
  $region3: #{mixnet_encode.12} parent=0 // loop_header
    %s9 = sphi 0, %s13
    %p10 = scmp.ge.s32.totalorder %s9, 4
    %s16 = sphi 0, %s28
    %s17 = sphi 0, %s24
    %s18 = sphi 0, %s16
    %s19 = sphi 0, %s17
    %s20 = sphi 0, %s18
    %s21 = sphi 0, %s19
    %s33 = sphi 0, %s35
    %s36 = sphi 0, %s33
    %s37 = sphi 0, %s36
    %s53 = sphi 0, %s37
    %s59 = sphi 0, %s61
    %s62 = sphi 0, %s59
    %s63 = sphi 0, %s62
    %s79 = sphi 0, %s63
    %s85 = sphi 0, %s87
    %s88 = sphi 0, %s85
    %s89 = sphi 0, %s88
    %s105 = sphi 0, %s89
    %s113 = sphi 0, %s115
    %s116 = sphi 0, %s113
    %s117 = sphi 0, %s116
    %s133 = sphi 0, %s117
  $region4: #{mixnet_encode.12} parent=0 // loop_header_branch
    %12 = sbr.rel (%p10) target = $region8
  $region5: #{mixnet_encode.12} parent=0 // loop_body
    %s14 = ssub.s32 %s9, 1
    %s15 = ssub.s32 %s9, 2
    %s22 = sadd.s32 1, %s17
    %p23 = scmp.ge.s32.totalorder %s22, 1
    %s24 = scalar_select %p23, 0, %s22
    %s25 = sadd.s32 1, %s16
    %s26 = scalar_select %p23, %s25, %s16
    %p27 = scmp.ge.s32.totalorder %s26, 2
    %s28 = scalar_select %p27, 0, %s26
    %s29 = ssub.s32 %s16, %s28
    %s30 = ssub.s32 %s17, %s24
    %s31 = sor.u32 %s29, %s30
    %p32 = scmp.eq.s32.totalorder %s31, 0
    %s34 = sadd.s32 %s33, 1
    %s35 = scalar_select %p32, %s33, %s34
    %p38 = pneg %p32
    %p39 = scmp.eq.s32.totalorder %s9, 1
    %p40 = por %p38, %p39
    %p41 = scmp.ne.s32.totalorder %s33, %s36
    %p42 = scmp.eq.s32.totalorder %s9, 0
    %p43 = por %p41, %p42
    %p44 = scmp.ne.s32.totalorder %s33, %s36
    %p45 = scmp.eq.s32.totalorder %s14, 1
    %p46 = por %p44, %p45
    %p47 = scmp.ne.s32.totalorder %s36, %s37
    %p48 = scmp.eq.s32.totalorder %s14, 0
    %p49 = por %p47, %p48
    %p50 = scmp.ne.s32.totalorder %s36, %s37
    %p51 = scmp.eq.s32.totalorder %s15, 1
    %p52 = por %p50, %p51
    %p54 = scmp.ne.s32.totalorder %s37, %s53
    %p55 = scmp.eq.s32.totalorder %s15, 0
    %p56 = por %p54, %p55
    %s57 = ssub.s32 %s16, %s28
    %p58 = scmp.eq.s32.totalorder %s57, 0
    %s60 = sadd.s32 %s59, 1
    %s61 = scalar_select %p58, %s59, %s60
    %p64 = pneg %p58
    %p65 = scmp.eq.s32.totalorder %s9, 1
    %p66 = por %p64, %p65
    %p67 = scmp.ne.s32.totalorder %s59, %s62
    %p68 = scmp.eq.s32.totalorder %s9, 0
    %p69 = por %p67, %p68
    %p70 = scmp.ne.s32.totalorder %s59, %s62
    %p71 = scmp.eq.s32.totalorder %s14, 1
    %p72 = por %p70, %p71
    %p73 = scmp.ne.s32.totalorder %s62, %s63
    %p74 = scmp.eq.s32.totalorder %s14, 0
    %p75 = por %p73, %p74
    %p76 = scmp.ne.s32.totalorder %s62, %s63
    %p77 = scmp.eq.s32.totalorder %s15, 1
    %p78 = por %p76, %p77
    %p80 = scmp.ne.s32.totalorder %s63, %s79
    %p81 = scmp.eq.s32.totalorder %s15, 0
    %p82 = por %p80, %p81
    %s83 = ssub.s32 %s16, %s28
    %p84 = scmp.eq.s32.totalorder %s83, 0
    %s86 = sadd.s32 %s85, 1
    %s87 = scalar_select %p84, %s85, %s86
    %p90 = pneg %p84
    %p91 = scmp.eq.s32.totalorder %s9, 1
    %p92 = por %p90, %p91
    %p93 = scmp.ne.s32.totalorder %s85, %s88
    %p94 = scmp.eq.s32.totalorder %s9, 0
    %p95 = por %p93, %p94
    %p96 = scmp.ne.s32.totalorder %s85, %s88
    %p97 = scmp.eq.s32.totalorder %s14, 1
    %p98 = por %p96, %p97
    %p99 = scmp.ne.s32.totalorder %s88, %s89
    %p100 = scmp.eq.s32.totalorder %s14, 0
    %p101 = por %p99, %p100
    %p102 = scmp.ne.s32.totalorder %s88, %s89
    %p103 = scmp.eq.s32.totalorder %s15, 1
    %p104 = por %p102, %p103
    %p106 = scmp.ne.s32.totalorder %s89, %s105
    %p107 = scmp.eq.s32.totalorder %s15, 0
    %p108 = por %p106, %p107
    %s109 = ssub.s32 %s16, %s28
    %s110 = ssub.s32 %s17, %s24
    %s111 = sor.u32 %s109, %s110
    %p112 = scmp.eq.s32.totalorder %s111, 0
    %s114 = sadd.s32 %s113, 1
    %s115 = scalar_select %p112, %s113, %s114
    %p118 = pneg %p112
    %p119 = scmp.eq.s32.totalorder %s9, 1
    %p120 = por %p118, %p119
    %p121 = scmp.ne.s32.totalorder %s113, %s116
    %p122 = scmp.eq.s32.totalorder %s9, 0
    %p123 = por %p121, %p122
    %p124 = scmp.ne.s32.totalorder %s113, %s116
    %p125 = scmp.eq.s32.totalorder %s14, 1
    %p126 = por %p124, %p125
    %p127 = scmp.ne.s32.totalorder %s116, %s117
    %p128 = scmp.eq.s32.totalorder %s14, 0
    %p129 = por %p127, %p128
    %p130 = scmp.ne.s32.totalorder %s116, %s117
    %p131 = scmp.eq.s32.totalorder %s15, 1
    %p132 = por %p130, %p131
    %p134 = scmp.ne.s32.totalorder %s117, %s133
    %p135 = scmp.eq.s32.totalorder %s15, 0
    %p136 = por %p134, %p135
    %p137 = scmp.le.s32.totalorder 1, %s9
    %p138 = scmp.lt.s32.totalorder %s9, 3
    %p139 = pnand %p137, %p138
    %p140 = pneg %p139
    // Predicated region
    $region9: #{mixnet_encode.12} parent=5 // pred_check
      _
    $region10: #{mixnet_encode.12} parent=5 // pred_check_branch
      %142 = sbr.rel (%p139) target = $region12
    $region11: #{mixnet_encode.12} parent=5 // pred_region
      %s143 = ssub.s32 %s9, 1
    $region12: #{mixnet_encode.12} parent=5 // pred_fallthru
      _
    %p144 = scmp.lt.s32.totalorder %s9, 2
    // Predicated region
    $region13: #{mixnet_encode.12} parent=5 // pred_check
      %p145 = pneg %p144
    $region14: #{mixnet_encode.12} parent=5 // pred_check_branch
      %147 = sbr.rel (%p145) target = $region16
    $region15: #{mixnet_encode.12} parent=5 // pred_region
      // Predicated region
      $region17: #{mixnet_encode.12} parent=15 // pred_check
        %p148 = pneg %p43
      $region18: #{mixnet_encode.12} parent=15 // pred_check_branch
        %150 = sbr.rel (%p148) target = $region20
      $region19: #{mixnet_encode.12} parent=15 // pred_region
        %s151 = smul.u32 16, %s17
        %p152 = scmp.lt.s32.totalorder %s16, 1
        %s153 = scalar_select %p152, %s16, 1
        %p154 = scmp.lt.s32.totalorder %s151, 15
        %s155 = scalar_select %p154, %s151, 15
        %s156 = smul.addr %s153, 16
        %s157 = sadd.s32 %s155, %s156
        %s158 = smul.addr %s157, 4
        %s159 = scalar_lea.vmem %s0, %s158
        %s160 = smul.u32 16, %s17
      $region20: #{mixnet_encode.12} parent=15 // pred_fallthru
        _
      // Predicated region
      $region21: #{mixnet_encode.12} parent=15 // pred_check
        %p161 = pneg %p69
      $region22: #{mixnet_encode.12} parent=15 // pred_check_branch
        %163 = sbr.rel (%p161) target = $region24
      $region23: #{mixnet_encode.12} parent=15 // pred_region
        %p164 = scmp.lt.s32.totalorder %s16, 1
        %s165 = scalar_select %p164, %s16, 1
        %s166 = smul.addr %s165, 8
        %s167 = scalar_lea.vmem %s1, %s166
      $region24: #{mixnet_encode.12} parent=15 // pred_fallthru
        _
      // Predicated region
      $region25: #{mixnet_encode.12} parent=15 // pred_check
        %p168 = pneg %p95
      $region26: #{mixnet_encode.12} parent=15 // pred_check_branch
        %170 = sbr.rel (%p168) target = $region28
      $region27: #{mixnet_encode.12} parent=15 // pred_region
        %p171 = scmp.lt.s32.totalorder %s16, 1
        %s172 = scalar_select %p171, %s16, 1
        %s173 = smul.addr %s172, 8
        %s174 = scalar_lea.vmem %s2, %s173
      $region28: #{mixnet_encode.12} parent=15 // pred_fallthru
        _
    $region16: #{mixnet_encode.12} parent=5 // pred_fallthru
      _
    %p175 = scmp.le.s32.totalorder 1, %s9
    %p176 = scmp.lt.s32.totalorder %s9, 3
    %p177 = pnand %p175, %p176
    %p178 = pneg %p177
    // Predicated region
    $region29: #{mixnet_encode.12} parent=5 // pred_check
      _
    $region30: #{mixnet_encode.12} parent=5 // pred_check_branch
      %180 = sbr.rel (%p177) target = $region32
    $region31: #{mixnet_encode.12} parent=5 // pred_region
      %s181 = ssub.s32 %s9, 1
      %s182 = smul.u32 16, %s19
      %p183 = scmp.lt.s32.totalorder %s18, 1
      %s184 = scalar_select %p183, %s18, 1
      %p185 = scmp.lt.s32.totalorder %s182, 15
      %s186 = scalar_select %p185, %s182, 15
      %s187 = smul.addr %s184, 16
      %s188 = sadd.s32 %s186, %s187
      %s189 = smul.addr %s188, 4
      %s190 = scalar_lea.vmem %s0, %s189
      %p191 = pneg %p49
      %p192 = pneg %p46
      %p193 = scmp.lt.s32.totalorder %s18, 1
      %s194 = scalar_select %p193, %s18, 1
      %s195 = smul.addr %s194, 8
      %s196 = scalar_lea.vmem %s1, %s195
      %p197 = pneg %p75
      %p198 = pneg %p72
      %p199 = scmp.lt.s32.totalorder %s18, 1
      %s200 = scalar_select %p199, %s18, 1
      %s201 = smul.addr %s200, 8
      %s202 = scalar_lea.vmem %s2, %s201
      %p203 = pneg %p101
      %p204 = pneg %p98
      %p205 = pneg %p129
      %p206 = pneg %p126
      %s207 = smul.u32 16, %s19
      %p208 = scmp.lt.s32.totalorder %s18, 1
      %s209 = scalar_select %p208, %s18, 1
      %p210 = scmp.lt.s32.totalorder %s207, 15
      %s211 = scalar_select %p210, %s207, 15
      %s212 = smul.addr %s209, 16
      %s213 = sadd.s32 %s211, %s212
      %s214 = smul.addr %s213, 4
      %s215 = scalar_lea.vmem %s3, %s214
      %s216 = smul.u32 16, %s19
      %p217 = scmp.lt.s32.totalorder %s18, 1
      %s218 = scalar_select %p217, %s18, 1
      %p219 = scmp.lt.s32.totalorder %s216, 15
      %s220 = scalar_select %p219, %s216, 15
      %s221 = smul.addr %s218, 16
      %s222 = sadd.s32 %s220, %s221
      %s223 = smul.addr %s222, 4
      %s224 = scalar_lea.vmem %s0, %s223
      %s225 = smul.u32 16, %s19
      %p226 = scmp.lt.s32.totalorder %s18, 1
      %s227 = scalar_select %p226, %s18, 1
      %s228 = smul.addr %s227, 8
      %s229 = scalar_lea.vmem %s1, %s228
      %p230 = scmp.lt.s32.totalorder %s18, 1
      %s231 = scalar_select %p230, %s18, 1
      %s232 = smul.addr %s231, 8
      %s233 = scalar_lea.vmem %s2, %s232
      %s234 = smul.u32 16, %s19
      %p235 = scmp.lt.s32.totalorder %s18, 1
      %s236 = scalar_select %p235, %s18, 1
      %p237 = scmp.lt.s32.totalorder %s234, 15
      %s238 = scalar_select %p237, %s234, 15
      %s239 = smul.addr %s236, 16
      %s240 = sadd.s32 %s238, %s239
      %s241 = smul.addr %s240, 4
      %s242 = scalar_lea.vmem %s3, %s241
      %s243 = smul.u32 16, %s19
      %v244 = vld [vmem:[%s229] sm:$0xff]
      %v245 = vld [vmem:[%s233] sm:$0xff]
      %v246 = vld [vmem:[%s224] sm:$0xf]
      %v247 = vld [vmem:[%s224 + $0x4] sm:$0xf]
      %v248 = vld [vmem:[%s224 + $0x8] sm:$0xf]
      %v249 = vld [vmem:[%s224 + $0xc] sm:$0xf]
      %v250 = vld [vmem:[%s224 + $0x10] sm:$0xf]
      %v251 = vld [vmem:[%s224 + $0x14] sm:$0xf]
      %v252 = vld [vmem:[%s224 + $0x18] sm:$0xf]
      %v253 = vld [vmem:[%s224 + $0x1c] sm:$0xf]
      %v254 = vld [vmem:[%s224 + $0x20] sm:$0xf]
      %v255 = vld [vmem:[%s224 + $0x24] sm:$0xf]
      %v256 = vld [vmem:[%s224 + $0x28] sm:$0xf]
      %v257 = vld [vmem:[%s224 + $0x2c] sm:$0xf]
      %v258 = vld [vmem:[%s224 + $0x30] sm:$0xf]
      %v259 = vld [vmem:[%s224 + $0x34] sm:$0xf]
      %v260 = vld [vmem:[%s224 + $0x38] sm:$0xf]
      %v261 = vld [vmem:[%s224 + $0x3c] sm:$0xf]
      %v262 = vunpack.c.l.bf16 %v246
      %v263 = vunpack.c.l.bf16 %v247
      %v264 = vunpack.c.l.bf16 %v248
      %v265 = vunpack.c.l.bf16 %v249
      %v266 = vunpack.c.l.bf16 %v250
      %v267 = vunpack.c.l.bf16 %v251
      %v268 = vunpack.c.l.bf16 %v252
      %v269 = vunpack.c.l.bf16 %v253
      %v270 = vunpack.c.l.bf16 %v254
      %v271 = vunpack.c.l.bf16 %v255
      %v272 = vunpack.c.l.bf16 %v256
      %v273 = vunpack.c.l.bf16 %v257
      %v274 = vunpack.c.l.bf16 %v258
      %v275 = vunpack.c.l.bf16 %v259
      %v276 = vunpack.c.l.bf16 %v260
      %v277 = vunpack.c.l.bf16 %v261
      %v278 = vlaneseq
      %v279 = vshrl.u32 %v278, 7
      %v280 = vsub.s32 0, %v279
      %v281 = vrot.slane %v244, %v280
      %v282 = vmul.f32 %v262, %v281
      %v283 = vmul.f32 %v263, %v281
      %v284 = vmul.f32 %v264, %v281
      %v285 = vmul.f32 %v265, %v281
      %v286 = vmul.f32 %v266, %v281
      %v287 = vmul.f32 %v267, %v281
      %v288 = vmul.f32 %v268, %v281
      %v289 = vmul.f32 %v269, %v281
      %v290 = vmul.f32 %v270, %v281
      %v291 = vmul.f32 %v271, %v281
      %v292 = vmul.f32 %v272, %v281
      %v293 = vmul.f32 %v273, %v281
      %v294 = vmul.f32 %v274, %v281
      %v295 = vmul.f32 %v275, %v281
      %v296 = vmul.f32 %v276, %v281
      %v297 = vmul.f32 %v277, %v281
      %v298 = vlaneseq
      %v299 = vshrl.u32 %v298, 7
      %v300 = vsub.s32 0, %v299
      %v301 = vrot.slane %v245, %v300
      %v302 = vadd.f32 %v282, %v301
      %v303 = vadd.f32 %v283, %v301
      %v304 = vadd.f32 %v284, %v301
      %v305 = vadd.f32 %v285, %v301
      %v306 = vadd.f32 %v286, %v301
      %v307 = vadd.f32 %v287, %v301
      %v308 = vadd.f32 %v288, %v301
      %v309 = vadd.f32 %v289, %v301
      %v310 = vadd.f32 %v290, %v301
      %v311 = vadd.f32 %v291, %v301
      %v312 = vadd.f32 %v292, %v301
      %v313 = vadd.f32 %v293, %v301
      %v314 = vadd.f32 %v294, %v301
      %v315 = vadd.f32 %v295, %v301
      %v316 = vadd.f32 %v296, %v301
      %v317 = vadd.f32 %v297, %v301
      %v318 = vpack.c.bf16 %v303, %v302
      %v319 = vpack.c.bf16 %v305, %v304
      %v320 = vpack.c.bf16 %v307, %v306
      %v321 = vpack.c.bf16 %v309, %v308
      %v322 = vpack.c.bf16 %v311, %v310
      %v323 = vpack.c.bf16 %v313, %v312
      %v324 = vpack.c.bf16 %v315, %v314
      %v325 = vpack.c.bf16 %v317, %v316
      %v334 = vunpack.c.l.b16 %v318
      %v335 = vunpack.c.h.b16 %v318
      %v336 = vunpack.c.l.b16 %v319
      %v337 = vunpack.c.h.b16 %v319
      %v338 = vunpack.c.l.b16 %v320
      %v339 = vunpack.c.h.b16 %v320
      %v340 = vunpack.c.l.b16 %v321
      %v341 = vunpack.c.h.b16 %v321
      %v342 = vunpack.c.l.b16 %v322
      %v343 = vunpack.c.h.b16 %v322
      %v344 = vunpack.c.l.b16 %v323
      %v345 = vunpack.c.h.b16 %v323
      %v346 = vunpack.c.l.b16 %v324
      %v347 = vunpack.c.h.b16 %v324
      %v348 = vunpack.c.l.b16 %v325
      %v349 = vunpack.c.h.b16 %v325
      %v350 = vpack.c.b16 %v334, %v334
      %v351 = vpack.c.b16 %v335, %v335
      %v352 = vpack.c.b16 %v336, %v336
      %v353 = vpack.c.b16 %v337, %v337
      %v354 = vpack.c.b16 %v338, %v338
      %v355 = vpack.c.b16 %v339, %v339
      %v356 = vpack.c.b16 %v340, %v340
      %v357 = vpack.c.b16 %v341, %v341
      %v358 = vpack.c.b16 %v342, %v342
      %v359 = vpack.c.b16 %v343, %v343
      %v360 = vpack.c.b16 %v344, %v344
      %v361 = vpack.c.b16 %v345, %v345
      %v362 = vpack.c.b16 %v346, %v346
      %v363 = vpack.c.b16 %v347, %v347
      %v364 = vpack.c.b16 %v348, %v348
      %v365 = vpack.c.b16 %v349, %v349
      %382 = vst [vmem:[%s242] sm:$0xf] %v350
      %383 = vst [vmem:[%s242 + $0x4] sm:$0xf] %v351
      %384 = vst [vmem:[%s242 + $0x8] sm:$0xf] %v352
      %385 = vst [vmem:[%s242 + $0xc] sm:$0xf] %v353
      %386 = vst [vmem:[%s242 + $0x10] sm:$0xf] %v354
      %387 = vst [vmem:[%s242 + $0x14] sm:$0xf] %v355
      %388 = vst [vmem:[%s242 + $0x18] sm:$0xf] %v356
      %389 = vst [vmem:[%s242 + $0x1c] sm:$0xf] %v357
      %390 = vst [vmem:[%s242 + $0x20] sm:$0xf] %v358
      %391 = vst [vmem:[%s242 + $0x24] sm:$0xf] %v359
      %392 = vst [vmem:[%s242 + $0x28] sm:$0xf] %v360
      %393 = vst [vmem:[%s242 + $0x2c] sm:$0xf] %v361
      %394 = vst [vmem:[%s242 + $0x30] sm:$0xf] %v362
      %395 = vst [vmem:[%s242 + $0x34] sm:$0xf] %v363
      %396 = vst [vmem:[%s242 + $0x38] sm:$0xf] %v364
      %397 = vst [vmem:[%s242 + $0x3c] sm:$0xf] %v365
      %s398 = smul.u32 16, %s19
      %p399 = scmp.lt.s32.totalorder %s18, 1
      %s400 = scalar_select %p399, %s18, 1
      %p401 = scmp.lt.s32.totalorder %s398, 15
      %s402 = scalar_select %p401, %s398, 15
      %s403 = smul.addr %s400, 16
      %s404 = sadd.s32 %s402, %s403
      %s405 = smul.addr %s404, 4
      %s406 = scalar_lea.vmem %s3, %s405
      // Predicated region
      $region33: #{mixnet_encode.12} parent=31 // pred_check
        %p407 = pneg %p126
      $region34: #{mixnet_encode.12} parent=31 // pred_check_branch
        %409 = sbr.rel (%p407) target = $region36
      $region35: #{mixnet_encode.12} parent=31 // pred_region
        %s410 = smul.u32 16, %s19
      $region36: #{mixnet_encode.12} parent=31 // pred_fallthru
        _
    $region32: #{mixnet_encode.12} parent=5 // pred_fallthru
      _
    %p411 = scmp.le.s32.totalorder 2, %s9
    // Predicated region
    $region37: #{mixnet_encode.12} parent=5 // pred_check
      %p412 = pneg %p411
    $region38: #{mixnet_encode.12} parent=5 // pred_check_branch
      %414 = sbr.rel (%p412) target = $region40
    $region39: #{mixnet_encode.12} parent=5 // pred_region
      %s415 = ssub.s32 %s9, 2
      // Predicated region
      $region41: #{mixnet_encode.12} parent=39 // pred_check
        %p416 = pneg %p132
      $region42: #{mixnet_encode.12} parent=39 // pred_check_branch
        %418 = sbr.rel (%p416) target = $region44
      $region43: #{mixnet_encode.12} parent=39 // pred_region
        %s419 = smul.u32 16, %s21
        %p420 = scmp.lt.s32.totalorder %s20, 1
        %s421 = scalar_select %p420, %s20, 1
        %p422 = scmp.lt.s32.totalorder %s419, 15
        %s423 = scalar_select %p422, %s419, 15
        %s424 = smul.addr %s421, 16
        %s425 = sadd.s32 %s423, %s424
        %s426 = smul.addr %s425, 4
        %s427 = scalar_lea.vmem %s3, %s426
      $region44: #{mixnet_encode.12} parent=39 // pred_fallthru
        _
    $region40: #{mixnet_encode.12} parent=5 // pred_fallthru
      _
  $region6: #{mixnet_encode.12} parent=0 // loop_footer
    %s13 = sadd.s32 1, %s9
  $region7: #{mixnet_encode.12} parent=0 // loop_footer_branch
    %8 = sbr.rel target = $region3
  $region8: #{mixnet_encode.12} parent=0 // loop_exit
    _

// kernel: mixnet_encode.13
$region0: #{mixnet_encode.13}
  #allocation0 [shape = 'u32[]', space=smem, size = 0x4, offset = 0x4, fixed_abs, tag = 'smem constant byte address 0x4 - core index']
  #allocation1 [shape = 'u32[144,128]{1,0:T(1,128)}', space=vmem, size = 0x12000, scoped, tag = 'internal scratch']
  #allocation2 [shape = 'f32[32,128]{1,0:T(8,128)}', space=vmem, size = 0x4000, scoped, tag = 'scratch operand']
  %s0 = inlined_call_operand.vmem [shape: bf16[2,32,256], index: 0, kind: input, shape index: {}]
  %s1 = inlined_call_operand.vmem [shape: bf16[256,128], index: 1, kind: input, shape index: {}]
  %s2 = inlined_call_operand.vmem [shape: bf16[2,32,128], index: 2, kind: output, shape index: {0}]
  %s3 = inlined_call_operand.vmem [shape: f32[2,8,128], index: 3, kind: output, shape index: {1}]
  %s4 = inlined_call_operand.vmem [shape: f32[2,8,128], index: 4, kind: output, shape index: {2}]
  %5 = xla_tuple %s2, %s3, %s4
  %s6 = sld [smem:[#allocation0]]
  $region65: #{mixnet_encode.13} parent=0
    _
  %s8 = ssub.s32 1, %s6
  %s9 = scalar_select 0, %s8, %s6
  loop: start=0, step=1, limit=4
  $region2: #{mixnet_encode.13} parent=0 // loop_pre_header
    _
  $region3: #{mixnet_encode.13} parent=0 // loop_header
    %s11 = sphi 0, %s15
    %p12 = scmp.ge.s32.totalorder %s11, 4
    %s18 = sphi 0, %s37
    %s19 = sphi 0, %s33
    %s20 = sphi 0, %s29
    %s21 = sphi 0, %s18
    %s22 = sphi 0, %s19
    %s23 = sphi 0, %s20
    %s24 = sphi 0, %s21
    %s25 = sphi 0, %s22
    %s26 = sphi 0, %s23
    %s44 = sphi 0, %s46
    %s47 = sphi 0, %s44
    %s48 = sphi 0, %s47
    %s64 = sphi 0, %s48
    %s70 = sphi 0, %s72
    %s73 = sphi 0, %s70
    %s74 = sphi 0, %s73
    %s90 = sphi 0, %s74
    %s98 = sphi 0, %s100
    %s101 = sphi 0, %s98
    %s102 = sphi 0, %s101
    %s118 = sphi 0, %s102
    %s126 = sphi 0, %s128
    %s129 = sphi 0, %s126
    %s130 = sphi 0, %s129
    %s146 = sphi 0, %s130
    %s154 = sphi 0, %s156
    %s157 = sphi 0, %s154
    %s158 = sphi 0, %s157
    %s174 = sphi 0, %s158
  $region4: #{mixnet_encode.13} parent=0 // loop_header_branch
    %14 = sbr.rel (%p12) target = $region8
  $region5: #{mixnet_encode.13} parent=0 // loop_body
    %s16 = ssub.s32 %s11, 1
    %s17 = ssub.s32 %s11, 2
    %s27 = sadd.s32 1, %s20
    %p28 = scmp.ge.s32.totalorder %s27, 1
    %s29 = scalar_select %p28, 0, %s27
    %s30 = sadd.s32 1, %s19
    %s31 = scalar_select %p28, %s30, %s19
    %p32 = scmp.ge.s32.totalorder %s31, 1
    %s33 = scalar_select %p32, 0, %s31
    %s34 = sadd.s32 1, %s18
    %s35 = scalar_select %p32, %s34, %s18
    %p36 = scmp.ge.s32.totalorder %s35, 2
    %s37 = scalar_select %p36, 0, %s35
    %s38 = ssub.s32 %s18, %s37
    %s39 = ssub.s32 %s19, %s33
    %s40 = sor.u32 %s38, %s39
    %s41 = ssub.s32 %s20, %s29
    %s42 = sor.u32 %s40, %s41
    %p43 = scmp.eq.s32.totalorder %s42, 0
    %s45 = sadd.s32 %s44, 1
    %s46 = scalar_select %p43, %s44, %s45
    %p49 = pneg %p43
    %p50 = scmp.eq.s32.totalorder %s11, 1
    %p51 = por %p49, %p50
    %p52 = scmp.ne.s32.totalorder %s44, %s47
    %p53 = scmp.eq.s32.totalorder %s11, 0
    %p54 = por %p52, %p53
    %p55 = scmp.ne.s32.totalorder %s44, %s47
    %p56 = scmp.eq.s32.totalorder %s16, 1
    %p57 = por %p55, %p56
    %p58 = scmp.ne.s32.totalorder %s47, %s48
    %p59 = scmp.eq.s32.totalorder %s16, 0
    %p60 = por %p58, %p59
    %p61 = scmp.ne.s32.totalorder %s47, %s48
    %p62 = scmp.eq.s32.totalorder %s17, 1
    %p63 = por %p61, %p62
    %p65 = scmp.ne.s32.totalorder %s48, %s64
    %p66 = scmp.eq.s32.totalorder %s17, 0
    %p67 = por %p65, %p66
    %s68 = ssub.s32 %s20, %s29
    %p69 = scmp.eq.s32.totalorder %s68, 0
    %s71 = sadd.s32 %s70, 1
    %s72 = scalar_select %p69, %s70, %s71
    %p75 = pneg %p69
    %p76 = scmp.eq.s32.totalorder %s11, 1
    %p77 = por %p75, %p76
    %p78 = scmp.ne.s32.totalorder %s70, %s73
    %p79 = scmp.eq.s32.totalorder %s11, 0
    %p80 = por %p78, %p79
    %p81 = scmp.ne.s32.totalorder %s70, %s73
    %p82 = scmp.eq.s32.totalorder %s16, 1
    %p83 = por %p81, %p82
    %p84 = scmp.ne.s32.totalorder %s73, %s74
    %p85 = scmp.eq.s32.totalorder %s16, 0
    %p86 = por %p84, %p85
    %p87 = scmp.ne.s32.totalorder %s73, %s74
    %p88 = scmp.eq.s32.totalorder %s17, 1
    %p89 = por %p87, %p88
    %p91 = scmp.ne.s32.totalorder %s74, %s90
    %p92 = scmp.eq.s32.totalorder %s17, 0
    %p93 = por %p91, %p92
    %s94 = ssub.s32 %s18, %s37
    %s95 = ssub.s32 %s19, %s33
    %s96 = sor.u32 %s94, %s95
    %p97 = scmp.eq.s32.totalorder %s96, 0
    %s99 = sadd.s32 %s98, 1
    %s100 = scalar_select %p97, %s98, %s99
    %p103 = pneg %p97
    %p104 = scmp.eq.s32.totalorder %s11, 1
    %p105 = por %p103, %p104
    %p106 = scmp.ne.s32.totalorder %s98, %s101
    %p107 = scmp.eq.s32.totalorder %s11, 0
    %p108 = por %p106, %p107
    %p109 = scmp.ne.s32.totalorder %s98, %s101
    %p110 = scmp.eq.s32.totalorder %s16, 1
    %p111 = por %p109, %p110
    %p112 = scmp.ne.s32.totalorder %s101, %s102
    %p113 = scmp.eq.s32.totalorder %s16, 0
    %p114 = por %p112, %p113
    %p115 = scmp.ne.s32.totalorder %s101, %s102
    %p116 = scmp.eq.s32.totalorder %s17, 1
    %p117 = por %p115, %p116
    %p119 = scmp.ne.s32.totalorder %s102, %s118
    %p120 = scmp.eq.s32.totalorder %s17, 0
    %p121 = por %p119, %p120
    %s122 = ssub.s32 %s18, %s37
    %s123 = ssub.s32 %s19, %s33
    %s124 = sor.u32 %s122, %s123
    %p125 = scmp.eq.s32.totalorder %s124, 0
    %s127 = sadd.s32 %s126, 1
    %s128 = scalar_select %p125, %s126, %s127
    %p131 = pneg %p125
    %p132 = scmp.eq.s32.totalorder %s11, 1
    %p133 = por %p131, %p132
    %p134 = scmp.ne.s32.totalorder %s126, %s129
    %p135 = scmp.eq.s32.totalorder %s11, 0
    %p136 = por %p134, %p135
    %p137 = scmp.ne.s32.totalorder %s126, %s129
    %p138 = scmp.eq.s32.totalorder %s16, 1
    %p139 = por %p137, %p138
    %p140 = scmp.ne.s32.totalorder %s129, %s130
    %p141 = scmp.eq.s32.totalorder %s16, 0
    %p142 = por %p140, %p141
    %p143 = scmp.ne.s32.totalorder %s129, %s130
    %p144 = scmp.eq.s32.totalorder %s17, 1
    %p145 = por %p143, %p144
    %p147 = scmp.ne.s32.totalorder %s130, %s146
    %p148 = scmp.eq.s32.totalorder %s17, 0
    %p149 = por %p147, %p148
    %s150 = ssub.s32 %s18, %s37
    %s151 = ssub.s32 %s19, %s33
    %s152 = sor.u32 %s150, %s151
    %p153 = scmp.eq.s32.totalorder %s152, 0
    %s155 = sadd.s32 %s154, 1
    %s156 = scalar_select %p153, %s154, %s155
    %p159 = pneg %p153
    %p160 = scmp.eq.s32.totalorder %s11, 1
    %p161 = por %p159, %p160
    %p162 = scmp.ne.s32.totalorder %s154, %s157
    %p163 = scmp.eq.s32.totalorder %s11, 0
    %p164 = por %p162, %p163
    %p165 = scmp.ne.s32.totalorder %s154, %s157
    %p166 = scmp.eq.s32.totalorder %s16, 1
    %p167 = por %p165, %p166
    %p168 = scmp.ne.s32.totalorder %s157, %s158
    %p169 = scmp.eq.s32.totalorder %s16, 0
    %p170 = por %p168, %p169
    %p171 = scmp.ne.s32.totalorder %s157, %s158
    %p172 = scmp.eq.s32.totalorder %s17, 1
    %p173 = por %p171, %p172
    %p175 = scmp.ne.s32.totalorder %s158, %s174
    %p176 = scmp.eq.s32.totalorder %s17, 0
    %p177 = por %p175, %p176
    %p178 = scmp.le.s32.totalorder 1, %s11
    %p179 = scmp.lt.s32.totalorder %s11, 3
    %p180 = pnand %p178, %p179
    %p181 = pneg %p180
    // Predicated region
    $region9: #{mixnet_encode.13} parent=5 // pred_check
      _
    $region10: #{mixnet_encode.13} parent=5 // pred_check_branch
      %183 = sbr.rel (%p180) target = $region12
    $region11: #{mixnet_encode.13} parent=5 // pred_region
      %s184 = ssub.s32 %s11, 1
      // Predicated region
      $region13: #{mixnet_encode.13} parent=11 // pred_check
        %p185 = pneg %p86
      $region14: #{mixnet_encode.13} parent=11 // pred_check_branch
        %187 = sbr.rel (%p185) target = $region16
      $region15: #{mixnet_encode.13} parent=11 // pred_region
        %s188 = smul.u32 32, %s23
        %p189 = scmp.lt.s32.totalorder %s188, 31
        %s190 = scalar_select %p189, %s188, 31
        %s191 = smul.addr %s190, 4
        %s192 = scalar_lea.vmem %s1, %s191
        %s193 = smul.u32 32, %s23
      $region16: #{mixnet_encode.13} parent=11 // pred_fallthru
        _
    $region12: #{mixnet_encode.13} parent=5 // pred_fallthru
      _
    %p194 = scmp.lt.s32.totalorder %s11, 2
    // Predicated region
    $region17: #{mixnet_encode.13} parent=5 // pred_check
      %p195 = pneg %p194
    $region18: #{mixnet_encode.13} parent=5 // pred_check_branch
      %197 = sbr.rel (%p195) target = $region20
    $region19: #{mixnet_encode.13} parent=5 // pred_region
      // Predicated region
      $region21: #{mixnet_encode.13} parent=19 // pred_check
        %p198 = pneg %p54
      $region22: #{mixnet_encode.13} parent=19 // pred_check_branch
        %200 = sbr.rel (%p198) target = $region24
      $region23: #{mixnet_encode.13} parent=19 // pred_region
        %s201 = smul.u32 4, %s19
        %s202 = smul.u32 2, %s20
        %p203 = scmp.lt.s32.totalorder %s18, 1
        %s204 = scalar_select %p203, %s18, 1
        %p205 = scmp.lt.s32.totalorder %s201, 3
        %s206 = scalar_select %p205, %s201, 3
        %p207 = scmp.lt.s32.totalorder %s202, 1
        %s208 = scalar_select %p207, %s202, 1
        %s209 = smul.addr %s206, 2
        %s210 = sadd.s32 %s208, %s209
        %s211 = smul.addr %s204, 8
        %s212 = sadd.s32 %s210, %s211
        %s213 = smul.addr %s212, 4
        %s214 = scalar_lea.vmem %s0, %s213
        %s215 = smul.u32 4, %s19
        %s216 = smul.u32 2, %s20
      $region24: #{mixnet_encode.13} parent=19 // pred_fallthru
        _
    $region20: #{mixnet_encode.13} parent=5 // pred_fallthru
      _
    %p217 = scmp.le.s32.totalorder 1, %s11
    %p218 = scmp.lt.s32.totalorder %s11, 3
    %p219 = pnand %p217, %p218
    %p220 = pneg %p219
    // Predicated region
    $region25: #{mixnet_encode.13} parent=5 // pred_check
      _
    $region26: #{mixnet_encode.13} parent=5 // pred_check_branch
      %222 = sbr.rel (%p219) target = $region28
    $region27: #{mixnet_encode.13} parent=5 // pred_region
      %s223 = ssub.s32 %s11, 1
      %s224 = smul.u32 4, %s22
      %s225 = smul.u32 2, %s23
      %p226 = scmp.lt.s32.totalorder %s21, 1
      %s227 = scalar_select %p226, %s21, 1
      %p228 = scmp.lt.s32.totalorder %s224, 3
      %s229 = scalar_select %p228, %s224, 3
      %p230 = scmp.lt.s32.totalorder %s225, 1
      %s231 = scalar_select %p230, %s225, 1
      %s232 = smul.addr %s229, 2
      %s233 = sadd.s32 %s231, %s232
      %s234 = smul.addr %s227, 8
      %s235 = sadd.s32 %s233, %s234
      %s236 = smul.addr %s235, 4
      %s237 = scalar_lea.vmem %s0, %s236
      %p238 = pneg %p60
      %p239 = pneg %p57
      %s240 = smul.u32 32, %s23
      %p241 = scmp.lt.s32.totalorder %s240, 31
      %s242 = scalar_select %p241, %s240, 31
      %s243 = smul.addr %s242, 4
      %s244 = scalar_lea.vmem %s1, %s243
      %p245 = pneg %p86
      %p246 = pneg %p83
      %p247 = pneg %p114
      %p248 = pneg %p111
      %s249 = smul.u32 4, %s22
      %p250 = scmp.lt.s32.totalorder %s21, 1
      %s251 = scalar_select %p250, %s21, 1
      %p252 = scmp.lt.s32.totalorder %s249, 3
      %s253 = scalar_select %p252, %s249, 3
      %s254 = smul.addr %s251, 4
      %s255 = sadd.s32 %s253, %s254
      %s256 = smul.addr %s255, 4
      %s257 = scalar_lea.vmem %s2, %s256
      %p258 = pneg %p142
      %p259 = pneg %p139
      %p260 = scmp.lt.s32.totalorder %s21, 1
      %s261 = scalar_select %p260, %s21, 1
      %p262 = scmp.lt.s32.totalorder %s22, 0
      %s263 = scalar_select %p262, %s22, 0
      %s264 = sadd.s32 %s263, %s261
      %s265 = smul.addr %s264, 8
      %s266 = scalar_lea.vmem %s3, %s265
      %p267 = pneg %p170
      %p268 = pneg %p167
      %p269 = scmp.lt.s32.totalorder %s21, 1
      %s270 = scalar_select %p269, %s21, 1
      %p271 = scmp.lt.s32.totalorder %s22, 0
      %s272 = scalar_select %p271, %s22, 0
      %s273 = sadd.s32 %s272, %s270
      %s274 = smul.addr %s273, 8
      %s275 = scalar_lea.vmem %s4, %s274
      %s276 = smul.u32 4, %s22
      %s277 = smul.u32 2, %s23
      %p278 = scmp.lt.s32.totalorder %s21, 1
      %s279 = scalar_select %p278, %s21, 1
      %p280 = scmp.lt.s32.totalorder %s276, 3
      %s281 = scalar_select %p280, %s276, 3
      %p282 = scmp.lt.s32.totalorder %s277, 1
      %s283 = scalar_select %p282, %s277, 1
      %s284 = smul.addr %s281, 2
      %s285 = sadd.s32 %s283, %s284
      %s286 = smul.addr %s279, 8
      %s287 = sadd.s32 %s285, %s286
      %s288 = smul.addr %s287, 4
      %s289 = scalar_lea.vmem %s0, %s288
      %s290 = smul.u32 4, %s22
      %s291 = smul.u32 2, %s23
      %s292 = smul.u32 32, %s23
      %p293 = scmp.lt.s32.totalorder %s292, 31
      %s294 = scalar_select %p293, %s292, 31
      %s295 = smul.addr %s294, 4
      %s296 = scalar_lea.vmem %s1, %s295
      %s297 = smul.u32 32, %s23
      %s298 = smul.u32 4, %s22
      %p299 = scmp.lt.s32.totalorder %s21, 1
      %s300 = scalar_select %p299, %s21, 1
      %p301 = scmp.lt.s32.totalorder %s298, 3
      %s302 = scalar_select %p301, %s298, 3
      %s303 = smul.addr %s300, 4
      %s304 = sadd.s32 %s302, %s303
      %s305 = smul.addr %s304, 4
      %s306 = scalar_lea.vmem %s2, %s305
      %s307 = smul.u32 4, %s22
      %p308 = scmp.lt.s32.totalorder %s21, 1
      %s309 = scalar_select %p308, %s21, 1
      %p310 = scmp.lt.s32.totalorder %s22, 0
      %s311 = scalar_select %p310, %s22, 0
      %s312 = sadd.s32 %s311, %s309
      %s313 = smul.addr %s312, 8
      %s314 = scalar_lea.vmem %s3, %s313
      %p315 = scmp.lt.s32.totalorder %s21, 1
      %s316 = scalar_select %p315, %s21, 1
      %p317 = scmp.lt.s32.totalorder %s22, 0
      %s318 = scalar_select %p317, %s22, 0
      %s319 = sadd.s32 %s318, %s316
      %s320 = smul.addr %s319, 8
      %s321 = scalar_lea.vmem %s4, %s320
      %p324 = scmp.eq.s32.totalorder %s23, 0
      // Predicated region
      $region29: #{mixnet_encode.13} parent=27 // pred_check
        %p325 = pneg %p324
      $region30: #{mixnet_encode.13} parent=27 // pred_check_branch
        %327 = sbr.rel (%p325) target = $region32
      $region31: #{mixnet_encode.13} parent=27 // pred_region
        %328 = vst [vmem:[#allocation2] sm:$0xff] 0.0
        %329 = vst [vmem:[#allocation2 + $0x8] sm:$0xff] 0.0
        %330 = vst [vmem:[#allocation2 + $0x10] sm:$0xff] 0.0
        %331 = vst [vmem:[#allocation2 + $0x18] sm:$0xff] 0.0
      $region32: #{mixnet_encode.13} parent=27 // pred_fallthru
        _
      %v332 = vld [vmem:[%s289] sm:$0xff]
      %v333 = vld [vmem:[%s289 + $0x8] sm:$0xff]
      %v334 = vld [vmem:[%s289 + $0x10] sm:$0xff]
      %v335 = vld [vmem:[%s289 + $0x18] sm:$0xff]
      %vm336 = vcmp.gt.bf16.partialorder %v332, 0
      %vm337 = vcmp.gt.bf16.partialorder %v333, 0
      %vm338 = vcmp.gt.bf16.partialorder %v334, 0
      %vm339 = vcmp.gt.bf16.partialorder %v335, 0
      %v340 = vmul.bf16 %v332, 1045249613
      %v341 = vmul.bf16 %v333, 1045249613
      %v342 = vmul.bf16 %v334, 1045249613
      %v343 = vmul.bf16 %v335, 1045249613
      %v344 = vsel %vm336, %v332, %v340
      %v345 = vsel %vm337, %v333, %v341
      %v346 = vsel %vm338, %v334, %v342
      %v347 = vsel %vm339, %v335, %v343
      %v348 = vld [vmem:[#allocation2] sm:$0xff]
      %v349 = vld [vmem:[#allocation2 + $0x8] sm:$0xff]
      %v350 = vld [vmem:[#allocation2 + $0x10] sm:$0xff]
      %v351 = vld [vmem:[#allocation2 + $0x18] sm:$0xff]
      %v352 = vld [vmem:[%s296] sm:$0xf]
      %v353 = vld [vmem:[%s296 + $0x4] sm:$0xf]
      %v354 = vld [vmem:[%s296 + $0x8] sm:$0xf]
      %v355 = vld [vmem:[%s296 + $0xc] sm:$0xf]
      %v356 = vld [vmem:[%s296 + $0x10] sm:$0xf]
      %v357 = vld [vmem:[%s296 + $0x14] sm:$0xf]
      %v358 = vld [vmem:[%s296 + $0x18] sm:$0xf]
      %v359 = vld [vmem:[%s296 + $0x1c] sm:$0xf]
      %v360 = vld [vmem:[%s296 + $0x20] sm:$0xf]
      %v361 = vld [vmem:[%s296 + $0x24] sm:$0xf]
      %v362 = vld [vmem:[%s296 + $0x28] sm:$0xf]
      %v363 = vld [vmem:[%s296 + $0x2c] sm:$0xf]
      %v364 = vld [vmem:[%s296 + $0x30] sm:$0xf]
      %v365 = vld [vmem:[%s296 + $0x34] sm:$0xf]
      %v366 = vld [vmem:[%s296 + $0x38] sm:$0xf]
      %v367 = vld [vmem:[%s296 + $0x3c] sm:$0xf]
      %v368 = vld [vmem:[%s296 + $0x40] sm:$0xf]
      %v369 = vld [vmem:[%s296 + $0x44] sm:$0xf]
      %v370 = vld [vmem:[%s296 + $0x48] sm:$0xf]
      %v371 = vld [vmem:[%s296 + $0x4c] sm:$0xf]
      %v372 = vld [vmem:[%s296 + $0x50] sm:$0xf]
      %v373 = vld [vmem:[%s296 + $0x54] sm:$0xf]
      %v374 = vld [vmem:[%s296 + $0x58] sm:$0xf]
      %v375 = vld [vmem:[%s296 + $0x5c] sm:$0xf]
      %v376 = vld [vmem:[%s296 + $0x60] sm:$0xf]
      %v377 = vld [vmem:[%s296 + $0x64] sm:$0xf]
      %v378 = vld [vmem:[%s296 + $0x68] sm:$0xf]
      %v379 = vld [vmem:[%s296 + $0x6c] sm:$0xf]
      %v380 = vld [vmem:[%s296 + $0x70] sm:$0xf]
      %v381 = vld [vmem:[%s296 + $0x74] sm:$0xf]
      %v382 = vld [vmem:[%s296 + $0x78] sm:$0xf]
      %v383 = vld [vmem:[%s296 + $0x7c] sm:$0xf]
      %v388 = vunpack.c.l.b16 %v344
      %v389 = vunpack.c.h.b16 %v344
      %v390 = vunpack.c.l.b16 %v345
      %v391 = vunpack.c.h.b16 %v345
      %v392 = vunpack.c.l.b16 %v346
      %v393 = vunpack.c.h.b16 %v346
      %v394 = vunpack.c.l.b16 %v347
      %v395 = vunpack.c.h.b16 %v347
      %v396 = vpack.c.b16 %v390, %v388
      %v397 = vpack.c.b16 %v391, %v389
      %v398 = vpack.c.b16 %v394, %v392
      %v399 = vpack.c.b16 %v395, %v393
      %v436 = vunpack.c.l.b16 %v352
      %v437 = vunpack.c.l.b16 %v353
      %v438 = vunpack.c.l.b16 %v354
      %v439 = vunpack.c.l.b16 %v355
      %v440 = vunpack.c.l.b16 %v356
      %v441 = vunpack.c.l.b16 %v357
      %v442 = vunpack.c.l.b16 %v358
      %v443 = vunpack.c.l.b16 %v359
      %v444 = vunpack.c.l.b16 %v360
      %v445 = vunpack.c.l.b16 %v361
      %v446 = vunpack.c.l.b16 %v362
      %v447 = vunpack.c.l.b16 %v363
      %v448 = vunpack.c.l.b16 %v364
      %v449 = vunpack.c.l.b16 %v365
      %v450 = vunpack.c.l.b16 %v366
      %v451 = vunpack.c.l.b16 %v367
      %v452 = vunpack.c.l.b16 %v368
      %v453 = vunpack.c.l.b16 %v369
      %v454 = vunpack.c.l.b16 %v370
      %v455 = vunpack.c.l.b16 %v371
      %v456 = vunpack.c.l.b16 %v372
      %v457 = vunpack.c.l.b16 %v373
      %v458 = vunpack.c.l.b16 %v374
      %v459 = vunpack.c.l.b16 %v375
      %v460 = vunpack.c.l.b16 %v376
      %v461 = vunpack.c.l.b16 %v377
      %v462 = vunpack.c.l.b16 %v378
      %v463 = vunpack.c.l.b16 %v379
      %v464 = vunpack.c.l.b16 %v380
      %v465 = vunpack.c.l.b16 %v381
      %v466 = vunpack.c.l.b16 %v382
      %v467 = vunpack.c.l.b16 %v383
      %v468 = vpack.c.b16 %v437, %v436
      %v469 = vpack.c.b16 %v439, %v438
      %v470 = vpack.c.b16 %v441, %v440
      %v471 = vpack.c.b16 %v443, %v442
      %v472 = vpack.c.b16 %v445, %v444
      %v473 = vpack.c.b16 %v447, %v446
      %v474 = vpack.c.b16 %v449, %v448
      %v475 = vpack.c.b16 %v451, %v450
      %v476 = vpack.c.b16 %v453, %v452
      %v477 = vpack.c.b16 %v455, %v454
      %v478 = vpack.c.b16 %v457, %v456
      %v479 = vpack.c.b16 %v459, %v458
      %v480 = vpack.c.b16 %v461, %v460
      %v481 = vpack.c.b16 %v463, %v462
      %v482 = vpack.c.b16 %v465, %v464
      %v483 = vpack.c.b16 %v467, %v466
      %500 = vmatprep.subr.bf16.mxu0 0
      %501 = vmatpush1.bf16.msra.mxu0 %v468
      %502 = vmatprep.subr.bf16.mxu0 0
      %503 = vmatpush1.bf16.msra.mxu0 %v469
      %504 = vmatprep.subr.bf16.mxu0 0
      %505 = vmatpush1.bf16.msra.mxu0 %v470
      %506 = vmatprep.subr.bf16.mxu0 0
      %507 = vmatpush1.bf16.msra.mxu0 %v471
      %508 = vmatprep.subr.bf16.mxu0 0
      %509 = vmatpush1.bf16.msra.mxu0 %v472
      %510 = vmatprep.subr.bf16.mxu0 0
      %511 = vmatpush1.bf16.msra.mxu0 %v473
      %512 = vmatprep.subr.bf16.mxu0 0
      %513 = vmatpush1.bf16.msra.mxu0 %v474
      %514 = vmatprep.subr.bf16.mxu0 0
      %515 = vmatpush1.bf16.msra.mxu0 %v475
      %516 = vmatprep.subr.bf16.mxu0 0
      %517 = vmatpush1.bf16.msra.mxu0 %v476
      %518 = vmatprep.subr.bf16.mxu0 0
      %519 = vmatpush1.bf16.msra.mxu0 %v477
      %520 = vmatprep.subr.bf16.mxu0 0
      %521 = vmatpush1.bf16.msra.mxu0 %v478
      %522 = vmatprep.subr.bf16.mxu0 0
      %523 = vmatpush1.bf16.msra.mxu0 %v479
      %524 = vmatprep.subr.bf16.mxu0 0
      %525 = vmatpush1.bf16.msra.mxu0 %v480
      %526 = vmatprep.subr.bf16.mxu0 0
      %527 = vmatpush1.bf16.msra.mxu0 %v481
      %528 = vmatprep.subr.bf16.mxu0 0
      %529 = vmatpush1.bf16.msra.mxu0 %v482
      %530 = vmatprep.subr.bf16.mxu0 0
      %531 = vmatpush1.bf16.msra.mxu0 %v483
      %532 = vmatprep.mubr.bf16.mxu0 %v397
      %533 = vmatmul.mubr.bf16.gmra.mrb[0].mxu0 %v396
      %v534 = vpop.f32.mrb[0].mxu0
      %v535 = vadd.f32 0.0, %v534
      %v536 = vpop.f32.mrb[0].mxu0
      %v537 = vpop.f32.mrb[0].mxu0
      %v538 = vadd.f32 0.0, %v537
      %v539 = vpop.f32.mrb[0].mxu0
      %540 = vmatprep.mubr.bf16.mxu0 %v399
      %541 = vmatmul.mubr.bf16.gmra.mrb[0].mxu0 %v398
      %v542 = vpop.f32.mrb[0].mxu0
      %v543 = vadd.f32 0.0, %v542
      %v544 = vpop.f32.mrb[0].mxu0
      %v545 = vpop.f32.mrb[0].mxu0
      %v546 = vadd.f32 0.0, %v545
      %v547 = vpop.f32.mrb[0].mxu0
      %548 = vdwg.mxu0
      %v549 = vadd.f32 %v348, %v535
      %v550 = vadd.f32 %v349, %v538
      %v551 = vadd.f32 %v350, %v543
      %v552 = vadd.f32 %v351, %v546
      %553 = vst [vmem:[#allocation2] sm:$0xff] %v549
      %554 = vst [vmem:[#allocation2 + $0x8] sm:$0xff] %v550
      %555 = vst [vmem:[#allocation2 + $0x10] sm:$0xff] %v551
      %556 = vst [vmem:[#allocation2 + $0x18] sm:$0xff] %v552
      // Predicated region
      $region33: #{mixnet_encode.13} parent=27 // pred_check
        %p557 = pneg %p324
      $region34: #{mixnet_encode.13} parent=27 // pred_check_branch
        %559 = sbr.rel (%p557) target = $region36
      $region35: #{mixnet_encode.13} parent=27 // pred_region
        %v560 = vld [vmem:[#allocation2] sm:$0xff]
        %v561 = vld [vmem:[#allocation2 + $0x8] sm:$0xff]
        %v562 = vld [vmem:[#allocation2 + $0x10] sm:$0xff]
        %v563 = vld [vmem:[#allocation2 + $0x18] sm:$0xff]
        %v564 = vpack.c.bf16 %v561, %v560
        %v565 = vpack.c.bf16 %v563, %v562
        %v568 = vunpack.c.l.b16 %v564
        %v569 = vunpack.c.h.b16 %v564
        %v570 = vunpack.c.l.b16 %v565
        %v571 = vunpack.c.h.b16 %v565
        %v572 = vpack.c.b16 %v568, %v568
        %v573 = vpack.c.b16 %v569, %v569
        %v574 = vpack.c.b16 %v570, %v570
        %v575 = vpack.c.b16 %v571, %v571
        %580 = vst [vmem:[%s306] sm:$0xf] %v572
        %581 = vst [vmem:[%s306 + $0x4] sm:$0xf] %v573
        %582 = vst [vmem:[%s306 + $0x8] sm:$0xf] %v574
        %583 = vst [vmem:[%s306 + $0xc] sm:$0xf] %v575
        %v584 = vadd.f32 %v560, %v561
        %v585 = vadd.f32 %v584, %v562
        %v586 = vadd.f32 %v585, %v563
        %v587 = vrot.slane %v586, 4
        %v588 = vadd.f32 %v586, %v587
        %v589 = vrot.slane %v588, 2
        %v590 = vadd.f32 %v588, %v589
        %v591 = vrot.slane %v590, 1
        %v592 = vadd.f32 %v590, %v591
        %v593 = vmul.f32 %v560, %v560
        %v594 = vmul.f32 %v561, %v561
        %v595 = vmul.f32 %v562, %v562
        %v596 = vmul.f32 %v563, %v563
        %v597 = vadd.f32 %v593, %v594
        %v598 = vadd.f32 %v597, %v595
        %v599 = vadd.f32 %v598, %v596
        %v600 = vrot.slane %v599, 4
        %v601 = vadd.f32 %v599, %v600
        %v602 = vrot.slane %v601, 2
        %v603 = vadd.f32 %v601, %v602
        %v604 = vrot.slane %v603, 1
        %v605 = vadd.f32 %v603, %v604
        %606 = vst [vmem:[%s314] sm:$0xff] %v592
        %607 = vst [vmem:[%s321] sm:$0xff] %v605
      $region36: #{mixnet_encode.13} parent=27 // pred_fallthru
        _
      %s608 = smul.u32 4, %s22
      %p609 = scmp.lt.s32.totalorder %s21, 1
      %s610 = scalar_select %p609, %s21, 1
      %p611 = scmp.lt.s32.totalorder %s608, 3
      %s612 = scalar_select %p611, %s608, 3
      %s613 = smul.addr %s610, 4
      %s614 = sadd.s32 %s612, %s613
      %s615 = smul.addr %s614, 4
      %s616 = scalar_lea.vmem %s2, %s615
      %p617 = scmp.lt.s32.totalorder %s21, 1
      %s618 = scalar_select %p617, %s21, 1
      %p619 = scmp.lt.s32.totalorder %s22, 0
      %s620 = scalar_select %p619, %s22, 0
      %s621 = sadd.s32 %s620, %s618
      %s622 = smul.addr %s621, 8
      %s623 = scalar_lea.vmem %s3, %s622
      %p624 = scmp.lt.s32.totalorder %s21, 1
      %s625 = scalar_select %p624, %s21, 1
      %p626 = scmp.lt.s32.totalorder %s22, 0
      %s627 = scalar_select %p626, %s22, 0
      %s628 = sadd.s32 %s627, %s625
      %s629 = smul.addr %s628, 8
      %s630 = scalar_lea.vmem %s4, %s629
      // Predicated region
      $region37: #{mixnet_encode.13} parent=27 // pred_check
        %p631 = pneg %p111
      $region38: #{mixnet_encode.13} parent=27 // pred_check_branch
        %633 = sbr.rel (%p631) target = $region40
      $region39: #{mixnet_encode.13} parent=27 // pred_region
        %s634 = smul.u32 4, %s22
      $region40: #{mixnet_encode.13} parent=27 // pred_fallthru
        _
      // Predicated region
      $region41: #{mixnet_encode.13} parent=27 // pred_check
        %p635 = pneg %p139
      $region42: #{mixnet_encode.13} parent=27 // pred_check_branch
        %637 = sbr.rel (%p635) target = $region44
      $region43: #{mixnet_encode.13} parent=27 // pred_region
        _
      $region44: #{mixnet_encode.13} parent=27 // pred_fallthru
        _
      // Predicated region
      $region45: #{mixnet_encode.13} parent=27 // pred_check
        %p638 = pneg %p167
      $region46: #{mixnet_encode.13} parent=27 // pred_check_branch
        %640 = sbr.rel (%p638) target = $region48
      $region47: #{mixnet_encode.13} parent=27 // pred_region
        _
      $region48: #{mixnet_encode.13} parent=27 // pred_fallthru
        _
    $region28: #{mixnet_encode.13} parent=5 // pred_fallthru
      _
    %p641 = scmp.le.s32.totalorder 2, %s11
    // Predicated region
    $region49: #{mixnet_encode.13} parent=5 // pred_check
      %p642 = pneg %p641
    $region50: #{mixnet_encode.13} parent=5 // pred_check_branch
      %644 = sbr.rel (%p642) target = $region52
    $region51: #{mixnet_encode.13} parent=5 // pred_region
      %s645 = ssub.s32 %s11, 2
      // Predicated region
      $region53: #{mixnet_encode.13} parent=51 // pred_check
        %p646 = pneg %p117
      $region54: #{mixnet_encode.13} parent=51 // pred_check_branch
        %648 = sbr.rel (%p646) target = $region56
      $region55: #{mixnet_encode.13} parent=51 // pred_region
        %s649 = smul.u32 4, %s25
        %p650 = scmp.lt.s32.totalorder %s24, 1
        %s651 = scalar_select %p650, %s24, 1
        %p652 = scmp.lt.s32.totalorder %s649, 3
        %s653 = scalar_select %p652, %s649, 3
        %s654 = smul.addr %s651, 4
        %s655 = sadd.s32 %s653, %s654
        %s656 = smul.addr %s655, 4
        %s657 = scalar_lea.vmem %s2, %s656
      $region56: #{mixnet_encode.13} parent=51 // pred_fallthru
        _
      // Predicated region
      $region57: #{mixnet_encode.13} parent=51 // pred_check
        %p658 = pneg %p145
      $region58: #{mixnet_encode.13} parent=51 // pred_check_branch
        %660 = sbr.rel (%p658) target = $region60
      $region59: #{mixnet_encode.13} parent=51 // pred_region
        %p661 = scmp.lt.s32.totalorder %s24, 1
        %s662 = scalar_select %p661, %s24, 1
        %p663 = scmp.lt.s32.totalorder %s25, 0
        %s664 = scalar_select %p663, %s25, 0
        %s665 = sadd.s32 %s664, %s662
        %s666 = smul.addr %s665, 8
        %s667 = scalar_lea.vmem %s3, %s666
      $region60: #{mixnet_encode.13} parent=51 // pred_fallthru
        _
      // Predicated region
      $region61: #{mixnet_encode.13} parent=51 // pred_check
        %p668 = pneg %p173
      $region62: #{mixnet_encode.13} parent=51 // pred_check_branch
        %670 = sbr.rel (%p668) target = $region64
      $region63: #{mixnet_encode.13} parent=51 // pred_region
        %p671 = scmp.lt.s32.totalorder %s24, 1
        %s672 = scalar_select %p671, %s24, 1
        %p673 = scmp.lt.s32.totalorder %s25, 0
        %s674 = scalar_select %p673, %s25, 0
        %s675 = sadd.s32 %s674, %s672
        %s676 = smul.addr %s675, 8
        %s677 = scalar_lea.vmem %s4, %s676
      $region64: #{mixnet_encode.13} parent=51 // pred_fallthru
        _
    $region52: #{mixnet_encode.13} parent=5 // pred_fallthru
      _
  $region6: #{mixnet_encode.13} parent=0 // loop_footer
    %s15 = sadd.s32 1, %s11
  $region7: #{mixnet_encode.13} parent=0 // loop_footer_branch
    %10 = sbr.rel target = $region3
  $region8: #{mixnet_encode.13} parent=0 // loop_exit
    _

// kernel: mixnet_encode.14
$region0: #{mixnet_encode.14}
  #allocation0 [shape = 'u32[]', space=smem, size = 0x4, offset = 0x4, fixed_abs, tag = 'smem constant byte address 0x4 - core index']
  #allocation1 [shape = 'u32[144,128]{1,0:T(1,128)}', space=vmem, size = 0x12000, scoped, tag = 'internal scratch']
  %s0 = inlined_call_operand.vmem [shape: bf16[2,32,128], index: 0, kind: input, shape index: {}, may-alias: {0,3}]
  %s1 = inlined_call_operand.vmem [shape: f32[2,8,128], index: 1, kind: input, shape index: {}]
  %s2 = inlined_call_operand.vmem [shape: f32[2,8,128], index: 2, kind: input, shape index: {}]
  %s3 = inlined_call_operand.vmem [shape: bf16[2,32,128], index: 3, kind: output, shape index: {}, may-alias: {0,3}]
  %s4 = sld [smem:[#allocation0]]
  $region45: #{mixnet_encode.14} parent=0
    _
  %s6 = ssub.s32 1, %s4
  %s7 = scalar_select 0, %s6, %s4
  loop: start=0, step=1, limit=4
  $region2: #{mixnet_encode.14} parent=0 // loop_pre_header
    _
  $region3: #{mixnet_encode.14} parent=0 // loop_header
    %s9 = sphi 0, %s13
    %p10 = scmp.ge.s32.totalorder %s9, 4
    %s16 = sphi 0, %s28
    %s17 = sphi 0, %s24
    %s18 = sphi 0, %s16
    %s19 = sphi 0, %s17
    %s20 = sphi 0, %s18
    %s21 = sphi 0, %s19
    %s33 = sphi 0, %s35
    %s36 = sphi 0, %s33
    %s37 = sphi 0, %s36
    %s53 = sphi 0, %s37
    %s59 = sphi 0, %s61
    %s62 = sphi 0, %s59
    %s63 = sphi 0, %s62
    %s79 = sphi 0, %s63
    %s85 = sphi 0, %s87
    %s88 = sphi 0, %s85
    %s89 = sphi 0, %s88
    %s105 = sphi 0, %s89
    %s113 = sphi 0, %s115
    %s116 = sphi 0, %s113
    %s117 = sphi 0, %s116
    %s133 = sphi 0, %s117
  $region4: #{mixnet_encode.14} parent=0 // loop_header_branch
    %12 = sbr.rel (%p10) target = $region8
  $region5: #{mixnet_encode.14} parent=0 // loop_body
    %s14 = ssub.s32 %s9, 1
    %s15 = ssub.s32 %s9, 2
    %s22 = sadd.s32 1, %s17
    %p23 = scmp.ge.s32.totalorder %s22, 1
    %s24 = scalar_select %p23, 0, %s22
    %s25 = sadd.s32 1, %s16
    %s26 = scalar_select %p23, %s25, %s16
    %p27 = scmp.ge.s32.totalorder %s26, 2
    %s28 = scalar_select %p27, 0, %s26
    %s29 = ssub.s32 %s16, %s28
    %s30 = ssub.s32 %s17, %s24
    %s31 = sor.u32 %s29, %s30
    %p32 = scmp.eq.s32.totalorder %s31, 0
    %s34 = sadd.s32 %s33, 1
    %s35 = scalar_select %p32, %s33, %s34
    %p38 = pneg %p32
    %p39 = scmp.eq.s32.totalorder %s9, 1
    %p40 = por %p38, %p39
    %p41 = scmp.ne.s32.totalorder %s33, %s36
    %p42 = scmp.eq.s32.totalorder %s9, 0
    %p43 = por %p41, %p42
    %p44 = scmp.ne.s32.totalorder %s33, %s36
    %p45 = scmp.eq.s32.totalorder %s14, 1
    %p46 = por %p44, %p45
    %p47 = scmp.ne.s32.totalorder %s36, %s37
    %p48 = scmp.eq.s32.totalorder %s14, 0
    %p49 = por %p47, %p48
    %p50 = scmp.ne.s32.totalorder %s36, %s37
    %p51 = scmp.eq.s32.totalorder %s15, 1
    %p52 = por %p50, %p51
    %p54 = scmp.ne.s32.totalorder %s37, %s53
    %p55 = scmp.eq.s32.totalorder %s15, 0
    %p56 = por %p54, %p55
    %s57 = ssub.s32 %s16, %s28
    %p58 = scmp.eq.s32.totalorder %s57, 0
    %s60 = sadd.s32 %s59, 1
    %s61 = scalar_select %p58, %s59, %s60
    %p64 = pneg %p58
    %p65 = scmp.eq.s32.totalorder %s9, 1
    %p66 = por %p64, %p65
    %p67 = scmp.ne.s32.totalorder %s59, %s62
    %p68 = scmp.eq.s32.totalorder %s9, 0
    %p69 = por %p67, %p68
    %p70 = scmp.ne.s32.totalorder %s59, %s62
    %p71 = scmp.eq.s32.totalorder %s14, 1
    %p72 = por %p70, %p71
    %p73 = scmp.ne.s32.totalorder %s62, %s63
    %p74 = scmp.eq.s32.totalorder %s14, 0
    %p75 = por %p73, %p74
    %p76 = scmp.ne.s32.totalorder %s62, %s63
    %p77 = scmp.eq.s32.totalorder %s15, 1
    %p78 = por %p76, %p77
    %p80 = scmp.ne.s32.totalorder %s63, %s79
    %p81 = scmp.eq.s32.totalorder %s15, 0
    %p82 = por %p80, %p81
    %s83 = ssub.s32 %s16, %s28
    %p84 = scmp.eq.s32.totalorder %s83, 0
    %s86 = sadd.s32 %s85, 1
    %s87 = scalar_select %p84, %s85, %s86
    %p90 = pneg %p84
    %p91 = scmp.eq.s32.totalorder %s9, 1
    %p92 = por %p90, %p91
    %p93 = scmp.ne.s32.totalorder %s85, %s88
    %p94 = scmp.eq.s32.totalorder %s9, 0
    %p95 = por %p93, %p94
    %p96 = scmp.ne.s32.totalorder %s85, %s88
    %p97 = scmp.eq.s32.totalorder %s14, 1
    %p98 = por %p96, %p97
    %p99 = scmp.ne.s32.totalorder %s88, %s89
    %p100 = scmp.eq.s32.totalorder %s14, 0
    %p101 = por %p99, %p100
    %p102 = scmp.ne.s32.totalorder %s88, %s89
    %p103 = scmp.eq.s32.totalorder %s15, 1
    %p104 = por %p102, %p103
    %p106 = scmp.ne.s32.totalorder %s89, %s105
    %p107 = scmp.eq.s32.totalorder %s15, 0
    %p108 = por %p106, %p107
    %s109 = ssub.s32 %s16, %s28
    %s110 = ssub.s32 %s17, %s24
    %s111 = sor.u32 %s109, %s110
    %p112 = scmp.eq.s32.totalorder %s111, 0
    %s114 = sadd.s32 %s113, 1
    %s115 = scalar_select %p112, %s113, %s114
    %p118 = pneg %p112
    %p119 = scmp.eq.s32.totalorder %s9, 1
    %p120 = por %p118, %p119
    %p121 = scmp.ne.s32.totalorder %s113, %s116
    %p122 = scmp.eq.s32.totalorder %s9, 0
    %p123 = por %p121, %p122
    %p124 = scmp.ne.s32.totalorder %s113, %s116
    %p125 = scmp.eq.s32.totalorder %s14, 1
    %p126 = por %p124, %p125
    %p127 = scmp.ne.s32.totalorder %s116, %s117
    %p128 = scmp.eq.s32.totalorder %s14, 0
    %p129 = por %p127, %p128
    %p130 = scmp.ne.s32.totalorder %s116, %s117
    %p131 = scmp.eq.s32.totalorder %s15, 1
    %p132 = por %p130, %p131
    %p134 = scmp.ne.s32.totalorder %s117, %s133
    %p135 = scmp.eq.s32.totalorder %s15, 0
    %p136 = por %p134, %p135
    %p137 = scmp.le.s32.totalorder 1, %s9
    %p138 = scmp.lt.s32.totalorder %s9, 3
    %p139 = pnand %p137, %p138
    %p140 = pneg %p139
    // Predicated region
    $region9: #{mixnet_encode.14} parent=5 // pred_check
      _
    $region10: #{mixnet_encode.14} parent=5 // pred_check_branch
      %142 = sbr.rel (%p139) target = $region12
    $region11: #{mixnet_encode.14} parent=5 // pred_region
      %s143 = ssub.s32 %s9, 1
    $region12: #{mixnet_encode.14} parent=5 // pred_fallthru
      _
    %p144 = scmp.lt.s32.totalorder %s9, 2
    // Predicated region
    $region13: #{mixnet_encode.14} parent=5 // pred_check
      %p145 = pneg %p144
    $region14: #{mixnet_encode.14} parent=5 // pred_check_branch
      %147 = sbr.rel (%p145) target = $region16
    $region15: #{mixnet_encode.14} parent=5 // pred_region
      // Predicated region
      $region17: #{mixnet_encode.14} parent=15 // pred_check
        %p148 = pneg %p43
      $region18: #{mixnet_encode.14} parent=15 // pred_check_branch
        %150 = sbr.rel (%p148) target = $region20
      $region19: #{mixnet_encode.14} parent=15 // pred_region
        %s151 = smul.u32 4, %s17
        %p152 = scmp.lt.s32.totalorder %s16, 1
        %s153 = scalar_select %p152, %s16, 1
        %p154 = scmp.lt.s32.totalorder %s151, 3
        %s155 = scalar_select %p154, %s151, 3
        %s156 = smul.addr %s153, 4
        %s157 = sadd.s32 %s155, %s156
        %s158 = smul.addr %s157, 4
        %s159 = scalar_lea.vmem %s0, %s158
        %s160 = smul.u32 4, %s17
      $region20: #{mixnet_encode.14} parent=15 // pred_fallthru
        _
      // Predicated region
      $region21: #{mixnet_encode.14} parent=15 // pred_check
        %p161 = pneg %p69
      $region22: #{mixnet_encode.14} parent=15 // pred_check_branch
        %163 = sbr.rel (%p161) target = $region24
      $region23: #{mixnet_encode.14} parent=15 // pred_region
        %p164 = scmp.lt.s32.totalorder %s16, 1
        %s165 = scalar_select %p164, %s16, 1
        %s166 = smul.addr %s165, 8
        %s167 = scalar_lea.vmem %s1, %s166
      $region24: #{mixnet_encode.14} parent=15 // pred_fallthru
        _
      // Predicated region
      $region25: #{mixnet_encode.14} parent=15 // pred_check
        %p168 = pneg %p95
      $region26: #{mixnet_encode.14} parent=15 // pred_check_branch
        %170 = sbr.rel (%p168) target = $region28
      $region27: #{mixnet_encode.14} parent=15 // pred_region
        %p171 = scmp.lt.s32.totalorder %s16, 1
        %s172 = scalar_select %p171, %s16, 1
        %s173 = smul.addr %s172, 8
        %s174 = scalar_lea.vmem %s2, %s173
      $region28: #{mixnet_encode.14} parent=15 // pred_fallthru
        _
    $region16: #{mixnet_encode.14} parent=5 // pred_fallthru
      _
    %p175 = scmp.le.s32.totalorder 1, %s9
    %p176 = scmp.lt.s32.totalorder %s9, 3
    %p177 = pnand %p175, %p176
    %p178 = pneg %p177
    // Predicated region
    $region29: #{mixnet_encode.14} parent=5 // pred_check
      _
    $region30: #{mixnet_encode.14} parent=5 // pred_check_branch
      %180 = sbr.rel (%p177) target = $region32
    $region31: #{mixnet_encode.14} parent=5 // pred_region
      %s181 = ssub.s32 %s9, 1
      %s182 = smul.u32 4, %s19
      %p183 = scmp.lt.s32.totalorder %s18, 1
      %s184 = scalar_select %p183, %s18, 1
      %p185 = scmp.lt.s32.totalorder %s182, 3
      %s186 = scalar_select %p185, %s182, 3
      %s187 = smul.addr %s184, 4
      %s188 = sadd.s32 %s186, %s187
      %s189 = smul.addr %s188, 4
      %s190 = scalar_lea.vmem %s0, %s189
      %p191 = pneg %p49
      %p192 = pneg %p46
      %p193 = scmp.lt.s32.totalorder %s18, 1
      %s194 = scalar_select %p193, %s18, 1
      %s195 = smul.addr %s194, 8
      %s196 = scalar_lea.vmem %s1, %s195
      %p197 = pneg %p75
      %p198 = pneg %p72
      %p199 = scmp.lt.s32.totalorder %s18, 1
      %s200 = scalar_select %p199, %s18, 1
      %s201 = smul.addr %s200, 8
      %s202 = scalar_lea.vmem %s2, %s201
      %p203 = pneg %p101
      %p204 = pneg %p98
      %p205 = pneg %p129
      %p206 = pneg %p126
      %s207 = smul.u32 4, %s19
      %p208 = scmp.lt.s32.totalorder %s18, 1
      %s209 = scalar_select %p208, %s18, 1
      %p210 = scmp.lt.s32.totalorder %s207, 3
      %s211 = scalar_select %p210, %s207, 3
      %s212 = smul.addr %s209, 4
      %s213 = sadd.s32 %s211, %s212
      %s214 = smul.addr %s213, 4
      %s215 = scalar_lea.vmem %s3, %s214
      %s216 = smul.u32 4, %s19
      %p217 = scmp.lt.s32.totalorder %s18, 1
      %s218 = scalar_select %p217, %s18, 1
      %p219 = scmp.lt.s32.totalorder %s216, 3
      %s220 = scalar_select %p219, %s216, 3
      %s221 = smul.addr %s218, 4
      %s222 = sadd.s32 %s220, %s221
      %s223 = smul.addr %s222, 4
      %s224 = scalar_lea.vmem %s0, %s223
      %s225 = smul.u32 4, %s19
      %p226 = scmp.lt.s32.totalorder %s18, 1
      %s227 = scalar_select %p226, %s18, 1
      %s228 = smul.addr %s227, 8
      %s229 = scalar_lea.vmem %s1, %s228
      %p230 = scmp.lt.s32.totalorder %s18, 1
      %s231 = scalar_select %p230, %s18, 1
      %s232 = smul.addr %s231, 8
      %s233 = scalar_lea.vmem %s2, %s232
      %s234 = smul.u32 4, %s19
      %p235 = scmp.lt.s32.totalorder %s18, 1
      %s236 = scalar_select %p235, %s18, 1
      %p237 = scmp.lt.s32.totalorder %s234, 3
      %s238 = scalar_select %p237, %s234, 3
      %s239 = smul.addr %s236, 4
      %s240 = sadd.s32 %s238, %s239
      %s241 = smul.addr %s240, 4
      %s242 = scalar_lea.vmem %s3, %s241
      %s243 = smul.u32 4, %s19
      %v244 = vld [vmem:[%s229] sm:$0xff]
      %v245 = vld [vmem:[%s233] sm:$0xff]
      %v246 = vld [vmem:[%s224] sm:$0xf]
      %v247 = vld [vmem:[%s224 + $0x4] sm:$0xf]
      %v248 = vld [vmem:[%s224 + $0x8] sm:$0xf]
      %v249 = vld [vmem:[%s224 + $0xc] sm:$0xf]
      %v250 = vunpack.c.l.bf16 %v246
      %v251 = vunpack.c.l.bf16 %v247
      %v252 = vunpack.c.l.bf16 %v248
      %v253 = vunpack.c.l.bf16 %v249
      %v254 = vlaneseq
      %v255 = vshrl.u32 %v254, 7
      %v256 = vsub.s32 0, %v255
      %v257 = vrot.slane %v244, %v256
      %v258 = vmul.f32 %v250, %v257
      %v259 = vmul.f32 %v251, %v257
      %v260 = vmul.f32 %v252, %v257
      %v261 = vmul.f32 %v253, %v257
      %v262 = vlaneseq
      %v263 = vshrl.u32 %v262, 7
      %v264 = vsub.s32 0, %v263
      %v265 = vrot.slane %v245, %v264
      %v266 = vadd.f32 %v258, %v265
      %v267 = vadd.f32 %v259, %v265
      %v268 = vadd.f32 %v260, %v265
      %v269 = vadd.f32 %v261, %v265
      %v270 = vpack.c.bf16 %v267, %v266
      %v271 = vpack.c.bf16 %v269, %v268
      %v274 = vunpack.c.l.b16 %v270
      %v275 = vunpack.c.h.b16 %v270
      %v276 = vunpack.c.l.b16 %v271
      %v277 = vunpack.c.h.b16 %v271
      %v278 = vpack.c.b16 %v274, %v274
      %v279 = vpack.c.b16 %v275, %v275
      %v280 = vpack.c.b16 %v276, %v276
      %v281 = vpack.c.b16 %v277, %v277
      %286 = vst [vmem:[%s242] sm:$0xf] %v278
      %287 = vst [vmem:[%s242 + $0x4] sm:$0xf] %v279
      %288 = vst [vmem:[%s242 + $0x8] sm:$0xf] %v280
      %289 = vst [vmem:[%s242 + $0xc] sm:$0xf] %v281
      %s290 = smul.u32 4, %s19
      %p291 = scmp.lt.s32.totalorder %s18, 1
      %s292 = scalar_select %p291, %s18, 1
      %p293 = scmp.lt.s32.totalorder %s290, 3
      %s294 = scalar_select %p293, %s290, 3
      %s295 = smul.addr %s292, 4
      %s296 = sadd.s32 %s294, %s295
      %s297 = smul.addr %s296, 4
      %s298 = scalar_lea.vmem %s3, %s297
      // Predicated region
      $region33: #{mixnet_encode.14} parent=31 // pred_check
        %p299 = pneg %p126
      $region34: #{mixnet_encode.14} parent=31 // pred_check_branch
        %301 = sbr.rel (%p299) target = $region36
      $region35: #{mixnet_encode.14} parent=31 // pred_region
        %s302 = smul.u32 4, %s19
      $region36: #{mixnet_encode.14} parent=31 // pred_fallthru
        _
    $region32: #{mixnet_encode.14} parent=5 // pred_fallthru
      _
    %p303 = scmp.le.s32.totalorder 2, %s9
    // Predicated region
    $region37: #{mixnet_encode.14} parent=5 // pred_check
      %p304 = pneg %p303
    $region38: #{mixnet_encode.14} parent=5 // pred_check_branch
      %306 = sbr.rel (%p304) target = $region40
    $region39: #{mixnet_encode.14} parent=5 // pred_region
      %s307 = ssub.s32 %s9, 2
      // Predicated region
      $region41: #{mixnet_encode.14} parent=39 // pred_check
        %p308 = pneg %p132
      $region42: #{mixnet_encode.14} parent=39 // pred_check_branch
        %310 = sbr.rel (%p308) target = $region44
      $region43: #{mixnet_encode.14} parent=39 // pred_region
        %s311 = smul.u32 4, %s21
        %p312 = scmp.lt.s32.totalorder %s20, 1
        %s313 = scalar_select %p312, %s20, 1
        %p314 = scmp.lt.s32.totalorder %s311, 3
        %s315 = scalar_select %p314, %s311, 3
        %s316 = smul.addr %s313, 4
        %s317 = sadd.s32 %s315, %s316
        %s318 = smul.addr %s317, 4
        %s319 = scalar_lea.vmem %s3, %s318
      $region44: #{mixnet_encode.14} parent=39 // pred_fallthru
        _
    $region40: #{mixnet_encode.14} parent=5 // pred_fallthru
      _
  $region6: #{mixnet_encode.14} parent=0 // loop_footer
    %s13 = sadd.s32 1, %s9
  $region7: #{mixnet_encode.14} parent=0 // loop_footer_branch
    %8 = sbr.rel target = $region3
  $region8: #{mixnet_encode.14} parent=0 // loop_exit
    _

// kernel: mixnet_encode.15
$region0: #{mixnet_encode.15}
  #allocation0 [shape = 'u32[]', space=smem, size = 0x4, offset = 0x4, fixed_abs, tag = 'smem constant byte address 0x4 - core index']
  #allocation1 [shape = 'u32[144,128]{1,0:T(1,128)}', space=vmem, size = 0x12000, scoped, tag = 'internal scratch']
  #allocation2 [shape = 'f32[16,128]{1,0:T(8,128)}', space=vmem, size = 0x2000, scoped, tag = 'scratch operand']
  %s0 = inlined_call_operand.vmem [shape: bf16[2,16,512], index: 0, kind: input, shape index: {}]
  %s1 = inlined_call_operand.vmem [shape: bf16[512,128], index: 1, kind: input, shape index: {}]
  %s2 = inlined_call_operand.vmem [shape: bf16[2,16,128], index: 2, kind: output, shape index: {0}]
  %s3 = inlined_call_operand.vmem [shape: f32[2,8,128], index: 3, kind: output, shape index: {1}]
  %s4 = inlined_call_operand.vmem [shape: f32[2,8,128], index: 4, kind: output, shape index: {2}]
  %5 = xla_tuple %s2, %s3, %s4
  %s6 = sld [smem:[#allocation0]]
  $region65: #{mixnet_encode.15} parent=0
    _
  %s8 = ssub.s32 1, %s6
  %s9 = scalar_select 0, %s8, %s6
  loop: start=0, step=1, limit=4
  $region2: #{mixnet_encode.15} parent=0 // loop_pre_header
    _
  $region3: #{mixnet_encode.15} parent=0 // loop_header
    %s11 = sphi 0, %s15
    %p12 = scmp.ge.s32.totalorder %s11, 4
    %s18 = sphi 0, %s37
    %s19 = sphi 0, %s33
    %s20 = sphi 0, %s29
    %s21 = sphi 0, %s18
    %s22 = sphi 0, %s19
    %s23 = sphi 0, %s20
    %s24 = sphi 0, %s21
    %s25 = sphi 0, %s22
    %s26 = sphi 0, %s23
    %s44 = sphi 0, %s46
    %s47 = sphi 0, %s44
    %s48 = sphi 0, %s47
    %s64 = sphi 0, %s48
    %s70 = sphi 0, %s72
    %s73 = sphi 0, %s70
    %s74 = sphi 0, %s73
    %s90 = sphi 0, %s74
    %s98 = sphi 0, %s100
    %s101 = sphi 0, %s98
    %s102 = sphi 0, %s101
    %s118 = sphi 0, %s102
    %s126 = sphi 0, %s128
    %s129 = sphi 0, %s126
    %s130 = sphi 0, %s129
    %s146 = sphi 0, %s130
    %s154 = sphi 0, %s156
    %s157 = sphi 0, %s154
    %s158 = sphi 0, %s157
    %s174 = sphi 0, %s158
  $region4: #{mixnet_encode.15} parent=0 // loop_header_branch
    %14 = sbr.rel (%p12) target = $region8
  $region5: #{mixnet_encode.15} parent=0 // loop_body
    %s16 = ssub.s32 %s11, 1
    %s17 = ssub.s32 %s11, 2
    %s27 = sadd.s32 1, %s20
    %p28 = scmp.ge.s32.totalorder %s27, 1
    %s29 = scalar_select %p28, 0, %s27
    %s30 = sadd.s32 1, %s19
    %s31 = scalar_select %p28, %s30, %s19
    %p32 = scmp.ge.s32.totalorder %s31, 1
    %s33 = scalar_select %p32, 0, %s31
    %s34 = sadd.s32 1, %s18
    %s35 = scalar_select %p32, %s34, %s18
    %p36 = scmp.ge.s32.totalorder %s35, 2
    %s37 = scalar_select %p36, 0, %s35
    %s38 = ssub.s32 %s18, %s37
    %s39 = ssub.s32 %s19, %s33
    %s40 = sor.u32 %s38, %s39
    %s41 = ssub.s32 %s20, %s29
    %s42 = sor.u32 %s40, %s41
    %p43 = scmp.eq.s32.totalorder %s42, 0
    %s45 = sadd.s32 %s44, 1
    %s46 = scalar_select %p43, %s44, %s45
    %p49 = pneg %p43
    %p50 = scmp.eq.s32.totalorder %s11, 1
    %p51 = por %p49, %p50
    %p52 = scmp.ne.s32.totalorder %s44, %s47
    %p53 = scmp.eq.s32.totalorder %s11, 0
    %p54 = por %p52, %p53
    %p55 = scmp.ne.s32.totalorder %s44, %s47
    %p56 = scmp.eq.s32.totalorder %s16, 1
    %p57 = por %p55, %p56
    %p58 = scmp.ne.s32.totalorder %s47, %s48
    %p59 = scmp.eq.s32.totalorder %s16, 0
    %p60 = por %p58, %p59
    %p61 = scmp.ne.s32.totalorder %s47, %s48
    %p62 = scmp.eq.s32.totalorder %s17, 1
    %p63 = por %p61, %p62
    %p65 = scmp.ne.s32.totalorder %s48, %s64
    %p66 = scmp.eq.s32.totalorder %s17, 0
    %p67 = por %p65, %p66
    %s68 = ssub.s32 %s20, %s29
    %p69 = scmp.eq.s32.totalorder %s68, 0
    %s71 = sadd.s32 %s70, 1
    %s72 = scalar_select %p69, %s70, %s71
    %p75 = pneg %p69
    %p76 = scmp.eq.s32.totalorder %s11, 1
    %p77 = por %p75, %p76
    %p78 = scmp.ne.s32.totalorder %s70, %s73
    %p79 = scmp.eq.s32.totalorder %s11, 0
    %p80 = por %p78, %p79
    %p81 = scmp.ne.s32.totalorder %s70, %s73
    %p82 = scmp.eq.s32.totalorder %s16, 1
    %p83 = por %p81, %p82
    %p84 = scmp.ne.s32.totalorder %s73, %s74
    %p85 = scmp.eq.s32.totalorder %s16, 0
    %p86 = por %p84, %p85
    %p87 = scmp.ne.s32.totalorder %s73, %s74
    %p88 = scmp.eq.s32.totalorder %s17, 1
    %p89 = por %p87, %p88
    %p91 = scmp.ne.s32.totalorder %s74, %s90
    %p92 = scmp.eq.s32.totalorder %s17, 0
    %p93 = por %p91, %p92
    %s94 = ssub.s32 %s18, %s37
    %s95 = ssub.s32 %s19, %s33
    %s96 = sor.u32 %s94, %s95
    %p97 = scmp.eq.s32.totalorder %s96, 0
    %s99 = sadd.s32 %s98, 1
    %s100 = scalar_select %p97, %s98, %s99
    %p103 = pneg %p97
    %p104 = scmp.eq.s32.totalorder %s11, 1
    %p105 = por %p103, %p104
    %p106 = scmp.ne.s32.totalorder %s98, %s101
    %p107 = scmp.eq.s32.totalorder %s11, 0
    %p108 = por %p106, %p107
    %p109 = scmp.ne.s32.totalorder %s98, %s101
    %p110 = scmp.eq.s32.totalorder %s16, 1
    %p111 = por %p109, %p110
    %p112 = scmp.ne.s32.totalorder %s101, %s102
    %p113 = scmp.eq.s32.totalorder %s16, 0
    %p114 = por %p112, %p113
    %p115 = scmp.ne.s32.totalorder %s101, %s102
    %p116 = scmp.eq.s32.totalorder %s17, 1
    %p117 = por %p115, %p116
    %p119 = scmp.ne.s32.totalorder %s102, %s118
    %p120 = scmp.eq.s32.totalorder %s17, 0
    %p121 = por %p119, %p120
    %s122 = ssub.s32 %s18, %s37
    %s123 = ssub.s32 %s19, %s33
    %s124 = sor.u32 %s122, %s123
    %p125 = scmp.eq.s32.totalorder %s124, 0
    %s127 = sadd.s32 %s126, 1
    %s128 = scalar_select %p125, %s126, %s127
    %p131 = pneg %p125
    %p132 = scmp.eq.s32.totalorder %s11, 1
    %p133 = por %p131, %p132
    %p134 = scmp.ne.s32.totalorder %s126, %s129
    %p135 = scmp.eq.s32.totalorder %s11, 0
    %p136 = por %p134, %p135
    %p137 = scmp.ne.s32.totalorder %s126, %s129
    %p138 = scmp.eq.s32.totalorder %s16, 1
    %p139 = por %p137, %p138
    %p140 = scmp.ne.s32.totalorder %s129, %s130
    %p141 = scmp.eq.s32.totalorder %s16, 0
    %p142 = por %p140, %p141
    %p143 = scmp.ne.s32.totalorder %s129, %s130
    %p144 = scmp.eq.s32.totalorder %s17, 1
    %p145 = por %p143, %p144
    %p147 = scmp.ne.s32.totalorder %s130, %s146
    %p148 = scmp.eq.s32.totalorder %s17, 0
    %p149 = por %p147, %p148
    %s150 = ssub.s32 %s18, %s37
    %s151 = ssub.s32 %s19, %s33
    %s152 = sor.u32 %s150, %s151
    %p153 = scmp.eq.s32.totalorder %s152, 0
    %s155 = sadd.s32 %s154, 1
    %s156 = scalar_select %p153, %s154, %s155
    %p159 = pneg %p153
    %p160 = scmp.eq.s32.totalorder %s11, 1
    %p161 = por %p159, %p160
    %p162 = scmp.ne.s32.totalorder %s154, %s157
    %p163 = scmp.eq.s32.totalorder %s11, 0
    %p164 = por %p162, %p163
    %p165 = scmp.ne.s32.totalorder %s154, %s157
    %p166 = scmp.eq.s32.totalorder %s16, 1
    %p167 = por %p165, %p166
    %p168 = scmp.ne.s32.totalorder %s157, %s158
    %p169 = scmp.eq.s32.totalorder %s16, 0
    %p170 = por %p168, %p169
    %p171 = scmp.ne.s32.totalorder %s157, %s158
    %p172 = scmp.eq.s32.totalorder %s17, 1
    %p173 = por %p171, %p172
    %p175 = scmp.ne.s32.totalorder %s158, %s174
    %p176 = scmp.eq.s32.totalorder %s17, 0
    %p177 = por %p175, %p176
    %p178 = scmp.le.s32.totalorder 1, %s11
    %p179 = scmp.lt.s32.totalorder %s11, 3
    %p180 = pnand %p178, %p179
    %p181 = pneg %p180
    // Predicated region
    $region9: #{mixnet_encode.15} parent=5 // pred_check
      _
    $region10: #{mixnet_encode.15} parent=5 // pred_check_branch
      %183 = sbr.rel (%p180) target = $region12
    $region11: #{mixnet_encode.15} parent=5 // pred_region
      %s184 = ssub.s32 %s11, 1
      // Predicated region
      $region13: #{mixnet_encode.15} parent=11 // pred_check
        %p185 = pneg %p86
      $region14: #{mixnet_encode.15} parent=11 // pred_check_branch
        %187 = sbr.rel (%p185) target = $region16
      $region15: #{mixnet_encode.15} parent=11 // pred_region
        %s188 = smul.u32 64, %s23
        %p189 = scmp.lt.s32.totalorder %s188, 63
        %s190 = scalar_select %p189, %s188, 63
        %s191 = smul.addr %s190, 4
        %s192 = scalar_lea.vmem %s1, %s191
        %s193 = smul.u32 64, %s23
      $region16: #{mixnet_encode.15} parent=11 // pred_fallthru
        _
    $region12: #{mixnet_encode.15} parent=5 // pred_fallthru
      _
    %p194 = scmp.lt.s32.totalorder %s11, 2
    // Predicated region
    $region17: #{mixnet_encode.15} parent=5 // pred_check
      %p195 = pneg %p194
    $region18: #{mixnet_encode.15} parent=5 // pred_check_branch
      %197 = sbr.rel (%p195) target = $region20
    $region19: #{mixnet_encode.15} parent=5 // pred_region
      // Predicated region
      $region21: #{mixnet_encode.15} parent=19 // pred_check
        %p198 = pneg %p54
      $region22: #{mixnet_encode.15} parent=19 // pred_check_branch
        %200 = sbr.rel (%p198) target = $region24
      $region23: #{mixnet_encode.15} parent=19 // pred_region
        %s201 = smul.u32 2, %s19
        %s202 = smul.u32 4, %s20
        %p203 = scmp.lt.s32.totalorder %s18, 1
        %s204 = scalar_select %p203, %s18, 1
        %p205 = scmp.lt.s32.totalorder %s201, 1
        %s206 = scalar_select %p205, %s201, 1
        %p207 = scmp.lt.s32.totalorder %s202, 3
        %s208 = scalar_select %p207, %s202, 3
        %s209 = smul.addr %s206, 4
        %s210 = sadd.s32 %s208, %s209
        %s211 = smul.addr %s204, 8
        %s212 = sadd.s32 %s210, %s211
        %s213 = smul.addr %s212, 4
        %s214 = scalar_lea.vmem %s0, %s213
        %s215 = smul.u32 2, %s19
        %s216 = smul.u32 4, %s20
      $region24: #{mixnet_encode.15} parent=19 // pred_fallthru
        _
    $region20: #{mixnet_encode.15} parent=5 // pred_fallthru
      _
    %p217 = scmp.le.s32.totalorder 1, %s11
    %p218 = scmp.lt.s32.totalorder %s11, 3
    %p219 = pnand %p217, %p218
    %p220 = pneg %p219
    // Predicated region
    $region25: #{mixnet_encode.15} parent=5 // pred_check
      _
    $region26: #{mixnet_encode.15} parent=5 // pred_check_branch
      %222 = sbr.rel (%p219) target = $region28
    $region27: #{mixnet_encode.15} parent=5 // pred_region
      %s223 = ssub.s32 %s11, 1
      %s224 = smul.u32 2, %s22
      %s225 = smul.u32 4, %s23
      %p226 = scmp.lt.s32.totalorder %s21, 1
      %s227 = scalar_select %p226, %s21, 1
      %p228 = scmp.lt.s32.totalorder %s224, 1
      %s229 = scalar_select %p228, %s224, 1
      %p230 = scmp.lt.s32.totalorder %s225, 3
      %s231 = scalar_select %p230, %s225, 3
      %s232 = smul.addr %s229, 4
      %s233 = sadd.s32 %s231, %s232
      %s234 = smul.addr %s227, 8
      %s235 = sadd.s32 %s233, %s234
      %s236 = smul.addr %s235, 4
      %s237 = scalar_lea.vmem %s0, %s236
      %p238 = pneg %p60
      %p239 = pneg %p57
      %s240 = smul.u32 64, %s23
      %p241 = scmp.lt.s32.totalorder %s240, 63
      %s242 = scalar_select %p241, %s240, 63
      %s243 = smul.addr %s242, 4
      %s244 = scalar_lea.vmem %s1, %s243
      %p245 = pneg %p86
      %p246 = pneg %p83
      %p247 = pneg %p114
      %p248 = pneg %p111
      %s249 = smul.u32 2, %s22
      %p250 = scmp.lt.s32.totalorder %s21, 1
      %s251 = scalar_select %p250, %s21, 1
      %p252 = scmp.lt.s32.totalorder %s249, 1
      %s253 = scalar_select %p252, %s249, 1
      %s254 = smul.addr %s251, 2
      %s255 = sadd.s32 %s253, %s254
      %s256 = smul.addr %s255, 4
      %s257 = scalar_lea.vmem %s2, %s256
      %p258 = pneg %p142
      %p259 = pneg %p139
      %p260 = scmp.lt.s32.totalorder %s21, 1
      %s261 = scalar_select %p260, %s21, 1
      %p262 = scmp.lt.s32.totalorder %s22, 0
      %s263 = scalar_select %p262, %s22, 0
      %s264 = sadd.s32 %s263, %s261
      %s265 = smul.addr %s264, 8
      %s266 = scalar_lea.vmem %s3, %s265
      %p267 = pneg %p170
      %p268 = pneg %p167
      %p269 = scmp.lt.s32.totalorder %s21, 1
      %s270 = scalar_select %p269, %s21, 1
      %p271 = scmp.lt.s32.totalorder %s22, 0
      %s272 = scalar_select %p271, %s22, 0
      %s273 = sadd.s32 %s272, %s270
      %s274 = smul.addr %s273, 8
      %s275 = scalar_lea.vmem %s4, %s274
      %s276 = smul.u32 2, %s22
      %s277 = smul.u32 4, %s23
      %p278 = scmp.lt.s32.totalorder %s21, 1
      %s279 = scalar_select %p278, %s21, 1
      %p280 = scmp.lt.s32.totalorder %s276, 1
      %s281 = scalar_select %p280, %s276, 1
      %p282 = scmp.lt.s32.totalorder %s277, 3
      %s283 = scalar_select %p282, %s277, 3
      %s284 = smul.addr %s281, 4
      %s285 = sadd.s32 %s283, %s284
      %s286 = smul.addr %s279, 8
      %s287 = sadd.s32 %s285, %s286
      %s288 = smul.addr %s287, 4
      %s289 = scalar_lea.vmem %s0, %s288
      %s290 = smul.u32 2, %s22
      %s291 = smul.u32 4, %s23
      %s292 = smul.u32 64, %s23
      %p293 = scmp.lt.s32.totalorder %s292, 63
      %s294 = scalar_select %p293, %s292, 63
      %s295 = smul.addr %s294, 4
      %s296 = scalar_lea.vmem %s1, %s295
      %s297 = smul.u32 64, %s23
      %s298 = smul.u32 2, %s22
      %p299 = scmp.lt.s32.totalorder %s21, 1
      %s300 = scalar_select %p299, %s21, 1
      %p301 = scmp.lt.s32.totalorder %s298, 1
      %s302 = scalar_select %p301, %s298, 1
      %s303 = smul.addr %s300, 2
      %s304 = sadd.s32 %s302, %s303
      %s305 = smul.addr %s304, 4
      %s306 = scalar_lea.vmem %s2, %s305
      %s307 = smul.u32 2, %s22
      %p308 = scmp.lt.s32.totalorder %s21, 1
      %s309 = scalar_select %p308, %s21, 1
      %p310 = scmp.lt.s32.totalorder %s22, 0
      %s311 = scalar_select %p310, %s22, 0
      %s312 = sadd.s32 %s311, %s309
      %s313 = smul.addr %s312, 8
      %s314 = scalar_lea.vmem %s3, %s313
      %p315 = scmp.lt.s32.totalorder %s21, 1
      %s316 = scalar_select %p315, %s21, 1
      %p317 = scmp.lt.s32.totalorder %s22, 0
      %s318 = scalar_select %p317, %s22, 0
      %s319 = sadd.s32 %s318, %s316
      %s320 = smul.addr %s319, 8
      %s321 = scalar_lea.vmem %s4, %s320
      %p324 = scmp.eq.s32.totalorder %s23, 0
      // Predicated region
      $region29: #{mixnet_encode.15} parent=27 // pred_check
        %p325 = pneg %p324
      $region30: #{mixnet_encode.15} parent=27 // pred_check_branch
        %327 = sbr.rel (%p325) target = $region32
      $region31: #{mixnet_encode.15} parent=27 // pred_region
        %328 = vst [vmem:[#allocation2] sm:$0xff] 0.0
        %329 = vst [vmem:[#allocation2 + $0x8] sm:$0xff] 0.0
      $region32: #{mixnet_encode.15} parent=27 // pred_fallthru
        _
      %v330 = vld [vmem:[%s289] sm:$0xff]
      %v331 = vld [vmem:[%s289 + $0x8] sm:$0xff]
      %v332 = vld [vmem:[%s289 + $0x10] sm:$0xff]
      %v333 = vld [vmem:[%s289 + $0x18] sm:$0xff]
      %vm334 = vcmp.gt.bf16.partialorder %v330, 0
      %vm335 = vcmp.gt.bf16.partialorder %v331, 0
      %vm336 = vcmp.gt.bf16.partialorder %v332, 0
      %vm337 = vcmp.gt.bf16.partialorder %v333, 0
      %v338 = vmul.bf16 %v330, 1045249613
      %v339 = vmul.bf16 %v331, 1045249613
      %v340 = vmul.bf16 %v332, 1045249613
      %v341 = vmul.bf16 %v333, 1045249613
      %v342 = vsel %vm334, %v330, %v338
      %v343 = vsel %vm335, %v331, %v339
      %v344 = vsel %vm336, %v332, %v340
      %v345 = vsel %vm337, %v333, %v341
      %v346 = vld [vmem:[#allocation2] sm:$0xff]
      %v347 = vld [vmem:[#allocation2 + $0x8] sm:$0xff]
      %v348 = vld [vmem:[%s296] sm:$0xf]
      %v349 = vld [vmem:[%s296 + $0x4] sm:$0xf]
      %v350 = vld [vmem:[%s296 + $0x8] sm:$0xf]
      %v351 = vld [vmem:[%s296 + $0xc] sm:$0xf]
      %v352 = vld [vmem:[%s296 + $0x10] sm:$0xf]
      %v353 = vld [vmem:[%s296 + $0x14] sm:$0xf]
      %v354 = vld [vmem:[%s296 + $0x18] sm:$0xf]
      %v355 = vld [vmem:[%s296 + $0x1c] sm:$0xf]
      %v356 = vld [vmem:[%s296 + $0x20] sm:$0xf]
      %v357 = vld [vmem:[%s296 + $0x24] sm:$0xf]
      %v358 = vld [vmem:[%s296 + $0x28] sm:$0xf]
      %v359 = vld [vmem:[%s296 + $0x2c] sm:$0xf]
      %v360 = vld [vmem:[%s296 + $0x30] sm:$0xf]
      %v361 = vld [vmem:[%s296 + $0x34] sm:$0xf]
      %v362 = vld [vmem:[%s296 + $0x38] sm:$0xf]
      %v363 = vld [vmem:[%s296 + $0x3c] sm:$0xf]
      %v364 = vld [vmem:[%s296 + $0x40] sm:$0xf]
      %v365 = vld [vmem:[%s296 + $0x44] sm:$0xf]
      %v366 = vld [vmem:[%s296 + $0x48] sm:$0xf]
      %v367 = vld [vmem:[%s296 + $0x4c] sm:$0xf]
      %v368 = vld [vmem:[%s296 + $0x50] sm:$0xf]
      %v369 = vld [vmem:[%s296 + $0x54] sm:$0xf]
      %v370 = vld [vmem:[%s296 + $0x58] sm:$0xf]
      %v371 = vld [vmem:[%s296 + $0x5c] sm:$0xf]
      %v372 = vld [vmem:[%s296 + $0x60] sm:$0xf]
      %v373 = vld [vmem:[%s296 + $0x64] sm:$0xf]
      %v374 = vld [vmem:[%s296 + $0x68] sm:$0xf]
      %v375 = vld [vmem:[%s296 + $0x6c] sm:$0xf]
      %v376 = vld [vmem:[%s296 + $0x70] sm:$0xf]
      %v377 = vld [vmem:[%s296 + $0x74] sm:$0xf]
      %v378 = vld [vmem:[%s296 + $0x78] sm:$0xf]
      %v379 = vld [vmem:[%s296 + $0x7c] sm:$0xf]
      %v380 = vld [vmem:[%s296 + $0x80] sm:$0xf]
      %v381 = vld [vmem:[%s296 + $0x84] sm:$0xf]
      %v382 = vld [vmem:[%s296 + $0x88] sm:$0xf]
      %v383 = vld [vmem:[%s296 + $0x8c] sm:$0xf]
      %v384 = vld [vmem:[%s296 + $0x90] sm:$0xf]
      %v385 = vld [vmem:[%s296 + $0x94] sm:$0xf]
      %v386 = vld [vmem:[%s296 + $0x98] sm:$0xf]
      %v387 = vld [vmem:[%s296 + $0x9c] sm:$0xf]
      %v388 = vld [vmem:[%s296 + $0xa0] sm:$0xf]
      %v389 = vld [vmem:[%s296 + $0xa4] sm:$0xf]
      %v390 = vld [vmem:[%s296 + $0xa8] sm:$0xf]
      %v391 = vld [vmem:[%s296 + $0xac] sm:$0xf]
      %v392 = vld [vmem:[%s296 + $0xb0] sm:$0xf]
      %v393 = vld [vmem:[%s296 + $0xb4] sm:$0xf]
      %v394 = vld [vmem:[%s296 + $0xb8] sm:$0xf]
      %v395 = vld [vmem:[%s296 + $0xbc] sm:$0xf]
      %v396 = vld [vmem:[%s296 + $0xc0] sm:$0xf]
      %v397 = vld [vmem:[%s296 + $0xc4] sm:$0xf]
      %v398 = vld [vmem:[%s296 + $0xc8] sm:$0xf]
      %v399 = vld [vmem:[%s296 + $0xcc] sm:$0xf]
      %v400 = vld [vmem:[%s296 + $0xd0] sm:$0xf]
      %v401 = vld [vmem:[%s296 + $0xd4] sm:$0xf]
      %v402 = vld [vmem:[%s296 + $0xd8] sm:$0xf]
      %v403 = vld [vmem:[%s296 + $0xdc] sm:$0xf]
      %v404 = vld [vmem:[%s296 + $0xe0] sm:$0xf]
      %v405 = vld [vmem:[%s296 + $0xe4] sm:$0xf]
      %v406 = vld [vmem:[%s296 + $0xe8] sm:$0xf]
      %v407 = vld [vmem:[%s296 + $0xec] sm:$0xf]
      %v408 = vld [vmem:[%s296 + $0xf0] sm:$0xf]
      %v409 = vld [vmem:[%s296 + $0xf4] sm:$0xf]
      %v410 = vld [vmem:[%s296 + $0xf8] sm:$0xf]
      %v411 = vld [vmem:[%s296 + $0xfc] sm:$0xf]
      %v416 = vunpack.c.l.b16 %v342
      %v417 = vunpack.c.h.b16 %v342
      %v418 = vunpack.c.l.b16 %v343
      %v419 = vunpack.c.h.b16 %v343
      %v420 = vunpack.c.l.b16 %v344
      %v421 = vunpack.c.h.b16 %v344
      %v422 = vunpack.c.l.b16 %v345
      %v423 = vunpack.c.h.b16 %v345
      %v424 = vpack.c.b16 %v420, %v416
      %v425 = vpack.c.b16 %v421, %v417
      %v426 = vpack.c.b16 %v422, %v418
      %v427 = vpack.c.b16 %v423, %v419
      %v496 = vunpack.c.l.b16 %v348
      %v497 = vunpack.c.l.b16 %v349
      %v498 = vunpack.c.l.b16 %v350
      %v499 = vunpack.c.l.b16 %v351
      %v500 = vunpack.c.l.b16 %v352
      %v501 = vunpack.c.l.b16 %v353
      %v502 = vunpack.c.l.b16 %v354
      %v503 = vunpack.c.l.b16 %v355
      %v504 = vunpack.c.l.b16 %v356
      %v505 = vunpack.c.l.b16 %v357
      %v506 = vunpack.c.l.b16 %v358
      %v507 = vunpack.c.l.b16 %v359
      %v508 = vunpack.c.l.b16 %v360
      %v509 = vunpack.c.l.b16 %v361
      %v510 = vunpack.c.l.b16 %v362
      %v511 = vunpack.c.l.b16 %v363
      %v512 = vunpack.c.l.b16 %v364
      %v513 = vunpack.c.l.b16 %v365
      %v514 = vunpack.c.l.b16 %v366
      %v515 = vunpack.c.l.b16 %v367
      %v516 = vunpack.c.l.b16 %v368
      %v517 = vunpack.c.l.b16 %v369
      %v518 = vunpack.c.l.b16 %v370
      %v519 = vunpack.c.l.b16 %v371
      %v520 = vunpack.c.l.b16 %v372
      %v521 = vunpack.c.l.b16 %v373
      %v522 = vunpack.c.l.b16 %v374
      %v523 = vunpack.c.l.b16 %v375
      %v524 = vunpack.c.l.b16 %v376
      %v525 = vunpack.c.l.b16 %v377
      %v526 = vunpack.c.l.b16 %v378
      %v527 = vunpack.c.l.b16 %v379
      %v528 = vunpack.c.l.b16 %v380
      %v529 = vunpack.c.l.b16 %v381
      %v530 = vunpack.c.l.b16 %v382
      %v531 = vunpack.c.l.b16 %v383
      %v532 = vunpack.c.l.b16 %v384
      %v533 = vunpack.c.l.b16 %v385
      %v534 = vunpack.c.l.b16 %v386
      %v535 = vunpack.c.l.b16 %v387
      %v536 = vunpack.c.l.b16 %v388
      %v537 = vunpack.c.l.b16 %v389
      %v538 = vunpack.c.l.b16 %v390
      %v539 = vunpack.c.l.b16 %v391
      %v540 = vunpack.c.l.b16 %v392
      %v541 = vunpack.c.l.b16 %v393
      %v542 = vunpack.c.l.b16 %v394
      %v543 = vunpack.c.l.b16 %v395
      %v544 = vunpack.c.l.b16 %v396
      %v545 = vunpack.c.l.b16 %v397
      %v546 = vunpack.c.l.b16 %v398
      %v547 = vunpack.c.l.b16 %v399
      %v548 = vunpack.c.l.b16 %v400
      %v549 = vunpack.c.l.b16 %v401
      %v550 = vunpack.c.l.b16 %v402
      %v551 = vunpack.c.l.b16 %v403
      %v552 = vunpack.c.l.b16 %v404
      %v553 = vunpack.c.l.b16 %v405
      %v554 = vunpack.c.l.b16 %v406
      %v555 = vunpack.c.l.b16 %v407
      %v556 = vunpack.c.l.b16 %v408
      %v557 = vunpack.c.l.b16 %v409
      %v558 = vunpack.c.l.b16 %v410
      %v559 = vunpack.c.l.b16 %v411
      %v560 = vpack.c.b16 %v497, %v496
      %v561 = vpack.c.b16 %v499, %v498
      %v562 = vpack.c.b16 %v501, %v500
      %v563 = vpack.c.b16 %v503, %v502
      %v564 = vpack.c.b16 %v505, %v504
      %v565 = vpack.c.b16 %v507, %v506
      %v566 = vpack.c.b16 %v509, %v508
      %v567 = vpack.c.b16 %v511, %v510
      %v568 = vpack.c.b16 %v513, %v512
      %v569 = vpack.c.b16 %v515, %v514
      %v570 = vpack.c.b16 %v517, %v516
      %v571 = vpack.c.b16 %v519, %v518
      %v572 = vpack.c.b16 %v521, %v520
      %v573 = vpack.c.b16 %v523, %v522
      %v574 = vpack.c.b16 %v525, %v524
      %v575 = vpack.c.b16 %v527, %v526
      %v576 = vpack.c.b16 %v529, %v528
      %v577 = vpack.c.b16 %v531, %v530
      %v578 = vpack.c.b16 %v533, %v532
      %v579 = vpack.c.b16 %v535, %v534
      %v580 = vpack.c.b16 %v537, %v536
      %v581 = vpack.c.b16 %v539, %v538
      %v582 = vpack.c.b16 %v541, %v540
      %v583 = vpack.c.b16 %v543, %v542
      %v584 = vpack.c.b16 %v545, %v544
      %v585 = vpack.c.b16 %v547, %v546
      %v586 = vpack.c.b16 %v549, %v548
      %v587 = vpack.c.b16 %v551, %v550
      %v588 = vpack.c.b16 %v553, %v552
      %v589 = vpack.c.b16 %v555, %v554
      %v590 = vpack.c.b16 %v557, %v556
      %v591 = vpack.c.b16 %v559, %v558
      %624 = vmatprep.subr.bf16.mxu0 0
      %625 = vmatpush1.bf16.msra.mxu0 %v560
      %626 = vmatprep.subr.bf16.mxu0 0
      %627 = vmatpush1.bf16.msra.mxu0 %v561
      %628 = vmatprep.subr.bf16.mxu0 0
      %629 = vmatpush1.bf16.msra.mxu0 %v562
      %630 = vmatprep.subr.bf16.mxu0 0
      %631 = vmatpush1.bf16.msra.mxu0 %v563
      %632 = vmatprep.subr.bf16.mxu0 0
      %633 = vmatpush1.bf16.msra.mxu0 %v564
      %634 = vmatprep.subr.bf16.mxu0 0
      %635 = vmatpush1.bf16.msra.mxu0 %v565
      %636 = vmatprep.subr.bf16.mxu0 0
      %637 = vmatpush1.bf16.msra.mxu0 %v566
      %638 = vmatprep.subr.bf16.mxu0 0
      %639 = vmatpush1.bf16.msra.mxu0 %v567
      %640 = vmatprep.subr.bf16.mxu0 0
      %641 = vmatpush1.bf16.msra.mxu0 %v568
      %642 = vmatprep.subr.bf16.mxu0 0
      %643 = vmatpush1.bf16.msra.mxu0 %v569
      %644 = vmatprep.subr.bf16.mxu0 0
      %645 = vmatpush1.bf16.msra.mxu0 %v570
      %646 = vmatprep.subr.bf16.mxu0 0
      %647 = vmatpush1.bf16.msra.mxu0 %v571
      %648 = vmatprep.subr.bf16.mxu0 0
      %649 = vmatpush1.bf16.msra.mxu0 %v572
      %650 = vmatprep.subr.bf16.mxu0 0
      %651 = vmatpush1.bf16.msra.mxu0 %v573
      %652 = vmatprep.subr.bf16.mxu0 0
      %653 = vmatpush1.bf16.msra.mxu0 %v574
      %654 = vmatprep.subr.bf16.mxu0 0
      %655 = vmatpush1.bf16.msra.mxu0 %v575
      %656 = vmatprep.mubr.bf16.mxu0 %v425
      %657 = vmatmul.mubr.bf16.gmra.mrb[0].mxu0 %v424
      %v658 = vpop.f32.mrb[0].mxu0
      %v659 = vadd.f32 0.0, %v658
      %v660 = vpop.f32.mrb[0].mxu0
      %v661 = vpop.f32.mrb[0].mxu0
      %v662 = vadd.f32 0.0, %v661
      %v663 = vpop.f32.mrb[0].mxu0
      %664 = vdwg.mxu0
      %665 = vmatprep.subr.bf16.mxu0 0
      %666 = vmatpush1.bf16.msra.mxu0 %v576
      %667 = vmatprep.subr.bf16.mxu0 0
      %668 = vmatpush1.bf16.msra.mxu0 %v577
      %669 = vmatprep.subr.bf16.mxu0 0
      %670 = vmatpush1.bf16.msra.mxu0 %v578
      %671 = vmatprep.subr.bf16.mxu0 0
      %672 = vmatpush1.bf16.msra.mxu0 %v579
      %673 = vmatprep.subr.bf16.mxu0 0
      %674 = vmatpush1.bf16.msra.mxu0 %v580
      %675 = vmatprep.subr.bf16.mxu0 0
      %676 = vmatpush1.bf16.msra.mxu0 %v581
      %677 = vmatprep.subr.bf16.mxu0 0
      %678 = vmatpush1.bf16.msra.mxu0 %v582
      %679 = vmatprep.subr.bf16.mxu0 0
      %680 = vmatpush1.bf16.msra.mxu0 %v583
      %681 = vmatprep.subr.bf16.mxu0 0
      %682 = vmatpush1.bf16.msra.mxu0 %v584
      %683 = vmatprep.subr.bf16.mxu0 0
      %684 = vmatpush1.bf16.msra.mxu0 %v585
      %685 = vmatprep.subr.bf16.mxu0 0
      %686 = vmatpush1.bf16.msra.mxu0 %v586
      %687 = vmatprep.subr.bf16.mxu0 0
      %688 = vmatpush1.bf16.msra.mxu0 %v587
      %689 = vmatprep.subr.bf16.mxu0 0
      %690 = vmatpush1.bf16.msra.mxu0 %v588
      %691 = vmatprep.subr.bf16.mxu0 0
      %692 = vmatpush1.bf16.msra.mxu0 %v589
      %693 = vmatprep.subr.bf16.mxu0 0
      %694 = vmatpush1.bf16.msra.mxu0 %v590
      %695 = vmatprep.subr.bf16.mxu0 0
      %696 = vmatpush1.bf16.msra.mxu0 %v591
      %697 = vmatprep.mubr.bf16.mxu0 %v427
      %698 = vmatmul.mubr.bf16.gmra.mrb[0].mxu0 %v426
      %v699 = vpop.f32.mrb[0].mxu0
      %v700 = vadd.f32 %v659, %v699
      %v701 = vpop.f32.mrb[0].mxu0
      %v702 = vpop.f32.mrb[0].mxu0
      %v703 = vadd.f32 %v662, %v702
      %v704 = vpop.f32.mrb[0].mxu0
      %705 = vdwg.mxu0
      %v706 = vadd.f32 %v346, %v700
      %v707 = vadd.f32 %v347, %v703
      %708 = vst [vmem:[#allocation2] sm:$0xff] %v706
      %709 = vst [vmem:[#allocation2 + $0x8] sm:$0xff] %v707
      // Predicated region
      $region33: #{mixnet_encode.15} parent=27 // pred_check
        %p710 = pneg %p324
      $region34: #{mixnet_encode.15} parent=27 // pred_check_branch
        %712 = sbr.rel (%p710) target = $region36
      $region35: #{mixnet_encode.15} parent=27 // pred_region
        %v713 = vld [vmem:[#allocation2] sm:$0xff]
        %v714 = vld [vmem:[#allocation2 + $0x8] sm:$0xff]
        %v715 = vpack.c.bf16 %v714, %v713
        %v717 = vunpack.c.l.b16 %v715
        %v718 = vunpack.c.h.b16 %v715
        %v719 = vpack.c.b16 %v717, %v717
        %v720 = vpack.c.b16 %v718, %v718
        %723 = vst [vmem:[%s306] sm:$0xf] %v719
        %724 = vst [vmem:[%s306 + $0x4] sm:$0xf] %v720
        %v725 = vadd.f32 %v713, %v714
        %v726 = vrot.slane %v725, 4
        %v727 = vadd.f32 %v725, %v726
        %v728 = vrot.slane %v727, 2
        %v729 = vadd.f32 %v727, %v728
        %v730 = vrot.slane %v729, 1
        %v731 = vadd.f32 %v729, %v730
        %v732 = vmul.f32 %v713, %v713
        %v733 = vmul.f32 %v714, %v714
        %v734 = vadd.f32 %v732, %v733
        %v735 = vrot.slane %v734, 4
        %v736 = vadd.f32 %v734, %v735
        %v737 = vrot.slane %v736, 2
        %v738 = vadd.f32 %v736, %v737
        %v739 = vrot.slane %v738, 1
        %v740 = vadd.f32 %v738, %v739
        %741 = vst [vmem:[%s314] sm:$0xff] %v731
        %742 = vst [vmem:[%s321] sm:$0xff] %v740
      $region36: #{mixnet_encode.15} parent=27 // pred_fallthru
        _
      %s743 = smul.u32 2, %s22
      %p744 = scmp.lt.s32.totalorder %s21, 1
      %s745 = scalar_select %p744, %s21, 1
      %p746 = scmp.lt.s32.totalorder %s743, 1
      %s747 = scalar_select %p746, %s743, 1
      %s748 = smul.addr %s745, 2
      %s749 = sadd.s32 %s747, %s748
      %s750 = smul.addr %s749, 4
      %s751 = scalar_lea.vmem %s2, %s750
      %p752 = scmp.lt.s32.totalorder %s21, 1
      %s753 = scalar_select %p752, %s21, 1
      %p754 = scmp.lt.s32.totalorder %s22, 0
      %s755 = scalar_select %p754, %s22, 0
      %s756 = sadd.s32 %s755, %s753
      %s757 = smul.addr %s756, 8
      %s758 = scalar_lea.vmem %s3, %s757
      %p759 = scmp.lt.s32.totalorder %s21, 1
      %s760 = scalar_select %p759, %s21, 1
      %p761 = scmp.lt.s32.totalorder %s22, 0
      %s762 = scalar_select %p761, %s22, 0
      %s763 = sadd.s32 %s762, %s760
      %s764 = smul.addr %s763, 8
      %s765 = scalar_lea.vmem %s4, %s764
      // Predicated region
      $region37: #{mixnet_encode.15} parent=27 // pred_check
        %p766 = pneg %p111
      $region38: #{mixnet_encode.15} parent=27 // pred_check_branch
        %768 = sbr.rel (%p766) target = $region40
      $region39: #{mixnet_encode.15} parent=27 // pred_region
        %s769 = smul.u32 2, %s22
      $region40: #{mixnet_encode.15} parent=27 // pred_fallthru
        _
      // Predicated region
      $region41: #{mixnet_encode.15} parent=27 // pred_check
        %p770 = pneg %p139
      $region42: #{mixnet_encode.15} parent=27 // pred_check_branch
        %772 = sbr.rel (%p770) target = $region44
      $region43: #{mixnet_encode.15} parent=27 // pred_region
        _
      $region44: #{mixnet_encode.15} parent=27 // pred_fallthru
        _
      // Predicated region
      $region45: #{mixnet_encode.15} parent=27 // pred_check
        %p773 = pneg %p167
      $region46: #{mixnet_encode.15} parent=27 // pred_check_branch
        %775 = sbr.rel (%p773) target = $region48
      $region47: #{mixnet_encode.15} parent=27 // pred_region
        _
      $region48: #{mixnet_encode.15} parent=27 // pred_fallthru
        _
    $region28: #{mixnet_encode.15} parent=5 // pred_fallthru
      _
    %p776 = scmp.le.s32.totalorder 2, %s11
    // Predicated region
    $region49: #{mixnet_encode.15} parent=5 // pred_check
      %p777 = pneg %p776
    $region50: #{mixnet_encode.15} parent=5 // pred_check_branch
      %779 = sbr.rel (%p777) target = $region52
    $region51: #{mixnet_encode.15} parent=5 // pred_region
      %s780 = ssub.s32 %s11, 2
      // Predicated region
      $region53: #{mixnet_encode.15} parent=51 // pred_check
        %p781 = pneg %p117
      $region54: #{mixnet_encode.15} parent=51 // pred_check_branch
        %783 = sbr.rel (%p781) target = $region56
      $region55: #{mixnet_encode.15} parent=51 // pred_region
        %s784 = smul.u32 2, %s25
        %p785 = scmp.lt.s32.totalorder %s24, 1
        %s786 = scalar_select %p785, %s24, 1
        %p787 = scmp.lt.s32.totalorder %s784, 1
        %s788 = scalar_select %p787, %s784, 1
        %s789 = smul.addr %s786, 2
        %s790 = sadd.s32 %s788, %s789
        %s791 = smul.addr %s790, 4
        %s792 = scalar_lea.vmem %s2, %s791
      $region56: #{mixnet_encode.15} parent=51 // pred_fallthru
        _
      // Predicated region
      $region57: #{mixnet_encode.15} parent=51 // pred_check
        %p793 = pneg %p145
      $region58: #{mixnet_encode.15} parent=51 // pred_check_branch
        %795 = sbr.rel (%p793) target = $region60
      $region59: #{mixnet_encode.15} parent=51 // pred_region
        %p796 = scmp.lt.s32.totalorder %s24, 1
        %s797 = scalar_select %p796, %s24, 1
        %p798 = scmp.lt.s32.totalorder %s25, 0
        %s799 = scalar_select %p798, %s25, 0
        %s800 = sadd.s32 %s799, %s797
        %s801 = smul.addr %s800, 8
        %s802 = scalar_lea.vmem %s3, %s801
      $region60: #{mixnet_encode.15} parent=51 // pred_fallthru
        _
      // Predicated region
      $region61: #{mixnet_encode.15} parent=51 // pred_check
        %p803 = pneg %p173
      $region62: #{mixnet_encode.15} parent=51 // pred_check_branch
        %805 = sbr.rel (%p803) target = $region64
      $region63: #{mixnet_encode.15} parent=51 // pred_region
        %p806 = scmp.lt.s32.totalorder %s24, 1
        %s807 = scalar_select %p806, %s24, 1
        %p808 = scmp.lt.s32.totalorder %s25, 0
        %s809 = scalar_select %p808, %s25, 0
        %s810 = sadd.s32 %s809, %s807
        %s811 = smul.addr %s810, 8
        %s812 = scalar_lea.vmem %s4, %s811
      $region64: #{mixnet_encode.15} parent=51 // pred_fallthru
        _
    $region52: #{mixnet_encode.15} parent=5 // pred_fallthru
      _
  $region6: #{mixnet_encode.15} parent=0 // loop_footer
    %s15 = sadd.s32 1, %s11
  $region7: #{mixnet_encode.15} parent=0 // loop_footer_branch
    %10 = sbr.rel target = $region3
  $region8: #{mixnet_encode.15} parent=0 // loop_exit
    _

// kernel: mixnet_encode.16
$region0: #{mixnet_encode.16}
  #allocation0 [shape = 'u32[]', space=smem, size = 0x4, offset = 0x4, fixed_abs, tag = 'smem constant byte address 0x4 - core index']
  #allocation1 [shape = 'u32[144,128]{1,0:T(1,128)}', space=vmem, size = 0x12000, scoped, tag = 'internal scratch']
  %s0 = inlined_call_operand.vmem [shape: bf16[2,16,128], index: 0, kind: input, shape index: {}, may-alias: {0,3}]
  %s1 = inlined_call_operand.vmem [shape: f32[2,8,128], index: 1, kind: input, shape index: {}]
  %s2 = inlined_call_operand.vmem [shape: f32[2,8,128], index: 2, kind: input, shape index: {}]
  %s3 = inlined_call_operand.vmem [shape: bf16[2,16,128], index: 3, kind: output, shape index: {}, may-alias: {0,3}]
  %s4 = sld [smem:[#allocation0]]
  $region45: #{mixnet_encode.16} parent=0
    _
  %s6 = ssub.s32 1, %s4
  %s7 = scalar_select 0, %s6, %s4
  loop: start=0, step=1, limit=4
  $region2: #{mixnet_encode.16} parent=0 // loop_pre_header
    _
  $region3: #{mixnet_encode.16} parent=0 // loop_header
    %s9 = sphi 0, %s13
    %p10 = scmp.ge.s32.totalorder %s9, 4
    %s16 = sphi 0, %s28
    %s17 = sphi 0, %s24
    %s18 = sphi 0, %s16
    %s19 = sphi 0, %s17
    %s20 = sphi 0, %s18
    %s21 = sphi 0, %s19
    %s33 = sphi 0, %s35
    %s36 = sphi 0, %s33
    %s37 = sphi 0, %s36
    %s53 = sphi 0, %s37
    %s59 = sphi 0, %s61
    %s62 = sphi 0, %s59
    %s63 = sphi 0, %s62
    %s79 = sphi 0, %s63
    %s85 = sphi 0, %s87
    %s88 = sphi 0, %s85
    %s89 = sphi 0, %s88
    %s105 = sphi 0, %s89
    %s113 = sphi 0, %s115
    %s116 = sphi 0, %s113
    %s117 = sphi 0, %s116
    %s133 = sphi 0, %s117
  $region4: #{mixnet_encode.16} parent=0 // loop_header_branch
    %12 = sbr.rel (%p10) target = $region8
  $region5: #{mixnet_encode.16} parent=0 // loop_body
    %s14 = ssub.s32 %s9, 1
    %s15 = ssub.s32 %s9, 2
    %s22 = sadd.s32 1, %s17
    %p23 = scmp.ge.s32.totalorder %s22, 1
    %s24 = scalar_select %p23, 0, %s22
    %s25 = sadd.s32 1, %s16
    %s26 = scalar_select %p23, %s25, %s16
    %p27 = scmp.ge.s32.totalorder %s26, 2
    %s28 = scalar_select %p27, 0, %s26
    %s29 = ssub.s32 %s16, %s28
    %s30 = ssub.s32 %s17, %s24
    %s31 = sor.u32 %s29, %s30
    %p32 = scmp.eq.s32.totalorder %s31, 0
    %s34 = sadd.s32 %s33, 1
    %s35 = scalar_select %p32, %s33, %s34
    %p38 = pneg %p32
    %p39 = scmp.eq.s32.totalorder %s9, 1
    %p40 = por %p38, %p39
    %p41 = scmp.ne.s32.totalorder %s33, %s36
    %p42 = scmp.eq.s32.totalorder %s9, 0
    %p43 = por %p41, %p42
    %p44 = scmp.ne.s32.totalorder %s33, %s36
    %p45 = scmp.eq.s32.totalorder %s14, 1
    %p46 = por %p44, %p45
    %p47 = scmp.ne.s32.totalorder %s36, %s37
    %p48 = scmp.eq.s32.totalorder %s14, 0
    %p49 = por %p47, %p48
    %p50 = scmp.ne.s32.totalorder %s36, %s37
    %p51 = scmp.eq.s32.totalorder %s15, 1
    %p52 = por %p50, %p51
    %p54 = scmp.ne.s32.totalorder %s37, %s53
    %p55 = scmp.eq.s32.totalorder %s15, 0
    %p56 = por %p54, %p55
    %s57 = ssub.s32 %s16, %s28
    %p58 = scmp.eq.s32.totalorder %s57, 0
    %s60 = sadd.s32 %s59, 1
    %s61 = scalar_select %p58, %s59, %s60
    %p64 = pneg %p58
    %p65 = scmp.eq.s32.totalorder %s9, 1
    %p66 = por %p64, %p65
    %p67 = scmp.ne.s32.totalorder %s59, %s62
    %p68 = scmp.eq.s32.totalorder %s9, 0
    %p69 = por %p67, %p68
    %p70 = scmp.ne.s32.totalorder %s59, %s62
    %p71 = scmp.eq.s32.totalorder %s14, 1
    %p72 = por %p70, %p71
    %p73 = scmp.ne.s32.totalorder %s62, %s63
    %p74 = scmp.eq.s32.totalorder %s14, 0
    %p75 = por %p73, %p74
    %p76 = scmp.ne.s32.totalorder %s62, %s63
    %p77 = scmp.eq.s32.totalorder %s15, 1
    %p78 = por %p76, %p77
    %p80 = scmp.ne.s32.totalorder %s63, %s79
    %p81 = scmp.eq.s32.totalorder %s15, 0
    %p82 = por %p80, %p81
    %s83 = ssub.s32 %s16, %s28
    %p84 = scmp.eq.s32.totalorder %s83, 0
    %s86 = sadd.s32 %s85, 1
    %s87 = scalar_select %p84, %s85, %s86
    %p90 = pneg %p84
    %p91 = scmp.eq.s32.totalorder %s9, 1
    %p92 = por %p90, %p91
    %p93 = scmp.ne.s32.totalorder %s85, %s88
    %p94 = scmp.eq.s32.totalorder %s9, 0
    %p95 = por %p93, %p94
    %p96 = scmp.ne.s32.totalorder %s85, %s88
    %p97 = scmp.eq.s32.totalorder %s14, 1
    %p98 = por %p96, %p97
    %p99 = scmp.ne.s32.totalorder %s88, %s89
    %p100 = scmp.eq.s32.totalorder %s14, 0
    %p101 = por %p99, %p100
    %p102 = scmp.ne.s32.totalorder %s88, %s89
    %p103 = scmp.eq.s32.totalorder %s15, 1
    %p104 = por %p102, %p103
    %p106 = scmp.ne.s32.totalorder %s89, %s105
    %p107 = scmp.eq.s32.totalorder %s15, 0
    %p108 = por %p106, %p107
    %s109 = ssub.s32 %s16, %s28
    %s110 = ssub.s32 %s17, %s24
    %s111 = sor.u32 %s109, %s110
    %p112 = scmp.eq.s32.totalorder %s111, 0
    %s114 = sadd.s32 %s113, 1
    %s115 = scalar_select %p112, %s113, %s114
    %p118 = pneg %p112
    %p119 = scmp.eq.s32.totalorder %s9, 1
    %p120 = por %p118, %p119
    %p121 = scmp.ne.s32.totalorder %s113, %s116
    %p122 = scmp.eq.s32.totalorder %s9, 0
    %p123 = por %p121, %p122
    %p124 = scmp.ne.s32.totalorder %s113, %s116
    %p125 = scmp.eq.s32.totalorder %s14, 1
    %p126 = por %p124, %p125
    %p127 = scmp.ne.s32.totalorder %s116, %s117
    %p128 = scmp.eq.s32.totalorder %s14, 0
    %p129 = por %p127, %p128
    %p130 = scmp.ne.s32.totalorder %s116, %s117
    %p131 = scmp.eq.s32.totalorder %s15, 1
    %p132 = por %p130, %p131
    %p134 = scmp.ne.s32.totalorder %s117, %s133
    %p135 = scmp.eq.s32.totalorder %s15, 0
    %p136 = por %p134, %p135
    %p137 = scmp.le.s32.totalorder 1, %s9
    %p138 = scmp.lt.s32.totalorder %s9, 3
    %p139 = pnand %p137, %p138
    %p140 = pneg %p139
    // Predicated region
    $region9: #{mixnet_encode.16} parent=5 // pred_check
      _
    $region10: #{mixnet_encode.16} parent=5 // pred_check_branch
      %142 = sbr.rel (%p139) target = $region12
    $region11: #{mixnet_encode.16} parent=5 // pred_region
      %s143 = ssub.s32 %s9, 1
    $region12: #{mixnet_encode.16} parent=5 // pred_fallthru
      _
    %p144 = scmp.lt.s32.totalorder %s9, 2
    // Predicated region
    $region13: #{mixnet_encode.16} parent=5 // pred_check
      %p145 = pneg %p144
    $region14: #{mixnet_encode.16} parent=5 // pred_check_branch
      %147 = sbr.rel (%p145) target = $region16
    $region15: #{mixnet_encode.16} parent=5 // pred_region
      // Predicated region
      $region17: #{mixnet_encode.16} parent=15 // pred_check
        %p148 = pneg %p43
      $region18: #{mixnet_encode.16} parent=15 // pred_check_branch
        %150 = sbr.rel (%p148) target = $region20
      $region19: #{mixnet_encode.16} parent=15 // pred_region
        %s151 = smul.u32 2, %s17
        %p152 = scmp.lt.s32.totalorder %s16, 1
        %s153 = scalar_select %p152, %s16, 1
        %p154 = scmp.lt.s32.totalorder %s151, 1
        %s155 = scalar_select %p154, %s151, 1
        %s156 = smul.addr %s153, 2
        %s157 = sadd.s32 %s155, %s156
        %s158 = smul.addr %s157, 4
        %s159 = scalar_lea.vmem %s0, %s158
        %s160 = smul.u32 2, %s17
      $region20: #{mixnet_encode.16} parent=15 // pred_fallthru
        _
      // Predicated region
      $region21: #{mixnet_encode.16} parent=15 // pred_check
        %p161 = pneg %p69
      $region22: #{mixnet_encode.16} parent=15 // pred_check_branch
        %163 = sbr.rel (%p161) target = $region24
      $region23: #{mixnet_encode.16} parent=15 // pred_region
        %p164 = scmp.lt.s32.totalorder %s16, 1
        %s165 = scalar_select %p164, %s16, 1
        %s166 = smul.addr %s165, 8
        %s167 = scalar_lea.vmem %s1, %s166
      $region24: #{mixnet_encode.16} parent=15 // pred_fallthru
        _
      // Predicated region
      $region25: #{mixnet_encode.16} parent=15 // pred_check
        %p168 = pneg %p95
      $region26: #{mixnet_encode.16} parent=15 // pred_check_branch
        %170 = sbr.rel (%p168) target = $region28
      $region27: #{mixnet_encode.16} parent=15 // pred_region
        %p171 = scmp.lt.s32.totalorder %s16, 1
        %s172 = scalar_select %p171, %s16, 1
        %s173 = smul.addr %s172, 8
        %s174 = scalar_lea.vmem %s2, %s173
      $region28: #{mixnet_encode.16} parent=15 // pred_fallthru
        _
    $region16: #{mixnet_encode.16} parent=5 // pred_fallthru
      _
    %p175 = scmp.le.s32.totalorder 1, %s9
    %p176 = scmp.lt.s32.totalorder %s9, 3
    %p177 = pnand %p175, %p176
    %p178 = pneg %p177
    // Predicated region
    $region29: #{mixnet_encode.16} parent=5 // pred_check
      _
    $region30: #{mixnet_encode.16} parent=5 // pred_check_branch
      %180 = sbr.rel (%p177) target = $region32
    $region31: #{mixnet_encode.16} parent=5 // pred_region
      %s181 = ssub.s32 %s9, 1
      %s182 = smul.u32 2, %s19
      %p183 = scmp.lt.s32.totalorder %s18, 1
      %s184 = scalar_select %p183, %s18, 1
      %p185 = scmp.lt.s32.totalorder %s182, 1
      %s186 = scalar_select %p185, %s182, 1
      %s187 = smul.addr %s184, 2
      %s188 = sadd.s32 %s186, %s187
      %s189 = smul.addr %s188, 4
      %s190 = scalar_lea.vmem %s0, %s189
      %p191 = pneg %p49
      %p192 = pneg %p46
      %p193 = scmp.lt.s32.totalorder %s18, 1
      %s194 = scalar_select %p193, %s18, 1
      %s195 = smul.addr %s194, 8
      %s196 = scalar_lea.vmem %s1, %s195
      %p197 = pneg %p75
      %p198 = pneg %p72
      %p199 = scmp.lt.s32.totalorder %s18, 1
      %s200 = scalar_select %p199, %s18, 1
      %s201 = smul.addr %s200, 8
      %s202 = scalar_lea.vmem %s2, %s201
      %p203 = pneg %p101
      %p204 = pneg %p98
      %p205 = pneg %p129
      %p206 = pneg %p126
      %s207 = smul.u32 2, %s19
      %p208 = scmp.lt.s32.totalorder %s18, 1
      %s209 = scalar_select %p208, %s18, 1
      %p210 = scmp.lt.s32.totalorder %s207, 1
      %s211 = scalar_select %p210, %s207, 1
      %s212 = smul.addr %s209, 2
      %s213 = sadd.s32 %s211, %s212
      %s214 = smul.addr %s213, 4
      %s215 = scalar_lea.vmem %s3, %s214
      %s216 = smul.u32 2, %s19
      %p217 = scmp.lt.s32.totalorder %s18, 1
      %s218 = scalar_select %p217, %s18, 1
      %p219 = scmp.lt.s32.totalorder %s216, 1
      %s220 = scalar_select %p219, %s216, 1
      %s221 = smul.addr %s218, 2
      %s222 = sadd.s32 %s220, %s221
      %s223 = smul.addr %s222, 4
      %s224 = scalar_lea.vmem %s0, %s223
      %s225 = smul.u32 2, %s19
      %p226 = scmp.lt.s32.totalorder %s18, 1
      %s227 = scalar_select %p226, %s18, 1
      %s228 = smul.addr %s227, 8
      %s229 = scalar_lea.vmem %s1, %s228
      %p230 = scmp.lt.s32.totalorder %s18, 1
      %s231 = scalar_select %p230, %s18, 1
      %s232 = smul.addr %s231, 8
      %s233 = scalar_lea.vmem %s2, %s232
      %s234 = smul.u32 2, %s19
      %p235 = scmp.lt.s32.totalorder %s18, 1
      %s236 = scalar_select %p235, %s18, 1
      %p237 = scmp.lt.s32.totalorder %s234, 1
      %s238 = scalar_select %p237, %s234, 1
      %s239 = smul.addr %s236, 2
      %s240 = sadd.s32 %s238, %s239
      %s241 = smul.addr %s240, 4
      %s242 = scalar_lea.vmem %s3, %s241
      %s243 = smul.u32 2, %s19
      %v244 = vld [vmem:[%s229] sm:$0xff]
      %v245 = vld [vmem:[%s233] sm:$0xff]
      %v246 = vld [vmem:[%s224] sm:$0xf]
      %v247 = vld [vmem:[%s224 + $0x4] sm:$0xf]
      %v248 = vunpack.c.l.bf16 %v246
      %v249 = vunpack.c.l.bf16 %v247
      %v250 = vlaneseq
      %v251 = vshrl.u32 %v250, 7
      %v252 = vsub.s32 0, %v251
      %v253 = vrot.slane %v244, %v252
      %v254 = vmul.f32 %v248, %v253
      %v255 = vmul.f32 %v249, %v253
      %v256 = vlaneseq
      %v257 = vshrl.u32 %v256, 7
      %v258 = vsub.s32 0, %v257
      %v259 = vrot.slane %v245, %v258
      %v260 = vadd.f32 %v254, %v259
      %v261 = vadd.f32 %v255, %v259
      %v262 = vpack.c.bf16 %v261, %v260
      %v264 = vunpack.c.l.b16 %v262
      %v265 = vunpack.c.h.b16 %v262
      %v266 = vpack.c.b16 %v264, %v264
      %v267 = vpack.c.b16 %v265, %v265
      %270 = vst [vmem:[%s242] sm:$0xf] %v266
      %271 = vst [vmem:[%s242 + $0x4] sm:$0xf] %v267
      %s272 = smul.u32 2, %s19
      %p273 = scmp.lt.s32.totalorder %s18, 1
      %s274 = scalar_select %p273, %s18, 1
      %p275 = scmp.lt.s32.totalorder %s272, 1
      %s276 = scalar_select %p275, %s272, 1
      %s277 = smul.addr %s274, 2
      %s278 = sadd.s32 %s276, %s277
      %s279 = smul.addr %s278, 4
      %s280 = scalar_lea.vmem %s3, %s279
      // Predicated region
      $region33: #{mixnet_encode.16} parent=31 // pred_check
        %p281 = pneg %p126
      $region34: #{mixnet_encode.16} parent=31 // pred_check_branch
        %283 = sbr.rel (%p281) target = $region36
      $region35: #{mixnet_encode.16} parent=31 // pred_region
        %s284 = smul.u32 2, %s19
      $region36: #{mixnet_encode.16} parent=31 // pred_fallthru
        _
    $region32: #{mixnet_encode.16} parent=5 // pred_fallthru
      _
    %p285 = scmp.le.s32.totalorder 2, %s9
    // Predicated region
    $region37: #{mixnet_encode.16} parent=5 // pred_check
      %p286 = pneg %p285
    $region38: #{mixnet_encode.16} parent=5 // pred_check_branch
      %288 = sbr.rel (%p286) target = $region40
    $region39: #{mixnet_encode.16} parent=5 // pred_region
      %s289 = ssub.s32 %s9, 2
      // Predicated region
      $region41: #{mixnet_encode.16} parent=39 // pred_check
        %p290 = pneg %p132
      $region42: #{mixnet_encode.16} parent=39 // pred_check_branch
        %292 = sbr.rel (%p290) target = $region44
      $region43: #{mixnet_encode.16} parent=39 // pred_region
        %s293 = smul.u32 2, %s21
        %p294 = scmp.lt.s32.totalorder %s20, 1
        %s295 = scalar_select %p294, %s20, 1
        %p296 = scmp.lt.s32.totalorder %s293, 1
        %s297 = scalar_select %p296, %s293, 1
        %s298 = smul.addr %s295, 2
        %s299 = sadd.s32 %s297, %s298
        %s300 = smul.addr %s299, 4
        %s301 = scalar_lea.vmem %s3, %s300
      $region44: #{mixnet_encode.16} parent=39 // pred_fallthru
        _
    $region40: #{mixnet_encode.16} parent=5 // pred_fallthru
      _
  $region6: #{mixnet_encode.16} parent=0 // loop_footer
    %s13 = sadd.s32 1, %s9
  $region7: #{mixnet_encode.16} parent=0 // loop_footer_branch
    %8 = sbr.rel target = $region3
  $region8: #{mixnet_encode.16} parent=0 // loop_exit
    _

// kernel: mixnet_encode.17
$region0: #{mixnet_encode.17}
  #allocation0 [shape = 'u32[]', space=smem, size = 0x4, offset = 0x4, fixed_abs, tag = 'smem constant byte address 0x4 - core index']
  #allocation1 [shape = 'u32[144,128]{1,0:T(1,128)}', space=vmem, size = 0x12000, scoped, tag = 'internal scratch']
  #allocation2 [shape = 'f32[16,128]{1,0:T(8,128)}', space=vmem, size = 0x2000, scoped, tag = 'scratch operand']
  %s0 = inlined_call_operand.vmem [shape: bf16[2,16,1024], index: 0, kind: input, shape index: {}]
  %s1 = inlined_call_operand.vmem [shape: bf16[1024,128], index: 1, kind: input, shape index: {}]
  %s2 = inlined_call_operand.vmem [shape: bf16[2,16,128], index: 2, kind: output, shape index: {0}]
  %s3 = inlined_call_operand.hbm [shape: f32[2,8,128], index: 3, kind: output, shape index: {1}]
  %s4 = inlined_call_operand.hbm [shape: f32[2,8,128], index: 4, kind: output, shape index: {2}]
  %5 = xla_tuple %s2, %s3, %s4
  %s6 = sld [smem:[#allocation0]]
  $region65: #{mixnet_encode.17} parent=0
    _
  %s8 = ssub.s32 1, %s6
  %s9 = scalar_select 0, %s8, %s6
  $region1: #{mixnet_encode.17} parent=0
    #allocation3 [shape = 'u8[8192]{0}', space=vmem, size = 0x2000, scoped, tag = 'output window, operand 1']
    #allocation4 [shape = 's32[2]{0}', space=sflag, size = 0x8, scoped, tag = 'scoped memory for mixnet_encode.17']
    #allocation5 [shape = 'u8[8192]{0}', space=vmem, size = 0x2000, scoped, tag = 'output window, operand 2']
    #allocation6 [shape = 's32[2]{0}', space=sflag, size = 0x8, scoped, tag = 'scoped memory for mixnet_encode.17']
    %10 = vsyncpa [#allocation4], 0
    %s11 = scalar_lea.sflag [#allocation4], 1
    %12 = vsyncpa %s11, 0
    %13 = vsyncpa [#allocation6], 0
    %s14 = scalar_lea.sflag [#allocation6], 1
    %15 = vsyncpa %s14, 0
    loop: start=0, step=1, limit=4
    $region2: #{mixnet_encode.17} parent=1 // loop_pre_header
      _
    $region3: #{mixnet_encode.17} parent=1 // loop_header
      %s17 = sphi 0, %s21
      %p18 = scmp.ge.s32.totalorder %s17, 4
      %s24 = sphi 0, %s43
      %s25 = sphi 0, %s39
      %s26 = sphi 0, %s35
      %s27 = sphi 0, %s24
      %s28 = sphi 0, %s25
      %s29 = sphi 0, %s26
      %s30 = sphi 0, %s27
      %s31 = sphi 0, %s28
      %s32 = sphi 0, %s29
      %s50 = sphi 0, %s52
      %s53 = sphi 0, %s50
      %s54 = sphi 0, %s53
      %s70 = sphi 0, %s54
      %s76 = sphi 0, %s78
      %s79 = sphi 0, %s76
      %s80 = sphi 0, %s79
      %s96 = sphi 0, %s80
      %s104 = sphi 0, %s106
      %s107 = sphi 0, %s104
      %s108 = sphi 0, %s107
      %s124 = sphi 0, %s108
      %s132 = sphi 0, %s134
      %s135 = sphi 0, %s132
      %s136 = sphi 0, %s135
      %s152 = sphi 0, %s136
      %s160 = sphi 0, %s162
      %s163 = sphi 0, %s160
      %s164 = sphi 0, %s163
      %s180 = sphi 0, %s164
    $region4: #{mixnet_encode.17} parent=1 // loop_header_branch
      %20 = sbr.rel (%p18) target = $region8
    $region5: #{mixnet_encode.17} parent=1 // loop_body
      %s22 = ssub.s32 %s17, 1
      %s23 = ssub.s32 %s17, 2
      %s33 = sadd.s32 1, %s26
      %p34 = scmp.ge.s32.totalorder %s33, 1
      %s35 = scalar_select %p34, 0, %s33
      %s36 = sadd.s32 1, %s25
      %s37 = scalar_select %p34, %s36, %s25
      %p38 = scmp.ge.s32.totalorder %s37, 1
      %s39 = scalar_select %p38, 0, %s37
      %s40 = sadd.s32 1, %s24
      %s41 = scalar_select %p38, %s40, %s24
      %p42 = scmp.ge.s32.totalorder %s41, 2
      %s43 = scalar_select %p42, 0, %s41
      %s44 = ssub.s32 %s24, %s43
      %s45 = ssub.s32 %s25, %s39
      %s46 = sor.u32 %s44, %s45
      %s47 = ssub.s32 %s26, %s35
      %s48 = sor.u32 %s46, %s47
      %p49 = scmp.eq.s32.totalorder %s48, 0
      %s51 = sadd.s32 %s50, 1
      %s52 = scalar_select %p49, %s50, %s51
      %p55 = pneg %p49
      %p56 = scmp.eq.s32.totalorder %s17, 1
      %p57 = por %p55, %p56
      %p58 = scmp.ne.s32.totalorder %s50, %s53
      %p59 = scmp.eq.s32.totalorder %s17, 0
      %p60 = por %p58, %p59
      %p61 = scmp.ne.s32.totalorder %s50, %s53
      %p62 = scmp.eq.s32.totalorder %s22, 1
      %p63 = por %p61, %p62
      %p64 = scmp.ne.s32.totalorder %s53, %s54
      %p65 = scmp.eq.s32.totalorder %s22, 0
      %p66 = por %p64, %p65
      %p67 = scmp.ne.s32.totalorder %s53, %s54
      %p68 = scmp.eq.s32.totalorder %s23, 1
      %p69 = por %p67, %p68
      %p71 = scmp.ne.s32.totalorder %s54, %s70
      %p72 = scmp.eq.s32.totalorder %s23, 0
      %p73 = por %p71, %p72
      %s74 = ssub.s32 %s26, %s35
      %p75 = scmp.eq.s32.totalorder %s74, 0
      %s77 = sadd.s32 %s76, 1
      %s78 = scalar_select %p75, %s76, %s77
      %p81 = pneg %p75
      %p82 = scmp.eq.s32.totalorder %s17, 1
      %p83 = por %p81, %p82
      %p84 = scmp.ne.s32.totalorder %s76, %s79
      %p85 = scmp.eq.s32.totalorder %s17, 0
      %p86 = por %p84, %p85
      %p87 = scmp.ne.s32.totalorder %s76, %s79
      %p88 = scmp.eq.s32.totalorder %s22, 1
      %p89 = por %p87, %p88
      %p90 = scmp.ne.s32.totalorder %s79, %s80
      %p91 = scmp.eq.s32.totalorder %s22, 0
      %p92 = por %p90, %p91
      %p93 = scmp.ne.s32.totalorder %s79, %s80
      %p94 = scmp.eq.s32.totalorder %s23, 1
      %p95 = por %p93, %p94
      %p97 = scmp.ne.s32.totalorder %s80, %s96
      %p98 = scmp.eq.s32.totalorder %s23, 0
      %p99 = por %p97, %p98
      %s100 = ssub.s32 %s24, %s43
      %s101 = ssub.s32 %s25, %s39
      %s102 = sor.u32 %s100, %s101
      %p103 = scmp.eq.s32.totalorder %s102, 0
      %s105 = sadd.s32 %s104, 1
      %s106 = scalar_select %p103, %s104, %s105
      %p109 = pneg %p103
      %p110 = scmp.eq.s32.totalorder %s17, 1
      %p111 = por %p109, %p110
      %p112 = scmp.ne.s32.totalorder %s104, %s107
      %p113 = scmp.eq.s32.totalorder %s17, 0
      %p114 = por %p112, %p113
      %p115 = scmp.ne.s32.totalorder %s104, %s107
      %p116 = scmp.eq.s32.totalorder %s22, 1
      %p117 = por %p115, %p116
      %p118 = scmp.ne.s32.totalorder %s107, %s108
      %p119 = scmp.eq.s32.totalorder %s22, 0
      %p120 = por %p118, %p119
      %p121 = scmp.ne.s32.totalorder %s107, %s108
      %p122 = scmp.eq.s32.totalorder %s23, 1
      %p123 = por %p121, %p122
      %p125 = scmp.ne.s32.totalorder %s108, %s124
      %p126 = scmp.eq.s32.totalorder %s23, 0
      %p127 = por %p125, %p126
      %s128 = ssub.s32 %s24, %s43
      %s129 = ssub.s32 %s25, %s39
      %s130 = sor.u32 %s128, %s129
      %p131 = scmp.eq.s32.totalorder %s130, 0
      %s133 = sadd.s32 %s132, 1
      %s134 = scalar_select %p131, %s132, %s133
      %p137 = pneg %p131
      %p138 = scmp.eq.s32.totalorder %s17, 1
      %p139 = por %p137, %p138
      %p140 = scmp.ne.s32.totalorder %s132, %s135
      %p141 = scmp.eq.s32.totalorder %s17, 0
      %p142 = por %p140, %p141
      %p143 = scmp.ne.s32.totalorder %s132, %s135
      %p144 = scmp.eq.s32.totalorder %s22, 1
      %p145 = por %p143, %p144
      %p146 = scmp.ne.s32.totalorder %s135, %s136
      %p147 = scmp.eq.s32.totalorder %s22, 0
      %p148 = por %p146, %p147
      %p149 = scmp.ne.s32.totalorder %s135, %s136
      %p150 = scmp.eq.s32.totalorder %s23, 1
      %p151 = por %p149, %p150
      %p153 = scmp.ne.s32.totalorder %s136, %s152
      %p154 = scmp.eq.s32.totalorder %s23, 0
      %p155 = por %p153, %p154
      %s156 = ssub.s32 %s24, %s43
      %s157 = ssub.s32 %s25, %s39
      %s158 = sor.u32 %s156, %s157
      %p159 = scmp.eq.s32.totalorder %s158, 0
      %s161 = sadd.s32 %s160, 1
      %s162 = scalar_select %p159, %s160, %s161
      %p165 = pneg %p159
      %p166 = scmp.eq.s32.totalorder %s17, 1
      %p167 = por %p165, %p166
      %p168 = scmp.ne.s32.totalorder %s160, %s163
      %p169 = scmp.eq.s32.totalorder %s17, 0
      %p170 = por %p168, %p169
      %p171 = scmp.ne.s32.totalorder %s160, %s163
      %p172 = scmp.eq.s32.totalorder %s22, 1
      %p173 = por %p171, %p172
      %p174 = scmp.ne.s32.totalorder %s163, %s164
      %p175 = scmp.eq.s32.totalorder %s22, 0
      %p176 = por %p174, %p175
      %p177 = scmp.ne.s32.totalorder %s163, %s164
      %p178 = scmp.eq.s32.totalorder %s23, 1
      %p179 = por %p177, %p178
      %p181 = scmp.ne.s32.totalorder %s164, %s180
      %p182 = scmp.eq.s32.totalorder %s23, 0
      %p183 = por %p181, %p182
      %p184 = scmp.le.s32.totalorder 1, %s17
      %p185 = scmp.lt.s32.totalorder %s17, 3
      %p186 = pnand %p184, %p185
      %p187 = pneg %p186
      // Predicated region
      $region9: #{mixnet_encode.17} parent=5 // pred_check
        _
      $region10: #{mixnet_encode.17} parent=5 // pred_check_branch
        %189 = sbr.rel (%p186) target = $region12
      $region11: #{mixnet_encode.17} parent=5 // pred_region
        %s190 = ssub.s32 %s17, 1
        // Predicated region
        $region13: #{mixnet_encode.17} parent=11 // pred_check
          %p191 = pneg %p92
        $region14: #{mixnet_encode.17} parent=11 // pred_check_branch
          %193 = sbr.rel (%p191) target = $region16
        $region15: #{mixnet_encode.17} parent=11 // pred_region
          %s194 = smul.u32 128, %s29
          %p195 = scmp.lt.s32.totalorder %s194, 127
          %s196 = scalar_select %p195, %s194, 127
          %s197 = smul.addr %s196, 4
          %s198 = scalar_lea.vmem %s1, %s197
          %s199 = smul.u32 128, %s29
        $region16: #{mixnet_encode.17} parent=11 // pred_fallthru
          _
      $region12: #{mixnet_encode.17} parent=5 // pred_fallthru
        _
      %p200 = scmp.lt.s32.totalorder %s17, 2
      // Predicated region
      $region17: #{mixnet_encode.17} parent=5 // pred_check
        %p201 = pneg %p200
      $region18: #{mixnet_encode.17} parent=5 // pred_check_branch
        %203 = sbr.rel (%p201) target = $region20
      $region19: #{mixnet_encode.17} parent=5 // pred_region
        // Predicated region
        $region21: #{mixnet_encode.17} parent=19 // pred_check
          %p204 = pneg %p60
        $region22: #{mixnet_encode.17} parent=19 // pred_check_branch
          %206 = sbr.rel (%p204) target = $region24
        $region23: #{mixnet_encode.17} parent=19 // pred_region
          %s207 = smul.u32 2, %s25
          %s208 = smul.u32 8, %s26
          %p209 = scmp.lt.s32.totalorder %s24, 1
          %s210 = scalar_select %p209, %s24, 1
          %p211 = scmp.lt.s32.totalorder %s207, 1
          %s212 = scalar_select %p211, %s207, 1
          %p213 = scmp.lt.s32.totalorder %s208, 7
          %s214 = scalar_select %p213, %s208, 7
          %s215 = smul.addr %s212, 8
          %s216 = sadd.s32 %s214, %s215
          %s217 = smul.addr %s210, 16
          %s218 = sadd.s32 %s216, %s217
          %s219 = smul.addr %s218, 4
          %s220 = scalar_lea.vmem %s0, %s219
          %s221 = smul.u32 2, %s25
          %s222 = smul.u32 8, %s26
        $region24: #{mixnet_encode.17} parent=19 // pred_fallthru
          _
      $region20: #{mixnet_encode.17} parent=5 // pred_fallthru
        _
      %p223 = scmp.le.s32.totalorder 1, %s17
      %p224 = scmp.lt.s32.totalorder %s17, 3
      %p225 = pnand %p223, %p224
      %p226 = pneg %p225
      // Predicated region
      $region25: #{mixnet_encode.17} parent=5 // pred_check
        _
      $region26: #{mixnet_encode.17} parent=5 // pred_check_branch
        %228 = sbr.rel (%p225) target = $region28
      $region27: #{mixnet_encode.17} parent=5 // pred_region
        %s229 = ssub.s32 %s17, 1
        %s230 = smul.u32 2, %s28
        %s231 = smul.u32 8, %s29
        %p232 = scmp.lt.s32.totalorder %s27, 1
        %s233 = scalar_select %p232, %s27, 1
        %p234 = scmp.lt.s32.totalorder %s230, 1
        %s235 = scalar_select %p234, %s230, 1
        %p236 = scmp.lt.s32.totalorder %s231, 7
        %s237 = scalar_select %p236, %s231, 7
        %s238 = smul.addr %s235, 8
        %s239 = sadd.s32 %s237, %s238
        %s240 = smul.addr %s233, 16
        %s241 = sadd.s32 %s239, %s240
        %s242 = smul.addr %s241, 4
        %s243 = scalar_lea.vmem %s0, %s242
        %p244 = pneg %p66
        %p245 = pneg %p63
        %s246 = smul.u32 128, %s29
        %p247 = scmp.lt.s32.totalorder %s246, 127
        %s248 = scalar_select %p247, %s246, 127
        %s249 = smul.addr %s248, 4
        %s250 = scalar_lea.vmem %s1, %s249
        %p251 = pneg %p92
        %p252 = pneg %p89
        %p253 = pneg %p120
        %p254 = pneg %p117
        %s255 = smul.u32 2, %s28
        %p256 = scmp.lt.s32.totalorder %s27, 1
        %s257 = scalar_select %p256, %s27, 1
        %p258 = scmp.lt.s32.totalorder %s255, 1
        %s259 = scalar_select %p258, %s255, 1
        %s260 = smul.addr %s257, 2
        %s261 = sadd.s32 %s259, %s260
        %s262 = smul.addr %s261, 4
        %s263 = scalar_lea.vmem %s2, %s262
        %p264 = pneg %p148
        %p265 = pneg %p145
        %s266 = sand.u32 %s135, 1
        %s267 = scalar_lea.sflag [#allocation4], %s266
        %s268 = sand.u32 %s135, 1
        %s269 = smul.addr %s268, 8
        %s270 = scalar_lea.vmem [#allocation3], %s269
        %p271 = pneg %p176
        %p272 = pneg %p173
        %s273 = sand.u32 %s163, 1
        %s274 = scalar_lea.sflag [#allocation6], %s273
        %s275 = sand.u32 %s163, 1
        %s276 = smul.addr %s275, 8
        %s277 = scalar_lea.vmem [#allocation5], %s276
        %s278 = smul.u32 2, %s28
        %s279 = smul.u32 8, %s29
        %p280 = scmp.lt.s32.totalorder %s27, 1
        %s281 = scalar_select %p280, %s27, 1
        %p282 = scmp.lt.s32.totalorder %s278, 1
        %s283 = scalar_select %p282, %s278, 1
        %p284 = scmp.lt.s32.totalorder %s279, 7
        %s285 = scalar_select %p284, %s279, 7
        %s286 = smul.addr %s283, 8
        %s287 = sadd.s32 %s285, %s286
        %s288 = smul.addr %s281, 16
        %s289 = sadd.s32 %s287, %s288
        %s290 = smul.addr %s289, 4
        %s291 = scalar_lea.vmem %s0, %s290
        %s292 = smul.u32 2, %s28
        %s293 = smul.u32 8, %s29
        %s294 = smul.u32 128, %s29
        %p295 = scmp.lt.s32.totalorder %s294, 127
        %s296 = scalar_select %p295, %s294, 127
        %s297 = smul.addr %s296, 4
        %s298 = scalar_lea.vmem %s1, %s297
        %s299 = smul.u32 128, %s29
        %s300 = smul.u32 2, %s28
        %p301 = scmp.lt.s32.totalorder %s27, 1
        %s302 = scalar_select %p301, %s27, 1
        %p303 = scmp.lt.s32.totalorder %s300, 1
        %s304 = scalar_select %p303, %s300, 1
        %s305 = smul.addr %s302, 2
        %s306 = sadd.s32 %s304, %s305
        %s307 = smul.addr %s306, 4
        %s308 = scalar_lea.vmem %s2, %s307
        %s309 = smul.u32 2, %s28
        %p312 = scmp.eq.s32.totalorder %s29, 0
        // Predicated region
        $region29: #{mixnet_encode.17} parent=27 // pred_check
          %p313 = pneg %p312
        $region30: #{mixnet_encode.17} parent=27 // pred_check_branch
          %315 = sbr.rel (%p313) target = $region32
        $region31: #{mixnet_encode.17} parent=27 // pred_region
          %316 = vst [vmem:[#allocation2] sm:$0xff] 0.0
          %317 = vst [vmem:[#allocation2 + $0x8] sm:$0xff] 0.0
        $region32: #{mixnet_encode.17} parent=27 // pred_fallthru
          _
        %v318 = vld [vmem:[%s291] sm:$0xff]
        %v319 = vld [vmem:[%s291 + $0x8] sm:$0xff]
        %v320 = vld [vmem:[%s291 + $0x10] sm:$0xff]
        %v321 = vld [vmem:[%s291 + $0x18] sm:$0xff]
        %v322 = vld [vmem:[%s291 + $0x20] sm:$0xff]
        %v323 = vld [vmem:[%s291 + $0x28] sm:$0xff]
        %v324 = vld [vmem:[%s291 + $0x30] sm:$0xff]
        %v325 = vld [vmem:[%s291 + $0x38] sm:$0xff]
        %vm326 = vcmp.gt.bf16.partialorder %v318, 0
        %vm327 = vcmp.gt.bf16.partialorder %v319, 0
        %vm328 = vcmp.gt.bf16.partialorder %v320, 0
        %vm329 = vcmp.gt.bf16.partialorder %v321, 0
        %vm330 = vcmp.gt.bf16.partialorder %v322, 0
        %vm331 = vcmp.gt.bf16.partialorder %v323, 0
        %vm332 = vcmp.gt.bf16.partialorder %v324, 0
        %vm333 = vcmp.gt.bf16.partialorder %v325, 0
        %v334 = vmul.bf16 %v318, 1045249613
        %v335 = vmul.bf16 %v319, 1045249613
        %v336 = vmul.bf16 %v320, 1045249613
        %v337 = vmul.bf16 %v321, 1045249613
        %v338 = vmul.bf16 %v322, 1045249613
        %v339 = vmul.bf16 %v323, 1045249613
        %v340 = vmul.bf16 %v324, 1045249613
        %v341 = vmul.bf16 %v325, 1045249613
        %v342 = vsel %vm326, %v318, %v334
        %v343 = vsel %vm327, %v319, %v335
        %v344 = vsel %vm328, %v320, %v336
        %v345 = vsel %vm329, %v321, %v337
        %v346 = vsel %vm330, %v322, %v338
        %v347 = vsel %vm331, %v323, %v339
        %v348 = vsel %vm332, %v324, %v340
        %v349 = vsel %vm333, %v325, %v341
        %v350 = vld [vmem:[#allocation2] sm:$0xff]
        %v351 = vld [vmem:[#allocation2 + $0x8] sm:$0xff]
        %v352 = vld [vmem:[%s298] sm:$0xf]
        %v353 = vld [vmem:[%s298 + $0x4] sm:$0xf]
        %v354 = vld [vmem:[%s298 + $0x8] sm:$0xf]
        %v355 = vld [vmem:[%s298 + $0xc] sm:$0xf]
        %v356 = vld [vmem:[%s298 + $0x10] sm:$0xf]
        %v357 = vld [vmem:[%s298 + $0x14] sm:$0xf]
        %v358 = vld [vmem:[%s298 + $0x18] sm:$0xf]
        %v359 = vld [vmem:[%s298 + $0x1c] sm:$0xf]
        %v360 = vld [vmem:[%s298 + $0x20] sm:$0xf]
        %v361 = vld [vmem:[%s298 + $0x24] sm:$0xf]
        %v362 = vld [vmem:[%s298 + $0x28] sm:$0xf]
        %v363 = vld [vmem:[%s298 + $0x2c] sm:$0xf]
        %v364 = vld [vmem:[%s298 + $0x30] sm:$0xf]
        %v365 = vld [vmem:[%s298 + $0x34] sm:$0xf]
        %v366 = vld [vmem:[%s298 + $0x38] sm:$0xf]
        %v367 = vld [vmem:[%s298 + $0x3c] sm:$0xf]
        %v368 = vld [vmem:[%s298 + $0x40] sm:$0xf]
        %v369 = vld [vmem:[%s298 + $0x44] sm:$0xf]
        %v370 = vld [vmem:[%s298 + $0x48] sm:$0xf]
        %v371 = vld [vmem:[%s298 + $0x4c] sm:$0xf]
        %v372 = vld [vmem:[%s298 + $0x50] sm:$0xf]
        %v373 = vld [vmem:[%s298 + $0x54] sm:$0xf]
        %v374 = vld [vmem:[%s298 + $0x58] sm:$0xf]
        %v375 = vld [vmem:[%s298 + $0x5c] sm:$0xf]
        %v376 = vld [vmem:[%s298 + $0x60] sm:$0xf]
        %v377 = vld [vmem:[%s298 + $0x64] sm:$0xf]
        %v378 = vld [vmem:[%s298 + $0x68] sm:$0xf]
        %v379 = vld [vmem:[%s298 + $0x6c] sm:$0xf]
        %v380 = vld [vmem:[%s298 + $0x70] sm:$0xf]
        %v381 = vld [vmem:[%s298 + $0x74] sm:$0xf]
        %v382 = vld [vmem:[%s298 + $0x78] sm:$0xf]
        %v383 = vld [vmem:[%s298 + $0x7c] sm:$0xf]
        %v384 = vld [vmem:[%s298 + $0x80] sm:$0xf]
        %v385 = vld [vmem:[%s298 + $0x84] sm:$0xf]
        %v386 = vld [vmem:[%s298 + $0x88] sm:$0xf]
        %v387 = vld [vmem:[%s298 + $0x8c] sm:$0xf]
        %v388 = vld [vmem:[%s298 + $0x90] sm:$0xf]
        %v389 = vld [vmem:[%s298 + $0x94] sm:$0xf]
        %v390 = vld [vmem:[%s298 + $0x98] sm:$0xf]
        %v391 = vld [vmem:[%s298 + $0x9c] sm:$0xf]
        %v392 = vld [vmem:[%s298 + $0xa0] sm:$0xf]
        %v393 = vld [vmem:[%s298 + $0xa4] sm:$0xf]
        %v394 = vld [vmem:[%s298 + $0xa8] sm:$0xf]
        %v395 = vld [vmem:[%s298 + $0xac] sm:$0xf]
        %v396 = vld [vmem:[%s298 + $0xb0] sm:$0xf]
        %v397 = vld [vmem:[%s298 + $0xb4] sm:$0xf]
        %v398 = vld [vmem:[%s298 + $0xb8] sm:$0xf]
        %v399 = vld [vmem:[%s298 + $0xbc] sm:$0xf]
        %v400 = vld [vmem:[%s298 + $0xc0] sm:$0xf]
        %v401 = vld [vmem:[%s298 + $0xc4] sm:$0xf]
        %v402 = vld [vmem:[%s298 + $0xc8] sm:$0xf]
        %v403 = vld [vmem:[%s298 + $0xcc] sm:$0xf]
        %v404 = vld [vmem:[%s298 + $0xd0] sm:$0xf]
        %v405 = vld [vmem:[%s298 + $0xd4] sm:$0xf]
        %v406 = vld [vmem:[%s298 + $0xd8] sm:$0xf]
        %v407 = vld [vmem:[%s298 + $0xdc] sm:$0xf]
        %v408 = vld [vmem:[%s298 + $0xe0] sm:$0xf]
        %v409 = vld [vmem:[%s298 + $0xe4] sm:$0xf]
        %v410 = vld [vmem:[%s298 + $0xe8] sm:$0xf]
        %v411 = vld [vmem:[%s298 + $0xec] sm:$0xf]
        %v412 = vld [vmem:[%s298 + $0xf0] sm:$0xf]
        %v413 = vld [vmem:[%s298 + $0xf4] sm:$0xf]
        %v414 = vld [vmem:[%s298 + $0xf8] sm:$0xf]
        %v415 = vld [vmem:[%s298 + $0xfc] sm:$0xf]
        %v416 = vld [vmem:[%s298 + $0x100] sm:$0xf]
        %v417 = vld [vmem:[%s298 + $0x104] sm:$0xf]
        %v418 = vld [vmem:[%s298 + $0x108] sm:$0xf]
        %v419 = vld [vmem:[%s298 + $0x10c] sm:$0xf]
        %v420 = vld [vmem:[%s298 + $0x110] sm:$0xf]
        %v421 = vld [vmem:[%s298 + $0x114] sm:$0xf]
        %v422 = vld [vmem:[%s298 + $0x118] sm:$0xf]
        %v423 = vld [vmem:[%s298 + $0x11c] sm:$0xf]
        %v424 = vld [vmem:[%s298 + $0x120] sm:$0xf]
        %v425 = vld [vmem:[%s298 + $0x124] sm:$0xf]
        %v426 = vld [vmem:[%s298 + $0x128] sm:$0xf]
        %v427 = vld [vmem:[%s298 + $0x12c] sm:$0xf]
        %v428 = vld [vmem:[%s298 + $0x130] sm:$0xf]
        %v429 = vld [vmem:[%s298 + $0x134] sm:$0xf]
        %v430 = vld [vmem:[%s298 + $0x138] sm:$0xf]
        %v431 = vld [vmem:[%s298 + $0x13c] sm:$0xf]
        %v432 = vld [vmem:[%s298 + $0x140] sm:$0xf]
        %v433 = vld [vmem:[%s298 + $0x144] sm:$0xf]
        %v434 = vld [vmem:[%s298 + $0x148] sm:$0xf]
        %v435 = vld [vmem:[%s298 + $0x14c] sm:$0xf]
        %v436 = vld [vmem:[%s298 + $0x150] sm:$0xf]
        %v437 = vld [vmem:[%s298 + $0x154] sm:$0xf]
        %v438 = vld [vmem:[%s298 + $0x158] sm:$0xf]
        %v439 = vld [vmem:[%s298 + $0x15c] sm:$0xf]
        %v440 = vld [vmem:[%s298 + $0x160] sm:$0xf]
        %v441 = vld [vmem:[%s298 + $0x164] sm:$0xf]
        %v442 = vld [vmem:[%s298 + $0x168] sm:$0xf]
        %v443 = vld [vmem:[%s298 + $0x16c] sm:$0xf]
        %v444 = vld [vmem:[%s298 + $0x170] sm:$0xf]
        %v445 = vld [vmem:[%s298 + $0x174] sm:$0xf]
        %v446 = vld [vmem:[%s298 + $0x178] sm:$0xf]
        %v447 = vld [vmem:[%s298 + $0x17c] sm:$0xf]
        %v448 = vld [vmem:[%s298 + $0x180] sm:$0xf]
        %v449 = vld [vmem:[%s298 + $0x184] sm:$0xf]
        %v450 = vld [vmem:[%s298 + $0x188] sm:$0xf]
        %v451 = vld [vmem:[%s298 + $0x18c] sm:$0xf]
        %v452 = vld [vmem:[%s298 + $0x190] sm:$0xf]
        %v453 = vld [vmem:[%s298 + $0x194] sm:$0xf]
        %v454 = vld [vmem:[%s298 + $0x198] sm:$0xf]
        %v455 = vld [vmem:[%s298 + $0x19c] sm:$0xf]
        %v456 = vld [vmem:[%s298 + $0x1a0] sm:$0xf]
        %v457 = vld [vmem:[%s298 + $0x1a4] sm:$0xf]
        %v458 = vld [vmem:[%s298 + $0x1a8] sm:$0xf]
        %v459 = vld [vmem:[%s298 + $0x1ac] sm:$0xf]
        %v460 = vld [vmem:[%s298 + $0x1b0] sm:$0xf]
        %v461 = vld [vmem:[%s298 + $0x1b4] sm:$0xf]
        %v462 = vld [vmem:[%s298 + $0x1b8] sm:$0xf]
        %v463 = vld [vmem:[%s298 + $0x1bc] sm:$0xf]
        %v464 = vld [vmem:[%s298 + $0x1c0] sm:$0xf]
        %v465 = vld [vmem:[%s298 + $0x1c4] sm:$0xf]
        %v466 = vld [vmem:[%s298 + $0x1c8] sm:$0xf]
        %v467 = vld [vmem:[%s298 + $0x1cc] sm:$0xf]
        %v468 = vld [vmem:[%s298 + $0x1d0] sm:$0xf]
        %v469 = vld [vmem:[%s298 + $0x1d4] sm:$0xf]
        %v470 = vld [vmem:[%s298 + $0x1d8] sm:$0xf]
        %v471 = vld [vmem:[%s298 + $0x1dc] sm:$0xf]
        %v472 = vld [vmem:[%s298 + $0x1e0] sm:$0xf]
        %v473 = vld [vmem:[%s298 + $0x1e4] sm:$0xf]
        %v474 = vld [vmem:[%s298 + $0x1e8] sm:$0xf]
        %v475 = vld [vmem:[%s298 + $0x1ec] sm:$0xf]
        %v476 = vld [vmem:[%s298 + $0x1f0] sm:$0xf]
        %v477 = vld [vmem:[%s298 + $0x1f4] sm:$0xf]
        %v478 = vld [vmem:[%s298 + $0x1f8] sm:$0xf]
        %v479 = vld [vmem:[%s298 + $0x1fc] sm:$0xf]
        %v488 = vunpack.c.l.b16 %v342
        %v489 = vunpack.c.h.b16 %v342
        %v490 = vunpack.c.l.b16 %v343
        %v491 = vunpack.c.h.b16 %v343
        %v492 = vunpack.c.l.b16 %v344
        %v493 = vunpack.c.h.b16 %v344
        %v494 = vunpack.c.l.b16 %v345
        %v495 = vunpack.c.h.b16 %v345
        %v496 = vunpack.c.l.b16 %v346
        %v497 = vunpack.c.h.b16 %v346
        %v498 = vunpack.c.l.b16 %v347
        %v499 = vunpack.c.h.b16 %v347
        %v500 = vunpack.c.l.b16 %v348
        %v501 = vunpack.c.h.b16 %v348
        %v502 = vunpack.c.l.b16 %v349
        %v503 = vunpack.c.h.b16 %v349
        %v504 = vpack.c.b16 %v496, %v488
        %v505 = vpack.c.b16 %v497, %v489
        %v506 = vpack.c.b16 %v498, %v490
        %v507 = vpack.c.b16 %v499, %v491
        %v508 = vpack.c.b16 %v500, %v492
        %v509 = vpack.c.b16 %v501, %v493
        %v510 = vpack.c.b16 %v502, %v494
        %v511 = vpack.c.b16 %v503, %v495
        %v648 = vunpack.c.l.b16 %v352
        %v649 = vunpack.c.l.b16 %v353
        %v650 = vunpack.c.l.b16 %v354
        %v651 = vunpack.c.l.b16 %v355
        %v652 = vunpack.c.l.b16 %v356
        %v653 = vunpack.c.l.b16 %v357
        %v654 = vunpack.c.l.b16 %v358
        %v655 = vunpack.c.l.b16 %v359
        %v656 = vunpack.c.l.b16 %v360
        %v657 = vunpack.c.l.b16 %v361
        %v658 = vunpack.c.l.b16 %v362
        %v659 = vunpack.c.l.b16 %v363
        %v660 = vunpack.c.l.b16 %v364
        %v661 = vunpack.c.l.b16 %v365
        %v662 = vunpack.c.l.b16 %v366
        %v663 = vunpack.c.l.b16 %v367
        %v664 = vunpack.c.l.b16 %v368
        %v665 = vunpack.c.l.b16 %v369
        %v666 = vunpack.c.l.b16 %v370
        %v667 = vunpack.c.l.b16 %v371
        %v668 = vunpack.c.l.b16 %v372
        %v669 = vunpack.c.l.b16 %v373
        %v670 = vunpack.c.l.b16 %v374
        %v671 = vunpack.c.l.b16 %v375
        %v672 = vunpack.c.l.b16 %v376
        %v673 = vunpack.c.l.b16 %v377
        %v674 = vunpack.c.l.b16 %v378
        %v675 = vunpack.c.l.b16 %v379
        %v676 = vunpack.c.l.b16 %v380
        %v677 = vunpack.c.l.b16 %v381
        %v678 = vunpack.c.l.b16 %v382
        %v679 = vunpack.c.l.b16 %v383
        %v680 = vunpack.c.l.b16 %v384
        %v681 = vunpack.c.l.b16 %v385
        %v682 = vunpack.c.l.b16 %v386
        %v683 = vunpack.c.l.b16 %v387
        %v684 = vunpack.c.l.b16 %v388
        %v685 = vunpack.c.l.b16 %v389
        %v686 = vunpack.c.l.b16 %v390
        %v687 = vunpack.c.l.b16 %v391
        %v688 = vunpack.c.l.b16 %v392
        %v689 = vunpack.c.l.b16 %v393
        %v690 = vunpack.c.l.b16 %v394
        %v691 = vunpack.c.l.b16 %v395
        %v692 = vunpack.c.l.b16 %v396
        %v693 = vunpack.c.l.b16 %v397
        %v694 = vunpack.c.l.b16 %v398
        %v695 = vunpack.c.l.b16 %v399
        %v696 = vunpack.c.l.b16 %v400
        %v697 = vunpack.c.l.b16 %v401
        %v698 = vunpack.c.l.b16 %v402
        %v699 = vunpack.c.l.b16 %v403
        %v700 = vunpack.c.l.b16 %v404
        %v701 = vunpack.c.l.b16 %v405
        %v702 = vunpack.c.l.b16 %v406
        %v703 = vunpack.c.l.b16 %v407
        %v704 = vunpack.c.l.b16 %v408
        %v705 = vunpack.c.l.b16 %v409
        %v706 = vunpack.c.l.b16 %v410
        %v707 = vunpack.c.l.b16 %v411
        %v708 = vunpack.c.l.b16 %v412
        %v709 = vunpack.c.l.b16 %v413
        %v710 = vunpack.c.l.b16 %v414
        %v711 = vunpack.c.l.b16 %v415
        %v712 = vunpack.c.l.b16 %v416
        %v713 = vunpack.c.l.b16 %v417
        %v714 = vunpack.c.l.b16 %v418
        %v715 = vunpack.c.l.b16 %v419
        %v716 = vunpack.c.l.b16 %v420
        %v717 = vunpack.c.l.b16 %v421
        %v718 = vunpack.c.l.b16 %v422
        %v719 = vunpack.c.l.b16 %v423
        %v720 = vunpack.c.l.b16 %v424
        %v721 = vunpack.c.l.b16 %v425
        %v722 = vunpack.c.l.b16 %v426
        %v723 = vunpack.c.l.b16 %v427
        %v724 = vunpack.c.l.b16 %v428
        %v725 = vunpack.c.l.b16 %v429
        %v726 = vunpack.c.l.b16 %v430
        %v727 = vunpack.c.l.b16 %v431
        %v728 = vunpack.c.l.b16 %v432
        %v729 = vunpack.c.l.b16 %v433
        %v730 = vunpack.c.l.b16 %v434
        %v731 = vunpack.c.l.b16 %v435
        %v732 = vunpack.c.l.b16 %v436
        %v733 = vunpack.c.l.b16 %v437
        %v734 = vunpack.c.l.b16 %v438
        %v735 = vunpack.c.l.b16 %v439
        %v736 = vunpack.c.l.b16 %v440
        %v737 = vunpack.c.l.b16 %v441
        %v738 = vunpack.c.l.b16 %v442
        %v739 = vunpack.c.l.b16 %v443
        %v740 = vunpack.c.l.b16 %v444
        %v741 = vunpack.c.l.b16 %v445
        %v742 = vunpack.c.l.b16 %v446
        %v743 = vunpack.c.l.b16 %v447
        %v744 = vunpack.c.l.b16 %v448
        %v745 = vunpack.c.l.b16 %v449
        %v746 = vunpack.c.l.b16 %v450
        %v747 = vunpack.c.l.b16 %v451
        %v748 = vunpack.c.l.b16 %v452
        %v749 = vunpack.c.l.b16 %v453
        %v750 = vunpack.c.l.b16 %v454
        %v751 = vunpack.c.l.b16 %v455
        %v752 = vunpack.c.l.b16 %v456
        %v753 = vunpack.c.l.b16 %v457
        %v754 = vunpack.c.l.b16 %v458
        %v755 = vunpack.c.l.b16 %v459
        %v756 = vunpack.c.l.b16 %v460
        %v757 = vunpack.c.l.b16 %v461
        %v758 = vunpack.c.l.b16 %v462
        %v759 = vunpack.c.l.b16 %v463
        %v760 = vunpack.c.l.b16 %v464
        %v761 = vunpack.c.l.b16 %v465
        %v762 = vunpack.c.l.b16 %v466
        %v763 = vunpack.c.l.b16 %v467
        %v764 = vunpack.c.l.b16 %v468
        %v765 = vunpack.c.l.b16 %v469
        %v766 = vunpack.c.l.b16 %v470
        %v767 = vunpack.c.l.b16 %v471
        %v768 = vunpack.c.l.b16 %v472
        %v769 = vunpack.c.l.b16 %v473
        %v770 = vunpack.c.l.b16 %v474
        %v771 = vunpack.c.l.b16 %v475
        %v772 = vunpack.c.l.b16 %v476
        %v773 = vunpack.c.l.b16 %v477
        %v774 = vunpack.c.l.b16 %v478
        %v775 = vunpack.c.l.b16 %v479
        %v776 = vpack.c.b16 %v649, %v648
        %v777 = vpack.c.b16 %v651, %v650
        %v778 = vpack.c.b16 %v653, %v652
        %v779 = vpack.c.b16 %v655, %v654
        %v780 = vpack.c.b16 %v657, %v656
        %v781 = vpack.c.b16 %v659, %v658
        %v782 = vpack.c.b16 %v661, %v660
        %v783 = vpack.c.b16 %v663, %v662
        %v784 = vpack.c.b16 %v665, %v664
        %v785 = vpack.c.b16 %v667, %v666
        %v786 = vpack.c.b16 %v669, %v668
        %v787 = vpack.c.b16 %v671, %v670
        %v788 = vpack.c.b16 %v673, %v672
        %v789 = vpack.c.b16 %v675, %v674
        %v790 = vpack.c.b16 %v677, %v676
        %v791 = vpack.c.b16 %v679, %v678
        %v792 = vpack.c.b16 %v681, %v680
        %v793 = vpack.c.b16 %v683, %v682
        %v794 = vpack.c.b16 %v685, %v684
        %v795 = vpack.c.b16 %v687, %v686
        %v796 = vpack.c.b16 %v689, %v688
        %v797 = vpack.c.b16 %v691, %v690
        %v798 = vpack.c.b16 %v693, %v692
        %v799 = vpack.c.b16 %v695, %v694
        %v800 = vpack.c.b16 %v697, %v696
        %v801 = vpack.c.b16 %v699, %v698
        %v802 = vpack.c.b16 %v701, %v700
        %v803 = vpack.c.b16 %v703, %v702
        %v804 = vpack.c.b16 %v705, %v704
        %v805 = vpack.c.b16 %v707, %v706
        %v806 = vpack.c.b16 %v709, %v708
        %v807 = vpack.c.b16 %v711, %v710
        %v808 = vpack.c.b16 %v713, %v712
        %v809 = vpack.c.b16 %v715, %v714
        %v810 = vpack.c.b16 %v717, %v716
        %v811 = vpack.c.b16 %v719, %v718
        %v812 = vpack.c.b16 %v721, %v720
        %v813 = vpack.c.b16 %v723, %v722
        %v814 = vpack.c.b16 %v725, %v724
        %v815 = vpack.c.b16 %v727, %v726
        %v816 = vpack.c.b16 %v729, %v728
        %v817 = vpack.c.b16 %v731, %v730
        %v818 = vpack.c.b16 %v733, %v732
        %v819 = vpack.c.b16 %v735, %v734
        %v820 = vpack.c.b16 %v737, %v736
        %v821 = vpack.c.b16 %v739, %v738
        %v822 = vpack.c.b16 %v741, %v740
        %v823 = vpack.c.b16 %v743, %v742
        %v824 = vpack.c.b16 %v745, %v744
        %v825 = vpack.c.b16 %v747, %v746
        %v826 = vpack.c.b16 %v749, %v748
        %v827 = vpack.c.b16 %v751, %v750
        %v828 = vpack.c.b16 %v753, %v752
        %v829 = vpack.c.b16 %v755, %v754
        %v830 = vpack.c.b16 %v757, %v756
        %v831 = vpack.c.b16 %v759, %v758
        %v832 = vpack.c.b16 %v761, %v760
        %v833 = vpack.c.b16 %v763, %v762
        %v834 = vpack.c.b16 %v765, %v764
        %v835 = vpack.c.b16 %v767, %v766
        %v836 = vpack.c.b16 %v769, %v768
        %v837 = vpack.c.b16 %v771, %v770
        %v838 = vpack.c.b16 %v773, %v772
        %v839 = vpack.c.b16 %v775, %v774
        %904 = vmatprep.subr.bf16.mxu0 0
        %905 = vmatpush1.bf16.msra.mxu0 %v776
        %906 = vmatprep.subr.bf16.mxu0 0
        %907 = vmatpush1.bf16.msra.mxu0 %v777
        %908 = vmatprep.subr.bf16.mxu0 0
        %909 = vmatpush1.bf16.msra.mxu0 %v778
        %910 = vmatprep.subr.bf16.mxu0 0
        %911 = vmatpush1.bf16.msra.mxu0 %v779
        %912 = vmatprep.subr.bf16.mxu0 0
        %913 = vmatpush1.bf16.msra.mxu0 %v780
        %914 = vmatprep.subr.bf16.mxu0 0
        %915 = vmatpush1.bf16.msra.mxu0 %v781
        %916 = vmatprep.subr.bf16.mxu0 0
        %917 = vmatpush1.bf16.msra.mxu0 %v782
        %918 = vmatprep.subr.bf16.mxu0 0
        %919 = vmatpush1.bf16.msra.mxu0 %v783
        %920 = vmatprep.subr.bf16.mxu0 0
        %921 = vmatpush1.bf16.msra.mxu0 %v784
        %922 = vmatprep.subr.bf16.mxu0 0
        %923 = vmatpush1.bf16.msra.mxu0 %v785
        %924 = vmatprep.subr.bf16.mxu0 0
        %925 = vmatpush1.bf16.msra.mxu0 %v786
        %926 = vmatprep.subr.bf16.mxu0 0
        %927 = vmatpush1.bf16.msra.mxu0 %v787
        %928 = vmatprep.subr.bf16.mxu0 0
        %929 = vmatpush1.bf16.msra.mxu0 %v788
        %930 = vmatprep.subr.bf16.mxu0 0
        %931 = vmatpush1.bf16.msra.mxu0 %v789
        %932 = vmatprep.subr.bf16.mxu0 0
        %933 = vmatpush1.bf16.msra.mxu0 %v790
        %934 = vmatprep.subr.bf16.mxu0 0
        %935 = vmatpush1.bf16.msra.mxu0 %v791
        %936 = vmatprep.mubr.bf16.mxu0 %v505
        %937 = vmatmul.mubr.bf16.gmra.mrb[0].mxu0 %v504
        %v938 = vpop.f32.mrb[0].mxu0
        %v939 = vadd.f32 0.0, %v938
        %v940 = vpop.f32.mrb[0].mxu0
        %v941 = vpop.f32.mrb[0].mxu0
        %v942 = vadd.f32 0.0, %v941
        %v943 = vpop.f32.mrb[0].mxu0
        %944 = vdwg.mxu0
        %945 = vmatprep.subr.bf16.mxu0 0
        %946 = vmatpush1.bf16.msra.mxu0 %v792
        %947 = vmatprep.subr.bf16.mxu0 0
        %948 = vmatpush1.bf16.msra.mxu0 %v793
        %949 = vmatprep.subr.bf16.mxu0 0
        %950 = vmatpush1.bf16.msra.mxu0 %v794
        %951 = vmatprep.subr.bf16.mxu0 0
        %952 = vmatpush1.bf16.msra.mxu0 %v795
        %953 = vmatprep.subr.bf16.mxu0 0
        %954 = vmatpush1.bf16.msra.mxu0 %v796
        %955 = vmatprep.subr.bf16.mxu0 0
        %956 = vmatpush1.bf16.msra.mxu0 %v797
        %957 = vmatprep.subr.bf16.mxu0 0
        %958 = vmatpush1.bf16.msra.mxu0 %v798
        %959 = vmatprep.subr.bf16.mxu0 0
        %960 = vmatpush1.bf16.msra.mxu0 %v799
        %961 = vmatprep.subr.bf16.mxu0 0
        %962 = vmatpush1.bf16.msra.mxu0 %v800
        %963 = vmatprep.subr.bf16.mxu0 0
        %964 = vmatpush1.bf16.msra.mxu0 %v801
        %965 = vmatprep.subr.bf16.mxu0 0
        %966 = vmatpush1.bf16.msra.mxu0 %v802
        %967 = vmatprep.subr.bf16.mxu0 0
        %968 = vmatpush1.bf16.msra.mxu0 %v803
        %969 = vmatprep.subr.bf16.mxu0 0
        %970 = vmatpush1.bf16.msra.mxu0 %v804
        %971 = vmatprep.subr.bf16.mxu0 0
        %972 = vmatpush1.bf16.msra.mxu0 %v805
        %973 = vmatprep.subr.bf16.mxu0 0
        %974 = vmatpush1.bf16.msra.mxu0 %v806
        %975 = vmatprep.subr.bf16.mxu0 0
        %976 = vmatpush1.bf16.msra.mxu0 %v807
        %977 = vmatprep.mubr.bf16.mxu0 %v507
        %978 = vmatmul.mubr.bf16.gmra.mrb[0].mxu0 %v506
        %v979 = vpop.f32.mrb[0].mxu0
        %v980 = vadd.f32 %v939, %v979
        %v981 = vpop.f32.mrb[0].mxu0
        %v982 = vpop.f32.mrb[0].mxu0
        %v983 = vadd.f32 %v942, %v982
        %v984 = vpop.f32.mrb[0].mxu0
        %985 = vdwg.mxu0
        %986 = vmatprep.subr.bf16.mxu0 0
        %987 = vmatpush1.bf16.msra.mxu0 %v808
        %988 = vmatprep.subr.bf16.mxu0 0
        %989 = vmatpush1.bf16.msra.mxu0 %v809
        %990 = vmatprep.subr.bf16.mxu0 0
        %991 = vmatpush1.bf16.msra.mxu0 %v810
        %992 = vmatprep.subr.bf16.mxu0 0
        %993 = vmatpush1.bf16.msra.mxu0 %v811
        %994 = vmatprep.subr.bf16.mxu0 0
        %995 = vmatpush1.bf16.msra.mxu0 %v812
        %996 = vmatprep.subr.bf16.mxu0 0
        %997 = vmatpush1.bf16.msra.mxu0 %v813
        %998 = vmatprep.subr.bf16.mxu0 0
        %999 = vmatpush1.bf16.msra.mxu0 %v814
        %1000 = vmatprep.subr.bf16.mxu0 0
        %1001 = vmatpush1.bf16.msra.mxu0 %v815
        %1002 = vmatprep.subr.bf16.mxu0 0
        %1003 = vmatpush1.bf16.msra.mxu0 %v816
        %1004 = vmatprep.subr.bf16.mxu0 0
        %1005 = vmatpush1.bf16.msra.mxu0 %v817
        %1006 = vmatprep.subr.bf16.mxu0 0
        %1007 = vmatpush1.bf16.msra.mxu0 %v818
        %1008 = vmatprep.subr.bf16.mxu0 0
        %1009 = vmatpush1.bf16.msra.mxu0 %v819
        %1010 = vmatprep.subr.bf16.mxu0 0
        %1011 = vmatpush1.bf16.msra.mxu0 %v820
        %1012 = vmatprep.subr.bf16.mxu0 0
        %1013 = vmatpush1.bf16.msra.mxu0 %v821
        %1014 = vmatprep.subr.bf16.mxu0 0
        %1015 = vmatpush1.bf16.msra.mxu0 %v822
        %1016 = vmatprep.subr.bf16.mxu0 0
        %1017 = vmatpush1.bf16.msra.mxu0 %v823
        %1018 = vmatprep.mubr.bf16.mxu0 %v509
        %1019 = vmatmul.mubr.bf16.gmra.mrb[0].mxu0 %v508
        %v1020 = vpop.f32.mrb[0].mxu0
        %v1021 = vadd.f32 %v980, %v1020
        %v1022 = vpop.f32.mrb[0].mxu0
        %v1023 = vpop.f32.mrb[0].mxu0
        %v1024 = vadd.f32 %v983, %v1023
        %v1025 = vpop.f32.mrb[0].mxu0
        %1026 = vdwg.mxu0
        %1027 = vmatprep.subr.bf16.mxu0 0
        %1028 = vmatpush1.bf16.msra.mxu0 %v824
        %1029 = vmatprep.subr.bf16.mxu0 0
        %1030 = vmatpush1.bf16.msra.mxu0 %v825
        %1031 = vmatprep.subr.bf16.mxu0 0
        %1032 = vmatpush1.bf16.msra.mxu0 %v826
        %1033 = vmatprep.subr.bf16.mxu0 0
        %1034 = vmatpush1.bf16.msra.mxu0 %v827
        %1035 = vmatprep.subr.bf16.mxu0 0
        %1036 = vmatpush1.bf16.msra.mxu0 %v828
        %1037 = vmatprep.subr.bf16.mxu0 0
        %1038 = vmatpush1.bf16.msra.mxu0 %v829
        %1039 = vmatprep.subr.bf16.mxu0 0
        %1040 = vmatpush1.bf16.msra.mxu0 %v830
        %1041 = vmatprep.subr.bf16.mxu0 0
        %1042 = vmatpush1.bf16.msra.mxu0 %v831
        %1043 = vmatprep.subr.bf16.mxu0 0
        %1044 = vmatpush1.bf16.msra.mxu0 %v832
        %1045 = vmatprep.subr.bf16.mxu0 0
        %1046 = vmatpush1.bf16.msra.mxu0 %v833
        %1047 = vmatprep.subr.bf16.mxu0 0
        %1048 = vmatpush1.bf16.msra.mxu0 %v834
        %1049 = vmatprep.subr.bf16.mxu0 0
        %1050 = vmatpush1.bf16.msra.mxu0 %v835
        %1051 = vmatprep.subr.bf16.mxu0 0
        %1052 = vmatpush1.bf16.msra.mxu0 %v836
        %1053 = vmatprep.subr.bf16.mxu0 0
        %1054 = vmatpush1.bf16.msra.mxu0 %v837
        %1055 = vmatprep.subr.bf16.mxu0 0
        %1056 = vmatpush1.bf16.msra.mxu0 %v838
        %1057 = vmatprep.subr.bf16.mxu0 0
        %1058 = vmatpush1.bf16.msra.mxu0 %v839
        %1059 = vmatprep.mubr.bf16.mxu0 %v511
        %1060 = vmatmul.mubr.bf16.gmra.mrb[0].mxu0 %v510
        %v1061 = vpop.f32.mrb[0].mxu0
        %v1062 = vadd.f32 %v1021, %v1061
        %v1063 = vpop.f32.mrb[0].mxu0
        %v1064 = vpop.f32.mrb[0].mxu0
        %v1065 = vadd.f32 %v1024, %v1064
        %v1066 = vpop.f32.mrb[0].mxu0
        %1067 = vdwg.mxu0
        %v1068 = vadd.f32 %v350, %v1062
        %v1069 = vadd.f32 %v351, %v1065
        %1070 = vst [vmem:[#allocation2] sm:$0xff] %v1068
        %1071 = vst [vmem:[#allocation2 + $0x8] sm:$0xff] %v1069
        // Predicated region
        $region33: #{mixnet_encode.17} parent=27 // pred_check
          %p1072 = pneg %p312
        $region34: #{mixnet_encode.17} parent=27 // pred_check_branch
          %1074 = sbr.rel (%p1072) target = $region36
        $region35: #{mixnet_encode.17} parent=27 // pred_region
          %v1075 = vld [vmem:[#allocation2] sm:$0xff]
          %v1076 = vld [vmem:[#allocation2 + $0x8] sm:$0xff]
          %v1077 = vpack.c.bf16 %v1076, %v1075
          %v1079 = vunpack.c.l.b16 %v1077
          %v1080 = vunpack.c.h.b16 %v1077
          %v1081 = vpack.c.b16 %v1079, %v1079
          %v1082 = vpack.c.b16 %v1080, %v1080
          %1085 = vst [vmem:[%s308] sm:$0xf] %v1081
          %1086 = vst [vmem:[%s308 + $0x4] sm:$0xf] %v1082
          %v1087 = vadd.f32 %v1075, %v1076
          %v1088 = vrot.slane %v1087, 4
          %v1089 = vadd.f32 %v1087, %v1088
          %v1090 = vrot.slane %v1089, 2
          %v1091 = vadd.f32 %v1089, %v1090
          %v1092 = vrot.slane %v1091, 1
          %v1093 = vadd.f32 %v1091, %v1092
          %v1094 = vmul.f32 %v1075, %v1075
          %v1095 = vmul.f32 %v1076, %v1076
          %v1096 = vadd.f32 %v1094, %v1095
          %v1097 = vrot.slane %v1096, 4
          %v1098 = vadd.f32 %v1096, %v1097
          %v1099 = vrot.slane %v1098, 2
          %v1100 = vadd.f32 %v1098, %v1099
          %v1101 = vrot.slane %v1100, 1
          %v1102 = vadd.f32 %v1100, %v1101
          %1103 = vst [vmem:[%s270] sm:$0xff] %v1093
          %1104 = vst [vmem:[%s277] sm:$0xff] %v1102
        $region36: #{mixnet_encode.17} parent=27 // pred_fallthru
          _
        %s1105 = smul.u32 2, %s28
        %p1106 = scmp.lt.s32.totalorder %s27, 1
        %s1107 = scalar_select %p1106, %s27, 1
        %p1108 = scmp.lt.s32.totalorder %s1105, 1
        %s1109 = scalar_select %p1108, %s1105, 1
        %s1110 = smul.addr %s1107, 2
        %s1111 = sadd.s32 %s1109, %s1110
        %s1112 = smul.addr %s1111, 4
        %s1113 = scalar_lea.vmem %s2, %s1112
        %s1114 = sand.u32 %s135, 1
        %s1115 = scalar_lea.sflag [#allocation4], %s1114
        %s1116 = sand.u32 %s135, 1
        %s1117 = smul.addr %s1116, 8
        %s1118 = scalar_lea.vmem [#allocation3], %s1117
        %s1119 = sand.u32 %s163, 1
        %s1120 = scalar_lea.sflag [#allocation6], %s1119
        %s1121 = sand.u32 %s163, 1
        %s1122 = smul.addr %s1121, 8
        %s1123 = scalar_lea.vmem [#allocation5], %s1122
        // Predicated region
        $region37: #{mixnet_encode.17} parent=27 // pred_check
          %p1124 = pneg %p117
        $region38: #{mixnet_encode.17} parent=27 // pred_check_branch
          %1126 = sbr.rel (%p1124) target = $region40
        $region39: #{mixnet_encode.17} parent=27 // pred_region
          %s1127 = smul.u32 2, %s28
        $region40: #{mixnet_encode.17} parent=27 // pred_fallthru
          _
        // Predicated region
        $region41: #{mixnet_encode.17} parent=27 // pred_check
          %p1128 = pneg %p145
        $region42: #{mixnet_encode.17} parent=27 // pred_check_branch
          %1130 = sbr.rel (%p1128) target = $region44
        $region43: #{mixnet_encode.17} parent=27 // pred_region
          %s1132 = ssub.s32 128, 128
          %1133 = vsyncadd %s1115, %s1132
          %s1134 = sadd.s32 %s28, %s27
          %s1135 = smul.addr %s1134, 128
          %s1136 = scalar_lea.hbm %s3, %s1135
          %s1138 = sshll.u32 %s1118, 4
          %s1139 = int_to_ptr.vmem [resolvable:$true] %s1138
          %1141 = dma.vmem_to_hbm [thread:$0]  %s1139, 128, %s1136, %s1115
        $region44: #{mixnet_encode.17} parent=27 // pred_fallthru
          _
        // Predicated region
        $region45: #{mixnet_encode.17} parent=27 // pred_check
          %p1142 = pneg %p173
        $region46: #{mixnet_encode.17} parent=27 // pred_check_branch
          %1144 = sbr.rel (%p1142) target = $region48
        $region47: #{mixnet_encode.17} parent=27 // pred_region
          %s1146 = ssub.s32 128, 128
          %1147 = vsyncadd %s1120, %s1146
          %s1148 = sadd.s32 %s28, %s27
          %s1149 = smul.addr %s1148, 128
          %s1150 = scalar_lea.hbm %s4, %s1149
          %s1152 = sshll.u32 %s1123, 4
          %s1153 = int_to_ptr.vmem [resolvable:$true] %s1152
          %1155 = dma.vmem_to_hbm [thread:$0]  %s1153, 128, %s1150, %s1120
        $region48: #{mixnet_encode.17} parent=27 // pred_fallthru
          _
      $region28: #{mixnet_encode.17} parent=5 // pred_fallthru
        _
      %p1156 = scmp.le.s32.totalorder 2, %s17
      // Predicated region
      $region49: #{mixnet_encode.17} parent=5 // pred_check
        %p1157 = pneg %p1156
      $region50: #{mixnet_encode.17} parent=5 // pred_check_branch
        %1159 = sbr.rel (%p1157) target = $region52
      $region51: #{mixnet_encode.17} parent=5 // pred_region
        %s1160 = ssub.s32 %s17, 2
        // Predicated region
        $region53: #{mixnet_encode.17} parent=51 // pred_check
          %p1161 = pneg %p123
        $region54: #{mixnet_encode.17} parent=51 // pred_check_branch
          %1163 = sbr.rel (%p1161) target = $region56
        $region55: #{mixnet_encode.17} parent=51 // pred_region
          %s1164 = smul.u32 2, %s31
          %p1165 = scmp.lt.s32.totalorder %s30, 1
          %s1166 = scalar_select %p1165, %s30, 1
          %p1167 = scmp.lt.s32.totalorder %s1164, 1
          %s1168 = scalar_select %p1167, %s1164, 1
          %s1169 = smul.addr %s1166, 2
          %s1170 = sadd.s32 %s1168, %s1169
          %s1171 = smul.addr %s1170, 4
          %s1172 = scalar_lea.vmem %s2, %s1171
        $region56: #{mixnet_encode.17} parent=51 // pred_fallthru
          _
        // Predicated region
        $region57: #{mixnet_encode.17} parent=51 // pred_check
          %p1173 = pneg %p151
        $region58: #{mixnet_encode.17} parent=51 // pred_check_branch
          %1175 = sbr.rel (%p1173) target = $region60
        $region59: #{mixnet_encode.17} parent=51 // pred_region
          %s1176 = sand.u32 %s136, 1
          %s1177 = scalar_lea.sflag [#allocation4], %s1176
          %s1178 = sand.u32 %s136, 1
          %s1179 = smul.addr %s1178, 8
          %s1180 = scalar_lea.vmem [#allocation3], %s1179
          %1181 = dma.done %s1177, 128
        $region60: #{mixnet_encode.17} parent=51 // pred_fallthru
          _
        // Predicated region
        $region61: #{mixnet_encode.17} parent=51 // pred_check
          %p1182 = pneg %p179
        $region62: #{mixnet_encode.17} parent=51 // pred_check_branch
          %1184 = sbr.rel (%p1182) target = $region64
        $region63: #{mixnet_encode.17} parent=51 // pred_region
          %s1185 = sand.u32 %s164, 1
          %s1186 = scalar_lea.sflag [#allocation6], %s1185
          %s1187 = sand.u32 %s164, 1
          %s1188 = smul.addr %s1187, 8
          %s1189 = scalar_lea.vmem [#allocation5], %s1188
          %1190 = dma.done %s1186, 128
        $region64: #{mixnet_encode.17} parent=51 // pred_fallthru
          _
      $region52: #{mixnet_encode.17} parent=5 // pred_fallthru
        _
    $region6: #{mixnet_encode.17} parent=1 // loop_footer
      %s21 = sadd.s32 1, %s17
    $region7: #{mixnet_encode.17} parent=1 // loop_footer_branch
      %16 = sbr.rel target = $region3
    $region8: #{mixnet_encode.17} parent=1 // loop_exit
      _
    %1191 = vsyncpa [#allocation4], 1
    %s1192 = scalar_lea.sflag [#allocation4], 1
    %1193 = vsyncpa %s1192, 1
    %1194 = vsyncpa [#allocation6], 1
    %s1195 = scalar_lea.sflag [#allocation6], 1
    %1196 = vsyncpa %s1195, 1

// kernel: mixnet_encode.18
$region0: #{mixnet_encode.18}
  #allocation0 [shape = 'u32[]', space=smem, size = 0x4, offset = 0x4, fixed_abs, tag = 'smem constant byte address 0x4 - core index']
  #allocation1 [shape = 'u32[144,128]{1,0:T(1,128)}', space=vmem, size = 0x12000, scoped, tag = 'internal scratch']
  #allocation2 [shape = 'f32[16,256]{1,0:T(8,128)}', space=vmem, size = 0x4000, scoped, tag = 'scratch operand']
  %s0 = inlined_call_operand.vmem [shape: bf16[2,16,576], index: 0, kind: input, shape index: {}]
  %s1 = inlined_call_operand.vmem [shape: bf16[576,256], index: 1, kind: input, shape index: {}]
  %s2 = inlined_call_operand.vmem [shape: bf16[2,16,256], index: 2, kind: output, shape index: {0}]
  %s3 = inlined_call_operand.vmem [shape: f32[2,8,256], index: 3, kind: output, shape index: {1}]
  %s4 = inlined_call_operand.vmem [shape: f32[2,8,256], index: 4, kind: output, shape index: {2}]
  %5 = xla_tuple %s2, %s3, %s4
  %s6 = sld [smem:[#allocation0]]
  $region65: #{mixnet_encode.18} parent=0
    _
  %s8 = ssub.s32 1, %s6
  %s9 = scalar_select 0, %s8, %s6
  loop: start=0, step=1, limit=4
  $region2: #{mixnet_encode.18} parent=0 // loop_pre_header
    _
  $region3: #{mixnet_encode.18} parent=0 // loop_header
    %s11 = sphi 0, %s15
    %p12 = scmp.ge.s32.totalorder %s11, 4
    %s18 = sphi 0, %s37
    %s19 = sphi 0, %s33
    %s20 = sphi 0, %s29
    %s21 = sphi 0, %s18
    %s22 = sphi 0, %s19
    %s23 = sphi 0, %s20
    %s24 = sphi 0, %s21
    %s25 = sphi 0, %s22
    %s26 = sphi 0, %s23
    %s44 = sphi 0, %s46
    %s47 = sphi 0, %s44
    %s48 = sphi 0, %s47
    %s64 = sphi 0, %s48
    %s70 = sphi 0, %s72
    %s73 = sphi 0, %s70
    %s74 = sphi 0, %s73
    %s90 = sphi 0, %s74
    %s98 = sphi 0, %s100
    %s101 = sphi 0, %s98
    %s102 = sphi 0, %s101
    %s118 = sphi 0, %s102
    %s126 = sphi 0, %s128
    %s129 = sphi 0, %s126
    %s130 = sphi 0, %s129
    %s146 = sphi 0, %s130
    %s154 = sphi 0, %s156
    %s157 = sphi 0, %s154
    %s158 = sphi 0, %s157
    %s174 = sphi 0, %s158
  $region4: #{mixnet_encode.18} parent=0 // loop_header_branch
    %14 = sbr.rel (%p12) target = $region8
  $region5: #{mixnet_encode.18} parent=0 // loop_body
    %s16 = ssub.s32 %s11, 1
    %s17 = ssub.s32 %s11, 2
    %s27 = sadd.s32 1, %s20
    %p28 = scmp.ge.s32.totalorder %s27, 1
    %s29 = scalar_select %p28, 0, %s27
    %s30 = sadd.s32 1, %s19
    %s31 = scalar_select %p28, %s30, %s19
    %p32 = scmp.ge.s32.totalorder %s31, 1
    %s33 = scalar_select %p32, 0, %s31
    %s34 = sadd.s32 1, %s18
    %s35 = scalar_select %p32, %s34, %s18
    %p36 = scmp.ge.s32.totalorder %s35, 2
    %s37 = scalar_select %p36, 0, %s35
    %s38 = ssub.s32 %s18, %s37
    %s39 = ssub.s32 %s19, %s33
    %s40 = sor.u32 %s38, %s39
    %s41 = ssub.s32 %s20, %s29
    %s42 = sor.u32 %s40, %s41
    %p43 = scmp.eq.s32.totalorder %s42, 0
    %s45 = sadd.s32 %s44, 1
    %s46 = scalar_select %p43, %s44, %s45
    %p49 = pneg %p43
    %p50 = scmp.eq.s32.totalorder %s11, 1
    %p51 = por %p49, %p50
    %p52 = scmp.ne.s32.totalorder %s44, %s47
    %p53 = scmp.eq.s32.totalorder %s11, 0
    %p54 = por %p52, %p53
    %p55 = scmp.ne.s32.totalorder %s44, %s47
    %p56 = scmp.eq.s32.totalorder %s16, 1
    %p57 = por %p55, %p56
    %p58 = scmp.ne.s32.totalorder %s47, %s48
    %p59 = scmp.eq.s32.totalorder %s16, 0
    %p60 = por %p58, %p59
    %p61 = scmp.ne.s32.totalorder %s47, %s48
    %p62 = scmp.eq.s32.totalorder %s17, 1
    %p63 = por %p61, %p62
    %p65 = scmp.ne.s32.totalorder %s48, %s64
    %p66 = scmp.eq.s32.totalorder %s17, 0
    %p67 = por %p65, %p66
    %s68 = ssub.s32 %s20, %s29
    %p69 = scmp.eq.s32.totalorder %s68, 0
    %s71 = sadd.s32 %s70, 1
    %s72 = scalar_select %p69, %s70, %s71
    %p75 = pneg %p69
    %p76 = scmp.eq.s32.totalorder %s11, 1
    %p77 = por %p75, %p76
    %p78 = scmp.ne.s32.totalorder %s70, %s73
    %p79 = scmp.eq.s32.totalorder %s11, 0
    %p80 = por %p78, %p79
    %p81 = scmp.ne.s32.totalorder %s70, %s73
    %p82 = scmp.eq.s32.totalorder %s16, 1
    %p83 = por %p81, %p82
    %p84 = scmp.ne.s32.totalorder %s73, %s74
    %p85 = scmp.eq.s32.totalorder %s16, 0
    %p86 = por %p84, %p85
    %p87 = scmp.ne.s32.totalorder %s73, %s74
    %p88 = scmp.eq.s32.totalorder %s17, 1
    %p89 = por %p87, %p88
    %p91 = scmp.ne.s32.totalorder %s74, %s90
    %p92 = scmp.eq.s32.totalorder %s17, 0
    %p93 = por %p91, %p92
    %s94 = ssub.s32 %s18, %s37
    %s95 = ssub.s32 %s19, %s33
    %s96 = sor.u32 %s94, %s95
    %p97 = scmp.eq.s32.totalorder %s96, 0
    %s99 = sadd.s32 %s98, 1
    %s100 = scalar_select %p97, %s98, %s99
    %p103 = pneg %p97
    %p104 = scmp.eq.s32.totalorder %s11, 1
    %p105 = por %p103, %p104
    %p106 = scmp.ne.s32.totalorder %s98, %s101
    %p107 = scmp.eq.s32.totalorder %s11, 0
    %p108 = por %p106, %p107
    %p109 = scmp.ne.s32.totalorder %s98, %s101
    %p110 = scmp.eq.s32.totalorder %s16, 1
    %p111 = por %p109, %p110
    %p112 = scmp.ne.s32.totalorder %s101, %s102
    %p113 = scmp.eq.s32.totalorder %s16, 0
    %p114 = por %p112, %p113
    %p115 = scmp.ne.s32.totalorder %s101, %s102
    %p116 = scmp.eq.s32.totalorder %s17, 1
    %p117 = por %p115, %p116
    %p119 = scmp.ne.s32.totalorder %s102, %s118
    %p120 = scmp.eq.s32.totalorder %s17, 0
    %p121 = por %p119, %p120
    %s122 = ssub.s32 %s18, %s37
    %s123 = ssub.s32 %s19, %s33
    %s124 = sor.u32 %s122, %s123
    %p125 = scmp.eq.s32.totalorder %s124, 0
    %s127 = sadd.s32 %s126, 1
    %s128 = scalar_select %p125, %s126, %s127
    %p131 = pneg %p125
    %p132 = scmp.eq.s32.totalorder %s11, 1
    %p133 = por %p131, %p132
    %p134 = scmp.ne.s32.totalorder %s126, %s129
    %p135 = scmp.eq.s32.totalorder %s11, 0
    %p136 = por %p134, %p135
    %p137 = scmp.ne.s32.totalorder %s126, %s129
    %p138 = scmp.eq.s32.totalorder %s16, 1
    %p139 = por %p137, %p138
    %p140 = scmp.ne.s32.totalorder %s129, %s130
    %p141 = scmp.eq.s32.totalorder %s16, 0
    %p142 = por %p140, %p141
    %p143 = scmp.ne.s32.totalorder %s129, %s130
    %p144 = scmp.eq.s32.totalorder %s17, 1
    %p145 = por %p143, %p144
    %p147 = scmp.ne.s32.totalorder %s130, %s146
    %p148 = scmp.eq.s32.totalorder %s17, 0
    %p149 = por %p147, %p148
    %s150 = ssub.s32 %s18, %s37
    %s151 = ssub.s32 %s19, %s33
    %s152 = sor.u32 %s150, %s151
    %p153 = scmp.eq.s32.totalorder %s152, 0
    %s155 = sadd.s32 %s154, 1
    %s156 = scalar_select %p153, %s154, %s155
    %p159 = pneg %p153
    %p160 = scmp.eq.s32.totalorder %s11, 1
    %p161 = por %p159, %p160
    %p162 = scmp.ne.s32.totalorder %s154, %s157
    %p163 = scmp.eq.s32.totalorder %s11, 0
    %p164 = por %p162, %p163
    %p165 = scmp.ne.s32.totalorder %s154, %s157
    %p166 = scmp.eq.s32.totalorder %s16, 1
    %p167 = por %p165, %p166
    %p168 = scmp.ne.s32.totalorder %s157, %s158
    %p169 = scmp.eq.s32.totalorder %s16, 0
    %p170 = por %p168, %p169
    %p171 = scmp.ne.s32.totalorder %s157, %s158
    %p172 = scmp.eq.s32.totalorder %s17, 1
    %p173 = por %p171, %p172
    %p175 = scmp.ne.s32.totalorder %s158, %s174
    %p176 = scmp.eq.s32.totalorder %s17, 0
    %p177 = por %p175, %p176
    %p178 = scmp.le.s32.totalorder 1, %s11
    %p179 = scmp.lt.s32.totalorder %s11, 3
    %p180 = pnand %p178, %p179
    %p181 = pneg %p180
    // Predicated region
    $region9: #{mixnet_encode.18} parent=5 // pred_check
      _
    $region10: #{mixnet_encode.18} parent=5 // pred_check_branch
      %183 = sbr.rel (%p180) target = $region12
    $region11: #{mixnet_encode.18} parent=5 // pred_region
      %s184 = ssub.s32 %s11, 1
      // Predicated region
      $region13: #{mixnet_encode.18} parent=11 // pred_check
        %p185 = pneg %p86
      $region14: #{mixnet_encode.18} parent=11 // pred_check_branch
        %187 = sbr.rel (%p185) target = $region16
      $region15: #{mixnet_encode.18} parent=11 // pred_region
        %s188 = smul.u32 72, %s23
        %p189 = scmp.lt.s32.totalorder %s188, 71
        %s190 = scalar_select %p189, %s188, 71
        %s191 = smul.addr %s190, 2
        %s192 = smul.addr %s191, 4
        %s193 = scalar_lea.vmem %s1, %s192
        %s194 = smul.u32 72, %s23
      $region16: #{mixnet_encode.18} parent=11 // pred_fallthru
        _
    $region12: #{mixnet_encode.18} parent=5 // pred_fallthru
      _
    %p195 = scmp.lt.s32.totalorder %s11, 2
    // Predicated region
    $region17: #{mixnet_encode.18} parent=5 // pred_check
      %p196 = pneg %p195
    $region18: #{mixnet_encode.18} parent=5 // pred_check_branch
      %198 = sbr.rel (%p196) target = $region20
    $region19: #{mixnet_encode.18} parent=5 // pred_region
      // Predicated region
      $region21: #{mixnet_encode.18} parent=19 // pred_check
        %p199 = pneg %p54
      $region22: #{mixnet_encode.18} parent=19 // pred_check_branch
        %201 = sbr.rel (%p199) target = $region24
      $region23: #{mixnet_encode.18} parent=19 // pred_region
        %s202 = smul.u32 2, %s19
        %s203 = smul.u32 5, %s20
        %p204 = scmp.lt.s32.totalorder %s18, 1
        %s205 = scalar_select %p204, %s18, 1
        %p206 = scmp.lt.s32.totalorder %s202, 1
        %s207 = scalar_select %p206, %s202, 1
        %p208 = scmp.lt.s32.totalorder %s203, 4
        %s209 = scalar_select %p208, %s203, 4
        %s210 = smul.addr %s207, 5
        %s211 = sadd.s32 %s209, %s210
        %s212 = smul.addr %s205, 10
        %s213 = sadd.s32 %s211, %s212
        %s214 = smul.addr %s213, 4
        %s215 = scalar_lea.vmem %s0, %s214
        %s216 = smul.u32 2, %s19
        %s217 = smul.u32 5, %s20
      $region24: #{mixnet_encode.18} parent=19 // pred_fallthru
        _
    $region20: #{mixnet_encode.18} parent=5 // pred_fallthru
      _
    %p218 = scmp.le.s32.totalorder 1, %s11
    %p219 = scmp.lt.s32.totalorder %s11, 3
    %p220 = pnand %p218, %p219
    %p221 = pneg %p220
    // Predicated region
    $region25: #{mixnet_encode.18} parent=5 // pred_check
      _
    $region26: #{mixnet_encode.18} parent=5 // pred_check_branch
      %223 = sbr.rel (%p220) target = $region28
    $region27: #{mixnet_encode.18} parent=5 // pred_region
      %s224 = ssub.s32 %s11, 1
      %s225 = smul.u32 2, %s22
      %s226 = smul.u32 5, %s23
      %p227 = scmp.lt.s32.totalorder %s21, 1
      %s228 = scalar_select %p227, %s21, 1
      %p229 = scmp.lt.s32.totalorder %s225, 1
      %s230 = scalar_select %p229, %s225, 1
      %p231 = scmp.lt.s32.totalorder %s226, 4
      %s232 = scalar_select %p231, %s226, 4
      %s233 = smul.addr %s230, 5
      %s234 = sadd.s32 %s232, %s233
      %s235 = smul.addr %s228, 10
      %s236 = sadd.s32 %s234, %s235
      %s237 = smul.addr %s236, 4
      %s238 = scalar_lea.vmem %s0, %s237
      %p239 = pneg %p60
      %p240 = pneg %p57
      %s241 = smul.u32 72, %s23
      %p242 = scmp.lt.s32.totalorder %s241, 71
      %s243 = scalar_select %p242, %s241, 71
      %s244 = smul.addr %s243, 2
      %s245 = smul.addr %s244, 4
      %s246 = scalar_lea.vmem %s1, %s245
      %p247 = pneg %p86
      %p248 = pneg %p83
      %p249 = pneg %p114
      %p250 = pneg %p111
      %s251 = smul.u32 2, %s22
      %p252 = scmp.lt.s32.totalorder %s21, 1
      %s253 = scalar_select %p252, %s21, 1
      %p254 = scmp.lt.s32.totalorder %s251, 1
      %s255 = scalar_select %p254, %s251, 1
      %s256 = smul.addr %s255, 2
      %s257 = smul.addr %s253, 4
      %s258 = sadd.s32 %s256, %s257
      %s259 = smul.addr %s258, 4
      %s260 = scalar_lea.vmem %s2, %s259
      %p261 = pneg %p142
      %p262 = pneg %p139
      %p263 = scmp.lt.s32.totalorder %s21, 1
      %s264 = scalar_select %p263, %s21, 1
      %p265 = scmp.lt.s32.totalorder %s22, 0
      %s266 = scalar_select %p265, %s22, 0
      %s267 = smul.addr %s266, 2
      %s268 = smul.addr %s264, 2
      %s269 = sadd.s32 %s267, %s268
      %s270 = smul.addr %s269, 8
      %s271 = scalar_lea.vmem %s3, %s270
      %p272 = pneg %p170
      %p273 = pneg %p167
      %p274 = scmp.lt.s32.totalorder %s21, 1
      %s275 = scalar_select %p274, %s21, 1
      %p276 = scmp.lt.s32.totalorder %s22, 0
      %s277 = scalar_select %p276, %s22, 0
      %s278 = smul.addr %s277, 2
      %s279 = smul.addr %s275, 2
      %s280 = sadd.s32 %s278, %s279
      %s281 = smul.addr %s280, 8
      %s282 = scalar_lea.vmem %s4, %s281
      %s283 = smul.u32 2, %s22
      %s284 = smul.u32 5, %s23
      %p285 = scmp.lt.s32.totalorder %s21, 1
      %s286 = scalar_select %p285, %s21, 1
      %p287 = scmp.lt.s32.totalorder %s283, 1
      %s288 = scalar_select %p287, %s283, 1
      %p289 = scmp.lt.s32.totalorder %s284, 4
      %s290 = scalar_select %p289, %s284, 4
      %s291 = smul.addr %s288, 5
      %s292 = sadd.s32 %s290, %s291
      %s293 = smul.addr %s286, 10
      %s294 = sadd.s32 %s292, %s293
      %s295 = smul.addr %s294, 4
      %s296 = scalar_lea.vmem %s0, %s295
      %s297 = smul.u32 2, %s22
      %s298 = smul.u32 5, %s23
      %s299 = smul.u32 72, %s23
      %p300 = scmp.lt.s32.totalorder %s299, 71
      %s301 = scalar_select %p300, %s299, 71
      %s302 = smul.addr %s301, 2
      %s303 = smul.addr %s302, 4
      %s304 = scalar_lea.vmem %s1, %s303
      %s305 = smul.u32 72, %s23
      %s306 = smul.u32 2, %s22
      %p307 = scmp.lt.s32.totalorder %s21, 1
      %s308 = scalar_select %p307, %s21, 1
      %p309 = scmp.lt.s32.totalorder %s306, 1
      %s310 = scalar_select %p309, %s306, 1
      %s311 = smul.addr %s310, 2
      %s312 = smul.addr %s308, 4
      %s313 = sadd.s32 %s311, %s312
      %s314 = smul.addr %s313, 4
      %s315 = scalar_lea.vmem %s2, %s314
      %s316 = smul.u32 2, %s22
      %p317 = scmp.lt.s32.totalorder %s21, 1
      %s318 = scalar_select %p317, %s21, 1
      %p319 = scmp.lt.s32.totalorder %s22, 0
      %s320 = scalar_select %p319, %s22, 0
      %s321 = smul.addr %s320, 2
      %s322 = smul.addr %s318, 2
      %s323 = sadd.s32 %s321, %s322
      %s324 = smul.addr %s323, 8
      %s325 = scalar_lea.vmem %s3, %s324
      %p326 = scmp.lt.s32.totalorder %s21, 1
      %s327 = scalar_select %p326, %s21, 1
      %p328 = scmp.lt.s32.totalorder %s22, 0
      %s329 = scalar_select %p328, %s22, 0
      %s330 = smul.addr %s329, 2
      %s331 = smul.addr %s327, 2
      %s332 = sadd.s32 %s330, %s331
      %s333 = smul.addr %s332, 8
      %s334 = scalar_lea.vmem %s4, %s333
      %p336 = scmp.eq.s32.totalorder %s23, 0
      // Predicated region
      $region29: #{mixnet_encode.18} parent=27 // pred_check
        %p337 = pneg %p336
      $region30: #{mixnet_encode.18} parent=27 // pred_check_branch
        %339 = sbr.rel (%p337) target = $region32
      $region31: #{mixnet_encode.18} parent=27 // pred_region
        %340 = vst [vmem:[#allocation2] sm:$0xff] 0.0
        %341 = vst [vmem:[#allocation2 + $0x8] sm:$0xff] 0.0
        %342 = vst [vmem:[#allocation2 + $0x10] sm:$0xff] 0.0
        %343 = vst [vmem:[#allocation2 + $0x18] sm:$0xff] 0.0
      $region32: #{mixnet_encode.18} parent=27 // pred_fallthru
        _
      %v344 = vld [vmem:[%s296] sm:$0xff]
      %v345 = vld [vmem:[%s296 + $0x8] sm:$0xff]
      %v346 = vld [vmem:[%s296 + $0x10] sm:$0xf]
      %v347 = vld [vmem:[%s296 + $0x14] sm:$0xff]
      %v348 = vld [vmem:[%s296 + $0x1c] sm:$0xff]
      %v349 = vld [vmem:[%s296 + $0x24] sm:$0xf]
      %v350 = vmax.bf16 %v344, 0
      %v351 = vmax.bf16 %v345, 0
      %v352 = vmax.bf16 %v346, 0
      %v353 = vmax.bf16 %v347, 0
      %v354 = vmax.bf16 %v348, 0
      %v355 = vmax.bf16 %v349, 0
      %v356 = vld [vmem:[#allocation2] sm:$0xff]
      %v357 = vld [vmem:[#allocation2 + $0x8] sm:$0xff]
      %v358 = vld [vmem:[#allocation2 + $0x10] sm:$0xff]
      %v359 = vld [vmem:[#allocation2 + $0x18] sm:$0xff]
      %v360 = vld [vmem:[%s304] sm:$0xff]
      %v361 = vld [vmem:[%s304 + $0x8] sm:$0xff]
      %v362 = vld [vmem:[%s304 + $0x10] sm:$0xff]
      %v363 = vld [vmem:[%s304 + $0x18] sm:$0xff]
      %v364 = vld [vmem:[%s304 + $0x20] sm:$0xff]
      %v365 = vld [vmem:[%s304 + $0x28] sm:$0xff]
      %v366 = vld [vmem:[%s304 + $0x30] sm:$0xff]
      %v367 = vld [vmem:[%s304 + $0x38] sm:$0xff]
      %v368 = vld [vmem:[%s304 + $0x40] sm:$0xff]
      %v369 = vld [vmem:[%s304 + $0x48] sm:$0xff]
      %v370 = vld [vmem:[%s304 + $0x50] sm:$0xff]
      %v371 = vld [vmem:[%s304 + $0x58] sm:$0xff]
      %v372 = vld [vmem:[%s304 + $0x60] sm:$0xff]
      %v373 = vld [vmem:[%s304 + $0x68] sm:$0xff]
      %v374 = vld [vmem:[%s304 + $0x70] sm:$0xff]
      %v375 = vld [vmem:[%s304 + $0x78] sm:$0xff]
      %v376 = vld [vmem:[%s304 + $0x80] sm:$0xff]
      %v377 = vld [vmem:[%s304 + $0x88] sm:$0xff]
      %v378 = vld [vmem:[%s304 + $0x90] sm:$0xff]
      %v379 = vld [vmem:[%s304 + $0x98] sm:$0xff]
      %v380 = vld [vmem:[%s304 + $0xa0] sm:$0xff]
      %v381 = vld [vmem:[%s304 + $0xa8] sm:$0xff]
      %v382 = vld [vmem:[%s304 + $0xb0] sm:$0xff]
      %v383 = vld [vmem:[%s304 + $0xb8] sm:$0xff]
      %v384 = vld [vmem:[%s304 + $0xc0] sm:$0xff]
      %v385 = vld [vmem:[%s304 + $0xc8] sm:$0xff]
      %v386 = vld [vmem:[%s304 + $0xd0] sm:$0xff]
      %v387 = vld [vmem:[%s304 + $0xd8] sm:$0xff]
      %v388 = vld [vmem:[%s304 + $0xe0] sm:$0xff]
      %v389 = vld [vmem:[%s304 + $0xe8] sm:$0xff]
      %v390 = vld [vmem:[%s304 + $0xf0] sm:$0xff]
      %v391 = vld [vmem:[%s304 + $0xf8] sm:$0xff]
      %v392 = vld [vmem:[%s304 + $0x100] sm:$0xff]
      %v393 = vld [vmem:[%s304 + $0x108] sm:$0xff]
      %v394 = vld [vmem:[%s304 + $0x110] sm:$0xff]
      %v395 = vld [vmem:[%s304 + $0x118] sm:$0xff]
      %v396 = vld [vmem:[%s304 + $0x120] sm:$0xff]
      %v397 = vld [vmem:[%s304 + $0x128] sm:$0xff]
      %v398 = vld [vmem:[%s304 + $0x130] sm:$0xff]
      %v399 = vld [vmem:[%s304 + $0x138] sm:$0xff]
      %v400 = vld [vmem:[%s304 + $0x140] sm:$0xff]
      %v401 = vld [vmem:[%s304 + $0x148] sm:$0xff]
      %v402 = vld [vmem:[%s304 + $0x150] sm:$0xff]
      %v403 = vld [vmem:[%s304 + $0x158] sm:$0xff]
      %v404 = vld [vmem:[%s304 + $0x160] sm:$0xff]
      %v405 = vld [vmem:[%s304 + $0x168] sm:$0xff]
      %v406 = vld [vmem:[%s304 + $0x170] sm:$0xff]
      %v407 = vld [vmem:[%s304 + $0x178] sm:$0xff]
      %v408 = vld [vmem:[%s304 + $0x180] sm:$0xff]
      %v409 = vld [vmem:[%s304 + $0x188] sm:$0xff]
      %v410 = vld [vmem:[%s304 + $0x190] sm:$0xff]
      %v411 = vld [vmem:[%s304 + $0x198] sm:$0xff]
      %v412 = vld [vmem:[%s304 + $0x1a0] sm:$0xff]
      %v413 = vld [vmem:[%s304 + $0x1a8] sm:$0xff]
      %v414 = vld [vmem:[%s304 + $0x1b0] sm:$0xff]
      %v415 = vld [vmem:[%s304 + $0x1b8] sm:$0xff]
      %v416 = vld [vmem:[%s304 + $0x1c0] sm:$0xff]
      %v417 = vld [vmem:[%s304 + $0x1c8] sm:$0xff]
      %v418 = vld [vmem:[%s304 + $0x1d0] sm:$0xff]
      %v419 = vld [vmem:[%s304 + $0x1d8] sm:$0xff]
      %v420 = vld [vmem:[%s304 + $0x1e0] sm:$0xff]
      %v421 = vld [vmem:[%s304 + $0x1e8] sm:$0xff]
      %v422 = vld [vmem:[%s304 + $0x1f0] sm:$0xff]
      %v423 = vld [vmem:[%s304 + $0x1f8] sm:$0xff]
      %v424 = vld [vmem:[%s304 + $0x200] sm:$0xff]
      %v425 = vld [vmem:[%s304 + $0x208] sm:$0xff]
      %v426 = vld [vmem:[%s304 + $0x210] sm:$0xff]
      %v427 = vld [vmem:[%s304 + $0x218] sm:$0xff]
      %v428 = vld [vmem:[%s304 + $0x220] sm:$0xff]
      %v429 = vld [vmem:[%s304 + $0x228] sm:$0xff]
      %v430 = vld [vmem:[%s304 + $0x230] sm:$0xff]
      %v431 = vld [vmem:[%s304 + $0x238] sm:$0xff]
      %v438 = vunpack.c.l.b16 %v350
      %v439 = vunpack.c.h.b16 %v350
      %v440 = vunpack.c.l.b16 %v351
      %v441 = vunpack.c.h.b16 %v351
      %v442 = vunpack.c.l.b16 %v352
      %v443 = vunpack.c.l.b16 %v353
      %v444 = vunpack.c.h.b16 %v353
      %v445 = vunpack.c.l.b16 %v354
      %v446 = vunpack.c.h.b16 %v354
      %v447 = vunpack.c.l.b16 %v355
      %v448 = vpack.c.b16 %v443, %v438
      %v449 = vpack.c.b16 %v444, %v439
      %v450 = vpack.c.b16 %v445, %v440
      %v451 = vpack.c.b16 %v446, %v441
      %v452 = vpack.c.b16 %v447, %v442
      %v529 = vunpack.c.l.b16 %v360
      %v530 = vunpack.c.h.b16 %v360
      %v531 = vunpack.c.l.b16 %v361
      %v532 = vunpack.c.h.b16 %v361
      %v533 = vunpack.c.l.b16 %v362
      %v534 = vunpack.c.h.b16 %v362
      %v535 = vunpack.c.l.b16 %v363
      %v536 = vunpack.c.h.b16 %v363
      %v537 = vunpack.c.l.b16 %v364
      %v538 = vunpack.c.h.b16 %v364
      %v539 = vunpack.c.l.b16 %v365
      %v540 = vunpack.c.h.b16 %v365
      %v541 = vunpack.c.l.b16 %v366
      %v542 = vunpack.c.h.b16 %v366
      %v543 = vunpack.c.l.b16 %v367
      %v544 = vunpack.c.h.b16 %v367
      %v545 = vunpack.c.l.b16 %v368
      %v546 = vunpack.c.h.b16 %v368
      %v547 = vunpack.c.l.b16 %v369
      %v548 = vunpack.c.h.b16 %v369
      %v549 = vunpack.c.l.b16 %v370
      %v550 = vunpack.c.h.b16 %v370
      %v551 = vunpack.c.l.b16 %v371
      %v552 = vunpack.c.h.b16 %v371
      %v553 = vunpack.c.l.b16 %v372
      %v554 = vunpack.c.h.b16 %v372
      %v555 = vunpack.c.l.b16 %v373
      %v556 = vunpack.c.h.b16 %v373
      %v557 = vunpack.c.l.b16 %v374
      %v558 = vunpack.c.h.b16 %v374
      %v559 = vunpack.c.l.b16 %v375
      %v560 = vunpack.c.h.b16 %v375
      %v561 = vunpack.c.l.b16 %v376
      %v562 = vunpack.c.h.b16 %v376
      %v563 = vunpack.c.l.b16 %v377
      %v564 = vunpack.c.h.b16 %v377
      %v565 = vunpack.c.l.b16 %v378
      %v566 = vunpack.c.h.b16 %v378
      %v567 = vunpack.c.l.b16 %v379
      %v568 = vunpack.c.h.b16 %v379
      %v569 = vunpack.c.l.b16 %v380
      %v570 = vunpack.c.h.b16 %v380
      %v571 = vunpack.c.l.b16 %v381
      %v572 = vunpack.c.h.b16 %v381
      %v573 = vunpack.c.l.b16 %v382
      %v574 = vunpack.c.h.b16 %v382
      %v575 = vunpack.c.l.b16 %v383
      %v576 = vunpack.c.h.b16 %v383
      %v577 = vunpack.c.l.b16 %v384
      %v578 = vunpack.c.h.b16 %v384
      %v579 = vunpack.c.l.b16 %v385
      %v580 = vunpack.c.h.b16 %v385
      %v581 = vunpack.c.l.b16 %v386
      %v582 = vunpack.c.h.b16 %v386
      %v583 = vunpack.c.l.b16 %v387
      %v584 = vunpack.c.h.b16 %v387
      %v585 = vunpack.c.l.b16 %v388
      %v586 = vunpack.c.h.b16 %v388
      %v587 = vunpack.c.l.b16 %v389
      %v588 = vunpack.c.h.b16 %v389
      %v589 = vunpack.c.l.b16 %v390
      %v590 = vunpack.c.h.b16 %v390
      %v591 = vunpack.c.l.b16 %v391
      %v592 = vunpack.c.h.b16 %v391
      %v593 = vunpack.c.l.b16 %v392
      %v594 = vunpack.c.h.b16 %v392
      %v595 = vunpack.c.l.b16 %v393
      %v596 = vunpack.c.h.b16 %v393
      %v597 = vunpack.c.l.b16 %v394
      %v598 = vunpack.c.h.b16 %v394
      %v599 = vunpack.c.l.b16 %v395
      %v600 = vunpack.c.h.b16 %v395
      %v601 = vunpack.c.l.b16 %v396
      %v602 = vunpack.c.h.b16 %v396
      %v603 = vunpack.c.l.b16 %v397
      %v604 = vunpack.c.h.b16 %v397
      %v605 = vunpack.c.l.b16 %v398
      %v606 = vunpack.c.h.b16 %v398
      %v607 = vunpack.c.l.b16 %v399
      %v608 = vunpack.c.h.b16 %v399
      %v609 = vunpack.c.l.b16 %v400
      %v610 = vunpack.c.h.b16 %v400
      %v611 = vunpack.c.l.b16 %v401
      %v612 = vunpack.c.h.b16 %v401
      %v613 = vunpack.c.l.b16 %v402
      %v614 = vunpack.c.h.b16 %v402
      %v615 = vunpack.c.l.b16 %v403
      %v616 = vunpack.c.h.b16 %v403
      %v617 = vunpack.c.l.b16 %v404
      %v618 = vunpack.c.h.b16 %v404
      %v619 = vunpack.c.l.b16 %v405
      %v620 = vunpack.c.h.b16 %v405
      %v621 = vunpack.c.l.b16 %v406
      %v622 = vunpack.c.h.b16 %v406
      %v623 = vunpack.c.l.b16 %v407
      %v624 = vunpack.c.h.b16 %v407
      %v625 = vunpack.c.l.b16 %v408
      %v626 = vunpack.c.h.b16 %v408
      %v627 = vunpack.c.l.b16 %v409
      %v628 = vunpack.c.h.b16 %v409
      %v629 = vunpack.c.l.b16 %v410
      %v630 = vunpack.c.h.b16 %v410
      %v631 = vunpack.c.l.b16 %v411
      %v632 = vunpack.c.h.b16 %v411
      %v633 = vunpack.c.l.b16 %v412
      %v634 = vunpack.c.h.b16 %v412
      %v635 = vunpack.c.l.b16 %v413
      %v636 = vunpack.c.h.b16 %v413
      %v637 = vunpack.c.l.b16 %v414
      %v638 = vunpack.c.h.b16 %v414
      %v639 = vunpack.c.l.b16 %v415
      %v640 = vunpack.c.h.b16 %v415
      %v641 = vunpack.c.l.b16 %v416
      %v642 = vunpack.c.h.b16 %v416
      %v643 = vunpack.c.l.b16 %v417
      %v644 = vunpack.c.h.b16 %v417
      %v645 = vunpack.c.l.b16 %v418
      %v646 = vunpack.c.h.b16 %v418
      %v647 = vunpack.c.l.b16 %v419
      %v648 = vunpack.c.h.b16 %v419
      %v649 = vunpack.c.l.b16 %v420
      %v650 = vunpack.c.h.b16 %v420
      %v651 = vunpack.c.l.b16 %v421
      %v652 = vunpack.c.h.b16 %v421
      %v653 = vunpack.c.l.b16 %v422
      %v654 = vunpack.c.h.b16 %v422
      %v655 = vunpack.c.l.b16 %v423
      %v656 = vunpack.c.h.b16 %v423
      %v657 = vunpack.c.l.b16 %v424
      %v658 = vunpack.c.h.b16 %v424
      %v659 = vunpack.c.l.b16 %v425
      %v660 = vunpack.c.h.b16 %v425
      %v661 = vunpack.c.l.b16 %v426
      %v662 = vunpack.c.h.b16 %v426
      %v663 = vunpack.c.l.b16 %v427
      %v664 = vunpack.c.h.b16 %v427
      %v665 = vunpack.c.l.b16 %v428
      %v666 = vunpack.c.h.b16 %v428
      %v667 = vunpack.c.l.b16 %v429
      %v668 = vunpack.c.h.b16 %v429
      %v669 = vunpack.c.l.b16 %v430
      %v670 = vunpack.c.h.b16 %v430
      %v671 = vunpack.c.l.b16 %v431
      %v672 = vunpack.c.h.b16 %v431
      %v673 = vpack.c.b16 %v531, %v529
      %v674 = vpack.c.b16 %v532, %v530
      %v675 = vpack.c.b16 %v535, %v533
      %v676 = vpack.c.b16 %v536, %v534
      %v677 = vpack.c.b16 %v539, %v537
      %v678 = vpack.c.b16 %v540, %v538
      %v679 = vpack.c.b16 %v543, %v541
      %v680 = vpack.c.b16 %v544, %v542
      %v681 = vpack.c.b16 %v547, %v545
      %v682 = vpack.c.b16 %v548, %v546
      %v683 = vpack.c.b16 %v551, %v549
      %v684 = vpack.c.b16 %v552, %v550
      %v685 = vpack.c.b16 %v555, %v553
      %v686 = vpack.c.b16 %v556, %v554
      %v687 = vpack.c.b16 %v559, %v557
      %v688 = vpack.c.b16 %v560, %v558
      %v689 = vpack.c.b16 %v563, %v561
      %v690 = vpack.c.b16 %v564, %v562
      %v691 = vpack.c.b16 %v567, %v565
      %v692 = vpack.c.b16 %v568, %v566
      %v693 = vpack.c.b16 %v571, %v569
      %v694 = vpack.c.b16 %v572, %v570
      %v695 = vpack.c.b16 %v575, %v573
      %v696 = vpack.c.b16 %v576, %v574
      %v697 = vpack.c.b16 %v579, %v577
      %v698 = vpack.c.b16 %v580, %v578
      %v699 = vpack.c.b16 %v583, %v581
      %v700 = vpack.c.b16 %v584, %v582
      %v701 = vpack.c.b16 %v587, %v585
      %v702 = vpack.c.b16 %v588, %v586
      %v703 = vpack.c.b16 %v591, %v589
      %v704 = vpack.c.b16 %v592, %v590
      %v705 = vpack.c.b16 %v595, %v593
      %v706 = vpack.c.b16 %v596, %v594
      %v707 = vpack.c.b16 %v599, %v597
      %v708 = vpack.c.b16 %v600, %v598
      %v709 = vpack.c.b16 %v603, %v601
      %v710 = vpack.c.b16 %v604, %v602
      %v711 = vpack.c.b16 %v607, %v605
      %v712 = vpack.c.b16 %v608, %v606
      %v713 = vpack.c.b16 %v611, %v609
      %v714 = vpack.c.b16 %v612, %v610
      %v715 = vpack.c.b16 %v615, %v613
      %v716 = vpack.c.b16 %v616, %v614
      %v717 = vpack.c.b16 %v619, %v617
      %v718 = vpack.c.b16 %v620, %v618
      %v719 = vpack.c.b16 %v623, %v621
      %v720 = vpack.c.b16 %v624, %v622
      %v721 = vpack.c.b16 %v627, %v625
      %v722 = vpack.c.b16 %v628, %v626
      %v723 = vpack.c.b16 %v631, %v629
      %v724 = vpack.c.b16 %v632, %v630
      %v725 = vpack.c.b16 %v635, %v633
      %v726 = vpack.c.b16 %v636, %v634
      %v727 = vpack.c.b16 %v639, %v637
      %v728 = vpack.c.b16 %v640, %v638
      %v729 = vpack.c.b16 %v643, %v641
      %v730 = vpack.c.b16 %v644, %v642
      %v731 = vpack.c.b16 %v647, %v645
      %v732 = vpack.c.b16 %v648, %v646
      %v733 = vpack.c.b16 %v651, %v649
      %v734 = vpack.c.b16 %v652, %v650
      %v735 = vpack.c.b16 %v655, %v653
      %v736 = vpack.c.b16 %v656, %v654
      %v737 = vpack.c.b16 %v659, %v657
      %v738 = vpack.c.b16 %v660, %v658
      %v739 = vpack.c.b16 %v663, %v661
      %v740 = vpack.c.b16 %v664, %v662
      %v741 = vpack.c.b16 %v667, %v665
      %v742 = vpack.c.b16 %v668, %v666
      %v743 = vpack.c.b16 %v671, %v669
      %v744 = vpack.c.b16 %v672, %v670
      %vm817 = vcmask 523264
      %v819 = vsel %vm817, %v452, 0
      %821 = vmatprep.subr.bf16.mxu0 %v674
      %822 = vmatpush1.bf16.msra.mxu0 %v673
      %823 = vmatprep.subr.bf16.mxu0 %v676
      %824 = vmatpush1.bf16.msra.mxu0 %v675
      %825 = vmatprep.subr.bf16.mxu0 %v678
      %826 = vmatpush1.bf16.msra.mxu0 %v677
      %827 = vmatprep.subr.bf16.mxu0 %v680
      %828 = vmatpush1.bf16.msra.mxu0 %v679
      %829 = vmatprep.subr.bf16.mxu0 %v682
      %830 = vmatpush1.bf16.msra.mxu0 %v681
      %831 = vmatprep.subr.bf16.mxu0 %v684
      %832 = vmatpush1.bf16.msra.mxu0 %v683
      %833 = vmatprep.subr.bf16.mxu0 %v686
      %834 = vmatpush1.bf16.msra.mxu0 %v685
      %835 = vmatprep.subr.bf16.mxu0 %v688
      %836 = vmatpush1.bf16.msra.mxu0 %v687
      %837 = vmatprep.subr.bf16.mxu0 %v690
      %838 = vmatpush1.bf16.msra.mxu0 %v689
      %839 = vmatprep.subr.bf16.mxu0 %v692
      %840 = vmatpush1.bf16.msra.mxu0 %v691
      %841 = vmatprep.subr.bf16.mxu0 %v694
      %842 = vmatpush1.bf16.msra.mxu0 %v693
      %843 = vmatprep.subr.bf16.mxu0 %v696
      %844 = vmatpush1.bf16.msra.mxu0 %v695
      %845 = vmatprep.subr.bf16.mxu0 %v698
      %846 = vmatpush1.bf16.msra.mxu0 %v697
      %847 = vmatprep.subr.bf16.mxu0 %v700
      %848 = vmatpush1.bf16.msra.mxu0 %v699
      %849 = vmatprep.subr.bf16.mxu0 %v702
      %850 = vmatpush1.bf16.msra.mxu0 %v701
      %851 = vmatprep.subr.bf16.mxu0 %v704
      %852 = vmatpush1.bf16.msra.mxu0 %v703
      %853 = vmatprep.mubr.bf16.mxu0 %v449
      %854 = vmatmul.mubr.bf16.gmra.mrb[0].mxu0 %v448
      %v855 = vpop.f32.mrb[0].mxu0
      %v856 = vadd.f32 0.0, %v855
      %v857 = vpop.f32.mrb[0].mxu0
      %v858 = vadd.f32 0.0, %v857
      %v859 = vpop.f32.mrb[0].mxu0
      %v860 = vadd.f32 0.0, %v859
      %v861 = vpop.f32.mrb[0].mxu0
      %v862 = vadd.f32 0.0, %v861
      %863 = vdwg.mxu0
      %864 = vmatprep.subr.bf16.mxu0 %v706
      %865 = vmatpush1.bf16.msra.mxu0 %v705
      %866 = vmatprep.subr.bf16.mxu0 %v708
      %867 = vmatpush1.bf16.msra.mxu0 %v707
      %868 = vmatprep.subr.bf16.mxu0 %v710
      %869 = vmatpush1.bf16.msra.mxu0 %v709
      %870 = vmatprep.subr.bf16.mxu0 %v712
      %871 = vmatpush1.bf16.msra.mxu0 %v711
      %872 = vmatprep.subr.bf16.mxu0 %v714
      %873 = vmatpush1.bf16.msra.mxu0 %v713
      %874 = vmatprep.subr.bf16.mxu0 %v716
      %875 = vmatpush1.bf16.msra.mxu0 %v715
      %876 = vmatprep.subr.bf16.mxu0 %v718
      %877 = vmatpush1.bf16.msra.mxu0 %v717
      %878 = vmatprep.subr.bf16.mxu0 %v720
      %879 = vmatpush1.bf16.msra.mxu0 %v719
      %880 = vmatprep.subr.bf16.mxu0 %v722
      %881 = vmatpush1.bf16.msra.mxu0 %v721
      %882 = vmatprep.subr.bf16.mxu0 %v724
      %883 = vmatpush1.bf16.msra.mxu0 %v723
      %884 = vmatprep.subr.bf16.mxu0 %v726
      %885 = vmatpush1.bf16.msra.mxu0 %v725
      %886 = vmatprep.subr.bf16.mxu0 %v728
      %887 = vmatpush1.bf16.msra.mxu0 %v727
      %888 = vmatprep.subr.bf16.mxu0 %v730
      %889 = vmatpush1.bf16.msra.mxu0 %v729
      %890 = vmatprep.subr.bf16.mxu0 %v732
      %891 = vmatpush1.bf16.msra.mxu0 %v731
      %892 = vmatprep.subr.bf16.mxu0 %v734
      %893 = vmatpush1.bf16.msra.mxu0 %v733
      %894 = vmatprep.subr.bf16.mxu0 %v736
      %895 = vmatpush1.bf16.msra.mxu0 %v735
      %896 = vmatprep.mubr.bf16.mxu0 %v451
      %897 = vmatmul.mubr.bf16.gmra.mrb[0].mxu0 %v450
      %v898 = vpop.f32.mrb[0].mxu0
      %v899 = vadd.f32 %v856, %v898
      %v900 = vpop.f32.mrb[0].mxu0
      %v901 = vadd.f32 %v858, %v900
      %v902 = vpop.f32.mrb[0].mxu0
      %v903 = vadd.f32 %v860, %v902
      %v904 = vpop.f32.mrb[0].mxu0
      %v905 = vadd.f32 %v862, %v904
      %906 = vdwg.mxu0
      %907 = vmatprep.subr.bf16.mxu0 %v738
      %908 = vmatpush1.bf16.msra.mxu0 %v737
      %909 = vmatprep.subr.bf16.mxu0 %v740
      %910 = vmatpush1.bf16.msra.mxu0 %v739
      %911 = vmatprep.subr.bf16.mxu0 %v742
      %912 = vmatpush1.bf16.msra.mxu0 %v741
      %913 = vmatprep.subr.bf16.mxu0 %v744
      %914 = vmatpush1.bf16.msra.mxu0 %v743
      %915 = vmatprep.subr.bf16.mxu0 0
      %916 = vmatpush1.bf16.msra.mxu0 0
      %917 = vmatprep.subr.bf16.mxu0 0
      %918 = vmatpush1.bf16.msra.mxu0 0
      %919 = vmatprep.subr.bf16.mxu0 0
      %920 = vmatpush1.bf16.msra.mxu0 0
      %921 = vmatprep.subr.bf16.mxu0 0
      %922 = vmatpush1.bf16.msra.mxu0 0
      %923 = vmatprep.subr.bf16.mxu0 0
      %924 = vmatpush1.bf16.msra.mxu0 0
      %925 = vmatprep.subr.bf16.mxu0 0
      %926 = vmatpush1.bf16.msra.mxu0 0
      %927 = vmatprep.subr.bf16.mxu0 0
      %928 = vmatpush1.bf16.msra.mxu0 0
      %929 = vmatprep.subr.bf16.mxu0 0
      %930 = vmatpush1.bf16.msra.mxu0 0
      %931 = vmatprep.subr.bf16.mxu0 0
      %932 = vmatpush1.bf16.msra.mxu0 0
      %933 = vmatprep.subr.bf16.mxu0 0
      %934 = vmatpush1.bf16.msra.mxu0 0
      %935 = vmatprep.subr.bf16.mxu0 0
      %936 = vmatpush1.bf16.msra.mxu0 0
      %937 = vmatprep.subr.bf16.mxu0 0
      %938 = vmatpush1.bf16.msra.mxu0 0
      %939 = vmatprep.mubr.bf16.mxu0 0
      %940 = vmatmul.mubr.bf16.gmra.mrb[0].mxu0 %v819
      %v941 = vpop.f32.mrb[0].mxu0
      %v942 = vadd.f32 %v899, %v941
      %v943 = vpop.f32.mrb[0].mxu0
      %v944 = vadd.f32 %v901, %v943
      %v945 = vpop.f32.mrb[0].mxu0
      %v946 = vadd.f32 %v903, %v945
      %v947 = vpop.f32.mrb[0].mxu0
      %v948 = vadd.f32 %v905, %v947
      %949 = vdwg.mxu0
      %v950 = vadd.f32 %v356, %v942
      %v951 = vadd.f32 %v357, %v944
      %v952 = vadd.f32 %v358, %v946
      %v953 = vadd.f32 %v359, %v948
      %954 = vst [vmem:[#allocation2] sm:$0xff] %v950
      %955 = vst [vmem:[#allocation2 + $0x8] sm:$0xff] %v951
      %956 = vst [vmem:[#allocation2 + $0x10] sm:$0xff] %v952
      %957 = vst [vmem:[#allocation2 + $0x18] sm:$0xff] %v953
      // Predicated region
      $region33: #{mixnet_encode.18} parent=27 // pred_check
        %p958 = pneg %p336
      $region34: #{mixnet_encode.18} parent=27 // pred_check_branch
        %960 = sbr.rel (%p958) target = $region36
      $region35: #{mixnet_encode.18} parent=27 // pred_region
        %v961 = vld [vmem:[#allocation2] sm:$0xff]
        %v962 = vld [vmem:[#allocation2 + $0x8] sm:$0xff]
        %v963 = vld [vmem:[#allocation2 + $0x10] sm:$0xff]
        %v964 = vld [vmem:[#allocation2 + $0x18] sm:$0xff]
        %v965 = vpack.c.bf16 %v963, %v961
        %v966 = vpack.c.bf16 %v964, %v962
        %v969 = vunpack.c.l.b16 %v965
        %v970 = vunpack.c.l.b16 %v966
        %v971 = vunpack.c.h.b16 %v965
        %v972 = vunpack.c.h.b16 %v966
        %v973 = vpack.c.b16 %v970, %v969
        %v974 = vpack.c.b16 %v972, %v971
        %977 = vst [vmem:[%s315] sm:$0xff] %v973
        %978 = vst [vmem:[%s315 + $0x8] sm:$0xff] %v974
        %v979 = vadd.f32 %v961, %v963
        %v980 = vrot.slane %v979, 4
        %v981 = vadd.f32 %v979, %v980
        %v982 = vrot.slane %v981, 2
        %v983 = vadd.f32 %v981, %v982
        %v984 = vrot.slane %v983, 1
        %v985 = vadd.f32 %v983, %v984
        %v986 = vadd.f32 %v962, %v964
        %v987 = vrot.slane %v986, 4
        %v988 = vadd.f32 %v986, %v987
        %v989 = vrot.slane %v988, 2
        %v990 = vadd.f32 %v988, %v989
        %v991 = vrot.slane %v990, 1
        %v992 = vadd.f32 %v990, %v991
        %v993 = vmul.f32 %v961, %v961
        %v994 = vmul.f32 %v962, %v962
        %v995 = vmul.f32 %v963, %v963
        %v996 = vmul.f32 %v964, %v964
        %v997 = vadd.f32 %v993, %v995
        %v998 = vrot.slane %v997, 4
        %v999 = vadd.f32 %v997, %v998
        %v1000 = vrot.slane %v999, 2
        %v1001 = vadd.f32 %v999, %v1000
        %v1002 = vrot.slane %v1001, 1
        %v1003 = vadd.f32 %v1001, %v1002
        %v1004 = vadd.f32 %v994, %v996
        %v1005 = vrot.slane %v1004, 4
        %v1006 = vadd.f32 %v1004, %v1005
        %v1007 = vrot.slane %v1006, 2
        %v1008 = vadd.f32 %v1006, %v1007
        %v1009 = vrot.slane %v1008, 1
        %v1010 = vadd.f32 %v1008, %v1009
        %1011 = vst [vmem:[%s325] sm:$0xff] %v985
        %1012 = vst [vmem:[%s325 + $0x8] sm:$0xff] %v992
        %1013 = vst [vmem:[%s334] sm:$0xff] %v1003
        %1014 = vst [vmem:[%s334 + $0x8] sm:$0xff] %v1010
      $region36: #{mixnet_encode.18} parent=27 // pred_fallthru
        _
      %s1015 = smul.u32 2, %s22
      %p1016 = scmp.lt.s32.totalorder %s21, 1
      %s1017 = scalar_select %p1016, %s21, 1
      %p1018 = scmp.lt.s32.totalorder %s1015, 1
      %s1019 = scalar_select %p1018, %s1015, 1
      %s1020 = smul.addr %s1019, 2
      %s1021 = smul.addr %s1017, 4
      %s1022 = sadd.s32 %s1020, %s1021
      %s1023 = smul.addr %s1022, 4
      %s1024 = scalar_lea.vmem %s2, %s1023
      %p1025 = scmp.lt.s32.totalorder %s21, 1
      %s1026 = scalar_select %p1025, %s21, 1
      %p1027 = scmp.lt.s32.totalorder %s22, 0
      %s1028 = scalar_select %p1027, %s22, 0
      %s1029 = smul.addr %s1028, 2
      %s1030 = smul.addr %s1026, 2
      %s1031 = sadd.s32 %s1029, %s1030
      %s1032 = smul.addr %s1031, 8
      %s1033 = scalar_lea.vmem %s3, %s1032
      %p1034 = scmp.lt.s32.totalorder %s21, 1
      %s1035 = scalar_select %p1034, %s21, 1
      %p1036 = scmp.lt.s32.totalorder %s22, 0
      %s1037 = scalar_select %p1036, %s22, 0
      %s1038 = smul.addr %s1037, 2
      %s1039 = smul.addr %s1035, 2
      %s1040 = sadd.s32 %s1038, %s1039
      %s1041 = smul.addr %s1040, 8
      %s1042 = scalar_lea.vmem %s4, %s1041
      // Predicated region
      $region37: #{mixnet_encode.18} parent=27 // pred_check
        %p1043 = pneg %p111
      $region38: #{mixnet_encode.18} parent=27 // pred_check_branch
        %1045 = sbr.rel (%p1043) target = $region40
      $region39: #{mixnet_encode.18} parent=27 // pred_region
        %s1046 = smul.u32 2, %s22
      $region40: #{mixnet_encode.18} parent=27 // pred_fallthru
        _
      // Predicated region
      $region41: #{mixnet_encode.18} parent=27 // pred_check
        %p1047 = pneg %p139
      $region42: #{mixnet_encode.18} parent=27 // pred_check_branch
        %1049 = sbr.rel (%p1047) target = $region44
      $region43: #{mixnet_encode.18} parent=27 // pred_region
        _
      $region44: #{mixnet_encode.18} parent=27 // pred_fallthru
        _
      // Predicated region
      $region45: #{mixnet_encode.18} parent=27 // pred_check
        %p1050 = pneg %p167
      $region46: #{mixnet_encode.18} parent=27 // pred_check_branch
        %1052 = sbr.rel (%p1050) target = $region48
      $region47: #{mixnet_encode.18} parent=27 // pred_region
        _
      $region48: #{mixnet_encode.18} parent=27 // pred_fallthru
        _
    $region28: #{mixnet_encode.18} parent=5 // pred_fallthru
      _
    %p1053 = scmp.le.s32.totalorder 2, %s11
    // Predicated region
    $region49: #{mixnet_encode.18} parent=5 // pred_check
      %p1054 = pneg %p1053
    $region50: #{mixnet_encode.18} parent=5 // pred_check_branch
      %1056 = sbr.rel (%p1054) target = $region52
    $region51: #{mixnet_encode.18} parent=5 // pred_region
      %s1057 = ssub.s32 %s11, 2
      // Predicated region
      $region53: #{mixnet_encode.18} parent=51 // pred_check
        %p1058 = pneg %p117
      $region54: #{mixnet_encode.18} parent=51 // pred_check_branch
        %1060 = sbr.rel (%p1058) target = $region56
      $region55: #{mixnet_encode.18} parent=51 // pred_region
        %s1061 = smul.u32 2, %s25
        %p1062 = scmp.lt.s32.totalorder %s24, 1
        %s1063 = scalar_select %p1062, %s24, 1
        %p1064 = scmp.lt.s32.totalorder %s1061, 1
        %s1065 = scalar_select %p1064, %s1061, 1
        %s1066 = smul.addr %s1065, 2
        %s1067 = smul.addr %s1063, 4
        %s1068 = sadd.s32 %s1066, %s1067
        %s1069 = smul.addr %s1068, 4
        %s1070 = scalar_lea.vmem %s2, %s1069
      $region56: #{mixnet_encode.18} parent=51 // pred_fallthru
        _
      // Predicated region
      $region57: #{mixnet_encode.18} parent=51 // pred_check
        %p1071 = pneg %p145
      $region58: #{mixnet_encode.18} parent=51 // pred_check_branch
        %1073 = sbr.rel (%p1071) target = $region60
      $region59: #{mixnet_encode.18} parent=51 // pred_region
        %p1074 = scmp.lt.s32.totalorder %s24, 1
        %s1075 = scalar_select %p1074, %s24, 1
        %p1076 = scmp.lt.s32.totalorder %s25, 0
        %s1077 = scalar_select %p1076, %s25, 0
        %s1078 = smul.addr %s1077, 2
        %s1079 = smul.addr %s1075, 2
        %s1080 = sadd.s32 %s1078, %s1079
        %s1081 = smul.addr %s1080, 8
        %s1082 = scalar_lea.vmem %s3, %s1081
      $region60: #{mixnet_encode.18} parent=51 // pred_fallthru
        _
      // Predicated region
      $region61: #{mixnet_encode.18} parent=51 // pred_check
        %p1083 = pneg %p173
      $region62: #{mixnet_encode.18} parent=51 // pred_check_branch
        %1085 = sbr.rel (%p1083) target = $region64
      $region63: #{mixnet_encode.18} parent=51 // pred_region
        %p1086 = scmp.lt.s32.totalorder %s24, 1
        %s1087 = scalar_select %p1086, %s24, 1
        %p1088 = scmp.lt.s32.totalorder %s25, 0
        %s1089 = scalar_select %p1088, %s25, 0
        %s1090 = smul.addr %s1089, 2
        %s1091 = smul.addr %s1087, 2
        %s1092 = sadd.s32 %s1090, %s1091
        %s1093 = smul.addr %s1092, 8
        %s1094 = scalar_lea.vmem %s4, %s1093
      $region64: #{mixnet_encode.18} parent=51 // pred_fallthru
        _
    $region52: #{mixnet_encode.18} parent=5 // pred_fallthru
      _
  $region6: #{mixnet_encode.18} parent=0 // loop_footer
    %s15 = sadd.s32 1, %s11
  $region7: #{mixnet_encode.18} parent=0 // loop_footer_branch
    %10 = sbr.rel target = $region3
  $region8: #{mixnet_encode.18} parent=0 // loop_exit
    _

// kernel: mixnet_encode.19
$region0: #{mixnet_encode.19}
  #allocation0 [shape = 'u32[]', space=smem, size = 0x4, offset = 0x4, fixed_abs, tag = 'smem constant byte address 0x4 - core index']
  #allocation1 [shape = 'u32[144,128]{1,0:T(1,128)}', space=vmem, size = 0x12000, scoped, tag = 'internal scratch']
  %s0 = inlined_call_operand.vmem [shape: bf16[2,16,256], index: 0, kind: input, shape index: {}, may-alias: {0,3}]
  %s1 = inlined_call_operand.vmem [shape: f32[2,8,256], index: 1, kind: input, shape index: {}]
  %s2 = inlined_call_operand.vmem [shape: f32[2,8,256], index: 2, kind: input, shape index: {}]
  %s3 = inlined_call_operand.vmem [shape: bf16[2,16,256], index: 3, kind: output, shape index: {}, may-alias: {0,3}]
  %s4 = sld [smem:[#allocation0]]
  $region45: #{mixnet_encode.19} parent=0
    _
  %s6 = ssub.s32 1, %s4
  %s7 = scalar_select 0, %s6, %s4
  loop: start=0, step=1, limit=4
  $region2: #{mixnet_encode.19} parent=0 // loop_pre_header
    _
  $region3: #{mixnet_encode.19} parent=0 // loop_header
    %s9 = sphi 0, %s13
    %p10 = scmp.ge.s32.totalorder %s9, 4
    %s16 = sphi 0, %s28
    %s17 = sphi 0, %s24
    %s18 = sphi 0, %s16
    %s19 = sphi 0, %s17
    %s20 = sphi 0, %s18
    %s21 = sphi 0, %s19
    %s33 = sphi 0, %s35
    %s36 = sphi 0, %s33
    %s37 = sphi 0, %s36
    %s53 = sphi 0, %s37
    %s59 = sphi 0, %s61
    %s62 = sphi 0, %s59
    %s63 = sphi 0, %s62
    %s79 = sphi 0, %s63
    %s85 = sphi 0, %s87
    %s88 = sphi 0, %s85
    %s89 = sphi 0, %s88
    %s105 = sphi 0, %s89
    %s113 = sphi 0, %s115
    %s116 = sphi 0, %s113
    %s117 = sphi 0, %s116
    %s133 = sphi 0, %s117
  $region4: #{mixnet_encode.19} parent=0 // loop_header_branch
    %12 = sbr.rel (%p10) target = $region8
  $region5: #{mixnet_encode.19} parent=0 // loop_body
    %s14 = ssub.s32 %s9, 1
    %s15 = ssub.s32 %s9, 2
    %s22 = sadd.s32 1, %s17
    %p23 = scmp.ge.s32.totalorder %s22, 1
    %s24 = scalar_select %p23, 0, %s22
    %s25 = sadd.s32 1, %s16
    %s26 = scalar_select %p23, %s25, %s16
    %p27 = scmp.ge.s32.totalorder %s26, 2
    %s28 = scalar_select %p27, 0, %s26
    %s29 = ssub.s32 %s16, %s28
    %s30 = ssub.s32 %s17, %s24
    %s31 = sor.u32 %s29, %s30
    %p32 = scmp.eq.s32.totalorder %s31, 0
    %s34 = sadd.s32 %s33, 1
    %s35 = scalar_select %p32, %s33, %s34
    %p38 = pneg %p32
    %p39 = scmp.eq.s32.totalorder %s9, 1
    %p40 = por %p38, %p39
    %p41 = scmp.ne.s32.totalorder %s33, %s36
    %p42 = scmp.eq.s32.totalorder %s9, 0
    %p43 = por %p41, %p42
    %p44 = scmp.ne.s32.totalorder %s33, %s36
    %p45 = scmp.eq.s32.totalorder %s14, 1
    %p46 = por %p44, %p45
    %p47 = scmp.ne.s32.totalorder %s36, %s37
    %p48 = scmp.eq.s32.totalorder %s14, 0
    %p49 = por %p47, %p48
    %p50 = scmp.ne.s32.totalorder %s36, %s37
    %p51 = scmp.eq.s32.totalorder %s15, 1
    %p52 = por %p50, %p51
    %p54 = scmp.ne.s32.totalorder %s37, %s53
    %p55 = scmp.eq.s32.totalorder %s15, 0
    %p56 = por %p54, %p55
    %s57 = ssub.s32 %s16, %s28
    %p58 = scmp.eq.s32.totalorder %s57, 0
    %s60 = sadd.s32 %s59, 1
    %s61 = scalar_select %p58, %s59, %s60
    %p64 = pneg %p58
    %p65 = scmp.eq.s32.totalorder %s9, 1
    %p66 = por %p64, %p65
    %p67 = scmp.ne.s32.totalorder %s59, %s62
    %p68 = scmp.eq.s32.totalorder %s9, 0
    %p69 = por %p67, %p68
    %p70 = scmp.ne.s32.totalorder %s59, %s62
    %p71 = scmp.eq.s32.totalorder %s14, 1
    %p72 = por %p70, %p71
    %p73 = scmp.ne.s32.totalorder %s62, %s63
    %p74 = scmp.eq.s32.totalorder %s14, 0
    %p75 = por %p73, %p74
    %p76 = scmp.ne.s32.totalorder %s62, %s63
    %p77 = scmp.eq.s32.totalorder %s15, 1
    %p78 = por %p76, %p77
    %p80 = scmp.ne.s32.totalorder %s63, %s79
    %p81 = scmp.eq.s32.totalorder %s15, 0
    %p82 = por %p80, %p81
    %s83 = ssub.s32 %s16, %s28
    %p84 = scmp.eq.s32.totalorder %s83, 0
    %s86 = sadd.s32 %s85, 1
    %s87 = scalar_select %p84, %s85, %s86
    %p90 = pneg %p84
    %p91 = scmp.eq.s32.totalorder %s9, 1
    %p92 = por %p90, %p91
    %p93 = scmp.ne.s32.totalorder %s85, %s88
    %p94 = scmp.eq.s32.totalorder %s9, 0
    %p95 = por %p93, %p94
    %p96 = scmp.ne.s32.totalorder %s85, %s88
    %p97 = scmp.eq.s32.totalorder %s14, 1
    %p98 = por %p96, %p97
    %p99 = scmp.ne.s32.totalorder %s88, %s89
    %p100 = scmp.eq.s32.totalorder %s14, 0
    %p101 = por %p99, %p100
    %p102 = scmp.ne.s32.totalorder %s88, %s89
    %p103 = scmp.eq.s32.totalorder %s15, 1
    %p104 = por %p102, %p103
    %p106 = scmp.ne.s32.totalorder %s89, %s105
    %p107 = scmp.eq.s32.totalorder %s15, 0
    %p108 = por %p106, %p107
    %s109 = ssub.s32 %s16, %s28
    %s110 = ssub.s32 %s17, %s24
    %s111 = sor.u32 %s109, %s110
    %p112 = scmp.eq.s32.totalorder %s111, 0
    %s114 = sadd.s32 %s113, 1
    %s115 = scalar_select %p112, %s113, %s114
    %p118 = pneg %p112
    %p119 = scmp.eq.s32.totalorder %s9, 1
    %p120 = por %p118, %p119
    %p121 = scmp.ne.s32.totalorder %s113, %s116
    %p122 = scmp.eq.s32.totalorder %s9, 0
    %p123 = por %p121, %p122
    %p124 = scmp.ne.s32.totalorder %s113, %s116
    %p125 = scmp.eq.s32.totalorder %s14, 1
    %p126 = por %p124, %p125
    %p127 = scmp.ne.s32.totalorder %s116, %s117
    %p128 = scmp.eq.s32.totalorder %s14, 0
    %p129 = por %p127, %p128
    %p130 = scmp.ne.s32.totalorder %s116, %s117
    %p131 = scmp.eq.s32.totalorder %s15, 1
    %p132 = por %p130, %p131
    %p134 = scmp.ne.s32.totalorder %s117, %s133
    %p135 = scmp.eq.s32.totalorder %s15, 0
    %p136 = por %p134, %p135
    %p137 = scmp.le.s32.totalorder 1, %s9
    %p138 = scmp.lt.s32.totalorder %s9, 3
    %p139 = pnand %p137, %p138
    %p140 = pneg %p139
    // Predicated region
    $region9: #{mixnet_encode.19} parent=5 // pred_check
      _
    $region10: #{mixnet_encode.19} parent=5 // pred_check_branch
      %142 = sbr.rel (%p139) target = $region12
    $region11: #{mixnet_encode.19} parent=5 // pred_region
      %s143 = ssub.s32 %s9, 1
    $region12: #{mixnet_encode.19} parent=5 // pred_fallthru
      _
    %p144 = scmp.lt.s32.totalorder %s9, 2
    // Predicated region
    $region13: #{mixnet_encode.19} parent=5 // pred_check
      %p145 = pneg %p144
    $region14: #{mixnet_encode.19} parent=5 // pred_check_branch
      %147 = sbr.rel (%p145) target = $region16
    $region15: #{mixnet_encode.19} parent=5 // pred_region
      // Predicated region
      $region17: #{mixnet_encode.19} parent=15 // pred_check
        %p148 = pneg %p43
      $region18: #{mixnet_encode.19} parent=15 // pred_check_branch
        %150 = sbr.rel (%p148) target = $region20
      $region19: #{mixnet_encode.19} parent=15 // pred_region
        %s151 = smul.u32 2, %s17
        %p152 = scmp.lt.s32.totalorder %s16, 1
        %s153 = scalar_select %p152, %s16, 1
        %p154 = scmp.lt.s32.totalorder %s151, 1
        %s155 = scalar_select %p154, %s151, 1
        %s156 = smul.addr %s155, 2
        %s157 = smul.addr %s153, 4
        %s158 = sadd.s32 %s156, %s157
        %s159 = smul.addr %s158, 4
        %s160 = scalar_lea.vmem %s0, %s159
        %s161 = smul.u32 2, %s17
      $region20: #{mixnet_encode.19} parent=15 // pred_fallthru
        _
      // Predicated region
      $region21: #{mixnet_encode.19} parent=15 // pred_check
        %p162 = pneg %p69
      $region22: #{mixnet_encode.19} parent=15 // pred_check_branch
        %164 = sbr.rel (%p162) target = $region24
      $region23: #{mixnet_encode.19} parent=15 // pred_region
        %p165 = scmp.lt.s32.totalorder %s16, 1
        %s166 = scalar_select %p165, %s16, 1
        %s167 = smul.addr %s166, 2
        %s168 = smul.addr %s167, 8
        %s169 = scalar_lea.vmem %s1, %s168
      $region24: #{mixnet_encode.19} parent=15 // pred_fallthru
        _
      // Predicated region
      $region25: #{mixnet_encode.19} parent=15 // pred_check
        %p170 = pneg %p95
      $region26: #{mixnet_encode.19} parent=15 // pred_check_branch
        %172 = sbr.rel (%p170) target = $region28
      $region27: #{mixnet_encode.19} parent=15 // pred_region
        %p173 = scmp.lt.s32.totalorder %s16, 1
        %s174 = scalar_select %p173, %s16, 1
        %s175 = smul.addr %s174, 2
        %s176 = smul.addr %s175, 8
        %s177 = scalar_lea.vmem %s2, %s176
      $region28: #{mixnet_encode.19} parent=15 // pred_fallthru
        _
    $region16: #{mixnet_encode.19} parent=5 // pred_fallthru
      _
    %p178 = scmp.le.s32.totalorder 1, %s9
    %p179 = scmp.lt.s32.totalorder %s9, 3
    %p180 = pnand %p178, %p179
    %p181 = pneg %p180
    // Predicated region
    $region29: #{mixnet_encode.19} parent=5 // pred_check
      _
    $region30: #{mixnet_encode.19} parent=5 // pred_check_branch
      %183 = sbr.rel (%p180) target = $region32
    $region31: #{mixnet_encode.19} parent=5 // pred_region
      %s184 = ssub.s32 %s9, 1
      %s185 = smul.u32 2, %s19
      %p186 = scmp.lt.s32.totalorder %s18, 1
      %s187 = scalar_select %p186, %s18, 1
      %p188 = scmp.lt.s32.totalorder %s185, 1
      %s189 = scalar_select %p188, %s185, 1
      %s190 = smul.addr %s189, 2
      %s191 = smul.addr %s187, 4
      %s192 = sadd.s32 %s190, %s191
      %s193 = smul.addr %s192, 4
      %s194 = scalar_lea.vmem %s0, %s193
      %p195 = pneg %p49
      %p196 = pneg %p46
      %p197 = scmp.lt.s32.totalorder %s18, 1
      %s198 = scalar_select %p197, %s18, 1
      %s199 = smul.addr %s198, 2
      %s200 = smul.addr %s199, 8
      %s201 = scalar_lea.vmem %s1, %s200
      %p202 = pneg %p75
      %p203 = pneg %p72
      %p204 = scmp.lt.s32.totalorder %s18, 1
      %s205 = scalar_select %p204, %s18, 1
      %s206 = smul.addr %s205, 2
      %s207 = smul.addr %s206, 8
      %s208 = scalar_lea.vmem %s2, %s207
      %p209 = pneg %p101
      %p210 = pneg %p98
      %p211 = pneg %p129
      %p212 = pneg %p126
      %s213 = smul.u32 2, %s19
      %p214 = scmp.lt.s32.totalorder %s18, 1
      %s215 = scalar_select %p214, %s18, 1
      %p216 = scmp.lt.s32.totalorder %s213, 1
      %s217 = scalar_select %p216, %s213, 1
      %s218 = smul.addr %s217, 2
      %s219 = smul.addr %s215, 4
      %s220 = sadd.s32 %s218, %s219
      %s221 = smul.addr %s220, 4
      %s222 = scalar_lea.vmem %s3, %s221
      %s223 = smul.u32 2, %s19
      %p224 = scmp.lt.s32.totalorder %s18, 1
      %s225 = scalar_select %p224, %s18, 1
      %p226 = scmp.lt.s32.totalorder %s223, 1
      %s227 = scalar_select %p226, %s223, 1
      %s228 = smul.addr %s227, 2
      %s229 = smul.addr %s225, 4
      %s230 = sadd.s32 %s228, %s229
      %s231 = smul.addr %s230, 4
      %s232 = scalar_lea.vmem %s0, %s231
      %s233 = smul.u32 2, %s19
      %p234 = scmp.lt.s32.totalorder %s18, 1
      %s235 = scalar_select %p234, %s18, 1
      %s236 = smul.addr %s235, 2
      %s237 = smul.addr %s236, 8
      %s238 = scalar_lea.vmem %s1, %s237
      %p239 = scmp.lt.s32.totalorder %s18, 1
      %s240 = scalar_select %p239, %s18, 1
      %s241 = smul.addr %s240, 2
      %s242 = smul.addr %s241, 8
      %s243 = scalar_lea.vmem %s2, %s242
      %s244 = smul.u32 2, %s19
      %p245 = scmp.lt.s32.totalorder %s18, 1
      %s246 = scalar_select %p245, %s18, 1
      %p247 = scmp.lt.s32.totalorder %s244, 1
      %s248 = scalar_select %p247, %s244, 1
      %s249 = smul.addr %s248, 2
      %s250 = smul.addr %s246, 4
      %s251 = sadd.s32 %s249, %s250
      %s252 = smul.addr %s251, 4
      %s253 = scalar_lea.vmem %s3, %s252
      %s254 = smul.u32 2, %s19
      %v255 = vld [vmem:[%s238] sm:$0xff]
      %v256 = vld [vmem:[%s238 + $0x8] sm:$0xff]
      %v257 = vld [vmem:[%s243] sm:$0xff]
      %v258 = vld [vmem:[%s243 + $0x8] sm:$0xff]
      %v259 = vld [vmem:[%s232] sm:$0xff]
      %v260 = vld [vmem:[%s232 + $0x8] sm:$0xff]
      %v261 = vunpack.c.l.bf16 %v259
      %v262 = vunpack.c.h.bf16 %v259
      %v263 = vunpack.c.l.bf16 %v260
      %v264 = vunpack.c.h.bf16 %v260
      %v265 = vlaneseq
      %v266 = vshrl.u32 %v265, 7
      %v267 = vsub.s32 0, %v266
      %v268 = vrot.slane %v255, %v267
      %v269 = vlaneseq
      %v270 = vshrl.u32 %v269, 7
      %v271 = vsub.s32 0, %v270
      %v272 = vrot.slane %v256, %v271
      %v273 = vmul.f32 %v261, %v268
      %v274 = vmul.f32 %v262, %v272
      %v275 = vmul.f32 %v263, %v268
      %v276 = vmul.f32 %v264, %v272
      %v277 = vlaneseq
      %v278 = vshrl.u32 %v277, 7
      %v279 = vsub.s32 0, %v278
      %v280 = vrot.slane %v257, %v279
      %v281 = vlaneseq
      %v282 = vshrl.u32 %v281, 7
      %v283 = vsub.s32 0, %v282
      %v284 = vrot.slane %v258, %v283
      %v285 = vadd.f32 %v273, %v280
      %v286 = vadd.f32 %v274, %v284
      %v287 = vadd.f32 %v275, %v280
      %v288 = vadd.f32 %v276, %v284
      %v289 = vpack.c.bf16 %v287, %v285
      %v290 = vpack.c.bf16 %v288, %v286
      %v293 = vunpack.c.l.b16 %v289
      %v294 = vunpack.c.l.b16 %v290
      %v295 = vunpack.c.h.b16 %v289
      %v296 = vunpack.c.h.b16 %v290
      %v297 = vpack.c.b16 %v294, %v293
      %v298 = vpack.c.b16 %v296, %v295
      %301 = vst [vmem:[%s253] sm:$0xff] %v297
      %302 = vst [vmem:[%s253 + $0x8] sm:$0xff] %v298
      %s303 = smul.u32 2, %s19
      %p304 = scmp.lt.s32.totalorder %s18, 1
      %s305 = scalar_select %p304, %s18, 1
      %p306 = scmp.lt.s32.totalorder %s303, 1
      %s307 = scalar_select %p306, %s303, 1
      %s308 = smul.addr %s307, 2
      %s309 = smul.addr %s305, 4
      %s310 = sadd.s32 %s308, %s309
      %s311 = smul.addr %s310, 4
      %s312 = scalar_lea.vmem %s3, %s311
      // Predicated region
      $region33: #{mixnet_encode.19} parent=31 // pred_check
        %p313 = pneg %p126
      $region34: #{mixnet_encode.19} parent=31 // pred_check_branch
        %315 = sbr.rel (%p313) target = $region36
      $region35: #{mixnet_encode.19} parent=31 // pred_region
        %s316 = smul.u32 2, %s19
      $region36: #{mixnet_encode.19} parent=31 // pred_fallthru
        _
    $region32: #{mixnet_encode.19} parent=5 // pred_fallthru
      _
    %p317 = scmp.le.s32.totalorder 2, %s9
    // Predicated region
    $region37: #{mixnet_encode.19} parent=5 // pred_check
      %p318 = pneg %p317
    $region38: #{mixnet_encode.19} parent=5 // pred_check_branch
      %320 = sbr.rel (%p318) target = $region40
    $region39: #{mixnet_encode.19} parent=5 // pred_region
      %s321 = ssub.s32 %s9, 2
      // Predicated region
      $region41: #{mixnet_encode.19} parent=39 // pred_check
        %p322 = pneg %p132
      $region42: #{mixnet_encode.19} parent=39 // pred_check_branch
        %324 = sbr.rel (%p322) target = $region44
      $region43: #{mixnet_encode.19} parent=39 // pred_region
        %s325 = smul.u32 2, %s21
        %p326 = scmp.lt.s32.totalorder %s20, 1
        %s327 = scalar_select %p326, %s20, 1
        %p328 = scmp.lt.s32.totalorder %s325, 1
        %s329 = scalar_select %p328, %s325, 1
        %s330 = smul.addr %s329, 2
        %s331 = smul.addr %s327, 4
        %s332 = sadd.s32 %s330, %s331
        %s333 = smul.addr %s332, 4
        %s334 = scalar_lea.vmem %s3, %s333
      $region44: #{mixnet_encode.19} parent=39 // pred_fallthru
        _
    $region40: #{mixnet_encode.19} parent=5 // pred_fallthru
      _
  $region6: #{mixnet_encode.19} parent=0 // loop_footer
    %s13 = sadd.s32 1, %s9
  $region7: #{mixnet_encode.19} parent=0 // loop_footer_branch
    %8 = sbr.rel target = $region3
  $region8: #{mixnet_encode.19} parent=0 // loop_exit
    _

</llo_original>
